<compile_context>
chip_gen: v5e
topology: v5e:2x2
jax: 0.10.0
libtpu: 0.0.40
codegen_flags: <defaults>
</compile_context>

<pallas_src>
import jax
import jax.numpy as jnp
from jax import lax
from jax.experimental import pallas as pl
from jax.experimental.pallas import tpu as pltpu

EPS = 1e-5

# ConvTranspose2d(k=4, s=2, p=1) parity decomposition: output row 2i+a pulls
# input rows i+shift for (shift+1, kh) in _PT[a]; same table for columns.
_PT = {0: ((1, 1), (0, 3)), 1: ((2, 0), (1, 2))}


# --------------------------------------------------------------------------
# Kernel 1: 3x3 conv tile -> pre-BN output + per-tile BN partial stats
# --------------------------------------------------------------------------
def _conv_acc_kernel(x_ref, w_ref, z_ref, st_ref):
    # x_ref : (3, 1, TH, W+2, Ci)  bf16  row-shifted, spatially padded input
    # w_ref : (9*Ci, Cm)           bf16  folded 3x3 weights
    # z_ref : (1, TH, W, Cm)       f32   pre-BN conv output tile
    # st_ref: (1, 1, 2, Cm)        f32   per-tile [sum, sum-of-squares]
    TH, W, Cm = z_ref.shape[1], z_ref.shape[2], z_ref.shape[3]
    taps = [x_ref[r, 0, :, c:c + W, :].reshape(TH * W, -1)
            for r in range(3) for c in range(3)]
    patch = jnp.concatenate(taps, axis=-1)                      # (TH*W, 9*Ci)
    acc = jnp.dot(patch, w_ref[...], preferred_element_type=jnp.float32)
    z_ref[...] = acc.reshape(1, TH, W, Cm)
    s = jnp.sum(acc, axis=0, keepdims=True)
    ss = jnp.sum(acc * acc, axis=0, keepdims=True)
    st_ref[...] = jnp.concatenate([s, ss], axis=0).reshape(1, 1, 2, Cm)


# --------------------------------------------------------------------------
# Kernel 2: per-channel scale/shift + ReLU (BatchNorm normalize pass)
# --------------------------------------------------------------------------
def _scale_shift_relu_kernel(z_ref, s_ref, t_ref, o_ref):
    y = z_ref[...] * s_ref[...] + t_ref[...]
    o_ref[...] = jnp.maximum(y, 0.0).astype(o_ref.dtype)


# --------------------------------------------------------------------------
# Kernel 3: ConvTranspose2d(4,2,1) tile -> pre-BN output (parity-merged lanes)
#           + per-tile BN partial stats
# --------------------------------------------------------------------------
def _deconv_acc_kernel(h_ref, w_ref, z_ref, st_ref):
    # h_ref : (3, 1, TH, W+2, Cm)  bf16  row-shifted, spatially padded h1
    # w_ref : (2, 2, 4*Cm, Co)     bf16  folded deconv weights per (a, b) parity
    # z_ref : (1, TH, 2, W, 2*Co)  f32   pre-BN output; lanes = b*Co + co
    # st_ref: (1, 1, 2, Co)        f32   per-tile [sum, sum-of-squares]
    TH, W = z_ref.shape[1], z_ref.shape[3]
    Co = st_ref.shape[-1]
    s_acc = jnp.zeros((1, Co), jnp.float32)
    ss_acc = jnp.zeros((1, Co), jnp.float32)
    for a in (0, 1):
        cols = []
        for b in (0, 1):
            taps = [h_ref[sr, 0, :, sc:sc + W, :].reshape(TH * W, -1)
                    for (sr, _kh) in _PT[a] for (sc, _kw) in _PT[b]]
            patch = jnp.concatenate(taps, axis=-1)              # (TH*W, 4*Cm)
            acc = jnp.dot(patch, w_ref[a, b],
                          preferred_element_type=jnp.float32)   # (TH*W, Co)
            s_acc = s_acc + jnp.sum(acc, axis=0, keepdims=True)
            ss_acc = ss_acc + jnp.sum(acc * acc, axis=0, keepdims=True)
            cols.append(acc)
        row_ab = jnp.concatenate(cols, axis=-1)                 # (TH*W, 2*Co)
        z_ref[:, :, a:a + 1, :, :] = row_ab.reshape(1, TH, 1, W, 2 * Co)
    st_ref[...] = jnp.concatenate([s_acc, ss_acc], axis=0).reshape(1, 1, 2, Co)


# --------------------------------------------------------------------------
# JAX glue: layout, weight folding, pallas_call wiring
# --------------------------------------------------------------------------
def _round_up(x, m):
    return ((x + m - 1) // m) * m


def _pad_last(x, target):
    pad = target - x.shape[-1]
    if pad == 0:
        return x
    return jnp.pad(x, [(0, 0)] * (x.ndim - 1) + [(0, pad)])


def _pick_tile(total, cap, mult=1):
    cap = max(1, min(total, cap))
    for d in range(cap, 0, -1):
        if total % d == 0 and (d % mult == 0 or d == total):
            return d
    return total


def _row_shift_stack(x_nhwc):
    """Zero-pad H,W by 1 and stack the 3 row shifts: (3, N, H, W+2, C)."""
    N, H, W, C = x_nhwc.shape
    xp = jnp.pad(x_nhwc, ((0, 0), (1, 1), (1, 1), (0, 0)))
    return jnp.stack([xp[:, r:r + H] for r in range(3)], axis=0)


def _conv3x3_pass(x3, w1f, TH):
    _, N, H, Wp2, Ci = x3.shape
    W = Wp2 - 2
    Cm = w1f.shape[-1]
    nT = H // TH
    return pl.pallas_call(
        _conv_acc_kernel,
        grid=(N, nT),
        in_specs=[
            pl.BlockSpec((3, 1, TH, Wp2, Ci), lambda n, t: (0, n, t, 0, 0)),
            pl.BlockSpec((9 * Ci, Cm), lambda n, t: (0, 0)),
        ],
        out_specs=(
            pl.BlockSpec((1, TH, W, Cm), lambda n, t: (n, t, 0, 0)),
            pl.BlockSpec((1, 1, 2, Cm), lambda n, t: (n, t, 0, 0)),
        ),
        out_shape=(
            jax.ShapeDtypeStruct((N, H, W, Cm), jnp.float32),
            jax.ShapeDtypeStruct((N, nT, 2, Cm), jnp.float32),
        ),
        compiler_params=pltpu.CompilerParams(
            dimension_semantics=("parallel", "parallel")),
    )(x3, w1f)


def _deconv_pass(h3, wdec, TH):
    _, N, H, Wp2, Cm = h3.shape
    W = Wp2 - 2
    Co = wdec.shape[-1]
    nT = H // TH
    return pl.pallas_call(
        _deconv_acc_kernel,
        grid=(N, nT),
        in_specs=[
            pl.BlockSpec((3, 1, TH, Wp2, Cm), lambda n, t: (0, n, t, 0, 0)),
            pl.BlockSpec(wdec.shape, lambda n, t: (0, 0, 0, 0)),
        ],
        out_specs=(
            pl.BlockSpec((1, TH, 2, W, 2 * Co), lambda n, t: (n, t, 0, 0, 0)),
            pl.BlockSpec((1, 1, 2, Co), lambda n, t: (n, t, 0, 0)),
        ),
        out_shape=(
            jax.ShapeDtypeStruct((N, H, 2, W, 2 * Co), jnp.float32),
            jax.ShapeDtypeStruct((N, nT, 2, Co), jnp.float32),
        ),
        compiler_params=pltpu.CompilerParams(
            dimension_semantics=("parallel", "parallel")),
    )(h3, wdec)


def _bn_relu_pass(z2d, scale, shift, out_dtype, TP):
    P, C = z2d.shape
    return pl.pallas_call(
        _scale_shift_relu_kernel,
        grid=(P // TP,),
        in_specs=[
            pl.BlockSpec((TP, C), lambda i: (i, 0)),
            pl.BlockSpec((1, C), lambda i: (0, 0)),
            pl.BlockSpec((1, C), lambda i: (0, 0)),
        ],
        out_specs=pl.BlockSpec((TP, C), lambda i: (i, 0)),
        out_shape=jax.ShapeDtypeStruct((P, C), out_dtype),
        compiler_params=pltpu.CompilerParams(dimension_semantics=("parallel",)),
    )(z2d, scale, shift)


def decoder_block_forward(x_nchw, params, row_tile=8, flat_tile=256):
    """DecoderBlock(is_deconv=True): (N, Cin, H, W) -> (N, Cout, 2H, 2W)."""
    N, Cin, H, W = x_nchw.shape
    Cmid = params["w1"].shape[-1]
    Cout = params["wt"].shape[-1]
    Ci, Cm, Co = _round_up(Cin, 128), _round_up(Cmid, 128), _round_up(Cout, 128)
    TH = _pick_tile(H, row_tile)                     # row-tile (divides H)

    # ---- stage 1: conv3x3 (bf16 MXU operands, zero-padded channels) ----
    x = jnp.transpose(x_nchw, (0, 2, 3, 1))                       # NCHW -> NHWC
    x = _pad_last(x, Ci).astype(jnp.bfloat16)
    x3 = _row_shift_stack(x)                                      # (3,N,H,W+2,Ci)

    w1p = jnp.pad(params["w1"], ((0, 0), (0, 0), (0, Ci - Cin), (0, Cm - Cmid)))
    w1f = w1p.reshape(9 * Ci, Cm).astype(jnp.bfloat16)            # folded taps
    # NOTE: conv bias b1 is intentionally not added (cancels under BatchNorm).

    z1, st1 = _conv3x3_pass(x3, w1f, TH)

    # BN1 affine from the per-tile partials (tiny per-channel math in glue).
    cnt1 = N * H * W
    tot1 = jnp.sum(st1, axis=(0, 1))                              # (2, Cm)
    mean1 = tot1[0] / cnt1
    var1 = jnp.maximum(tot1[1] / cnt1 - mean1 * mean1, 0.0)
    inv1 = lax.rsqrt(var1 + EPS)
    g1, b1 = _pad_last(params["g1"], Cm), _pad_last(params["be1"], Cm)
    s1 = (g1 * inv1).reshape(1, Cm)
    t1 = (b1 - mean1 * g1 * inv1).reshape(1, Cm)

    TP1 = _pick_tile(N * H * W, flat_tile, mult=8)
    h1 = _bn_relu_pass(z1.reshape(N * H * W, Cm), s1, t1, jnp.bfloat16, TP1)
    h1 = h1.reshape(N, H, W, Cm)

    # ---- stage 2: ConvTranspose2d(4, s=2, p=1) via parity decomposition ----
    h3 = _row_shift_stack(h1)                                     # (3,N,H,W+2,Cm)
    wtp = jnp.pad(params["wt"], ((0, 0), (0, 0), (0, Cm - Cmid), (0, Co - Cout)))
    wdec = jnp.stack([
        jnp.stack([
            jnp.concatenate([wtp[kh, kw]
                             for (_sr, kh) in _PT[a]
                             for (_sc, kw) in _PT[b]], axis=0)
            for b in (0, 1)], axis=0)
        for a in (0, 1)], axis=0).astype(jnp.bfloat16)            # (2,2,4*Cm,Co)
    # NOTE: deconv bias bt is intentionally not added (cancels under BatchNorm).

    z2, st2 = _deconv_pass(h3, wdec, TH)

    cnt2 = N * (2 * H) * (2 * W)
    tot2 = jnp.sum(st2, axis=(0, 1))                              # (2, Co)
    mean2 = tot2[0] / cnt2
    var2 = jnp.maximum(tot2[1] / cnt2 - mean2 * mean2, 0.0)
    inv2 = lax.rsqrt(var2 + EPS)
    g2, b2 = _pad_last(params["g2"], Co), _pad_last(params["be2"], Co)
    s2 = g2 * inv2
    t2 = b2 - mean2 * s2
    s2d = jnp.concatenate([s2, s2]).reshape(1, 2 * Co)            # both b-parities
    t2d = jnp.concatenate([t2, t2]).reshape(1, 2 * Co)

    P2 = N * H * 2 * W
    TP2 = _pick_tile(P2, flat_tile, mult=8)
    y = _bn_relu_pass(z2.reshape(P2, 2 * Co), s2d, t2d, jnp.float32, TP2)

    # Parity-merged layout -> (N, 2H, 2W, Cout): pure reshapes + channel slice.
    y = y.reshape(N, H, 2, W, 2, Co)[..., :Cout].reshape(N, 2 * H, 2 * W, Cout)
    return jnp.transpose(y, (0, 3, 1, 2))                         # NHWC -> NCHW


# --------------------------------------------------------------------------
# Parameters (same conventions / init semantics as the PyTorch module)
# --------------------------------------------------------------------------
def init_params(key, in_channels, middle_channels, out_channels):
    k1, k2, k3, k4 = jax.random.split(key, 4)
    n1 = 3 * 3 * middle_channels                       # Conv2d init from module
    w1 = jax.random.normal(k1, (3, 3, in_channels, middle_channels),
                           jnp.float32) * jnp.sqrt(2.0 / n1)          # HWIO
    b1 = 0.1 * jax.random.normal(k2, (middle_channels,), jnp.float32)
    # ConvTranspose2d weight stored as (kh, kw, Cmid, Cout) == W_t[:, :, kh, kw]
    wt = 0.1 * jax.random.normal(k3, (4, 4, middle_channels, out_channels),
                                 jnp.float32)
    bt = 0.1 * jax.random.normal(k4, (out_channels,), jnp.float32)
    return dict(
        w1=w1, b1=b1,
        g1=jnp.ones((middle_channels,), jnp.float32),   # BN weight.fill_(1)
        be1=jnp.zeros((middle_channels,), jnp.float32),  # BN bias.zero_()
        wt=wt, bt=bt,
        g2=jnp.ones((out_channels,), jnp.float32),
        be2=jnp.zeros((out_channels,), jnp.float32),
    )


# --------------------------------------------------------------------------
# Pure-JAX reference (for verification)
# --------------------------------------------------------------------------
def _bn_relu_ref(x, gamma, beta):
    mean = jnp.mean(x, axis=(0, 1, 2), keepdims=True)
    var = jnp.mean(jnp.square(x - mean), axis=(0, 1, 2), keepdims=True)
    return jnp.maximum((x - mean) * lax.rsqrt(var + EPS) * gamma + beta, 0.0)


def reference_forward(x_nchw, params):
    x = jnp.transpose(x_nchw, (0, 2, 3, 1))
    y = lax.conv_general_dilated(
        x, params["w1"], (1, 1), ((1, 1), (1, 1)),
        dimension_numbers=("NHWC", "HWIO", "NHWC"),
        precision=lax.Precision.HIGHEST) + params["b1"]
    y = _bn_relu_ref(y, params["g1"], params["be1"])
    # ConvTranspose2d == conv of zero-dilated input with spatially flipped kernel
    w_eq = params["wt"][::-1, ::-1]
    z = lax.conv_general_dilated(
        y, w_eq, (1, 1), ((2, 2), (2, 2)), lhs_dilation=(2, 2),
        dimension_numbers=("NHWC", "HWIO", "NHWC"),
        precision=lax.Precision.HIGHEST) + params["bt"]
    z = _bn_relu_ref(z, params["g2"], params["be2"])
    return jnp.transpose(z, (0, 3, 1, 2))


if __name__ == "__main__":
    key = jax.random.PRNGKey(0)
    kx, kp = jax.random.split(key)
    N, Cin, H, W = 2, 4, 16, 16
    Cmid, Cout = 8, 4

    x = jax.random.normal(kx, (N, Cin, H, W), jnp.float32)
    params = init_params(kp, Cin, Cmid, Cout)

    fwd = jax.jit(decoder_block_forward)
    y = jax.block_until_ready(fwd(x, params))

    y_ref = reference_forward(x, params)
    assert y.shape == (N, Cout, 2 * H, 2 * W), y.shape
    # bf16 MXU operands vs. f32 HIGHEST-precision reference -> loose tolerance.
    assert jnp.allclose(y, y_ref, atol=5e-2, rtol=5e-2), \
        float(jnp.max(jnp.abs(y - y_ref)))
    print("KERNEL_OK")
</pallas_src>

<mosaic_0001>
module attributes {stable_mosaic.version = 11 : i64} {
  func.func @_conv_acc_kernel(%arg0: i32, %arg1: i32, %arg2: memref<3x1x8x18x128xbf16, #tpu.memory_space<vmem>>, %arg3: memref<1152x128xbf16, #tpu.memory_space<vmem>>, %arg4: memref<1x8x16x128xf32, #tpu.memory_space<vmem>>, %arg5: memref<1x1x2x128xf32, #tpu.memory_space<vmem>>) attributes {dimension_semantics = [#tpu.dimension_semantics<parallel>, #tpu.dimension_semantics<parallel>], iteration_bounds = array<i64: 2, 2>, scalar_prefetch = 0 : i64, scratch_operands = 0 : i64, tpu.core_type = #tpu.core_type<tc>, window_params = [{transform_indices = @transform_0, window_bounds = array<i64: 3, 1, 8, 18, 128>}, {pipeline_mode = #tpu.pipeline_mode<synchronous>, transform_indices = @transform_1, window_bounds = array<i64: 1152, 128>}, {transform_indices = @transform_2, window_bounds = array<i64: 1, 8, 16, 128>}, {transform_indices = @transform_3, window_bounds = array<i64: 1, 1, 2, 128>}]} {
    %c0 = arith.constant 0 : index
    %c0_0 = arith.constant 0 : index
    %c0_1 = arith.constant 0 : index
    %c0_2 = arith.constant 0 : index
    %c0_3 = arith.constant 0 : index
    %0 = vector.load %arg2[%c0, %c0_0, %c0_1, %c0_2, %c0_3] : memref<3x1x8x18x128xbf16, #tpu.memory_space<vmem>>, vector<1x1x8x16x128xbf16>
    %1 = vector.shape_cast %0 : vector<1x1x8x16x128xbf16> to vector<8x16x128xbf16>
    %2 = vector.shape_cast %1 : vector<8x16x128xbf16> to vector<128x128xbf16>
    %c0_4 = arith.constant 0 : index
    %c0_5 = arith.constant 0 : index
    %c0_6 = arith.constant 0 : index
    %c1 = arith.constant 1 : index
    %c0_7 = arith.constant 0 : index
    %3 = vector.load %arg2[%c0_4, %c0_5, %c0_6, %c1, %c0_7] : memref<3x1x8x18x128xbf16, #tpu.memory_space<vmem>>, vector<1x1x8x16x128xbf16>
    %4 = vector.shape_cast %3 : vector<1x1x8x16x128xbf16> to vector<8x16x128xbf16>
    %5 = vector.shape_cast %4 : vector<8x16x128xbf16> to vector<128x128xbf16>
    %c0_8 = arith.constant 0 : index
    %c0_9 = arith.constant 0 : index
    %c0_10 = arith.constant 0 : index
    %c2 = arith.constant 2 : index
    %c0_11 = arith.constant 0 : index
    %6 = vector.load %arg2[%c0_8, %c0_9, %c0_10, %c2, %c0_11] : memref<3x1x8x18x128xbf16, #tpu.memory_space<vmem>>, vector<1x1x8x16x128xbf16>
    %7 = vector.shape_cast %6 : vector<1x1x8x16x128xbf16> to vector<8x16x128xbf16>
    %8 = vector.shape_cast %7 : vector<8x16x128xbf16> to vector<128x128xbf16>
    %c1_12 = arith.constant 1 : index
    %c0_13 = arith.constant 0 : index
    %c0_14 = arith.constant 0 : index
    %c0_15 = arith.constant 0 : index
    %c0_16 = arith.constant 0 : index
    %9 = vector.load %arg2[%c1_12, %c0_13, %c0_14, %c0_15, %c0_16] : memref<3x1x8x18x128xbf16, #tpu.memory_space<vmem>>, vector<1x1x8x16x128xbf16>
    %10 = vector.shape_cast %9 : vector<1x1x8x16x128xbf16> to vector<8x16x128xbf16>
    %11 = vector.shape_cast %10 : vector<8x16x128xbf16> to vector<128x128xbf16>
    %c1_17 = arith.constant 1 : index
    %c0_18 = arith.constant 0 : index
    %c0_19 = arith.constant 0 : index
    %c1_20 = arith.constant 1 : index
    %c0_21 = arith.constant 0 : index
    %12 = vector.load %arg2[%c1_17, %c0_18, %c0_19, %c1_20, %c0_21] : memref<3x1x8x18x128xbf16, #tpu.memory_space<vmem>>, vector<1x1x8x16x128xbf16>
    %13 = vector.shape_cast %12 : vector<1x1x8x16x128xbf16> to vector<8x16x128xbf16>
    %14 = vector.shape_cast %13 : vector<8x16x128xbf16> to vector<128x128xbf16>
    %c1_22 = arith.constant 1 : index
    %c0_23 = arith.constant 0 : index
    %c0_24 = arith.constant 0 : index
    %c2_25 = arith.constant 2 : index
    %c0_26 = arith.constant 0 : index
    %15 = vector.load %arg2[%c1_22, %c0_23, %c0_24, %c2_25, %c0_26] : memref<3x1x8x18x128xbf16, #tpu.memory_space<vmem>>, vector<1x1x8x16x128xbf16>
    %16 = vector.shape_cast %15 : vector<1x1x8x16x128xbf16> to vector<8x16x128xbf16>
    %17 = vector.shape_cast %16 : vector<8x16x128xbf16> to vector<128x128xbf16>
    %c2_27 = arith.constant 2 : index
    %c0_28 = arith.constant 0 : index
    %c0_29 = arith.constant 0 : index
    %c0_30 = arith.constant 0 : index
    %c0_31 = arith.constant 0 : index
    %18 = vector.load %arg2[%c2_27, %c0_28, %c0_29, %c0_30, %c0_31] : memref<3x1x8x18x128xbf16, #tpu.memory_space<vmem>>, vector<1x1x8x16x128xbf16>
    %19 = vector.shape_cast %18 : vector<1x1x8x16x128xbf16> to vector<8x16x128xbf16>
    %20 = vector.shape_cast %19 : vector<8x16x128xbf16> to vector<128x128xbf16>
    %c2_32 = arith.constant 2 : index
    %c0_33 = arith.constant 0 : index
    %c0_34 = arith.constant 0 : index
    %c1_35 = arith.constant 1 : index
    %c0_36 = arith.constant 0 : index
    %21 = vector.load %arg2[%c2_32, %c0_33, %c0_34, %c1_35, %c0_36] : memref<3x1x8x18x128xbf16, #tpu.memory_space<vmem>>, vector<1x1x8x16x128xbf16>
    %22 = vector.shape_cast %21 : vector<1x1x8x16x128xbf16> to vector<8x16x128xbf16>
    %23 = vector.shape_cast %22 : vector<8x16x128xbf16> to vector<128x128xbf16>
    %c2_37 = arith.constant 2 : index
    %c0_38 = arith.constant 0 : index
    %c0_39 = arith.constant 0 : index
    %c2_40 = arith.constant 2 : index
    %c0_41 = arith.constant 0 : index
    %24 = vector.load %arg2[%c2_37, %c0_38, %c0_39, %c2_40, %c0_41] : memref<3x1x8x18x128xbf16, #tpu.memory_space<vmem>>, vector<1x1x8x16x128xbf16>
    %25 = vector.shape_cast %24 : vector<1x1x8x16x128xbf16> to vector<8x16x128xbf16>
    %26 = vector.shape_cast %25 : vector<8x16x128xbf16> to vector<128x128xbf16>
    %27 = tpu.concatenate %2, %5, %8, %11, %14, %17, %20, %23, %26 in 1 : vector<128x128xbf16>, vector<128x128xbf16>, vector<128x128xbf16>, vector<128x128xbf16>, vector<128x128xbf16>, vector<128x128xbf16>, vector<128x128xbf16>, vector<128x128xbf16>, vector<128x128xbf16> -> vector<128x1152xbf16>
    %c0_42 = arith.constant 0 : index
    %c0_43 = arith.constant 0 : index
    %28 = vector.load %arg3[%c0_42, %c0_43] : memref<1152x128xbf16, #tpu.memory_space<vmem>>, vector<1152x128xbf16>
    %cst = arith.constant dense<0.000000e+00> : vector<128x128xf32>
    %29 = tpu.matmul %27, %28, %cst {dimension_numbers = #tpu.dot_dimension_numbers<[1], [0], [0], [1], [0, 0, 1, 1], [], []>} : vector<128x1152xbf16>, vector<1152x128xbf16>, vector<128x128xf32> -> vector<128x128xf32>
    %30 = vector.shape_cast %29 : vector<128x128xf32> to vector<1x8x16x128xf32>
    %c0_44 = arith.constant 0 : index
    %c0_45 = arith.constant 0 : index
    %c0_46 = arith.constant 0 : index
    %c0_47 = arith.constant 0 : index
    %31 = vector.load %arg4[%c0_44, %c0_45, %c0_46, %c0_47] : memref<1x8x16x128xf32, #tpu.memory_space<vmem>>, vector<1x8x16x128xf32>
    tpu.vector_store %arg4[%c0_44, %c0_45, %c0_46, %c0_47], %30 {strides = array<i32>} : memref<1x8x16x128xf32, #tpu.memory_space<vmem>>, vector<1x8x16x128xf32>,
    %cst_48 = arith.constant dense<0.000000e+00> : vector<128xf32>
    %32 = vector.multi_reduction <add>, %29, %cst_48 [0] : vector<128x128xf32> to vector<128xf32>
    %33 = vector.shape_cast %32 : vector<128xf32> to vector<1x128xf32>
    %34 = arith.mulf %29, %29 : vector<128x128xf32>
    %cst_49 = arith.constant dense<0.000000e+00> : vector<128xf32>
    %35 = vector.multi_reduction <add>, %34, %cst_49 [0] : vector<128x128xf32> to vector<128xf32>
    %36 = vector.shape_cast %35 : vector<128xf32> to vector<1x128xf32>
    %37 = tpu.concatenate %33, %36 in 0 : vector<1x128xf32>, vector<1x128xf32> -> vector<2x128xf32>
    %38 = vector.shape_cast %37 : vector<2x128xf32> to vector<1x1x2x128xf32>
    %c0_50 = arith.constant 0 : index
    %c0_51 = arith.constant 0 : index
    %c0_52 = arith.constant 0 : index
    %c0_53 = arith.constant 0 : index
    %39 = vector.load %arg5[%c0_50, %c0_51, %c0_52, %c0_53] : memref<1x1x2x128xf32, #tpu.memory_space<vmem>>, vector<1x1x2x128xf32>
    tpu.vector_store %arg5[%c0_50, %c0_51, %c0_52, %c0_53], %38 {strides = array<i32>} : memref<1x1x2x128xf32, #tpu.memory_space<vmem>>, vector<1x1x2x128xf32>,
    return
  }
  func.func @transform_0(%arg0: i32, %arg1: i32) -> (i32, i32, i32, i32, i32) {
    %c0_i32 = arith.constant 0 : i32
    %c0_i32_0 = arith.constant 0 : i32
    %c0_i32_1 = arith.constant 0 : i32
    %c0_i32_2 = arith.constant 0 : i32
    return %c0_i32, %arg0, %arg1, %c0_i32_0, %c0_i32_1 : i32, i32, i32, i32, i32
  }
  func.func @transform_1(%arg0: i32, %arg1: i32) -> (i32, i32) {
    %c0_i32 = arith.constant 0 : i32
    %c0_i32_0 = arith.constant 0 : i32
    %c0_i32_1 = arith.constant 0 : i32
    return %c0_i32, %c0_i32_0 : i32, i32
  }
  func.func @transform_2(%arg0: i32, %arg1: i32) -> (i32, i32, i32, i32) {
    %c0_i32 = arith.constant 0 : i32
    %c0_i32_0 = arith.constant 0 : i32
    %c0_i32_1 = arith.constant 0 : i32
    return %arg0, %arg1, %c0_i32, %c0_i32_0 : i32, i32, i32, i32
  }
  func.func @transform_3(%arg0: i32, %arg1: i32) -> (i32, i32, i32, i32) {
    %c0_i32 = arith.constant 0 : i32
    %c0_i32_0 = arith.constant 0 : i32
    %c0_i32_1 = arith.constant 0 : i32
    return %arg0, %arg1, %c0_i32, %c0_i32_0 : i32, i32, i32, i32
  }
}

module attributes {stable_mosaic.version = 11 : i64} {
  func.func @_scale_shift_relu_kernel(%arg0: i32, %arg1: memref<256x128xf32, #tpu.memory_space<vmem>>, %arg2: memref<1x128xf32, #tpu.memory_space<vmem>>, %arg3: memref<1x128xf32, #tpu.memory_space<vmem>>, %arg4: memref<256x128xbf16, #tpu.memory_space<vmem>>) attributes {dimension_semantics = [#tpu.dimension_semantics<parallel>], iteration_bounds = array<i64: 2>, scalar_prefetch = 0 : i64, scratch_operands = 0 : i64, tpu.core_type = #tpu.core_type<tc>, window_params = [{transform_indices = @transform_0, window_bounds = array<i64: 256, 128>}, {pipeline_mode = #tpu.pipeline_mode<synchronous>, transform_indices = @transform_1, window_bounds = array<i64: 1, 128>}, {pipeline_mode = #tpu.pipeline_mode<synchronous>, transform_indices = @transform_2, window_bounds = array<i64: 1, 128>}, {transform_indices = @transform_3, window_bounds = array<i64: 256, 128>}]} {
    %c0 = arith.constant 0 : index
    %c0_0 = arith.constant 0 : index
    %0 = vector.load %arg1[%c0, %c0_0] : memref<256x128xf32, #tpu.memory_space<vmem>>, vector<256x128xf32>
    %c0_1 = arith.constant 0 : index
    %c0_2 = arith.constant 0 : index
    %1 = vector.load %arg2[%c0_1, %c0_2] : memref<1x128xf32, #tpu.memory_space<vmem>>, vector<1x128xf32>
    %2 = vector.broadcast %1 : vector<1x128xf32> to vector<256x128xf32>
    %3 = arith.mulf %0, %2 : vector<256x128xf32>
    %c0_3 = arith.constant 0 : index
    %c0_4 = arith.constant 0 : index
    %4 = vector.load %arg3[%c0_3, %c0_4] : memref<1x128xf32, #tpu.memory_space<vmem>>, vector<1x128xf32>
    %5 = vector.broadcast %4 : vector<1x128xf32> to vector<256x128xf32>
    %6 = arith.addf %3, %5 : vector<256x128xf32>
    %cst = arith.constant 0.000000e+00 : f32
    %7 = vector.broadcast %cst : f32 to vector<256x128xf32>
    %8 = arith.maximumf %6, %7 : vector<256x128xf32>
    %9 = arith.truncf %8 : vector<256x128xf32> to vector<256x128xbf16>
    %c0_5 = arith.constant 0 : index
    %c0_6 = arith.constant 0 : index
    %10 = vector.load %arg4[%c0_5, %c0_6] : memref<256x128xbf16, #tpu.memory_space<vmem>>, vector<256x128xbf16>
    tpu.vector_store %arg4[%c0_5, %c0_6], %9 {strides = array<i32>} : memref<256x128xbf16, #tpu.memory_space<vmem>>, vector<256x128xbf16>,
    return
  }
  func.func @transform_0(%arg0: i32) -> (i32, i32) {
    %c0_i32 = arith.constant 0 : i32
    %c0_i32_0 = arith.constant 0 : i32
    return %arg0, %c0_i32 : i32, i32
  }
  func.func @transform_1(%arg0: i32) -> (i32, i32) {
    %c0_i32 = arith.constant 0 : i32
    %c0_i32_0 = arith.constant 0 : i32
    %c0_i32_1 = arith.constant 0 : i32
    return %c0_i32, %c0_i32_0 : i32, i32
  }
  func.func @transform_2(%arg0: i32) -> (i32, i32) {
    %c0_i32 = arith.constant 0 : i32
    %c0_i32_0 = arith.constant 0 : i32
    %c0_i32_1 = arith.constant 0 : i32
    return %c0_i32, %c0_i32_0 : i32, i32
  }
  func.func @transform_3(%arg0: i32) -> (i32, i32) {
    %c0_i32 = arith.constant 0 : i32
    %c0_i32_0 = arith.constant 0 : i32
    return %arg0, %c0_i32 : i32, i32
  }
}

module attributes {stable_mosaic.version = 11 : i64} {
  func.func @_deconv_acc_kernel(%arg0: i32, %arg1: i32, %arg2: memref<3x1x8x18x128xbf16, #tpu.memory_space<vmem>>, %arg3: memref<2x2x512x128xbf16, #tpu.memory_space<vmem>>, %arg4: memref<1x8x2x16x256xf32, #tpu.memory_space<vmem>>, %arg5: memref<1x1x2x128xf32, #tpu.memory_space<vmem>>) attributes {dimension_semantics = [#tpu.dimension_semantics<parallel>, #tpu.dimension_semantics<parallel>], iteration_bounds = array<i64: 2, 2>, scalar_prefetch = 0 : i64, scratch_operands = 0 : i64, tpu.core_type = #tpu.core_type<tc>, window_params = [{transform_indices = @transform_0, window_bounds = array<i64: 3, 1, 8, 18, 128>}, {pipeline_mode = #tpu.pipeline_mode<synchronous>, transform_indices = @transform_1, window_bounds = array<i64: 2, 2, 512, 128>}, {transform_indices = @transform_2, window_bounds = array<i64: 1, 8, 2, 16, 256>}, {transform_indices = @transform_3, window_bounds = array<i64: 1, 1, 2, 128>}]} {
    %cst = arith.constant 0.000000e+00 : f32
    %0 = vector.broadcast %cst : f32 to vector<1x128xf32>
    %cst_0 = arith.constant 0.000000e+00 : f32
    %1 = vector.broadcast %cst_0 : f32 to vector<1x128xf32>
    %c1 = arith.constant 1 : index
    %c0 = arith.constant 0 : index
    %c0_1 = arith.constant 0 : index
    %c1_2 = arith.constant 1 : index
    %c0_3 = arith.constant 0 : index
    %2 = vector.load %arg2[%c1, %c0, %c0_1, %c1_2, %c0_3] : memref<3x1x8x18x128xbf16, #tpu.memory_space<vmem>>, vector<1x1x8x16x128xbf16>
    %3 = vector.shape_cast %2 : vector<1x1x8x16x128xbf16> to vector<8x16x128xbf16>
    %4 = vector.shape_cast %3 : vector<8x16x128xbf16> to vector<128x128xbf16>
    %c1_4 = arith.constant 1 : index
    %c0_5 = arith.constant 0 : index
    %c0_6 = arith.constant 0 : index
    %c0_7 = arith.constant 0 : index
    %c0_8 = arith.constant 0 : index
    %5 = vector.load %arg2[%c1_4, %c0_5, %c0_6, %c0_7, %c0_8] : memref<3x1x8x18x128xbf16, #tpu.memory_space<vmem>>, vector<1x1x8x16x128xbf16>
    %6 = vector.shape_cast %5 : vector<1x1x8x16x128xbf16> to vector<8x16x128xbf16>
    %7 = vector.shape_cast %6 : vector<8x16x128xbf16> to vector<128x128xbf16>
    %c0_9 = arith.constant 0 : index
    %c0_10 = arith.constant 0 : index
    %c0_11 = arith.constant 0 : index
    %c1_12 = arith.constant 1 : index
    %c0_13 = arith.constant 0 : index
    %8 = vector.load %arg2[%c0_9, %c0_10, %c0_11, %c1_12, %c0_13] : memref<3x1x8x18x128xbf16, #tpu.memory_space<vmem>>, vector<1x1x8x16x128xbf16>
    %9 = vector.shape_cast %8 : vector<1x1x8x16x128xbf16> to vector<8x16x128xbf16>
    %10 = vector.shape_cast %9 : vector<8x16x128xbf16> to vector<128x128xbf16>
    %c0_14 = arith.constant 0 : index
    %c0_15 = arith.constant 0 : index
    %c0_16 = arith.constant 0 : index
    %c0_17 = arith.constant 0 : index
    %c0_18 = arith.constant 0 : index
    %11 = vector.load %arg2[%c0_14, %c0_15, %c0_16, %c0_17, %c0_18] : memref<3x1x8x18x128xbf16, #tpu.memory_space<vmem>>, vector<1x1x8x16x128xbf16>
    %12 = vector.shape_cast %11 : vector<1x1x8x16x128xbf16> to vector<8x16x128xbf16>
    %13 = vector.shape_cast %12 : vector<8x16x128xbf16> to vector<128x128xbf16>
    %14 = tpu.concatenate %4, %7, %10, %13 in 1 : vector<128x128xbf16>, vector<128x128xbf16>, vector<128x128xbf16>, vector<128x128xbf16> -> vector<128x512xbf16>
    %c0_19 = arith.constant 0 : index
    %c0_20 = arith.constant 0 : index
    %c0_21 = arith.constant 0 : index
    %c0_22 = arith.constant 0 : index
    %15 = vector.load %arg3[%c0_19, %c0_20, %c0_21, %c0_22] : memref<2x2x512x128xbf16, #tpu.memory_space<vmem>>, vector<1x1x512x128xbf16>
    %16 = vector.shape_cast %15 : vector<1x1x512x128xbf16> to vector<512x128xbf16>
    %cst_23 = arith.constant dense<0.000000e+00> : vector<128x128xf32>
    %17 = tpu.matmul %14, %16, %cst_23 {dimension_numbers = #tpu.dot_dimension_numbers<[1], [0], [0], [1], [0, 0, 1, 1], [], []>} : vector<128x512xbf16>, vector<512x128xbf16>, vector<128x128xf32> -> vector<128x128xf32>
    %cst_24 = arith.constant dense<0.000000e+00> : vector<128xf32>
    %18 = vector.multi_reduction <add>, %17, %cst_24 [0] : vector<128x128xf32> to vector<128xf32>
    %19 = vector.shape_cast %18 : vector<128xf32> to vector<1x128xf32>
    %20 = arith.addf %0, %19 : vector<1x128xf32>
    %21 = arith.mulf %17, %17 : vector<128x128xf32>
    %cst_25 = arith.constant dense<0.000000e+00> : vector<128xf32>
    %22 = vector.multi_reduction <add>, %21, %cst_25 [0] : vector<128x128xf32> to vector<128xf32>
    %23 = vector.shape_cast %22 : vector<128xf32> to vector<1x128xf32>
    %24 = arith.addf %1, %23 : vector<1x128xf32>
    %c1_26 = arith.constant 1 : index
    %c0_27 = arith.constant 0 : index
    %c0_28 = arith.constant 0 : index
    %c2 = arith.constant 2 : index
    %c0_29 = arith.constant 0 : index
    %25 = vector.load %arg2[%c1_26, %c0_27, %c0_28, %c2, %c0_29] : memref<3x1x8x18x128xbf16, #tpu.memory_space<vmem>>, vector<1x1x8x16x128xbf16>
    %26 = vector.shape_cast %25 : vector<1x1x8x16x128xbf16> to vector<8x16x128xbf16>
    %27 = vector.shape_cast %26 : vector<8x16x128xbf16> to vector<128x128xbf16>
    %c1_30 = arith.constant 1 : index
    %c0_31 = arith.constant 0 : index
    %c0_32 = arith.constant 0 : index
    %c1_33 = arith.constant 1 : index
    %c0_34 = arith.constant 0 : index
    %28 = vector.load %arg2[%c1_30, %c0_31, %c0_32, %c1_33, %c0_34] : memref<3x1x8x18x128xbf16, #tpu.memory_space<vmem>>, vector<1x1x8x16x128xbf16>
    %29 = vector.shape_cast %28 : vector<1x1x8x16x128xbf16> to vector<8x16x128xbf16>
    %30 = vector.shape_cast %29 : vector<8x16x128xbf16> to vector<128x128xbf16>
    %c0_35 = arith.constant 0 : index
    %c0_36 = arith.constant 0 : index
    %c0_37 = arith.constant 0 : index
    %c2_38 = arith.constant 2 : index
    %c0_39 = arith.constant 0 : index
    %31 = vector.load %arg2[%c0_35, %c0_36, %c0_37, %c2_38, %c0_39] : memref<3x1x8x18x128xbf16, #tpu.memory_space<vmem>>, vector<1x1x8x16x128xbf16>
    %32 = vector.shape_cast %31 : vector<1x1x8x16x128xbf16> to vector<8x16x128xbf16>
    %33 = vector.shape_cast %32 : vector<8x16x128xbf16> to vector<128x128xbf16>
    %c0_40 = arith.constant 0 : index
    %c0_41 = arith.constant 0 : index
    %c0_42 = arith.constant 0 : index
    %c1_43 = arith.constant 1 : index
    %c0_44 = arith.constant 0 : index
    %34 = vector.load %arg2[%c0_40, %c0_41, %c0_42, %c1_43, %c0_44] : memref<3x1x8x18x128xbf16, #tpu.memory_space<vmem>>, vector<1x1x8x16x128xbf16>
    %35 = vector.shape_cast %34 : vector<1x1x8x16x128xbf16> to vector<8x16x128xbf16>
    %36 = vector.shape_cast %35 : vector<8x16x128xbf16> to vector<128x128xbf16>
    %37 = tpu.concatenate %27, %30, %33, %36 in 1 : vector<128x128xbf16>, vector<128x128xbf16>, vector<128x128xbf16>, vector<128x128xbf16> -> vector<128x512xbf16>
    %c0_45 = arith.constant 0 : index
    %c1_46 = arith.constant 1 : index
    %c0_47 = arith.constant 0 : index
    %c0_48 = arith.constant 0 : index
    %38 = vector.load %arg3[%c0_45, %c1_46, %c0_47, %c0_48] : memref<2x2x512x128xbf16, #tpu.memory_space<vmem>>, vector<1x1x512x128xbf16>
    %39 = vector.shape_cast %38 : vector<1x1x512x128xbf16> to vector<512x128xbf16>
    %cst_49 = arith.constant dense<0.000000e+00> : vector<128x128xf32>
    %40 = tpu.matmul %37, %39, %cst_49 {dimension_numbers = #tpu.dot_dimension_numbers<[1], [0], [0], [1], [0, 0, 1, 1], [], []>} : vector<128x512xbf16>, vector<512x128xbf16>, vector<128x128xf32> -> vector<128x128xf32>
    %cst_50 = arith.constant dense<0.000000e+00> : vector<128xf32>
    %41 = vector.multi_reduction <add>, %40, %cst_50 [0] : vector<128x128xf32> to vector<128xf32>
    %42 = vector.shape_cast %41 : vector<128xf32> to vector<1x128xf32>
    %43 = arith.addf %20, %42 : vector<1x128xf32>
    %44 = arith.mulf %40, %40 : vector<128x128xf32>
    %cst_51 = arith.constant dense<0.000000e+00> : vector<128xf32>
    %45 = vector.multi_reduction <add>, %44, %cst_51 [0] : vector<128x128xf32> to vector<128xf32>
    %46 = vector.shape_cast %45 : vector<128xf32> to vector<1x128xf32>
    %47 = arith.addf %24, %46 : vector<1x128xf32>
    %48 = tpu.concatenate %17, %40 in 1 : vector<128x128xf32>, vector<128x128xf32> -> vector<128x256xf32>
    %49 = vector.shape_cast %48 : vector<128x256xf32> to vector<1x8x1x16x256xf32>
    %c0_52 = arith.constant 0 : index
    %c0_53 = arith.constant 0 : index
    %c0_54 = arith.constant 0 : index
    %c0_55 = arith.constant 0 : index
    %c0_56 = arith.constant 0 : index
    %50 = vector.load %arg4[%c0_52, %c0_53, %c0_54, %c0_55, %c0_56] : memref<1x8x2x16x256xf32, #tpu.memory_space<vmem>>, vector<1x8x1x16x256xf32>
    tpu.vector_store %arg4[%c0_52, %c0_53, %c0_54, %c0_55, %c0_56], %49 {strides = array<i32>} : memref<1x8x2x16x256xf32, #tpu.memory_space<vmem>>, vector<1x8x1x16x256xf32>,
    %c2_57 = arith.constant 2 : index
    %c0_58 = arith.constant 0 : index
    %c0_59 = arith.constant 0 : index
    %c1_60 = arith.constant 1 : index
    %c0_61 = arith.constant 0 : index
    %51 = vector.load %arg2[%c2_57, %c0_58, %c0_59, %c1_60, %c0_61] : memref<3x1x8x18x128xbf16, #tpu.memory_space<vmem>>, vector<1x1x8x16x128xbf16>
    %52 = vector.shape_cast %51 : vector<1x1x8x16x128xbf16> to vector<8x16x128xbf16>
    %53 = vector.shape_cast %52 : vector<8x16x128xbf16> to vector<128x128xbf16>
    %c2_62 = arith.constant 2 : index
    %c0_63 = arith.constant 0 : index
    %c0_64 = arith.constant 0 : index
    %c0_65 = arith.constant 0 : index
    %c0_66 = arith.constant 0 : index
    %54 = vector.load %arg2[%c2_62, %c0_63, %c0_64, %c0_65, %c0_66] : memref<3x1x8x18x128xbf16, #tpu.memory_space<vmem>>, vector<1x1x8x16x128xbf16>
    %55 = vector.shape_cast %54 : vector<1x1x8x16x128xbf16> to vector<8x16x128xbf16>
    %56 = vector.shape_cast %55 : vector<8x16x128xbf16> to vector<128x128xbf16>
    %c1_67 = arith.constant 1 : index
    %c0_68 = arith.constant 0 : index
    %c0_69 = arith.constant 0 : index
    %c1_70 = arith.constant 1 : index
    %c0_71 = arith.constant 0 : index
    %57 = vector.load %arg2[%c1_67, %c0_68, %c0_69, %c1_70, %c0_71] : memref<3x1x8x18x128xbf16, #tpu.memory_space<vmem>>, vector<1x1x8x16x128xbf16>
    %58 = vector.shape_cast %57 : vector<1x1x8x16x128xbf16> to vector<8x16x128xbf16>
    %59 = vector.shape_cast %58 : vector<8x16x128xbf16> to vector<128x128xbf16>
    %c1_72 = arith.constant 1 : index
    %c0_73 = arith.constant 0 : index
    %c0_74 = arith.constant 0 : index
    %c0_75 = arith.constant 0 : index
    %c0_76 = arith.constant 0 : index
    %60 = vector.load %arg2[%c1_72, %c0_73, %c0_74, %c0_75, %c0_76] : memref<3x1x8x18x128xbf16, #tpu.memory_space<vmem>>, vector<1x1x8x16x128xbf16>
    %61 = vector.shape_cast %60 : vector<1x1x8x16x128xbf16> to vector<8x16x128xbf16>
    %62 = vector.shape_cast %61 : vector<8x16x128xbf16> to vector<128x128xbf16>
    %63 = tpu.concatenate %53, %56, %59, %62 in 1 : vector<128x128xbf16>, vector<128x128xbf16>, vector<128x128xbf16>, vector<128x128xbf16> -> vector<128x512xbf16>
    %c1_77 = arith.constant 1 : index
    %c0_78 = arith.constant 0 : index
    %c0_79 = arith.constant 0 : index
    %c0_80 = arith.constant 0 : index
    %64 = vector.load %arg3[%c1_77, %c0_78, %c0_79, %c0_80] : memref<2x2x512x128xbf16, #tpu.memory_space<vmem>>, vector<1x1x512x128xbf16>
    %65 = vector.shape_cast %64 : vector<1x1x512x128xbf16> to vector<512x128xbf16>
    %cst_81 = arith.constant dense<0.000000e+00> : vector<128x128xf32>
    %66 = tpu.matmul %63, %65, %cst_81 {dimension_numbers = #tpu.dot_dimension_numbers<[1], [0], [0], [1], [0, 0, 1, 1], [], []>} : vector<128x512xbf16>, vector<512x128xbf16>, vector<128x128xf32> -> vector<128x128xf32>
    %cst_82 = arith.constant dense<0.000000e+00> : vector<128xf32>
    %67 = vector.multi_reduction <add>, %66, %cst_82 [0] : vector<128x128xf32> to vector<128xf32>
    %68 = vector.shape_cast %67 : vector<128xf32> to vector<1x128xf32>
    %69 = arith.addf %43, %68 : vector<1x128xf32>
    %70 = arith.mulf %66, %66 : vector<128x128xf32>
    %cst_83 = arith.constant dense<0.000000e+00> : vector<128xf32>
    %71 = vector.multi_reduction <add>, %70, %cst_83 [0] : vector<128x128xf32> to vector<128xf32>
    %72 = vector.shape_cast %71 : vector<128xf32> to vector<1x128xf32>
    %73 = arith.addf %47, %72 : vector<1x128xf32>
    %c2_84 = arith.constant 2 : index
    %c0_85 = arith.constant 0 : index
    %c0_86 = arith.constant 0 : index
    %c2_87 = arith.constant 2 : index
    %c0_88 = arith.constant 0 : index
    %74 = vector.load %arg2[%c2_84, %c0_85, %c0_86, %c2_87, %c0_88] : memref<3x1x8x18x128xbf16, #tpu.memory_space<vmem>>, vector<1x1x8x16x128xbf16>
    %75 = vector.shape_cast %74 : vector<1x1x8x16x128xbf16> to vector<8x16x128xbf16>
    %76 = vector.shape_cast %75 : vector<8x16x128xbf16> to vector<128x128xbf16>
    %c2_89 = arith.constant 2 : index
    %c0_90 = arith.constant 0 : index
    %c0_91 = arith.constant 0 : index
    %c1_92 = arith.constant 1 : index
    %c0_93 = arith.constant 0 : index
    %77 = vector.load %arg2[%c2_89, %c0_90, %c0_91, %c1_92, %c0_93] : memref<3x1x8x18x128xbf16, #tpu.memory_space<vmem>>, vector<1x1x8x16x128xbf16>
    %78 = vector.shape_cast %77 : vector<1x1x8x16x128xbf16> to vector<8x16x128xbf16>
    %79 = vector.shape_cast %78 : vector<8x16x128xbf16> to vector<128x128xbf16>
    %c1_94 = arith.constant 1 : index
    %c0_95 = arith.constant 0 : index
    %c0_96 = arith.constant 0 : index
    %c2_97 = arith.constant 2 : index
    %c0_98 = arith.constant 0 : index
    %80 = vector.load %arg2[%c1_94, %c0_95, %c0_96, %c2_97, %c0_98] : memref<3x1x8x18x128xbf16, #tpu.memory_space<vmem>>, vector<1x1x8x16x128xbf16>
    %81 = vector.shape_cast %80 : vector<1x1x8x16x128xbf16> to vector<8x16x128xbf16>
    %82 = vector.shape_cast %81 : vector<8x16x128xbf16> to vector<128x128xbf16>
    %c1_99 = arith.constant 1 : index
    %c0_100 = arith.constant 0 : index
    %c0_101 = arith.constant 0 : index
    %c1_102 = arith.constant 1 : index
    %c0_103 = arith.constant 0 : index
    %83 = vector.load %arg2[%c1_99, %c0_100, %c0_101, %c1_102, %c0_103] : memref<3x1x8x18x128xbf16, #tpu.memory_space<vmem>>, vector<1x1x8x16x128xbf16>
    %84 = vector.shape_cast %83 : vector<1x1x8x16x128xbf16> to vector<8x16x128xbf16>
    %85 = vector.shape_cast %84 : vector<8x16x128xbf16> to vector<128x128xbf16>
    %86 = tpu.concatenate %76, %79, %82, %85 in 1 : vector<128x128xbf16>, vector<128x128xbf16>, vector<128x128xbf16>, vector<128x128xbf16> -> vector<128x512xbf16>
    %c1_104 = arith.constant 1 : index
    %c1_105 = arith.constant 1 : index
    %c0_106 = arith.constant 0 : index
    %c0_107 = arith.constant 0 : index
    %87 = vector.load %arg3[%c1_104, %c1_105, %c0_106, %c0_107] : memref<2x2x512x128xbf16, #tpu.memory_space<vmem>>, vector<1x1x512x128xbf16>
    %88 = vector.shape_cast %87 : vector<1x1x512x128xbf16> to vector<512x128xbf16>
    %cst_108 = arith.constant dense<0.000000e+00> : vector<128x128xf32>
    %89 = tpu.matmul %86, %88, %cst_108 {dimension_numbers = #tpu.dot_dimension_numbers<[1], [0], [0], [1], [0, 0, 1, 1], [], []>} : vector<128x512xbf16>, vector<512x128xbf16>, vector<128x128xf32> -> vector<128x128xf32>
    %cst_109 = arith.constant dense<0.000000e+00> : vector<128xf32>
    %90 = vector.multi_reduction <add>, %89, %cst_109 [0] : vector<128x128xf32> to vector<128xf32>
    %91 = vector.shape_cast %90 : vector<128xf32> to vector<1x128xf32>
    %92 = arith.addf %69, %91 : vector<1x128xf32>
    %93 = arith.mulf %89, %89 : vector<128x128xf32>
    %cst_110 = arith.constant dense<0.000000e+00> : vector<128xf32>
    %94 = vector.multi_reduction <add>, %93, %cst_110 [0] : vector<128x128xf32> to vector<128xf32>
    %95 = vector.shape_cast %94 : vector<128xf32> to vector<1x128xf32>
    %96 = arith.addf %73, %95 : vector<1x128xf32>
    %97 = tpu.concatenate %66, %89 in 1 : vector<128x128xf32>, vector<128x128xf32> -> vector<128x256xf32>
    %98 = vector.shape_cast %97 : vector<128x256xf32> to vector<1x8x1x16x256xf32>
    %c0_111 = arith.constant 0 : index
    %c0_112 = arith.constant 0 : index
    %c1_113 = arith.constant 1 : index
    %c0_114 = arith.constant 0 : index
    %c0_115 = arith.constant 0 : index
    %99 = vector.load %arg4[%c0_111, %c0_112, %c1_113, %c0_114, %c0_115] : memref<1x8x2x16x256xf32, #tpu.memory_space<vmem>>, vector<1x8x1x16x256xf32>
    tpu.vector_store %arg4[%c0_111, %c0_112, %c1_113, %c0_114, %c0_115], %98 {strides = array<i32>} : memref<1x8x2x16x256xf32, #tpu.memory_space<vmem>>, vector<1x8x1x16x256xf32>,
    %100 = tpu.concatenate %92, %96 in 0 : vector<1x128xf32>, vector<1x128xf32> -> vector<2x128xf32>
    %101 = vector.shape_cast %100 : vector<2x128xf32> to vector<1x1x2x128xf32>
    %c0_116 = arith.constant 0 : index
    %c0_117 = arith.constant 0 : index
    %c0_118 = arith.constant 0 : index
    %c0_119 = arith.constant 0 : index
    %102 = vector.load %arg5[%c0_116, %c0_117, %c0_118, %c0_119] : memref<1x1x2x128xf32, #tpu.memory_space<vmem>>, vector<1x1x2x128xf32>
    tpu.vector_store %arg5[%c0_116, %c0_117, %c0_118, %c0_119], %101 {strides = array<i32>} : memref<1x1x2x128xf32, #tpu.memory_space<vmem>>, vector<1x1x2x128xf32>,
    return
  }
  func.func @transform_0(%arg0: i32, %arg1: i32) -> (i32, i32, i32, i32, i32) {
    %c0_i32 = arith.constant 0 : i32
    %c0_i32_0 = arith.constant 0 : i32
    %c0_i32_1 = arith.constant 0 : i32
    %c0_i32_2 = arith.constant 0 : i32
    return %c0_i32, %arg0, %arg1, %c0_i32_0, %c0_i32_1 : i32, i32, i32, i32, i32
  }
  func.func @transform_1(%arg0: i32, %arg1: i32) -> (i32, i32, i32, i32) {
    %c0_i32 = arith.constant 0 : i32
    %c0_i32_0 = arith.constant 0 : i32
    %c0_i32_1 = arith.constant 0 : i32
    %c0_i32_2 = arith.constant 0 : i32
    %c0_i32_3 = arith.constant 0 : i32
    return %c0_i32, %c0_i32_0, %c0_i32_1, %c0_i32_2 : i32, i32, i32, i32
  }
  func.func @transform_2(%arg0: i32, %arg1: i32) -> (i32, i32, i32, i32, i32) {
    %c0_i32 = arith.constant 0 : i32
    %c0_i32_0 = arith.constant 0 : i32
    %c0_i32_1 = arith.constant 0 : i32
    %c0_i32_2 = arith.constant 0 : i32
    return %arg0, %arg1, %c0_i32, %c0_i32_0, %c0_i32_1 : i32, i32, i32, i32, i32
  }
  func.func @transform_3(%arg0: i32, %arg1: i32) -> (i32, i32, i32, i32) {
    %c0_i32 = arith.constant 0 : i32
    %c0_i32_0 = arith.constant 0 : i32
    %c0_i32_1 = arith.constant 0 : i32
    return %arg0, %arg1, %c0_i32, %c0_i32_0 : i32, i32, i32, i32
  }
}

module attributes {stable_mosaic.version = 11 : i64} {
  func.func @_scale_shift_relu_kernel(%arg0: i32, %arg1: memref<256x256xf32, #tpu.memory_space<vmem>>, %arg2: memref<1x256xf32, #tpu.memory_space<vmem>>, %arg3: memref<1x256xf32, #tpu.memory_space<vmem>>, %arg4: memref<256x256xf32, #tpu.memory_space<vmem>>) attributes {dimension_semantics = [#tpu.dimension_semantics<parallel>], iteration_bounds = array<i64: 4>, scalar_prefetch = 0 : i64, scratch_operands = 0 : i64, tpu.core_type = #tpu.core_type<tc>, window_params = [{transform_indices = @transform_0, window_bounds = array<i64: 256, 256>}, {pipeline_mode = #tpu.pipeline_mode<synchronous>, transform_indices = @transform_1, window_bounds = array<i64: 1, 256>}, {pipeline_mode = #tpu.pipeline_mode<synchronous>, transform_indices = @transform_2, window_bounds = array<i64: 1, 256>}, {transform_indices = @transform_3, window_bounds = array<i64: 256, 256>}]} {
    %c0 = arith.constant 0 : index
    %c0_0 = arith.constant 0 : index
    %0 = vector.load %arg1[%c0, %c0_0] : memref<256x256xf32, #tpu.memory_space<vmem>>, vector<256x256xf32>
    %c0_1 = arith.constant 0 : index
    %c0_2 = arith.constant 0 : index
    %1 = vector.load %arg2[%c0_1, %c0_2] : memref<1x256xf32, #tpu.memory_space<vmem>>, vector<1x256xf32>
    %2 = vector.broadcast %1 : vector<1x256xf32> to vector<256x256xf32>
    %3 = arith.mulf %0, %2 : vector<256x256xf32>
    %c0_3 = arith.constant 0 : index
    %c0_4 = arith.constant 0 : index
    %4 = vector.load %arg3[%c0_3, %c0_4] : memref<1x256xf32, #tpu.memory_space<vmem>>, vector<1x256xf32>
    %5 = vector.broadcast %4 : vector<1x256xf32> to vector<256x256xf32>
    %6 = arith.addf %3, %5 : vector<256x256xf32>
    %cst = arith.constant 0.000000e+00 : f32
    %7 = vector.broadcast %cst : f32 to vector<256x256xf32>
    %8 = arith.maximumf %6, %7 : vector<256x256xf32>
    %c0_5 = arith.constant 0 : index
    %c0_6 = arith.constant 0 : index
    %9 = vector.load %arg4[%c0_5, %c0_6] : memref<256x256xf32, #tpu.memory_space<vmem>>, vector<256x256xf32>
    tpu.vector_store %arg4[%c0_5, %c0_6], %8 {strides = array<i32>} : memref<256x256xf32, #tpu.memory_space<vmem>>, vector<256x256xf32>,
    return
  }
  func.func @transform_0(%arg0: i32) -> (i32, i32) {
    %c0_i32 = arith.constant 0 : i32
    %c0_i32_0 = arith.constant 0 : i32
    return %arg0, %c0_i32 : i32, i32
  }
  func.func @transform_1(%arg0: i32) -> (i32, i32) {
    %c0_i32 = arith.constant 0 : i32
    %c0_i32_0 = arith.constant 0 : i32
    %c0_i32_1 = arith.constant 0 : i32
    return %c0_i32, %c0_i32_0 : i32, i32
  }
  func.func @transform_2(%arg0: i32) -> (i32, i32) {
    %c0_i32 = arith.constant 0 : i32
    %c0_i32_0 = arith.constant 0 : i32
    %c0_i32_1 = arith.constant 0 : i32
    return %c0_i32, %c0_i32_0 : i32, i32
  }
  func.func @transform_3(%arg0: i32) -> (i32, i32) {
    %c0_i32 = arith.constant 0 : i32
    %c0_i32_0 = arith.constant 0 : i32
    return %arg0, %c0_i32 : i32, i32
  }
}

</mosaic_0001>

<llo_original>
// kernel: decoder_block_forward.5
$region0: #{decoder_block_forward.5}
  #allocation0 [shape = 'u32[]', space=smem, size = 0x4, offset = 0x4, fixed_abs, tag = 'smem constant byte address 0x4 - core index']
  #allocation1 [shape = 'u32[72,128]{1,0:T(1,128)}', space=vmem, size = 0x9000, scoped, tag = 'internal scratch']
  %s0 = inlined_call_operand.vmem [shape: f32[512,128], index: 0, kind: input, shape index: {}]
  %s1 = inlined_call_operand.vmem [shape: f32[1,128], index: 1, kind: input, shape index: {}]
  %s2 = inlined_call_operand.vmem [shape: f32[1,128], index: 2, kind: input, shape index: {}]
  %s3 = inlined_call_operand.vmem [shape: bf16[512,128], index: 3, kind: output, shape index: {}]
  %s4 = sld [smem:[#allocation0]]
  $region45: #{decoder_block_forward.5} parent=0
    _
  %s6 = ssub.s32 1, %s4
  %s7 = scalar_select 0, %s6, %s4
  loop: start=0, step=1, limit=4
  $region2: #{decoder_block_forward.5} parent=0 // loop_pre_header
    _
  $region3: #{decoder_block_forward.5} parent=0 // loop_header
    %s9 = sphi 0, %s13
    %p10 = scmp.ge.s32.totalorder %s9, 4
    %s19 = sphi 0, %s21
    %s22 = sphi 0, %s19
    %s23 = sphi 0, %s22
    %s39 = sphi 0, %s23
    %s43 = sphi 0, %s43
    %s45 = sphi 0, %s43
    %s46 = sphi 0, %s45
    %s60 = sphi 0, %s46
    %s64 = sphi 0, %s64
    %s66 = sphi 0, %s64
    %s67 = sphi 0, %s66
    %s81 = sphi 0, %s67
    %s87 = sphi 0, %s89
    %s90 = sphi 0, %s87
    %s91 = sphi 0, %s90
    %s107 = sphi 0, %s91
  $region4: #{decoder_block_forward.5} parent=0 // loop_header_branch
    %12 = sbr.rel (%p10) target = $region8
  $region5: #{decoder_block_forward.5} parent=0 // loop_body
    %s14 = ssub.s32 %s9, 1
    %s15 = ssub.s32 %s9, 2
    %s16 = sadd.s32 %s9, 1
    %s17 = ssub.s32 %s9, %s16
    %p18 = scmp.eq.s32.totalorder %s17, 0
    %s20 = sadd.s32 %s19, 1
    %s21 = scalar_select %p18, %s19, %s20
    %p24 = pneg %p18
    %p25 = scmp.eq.s32.totalorder %s9, 1
    %p26 = por %p24, %p25
    %p27 = scmp.ne.s32.totalorder %s19, %s22
    %p28 = scmp.eq.s32.totalorder %s9, 0
    %p29 = por %p27, %p28
    %p30 = scmp.ne.s32.totalorder %s19, %s22
    %p31 = scmp.eq.s32.totalorder %s14, 1
    %p32 = por %p30, %p31
    %p33 = scmp.ne.s32.totalorder %s22, %s23
    %p34 = scmp.eq.s32.totalorder %s14, 0
    %p35 = por %p33, %p34
    %p36 = scmp.ne.s32.totalorder %s22, %s23
    %p37 = scmp.eq.s32.totalorder %s15, 1
    %p38 = por %p36, %p37
    %p40 = scmp.ne.s32.totalorder %s23, %s39
    %p41 = scmp.eq.s32.totalorder %s15, 0
    %p42 = por %p40, %p41
    %s44 = sadd.s32 %s43, 1
    %p47 = scmp.eq.s32.totalorder %s9, 1
    %p48 = scmp.ne.s32.totalorder %s43, %s45
    %p49 = scmp.eq.s32.totalorder %s9, 0
    %p50 = por %p48, %p49
    %p51 = scmp.ne.s32.totalorder %s43, %s45
    %p52 = scmp.eq.s32.totalorder %s14, 1
    %p53 = por %p51, %p52
    %p54 = scmp.ne.s32.totalorder %s45, %s46
    %p55 = scmp.eq.s32.totalorder %s14, 0
    %p56 = por %p54, %p55
    %p57 = scmp.ne.s32.totalorder %s45, %s46
    %p58 = scmp.eq.s32.totalorder %s15, 1
    %p59 = por %p57, %p58
    %p61 = scmp.ne.s32.totalorder %s46, %s60
    %p62 = scmp.eq.s32.totalorder %s15, 0
    %p63 = por %p61, %p62
    %s65 = sadd.s32 %s64, 1
    %p68 = scmp.eq.s32.totalorder %s9, 1
    %p69 = scmp.ne.s32.totalorder %s64, %s66
    %p70 = scmp.eq.s32.totalorder %s9, 0
    %p71 = por %p69, %p70
    %p72 = scmp.ne.s32.totalorder %s64, %s66
    %p73 = scmp.eq.s32.totalorder %s14, 1
    %p74 = por %p72, %p73
    %p75 = scmp.ne.s32.totalorder %s66, %s67
    %p76 = scmp.eq.s32.totalorder %s14, 0
    %p77 = por %p75, %p76
    %p78 = scmp.ne.s32.totalorder %s66, %s67
    %p79 = scmp.eq.s32.totalorder %s15, 1
    %p80 = por %p78, %p79
    %p82 = scmp.ne.s32.totalorder %s67, %s81
    %p83 = scmp.eq.s32.totalorder %s15, 0
    %p84 = por %p82, %p83
    %s85 = ssub.s32 %s9, %s16
    %p86 = scmp.eq.s32.totalorder %s85, 0
    %s88 = sadd.s32 %s87, 1
    %s89 = scalar_select %p86, %s87, %s88
    %p92 = pneg %p86
    %p93 = scmp.eq.s32.totalorder %s9, 1
    %p94 = por %p92, %p93
    %p95 = scmp.ne.s32.totalorder %s87, %s90
    %p96 = scmp.eq.s32.totalorder %s9, 0
    %p97 = por %p95, %p96
    %p98 = scmp.ne.s32.totalorder %s87, %s90
    %p99 = scmp.eq.s32.totalorder %s14, 1
    %p100 = por %p98, %p99
    %p101 = scmp.ne.s32.totalorder %s90, %s91
    %p102 = scmp.eq.s32.totalorder %s14, 0
    %p103 = por %p101, %p102
    %p104 = scmp.ne.s32.totalorder %s90, %s91
    %p105 = scmp.eq.s32.totalorder %s15, 1
    %p106 = por %p104, %p105
    %p108 = scmp.ne.s32.totalorder %s91, %s107
    %p109 = scmp.eq.s32.totalorder %s15, 0
    %p110 = por %p108, %p109
    %p111 = scmp.le.s32.totalorder 1, %s9
    %p112 = scmp.lt.s32.totalorder %s9, 3
    %p113 = pnand %p111, %p112
    %p114 = pneg %p113
    // Predicated region
    $region9: #{decoder_block_forward.5} parent=5 // pred_check
      _
    $region10: #{decoder_block_forward.5} parent=5 // pred_check_branch
      %116 = sbr.rel (%p113) target = $region12
    $region11: #{decoder_block_forward.5} parent=5 // pred_region
      %s117 = ssub.s32 %s9, 1
      // Predicated region
      $region13: #{decoder_block_forward.5} parent=11 // pred_check
        %p118 = pneg %p56
      $region14: #{decoder_block_forward.5} parent=11 // pred_check_branch
        %120 = sbr.rel (%p118) target = $region16
      $region15: #{decoder_block_forward.5} parent=11 // pred_region
        _
      $region16: #{decoder_block_forward.5} parent=11 // pred_fallthru
        _
      // Predicated region
      $region17: #{decoder_block_forward.5} parent=11 // pred_check
        %p121 = pneg %p77
      $region18: #{decoder_block_forward.5} parent=11 // pred_check_branch
        %123 = sbr.rel (%p121) target = $region20
      $region19: #{decoder_block_forward.5} parent=11 // pred_region
        _
      $region20: #{decoder_block_forward.5} parent=11 // pred_fallthru
        _
    $region12: #{decoder_block_forward.5} parent=5 // pred_fallthru
      _
    %p124 = scmp.lt.s32.totalorder %s9, 2
    // Predicated region
    $region21: #{decoder_block_forward.5} parent=5 // pred_check
      %p125 = pneg %p124
    $region22: #{decoder_block_forward.5} parent=5 // pred_check_branch
      %127 = sbr.rel (%p125) target = $region24
    $region23: #{decoder_block_forward.5} parent=5 // pred_region
      // Predicated region
      $region25: #{decoder_block_forward.5} parent=23 // pred_check
        %p128 = pneg %p29
      $region26: #{decoder_block_forward.5} parent=23 // pred_check_branch
        %130 = sbr.rel (%p128) target = $region28
      $region27: #{decoder_block_forward.5} parent=23 // pred_region
        %s131 = smul.u32 32, %s9
        %p132 = scmp.lt.s32.totalorder %s131, 63
        %s133 = scalar_select %p132, %s131, 63
        %s134 = smul.addr %s133, 8
        %s135 = scalar_lea.vmem %s0, %s134
        %s136 = smul.u32 32, %s9
      $region28: #{decoder_block_forward.5} parent=23 // pred_fallthru
        _
    $region24: #{decoder_block_forward.5} parent=5 // pred_fallthru
      _
    %p137 = scmp.le.s32.totalorder 1, %s9
    %p138 = scmp.lt.s32.totalorder %s9, 3
    %p139 = pnand %p137, %p138
    %p140 = pneg %p139
    // Predicated region
    $region29: #{decoder_block_forward.5} parent=5 // pred_check
      _
    $region30: #{decoder_block_forward.5} parent=5 // pred_check_branch
      %142 = sbr.rel (%p139) target = $region32
    $region31: #{decoder_block_forward.5} parent=5 // pred_region
      %s143 = ssub.s32 %s9, 1
      %s144 = smul.u32 32, %s14
      %p145 = scmp.lt.s32.totalorder %s144, 63
      %s146 = scalar_select %p145, %s144, 63
      %s147 = smul.addr %s146, 8
      %s148 = scalar_lea.vmem %s0, %s147
      %p149 = pneg %p35
      %p150 = pneg %p32
      %p151 = pneg %p56
      %p152 = pneg %p53
      %p153 = pneg %p77
      %p154 = pneg %p74
      %p155 = pneg %p103
      %p156 = pneg %p100
      %s157 = smul.u32 32, %s14
      %p158 = scmp.lt.s32.totalorder %s157, 63
      %s159 = scalar_select %p158, %s157, 63
      %s160 = smul.addr %s159, 4
      %s161 = scalar_lea.vmem %s3, %s160
      %s162 = smul.u32 32, %s14
      %p163 = scmp.lt.s32.totalorder %s162, 63
      %s164 = scalar_select %p163, %s162, 63
      %s165 = smul.addr %s164, 8
      %s166 = scalar_lea.vmem %s0, %s165
      %s167 = smul.u32 32, %s14
      %s168 = smul.u32 32, %s14
      %p169 = scmp.lt.s32.totalorder %s168, 63
      %s170 = scalar_select %p169, %s168, 63
      %s171 = smul.addr %s170, 4
      %s172 = scalar_lea.vmem %s3, %s171
      %s173 = smul.u32 32, %s14
      %v174 = vld [vmem:[%s166] sm:$0xff]
      %v175 = vld [vmem:[%s166 + $0x8] sm:$0xff]
      %v176 = vld [vmem:[%s166 + $0x10] sm:$0xff]
      %v177 = vld [vmem:[%s166 + $0x18] sm:$0xff]
      %v178 = vld [vmem:[%s166 + $0x20] sm:$0xff]
      %v179 = vld [vmem:[%s166 + $0x28] sm:$0xff]
      %v180 = vld [vmem:[%s166 + $0x30] sm:$0xff]
      %v181 = vld [vmem:[%s166 + $0x38] sm:$0xff]
      %v182 = vld [vmem:[%s166 + $0x40] sm:$0xff]
      %v183 = vld [vmem:[%s166 + $0x48] sm:$0xff]
      %v184 = vld [vmem:[%s166 + $0x50] sm:$0xff]
      %v185 = vld [vmem:[%s166 + $0x58] sm:$0xff]
      %v186 = vld [vmem:[%s166 + $0x60] sm:$0xff]
      %v187 = vld [vmem:[%s166 + $0x68] sm:$0xff]
      %v188 = vld [vmem:[%s166 + $0x70] sm:$0xff]
      %v189 = vld [vmem:[%s166 + $0x78] sm:$0xff]
      %v190 = vld [vmem:[%s166 + $0x80] sm:$0xff]
      %v191 = vld [vmem:[%s166 + $0x88] sm:$0xff]
      %v192 = vld [vmem:[%s166 + $0x90] sm:$0xff]
      %v193 = vld [vmem:[%s166 + $0x98] sm:$0xff]
      %v194 = vld [vmem:[%s166 + $0xa0] sm:$0xff]
      %v195 = vld [vmem:[%s166 + $0xa8] sm:$0xff]
      %v196 = vld [vmem:[%s166 + $0xb0] sm:$0xff]
      %v197 = vld [vmem:[%s166 + $0xb8] sm:$0xff]
      %v198 = vld [vmem:[%s166 + $0xc0] sm:$0xff]
      %v199 = vld [vmem:[%s166 + $0xc8] sm:$0xff]
      %v200 = vld [vmem:[%s166 + $0xd0] sm:$0xff]
      %v201 = vld [vmem:[%s166 + $0xd8] sm:$0xff]
      %v202 = vld [vmem:[%s166 + $0xe0] sm:$0xff]
      %v203 = vld [vmem:[%s166 + $0xe8] sm:$0xff]
      %v204 = vld [vmem:[%s166 + $0xf0] sm:$0xff]
      %v205 = vld [vmem:[%s166 + $0xf8] sm:$0xff]
      %v206 = vld [vmem:[%s1] sm:$0x1]
      %v208 = vperm.slane %v206, 0
      %v210 = vmul.f32 %v174, %v208
      %v211 = vmul.f32 %v175, %v208
      %v212 = vmul.f32 %v176, %v208
      %v213 = vmul.f32 %v177, %v208
      %v214 = vmul.f32 %v178, %v208
      %v215 = vmul.f32 %v179, %v208
      %v216 = vmul.f32 %v180, %v208
      %v217 = vmul.f32 %v181, %v208
      %v218 = vmul.f32 %v182, %v208
      %v219 = vmul.f32 %v183, %v208
      %v220 = vmul.f32 %v184, %v208
      %v221 = vmul.f32 %v185, %v208
      %v222 = vmul.f32 %v186, %v208
      %v223 = vmul.f32 %v187, %v208
      %v224 = vmul.f32 %v188, %v208
      %v225 = vmul.f32 %v189, %v208
      %v226 = vmul.f32 %v190, %v208
      %v227 = vmul.f32 %v191, %v208
      %v228 = vmul.f32 %v192, %v208
      %v229 = vmul.f32 %v193, %v208
      %v230 = vmul.f32 %v194, %v208
      %v231 = vmul.f32 %v195, %v208
      %v232 = vmul.f32 %v196, %v208
      %v233 = vmul.f32 %v197, %v208
      %v234 = vmul.f32 %v198, %v208
      %v235 = vmul.f32 %v199, %v208
      %v236 = vmul.f32 %v200, %v208
      %v237 = vmul.f32 %v201, %v208
      %v238 = vmul.f32 %v202, %v208
      %v239 = vmul.f32 %v203, %v208
      %v240 = vmul.f32 %v204, %v208
      %v241 = vmul.f32 %v205, %v208
      %v242 = vld [vmem:[%s2] sm:$0x1]
      %v244 = vperm.slane %v242, 0
      %v246 = vadd.f32 %v210, %v244
      %v247 = vadd.f32 %v211, %v244
      %v248 = vadd.f32 %v212, %v244
      %v249 = vadd.f32 %v213, %v244
      %v250 = vadd.f32 %v214, %v244
      %v251 = vadd.f32 %v215, %v244
      %v252 = vadd.f32 %v216, %v244
      %v253 = vadd.f32 %v217, %v244
      %v254 = vadd.f32 %v218, %v244
      %v255 = vadd.f32 %v219, %v244
      %v256 = vadd.f32 %v220, %v244
      %v257 = vadd.f32 %v221, %v244
      %v258 = vadd.f32 %v222, %v244
      %v259 = vadd.f32 %v223, %v244
      %v260 = vadd.f32 %v224, %v244
      %v261 = vadd.f32 %v225, %v244
      %v262 = vadd.f32 %v226, %v244
      %v263 = vadd.f32 %v227, %v244
      %v264 = vadd.f32 %v228, %v244
      %v265 = vadd.f32 %v229, %v244
      %v266 = vadd.f32 %v230, %v244
      %v267 = vadd.f32 %v231, %v244
      %v268 = vadd.f32 %v232, %v244
      %v269 = vadd.f32 %v233, %v244
      %v270 = vadd.f32 %v234, %v244
      %v271 = vadd.f32 %v235, %v244
      %v272 = vadd.f32 %v236, %v244
      %v273 = vadd.f32 %v237, %v244
      %v274 = vadd.f32 %v238, %v244
      %v275 = vadd.f32 %v239, %v244
      %v276 = vadd.f32 %v240, %v244
      %v277 = vadd.f32 %v241, %v244
      %v278 = vmax.f32 %v246, 0.0
      %v279 = vmax.f32 %v247, 0.0
      %v280 = vmax.f32 %v248, 0.0
      %v281 = vmax.f32 %v249, 0.0
      %v282 = vmax.f32 %v250, 0.0
      %v283 = vmax.f32 %v251, 0.0
      %v284 = vmax.f32 %v252, 0.0
      %v285 = vmax.f32 %v253, 0.0
      %v286 = vmax.f32 %v254, 0.0
      %v287 = vmax.f32 %v255, 0.0
      %v288 = vmax.f32 %v256, 0.0
      %v289 = vmax.f32 %v257, 0.0
      %v290 = vmax.f32 %v258, 0.0
      %v291 = vmax.f32 %v259, 0.0
      %v292 = vmax.f32 %v260, 0.0
      %v293 = vmax.f32 %v261, 0.0
      %v294 = vmax.f32 %v262, 0.0
      %v295 = vmax.f32 %v263, 0.0
      %v296 = vmax.f32 %v264, 0.0
      %v297 = vmax.f32 %v265, 0.0
      %v298 = vmax.f32 %v266, 0.0
      %v299 = vmax.f32 %v267, 0.0
      %v300 = vmax.f32 %v268, 0.0
      %v301 = vmax.f32 %v269, 0.0
      %v302 = vmax.f32 %v270, 0.0
      %v303 = vmax.f32 %v271, 0.0
      %v304 = vmax.f32 %v272, 0.0
      %v305 = vmax.f32 %v273, 0.0
      %v306 = vmax.f32 %v274, 0.0
      %v307 = vmax.f32 %v275, 0.0
      %v308 = vmax.f32 %v276, 0.0
      %v309 = vmax.f32 %v277, 0.0
      %v310 = vpack.c.bf16 %v278, %v278
      %v311 = vpack.c.bf16 %v279, %v279
      %v312 = vpack.c.bf16 %v280, %v280
      %v313 = vpack.c.bf16 %v281, %v281
      %v314 = vpack.c.bf16 %v282, %v282
      %v315 = vpack.c.bf16 %v283, %v283
      %v316 = vpack.c.bf16 %v284, %v284
      %v317 = vpack.c.bf16 %v285, %v285
      %v318 = vpack.c.bf16 %v286, %v286
      %v319 = vpack.c.bf16 %v287, %v287
      %v320 = vpack.c.bf16 %v288, %v288
      %v321 = vpack.c.bf16 %v289, %v289
      %v322 = vpack.c.bf16 %v290, %v290
      %v323 = vpack.c.bf16 %v291, %v291
      %v324 = vpack.c.bf16 %v292, %v292
      %v325 = vpack.c.bf16 %v293, %v293
      %v326 = vpack.c.bf16 %v294, %v294
      %v327 = vpack.c.bf16 %v295, %v295
      %v328 = vpack.c.bf16 %v296, %v296
      %v329 = vpack.c.bf16 %v297, %v297
      %v330 = vpack.c.bf16 %v298, %v298
      %v331 = vpack.c.bf16 %v299, %v299
      %v332 = vpack.c.bf16 %v300, %v300
      %v333 = vpack.c.bf16 %v301, %v301
      %v334 = vpack.c.bf16 %v302, %v302
      %v335 = vpack.c.bf16 %v303, %v303
      %v336 = vpack.c.bf16 %v304, %v304
      %v337 = vpack.c.bf16 %v305, %v305
      %v338 = vpack.c.bf16 %v306, %v306
      %v339 = vpack.c.bf16 %v307, %v307
      %v340 = vpack.c.bf16 %v308, %v308
      %v341 = vpack.c.bf16 %v309, %v309
      %342 = vst [vmem:[%s172] sm:$0xf] %v310
      %343 = vst [vmem:[%s172 + $0x4] sm:$0xf] %v311
      %344 = vst [vmem:[%s172 + $0x8] sm:$0xf] %v312
      %345 = vst [vmem:[%s172 + $0xc] sm:$0xf] %v313
      %346 = vst [vmem:[%s172 + $0x10] sm:$0xf] %v314
      %347 = vst [vmem:[%s172 + $0x14] sm:$0xf] %v315
      %348 = vst [vmem:[%s172 + $0x18] sm:$0xf] %v316
      %349 = vst [vmem:[%s172 + $0x1c] sm:$0xf] %v317
      %350 = vst [vmem:[%s172 + $0x20] sm:$0xf] %v318
      %351 = vst [vmem:[%s172 + $0x24] sm:$0xf] %v319
      %352 = vst [vmem:[%s172 + $0x28] sm:$0xf] %v320
      %353 = vst [vmem:[%s172 + $0x2c] sm:$0xf] %v321
      %354 = vst [vmem:[%s172 + $0x30] sm:$0xf] %v322
      %355 = vst [vmem:[%s172 + $0x34] sm:$0xf] %v323
      %356 = vst [vmem:[%s172 + $0x38] sm:$0xf] %v324
      %357 = vst [vmem:[%s172 + $0x3c] sm:$0xf] %v325
      %358 = vst [vmem:[%s172 + $0x40] sm:$0xf] %v326
      %359 = vst [vmem:[%s172 + $0x44] sm:$0xf] %v327
      %360 = vst [vmem:[%s172 + $0x48] sm:$0xf] %v328
      %361 = vst [vmem:[%s172 + $0x4c] sm:$0xf] %v329
      %362 = vst [vmem:[%s172 + $0x50] sm:$0xf] %v330
      %363 = vst [vmem:[%s172 + $0x54] sm:$0xf] %v331
      %364 = vst [vmem:[%s172 + $0x58] sm:$0xf] %v332
      %365 = vst [vmem:[%s172 + $0x5c] sm:$0xf] %v333
      %366 = vst [vmem:[%s172 + $0x60] sm:$0xf] %v334
      %367 = vst [vmem:[%s172 + $0x64] sm:$0xf] %v335
      %368 = vst [vmem:[%s172 + $0x68] sm:$0xf] %v336
      %369 = vst [vmem:[%s172 + $0x6c] sm:$0xf] %v337
      %370 = vst [vmem:[%s172 + $0x70] sm:$0xf] %v338
      %371 = vst [vmem:[%s172 + $0x74] sm:$0xf] %v339
      %372 = vst [vmem:[%s172 + $0x78] sm:$0xf] %v340
      %373 = vst [vmem:[%s172 + $0x7c] sm:$0xf] %v341
      %s374 = smul.u32 32, %s14
      %p375 = scmp.lt.s32.totalorder %s374, 63
      %s376 = scalar_select %p375, %s374, 63
      %s377 = smul.addr %s376, 4
      %s378 = scalar_lea.vmem %s3, %s377
      // Predicated region
      $region33: #{decoder_block_forward.5} parent=31 // pred_check
        %p379 = pneg %p100
      $region34: #{decoder_block_forward.5} parent=31 // pred_check_branch
        %381 = sbr.rel (%p379) target = $region36
      $region35: #{decoder_block_forward.5} parent=31 // pred_region
        %s382 = smul.u32 32, %s14
      $region36: #{decoder_block_forward.5} parent=31 // pred_fallthru
        _
    $region32: #{decoder_block_forward.5} parent=5 // pred_fallthru
      _
    %p383 = scmp.le.s32.totalorder 2, %s9
    // Predicated region
    $region37: #{decoder_block_forward.5} parent=5 // pred_check
      %p384 = pneg %p383
    $region38: #{decoder_block_forward.5} parent=5 // pred_check_branch
      %386 = sbr.rel (%p384) target = $region40
    $region39: #{decoder_block_forward.5} parent=5 // pred_region
      %s387 = ssub.s32 %s9, 2
      // Predicated region
      $region41: #{decoder_block_forward.5} parent=39 // pred_check
        %p388 = pneg %p106
      $region42: #{decoder_block_forward.5} parent=39 // pred_check_branch
        %390 = sbr.rel (%p388) target = $region44
      $region43: #{decoder_block_forward.5} parent=39 // pred_region
        %s391 = smul.u32 32, %s15
        %p392 = scmp.lt.s32.totalorder %s391, 63
        %s393 = scalar_select %p392, %s391, 63
        %s394 = smul.addr %s393, 4
        %s395 = scalar_lea.vmem %s3, %s394
      $region44: #{decoder_block_forward.5} parent=39 // pred_fallthru
        _
    $region40: #{decoder_block_forward.5} parent=5 // pred_fallthru
      _
  $region6: #{decoder_block_forward.5} parent=0 // loop_footer
    %s13 = sadd.s32 1, %s9
  $region7: #{decoder_block_forward.5} parent=0 // loop_footer_branch
    %8 = sbr.rel target = $region3
  $region8: #{decoder_block_forward.5} parent=0 // loop_exit
    _

// kernel: decoder_block_forward.4
$region0: #{decoder_block_forward.4}
  #allocation0 [shape = 'u32[]', space=smem, size = 0x4, offset = 0x4, fixed_abs, tag = 'smem constant byte address 0x4 - core index']
  #allocation1 [shape = 'u32[72,128]{1,0:T(1,128)}', space=vmem, size = 0x9000, scoped, tag = 'internal scratch']
  %s0 = inlined_call_operand.vmem [shape: bf16[3,2,16,18,128], index: 0, kind: input, shape index: {}]
  %s1 = inlined_call_operand.vmem [shape: bf16[1152,128], index: 1, kind: input, shape index: {}]
  %s2 = inlined_call_operand.vmem [shape: f32[2,16,16,128], index: 2, kind: output, shape index: {0}]
  %s3 = inlined_call_operand.vmem [shape: f32[2,2,2,128], index: 3, kind: output, shape index: {1}]
  %4 = xla_tuple %s2, %s3
  %s5 = sld [smem:[#allocation0]]
  $region90: #{decoder_block_forward.4} parent=0
    _
  %s7 = ssub.s32 1, %s5
  %s8 = scalar_select 0, %s7, %s5
  $region1: #{decoder_block_forward.4} parent=0
    #allocation2 [shape = 'u8[294912]{0}', space=vmem, size = 0x48000, scoped, tag = 'input window, operand 0']
    loop: start=0, step=1, limit=6
    $region2: #{decoder_block_forward.4} parent=1 // loop_pre_header
      _
    $region3: #{decoder_block_forward.4} parent=1 // loop_header
      %s10 = sphi 0, %s14
      %p11 = scmp.ge.s32.totalorder %s10, 6
      %s17 = sphi 0, %s29
      %s18 = sphi 0, %s25
      %s19 = sphi 0, %s17
      %s20 = sphi 0, %s18
      %s21 = sphi 0, %s19
      %s22 = sphi 0, %s20
      %s34 = sphi 0, %s36
      %s37 = sphi 0, %s34
      %s38 = sphi 0, %s37
      %s54 = sphi 0, %s38
      %s58 = sphi 0, %s58
      %s60 = sphi 0, %s58
      %s61 = sphi 0, %s60
      %s75 = sphi 0, %s61
      %s83 = sphi 0, %s85
      %s86 = sphi 0, %s83
      %s87 = sphi 0, %s86
      %s103 = sphi 0, %s87
      %s111 = sphi 0, %s113
      %s114 = sphi 0, %s111
      %s115 = sphi 0, %s114
      %s131 = sphi 0, %s115
    $region4: #{decoder_block_forward.4} parent=1 // loop_header_branch
      %13 = sbr.rel (%p11) target = $region8
    $region5: #{decoder_block_forward.4} parent=1 // loop_body
      %s15 = ssub.s32 %s10, 1
      %s16 = ssub.s32 %s10, 2
      %s23 = sadd.s32 1, %s18
      %p24 = scmp.ge.s32.totalorder %s23, 2
      %s25 = scalar_select %p24, 0, %s23
      %s26 = sadd.s32 1, %s17
      %s27 = scalar_select %p24, %s26, %s17
      %p28 = scmp.ge.s32.totalorder %s27, 2
      %s29 = scalar_select %p28, 0, %s27
      %s30 = ssub.s32 %s17, %s29
      %s31 = ssub.s32 %s18, %s25
      %s32 = sor.u32 %s30, %s31
      %p33 = scmp.eq.s32.totalorder %s32, 0
      %s35 = sadd.s32 %s34, 1
      %s36 = scalar_select %p33, %s34, %s35
      %p39 = pneg %p33
      %p40 = scmp.eq.s32.totalorder %s10, 3
      %p41 = por %p39, %p40
      %p42 = scmp.ne.s32.totalorder %s34, %s37
      %p43 = scmp.eq.s32.totalorder %s10, 0
      %p44 = por %p42, %p43
      %p45 = scmp.ne.s32.totalorder %s34, %s37
      %p46 = scmp.eq.s32.totalorder %s15, 3
      %p47 = por %p45, %p46
      %p48 = scmp.ne.s32.totalorder %s37, %s38
      %p49 = scmp.eq.s32.totalorder %s15, 0
      %p50 = por %p48, %p49
      %p51 = scmp.ne.s32.totalorder %s37, %s38
      %p52 = scmp.eq.s32.totalorder %s16, 3
      %p53 = por %p51, %p52
      %p55 = scmp.ne.s32.totalorder %s38, %s54
      %p56 = scmp.eq.s32.totalorder %s16, 0
      %p57 = por %p55, %p56
      %s59 = sadd.s32 %s58, 1
      %p62 = scmp.eq.s32.totalorder %s10, 3
      %p63 = scmp.ne.s32.totalorder %s58, %s60
      %p64 = scmp.eq.s32.totalorder %s10, 0
      %p65 = por %p63, %p64
      %p66 = scmp.ne.s32.totalorder %s58, %s60
      %p67 = scmp.eq.s32.totalorder %s15, 3
      %p68 = por %p66, %p67
      %p69 = scmp.ne.s32.totalorder %s60, %s61
      %p70 = scmp.eq.s32.totalorder %s15, 0
      %p71 = por %p69, %p70
      %p72 = scmp.ne.s32.totalorder %s60, %s61
      %p73 = scmp.eq.s32.totalorder %s16, 3
      %p74 = por %p72, %p73
      %p76 = scmp.ne.s32.totalorder %s61, %s75
      %p77 = scmp.eq.s32.totalorder %s16, 0
      %p78 = por %p76, %p77
      %s79 = ssub.s32 %s17, %s29
      %s80 = ssub.s32 %s18, %s25
      %s81 = sor.u32 %s79, %s80
      %p82 = scmp.eq.s32.totalorder %s81, 0
      %s84 = sadd.s32 %s83, 1
      %s85 = scalar_select %p82, %s83, %s84
      %p88 = pneg %p82
      %p89 = scmp.eq.s32.totalorder %s10, 3
      %p90 = por %p88, %p89
      %p91 = scmp.ne.s32.totalorder %s83, %s86
      %p92 = scmp.eq.s32.totalorder %s10, 0
      %p93 = por %p91, %p92
      %p94 = scmp.ne.s32.totalorder %s83, %s86
      %p95 = scmp.eq.s32.totalorder %s15, 3
      %p96 = por %p94, %p95
      %p97 = scmp.ne.s32.totalorder %s86, %s87
      %p98 = scmp.eq.s32.totalorder %s15, 0
      %p99 = por %p97, %p98
      %p100 = scmp.ne.s32.totalorder %s86, %s87
      %p101 = scmp.eq.s32.totalorder %s16, 3
      %p102 = por %p100, %p101
      %p104 = scmp.ne.s32.totalorder %s87, %s103
      %p105 = scmp.eq.s32.totalorder %s16, 0
      %p106 = por %p104, %p105
      %s107 = ssub.s32 %s17, %s29
      %s108 = ssub.s32 %s18, %s25
      %s109 = sor.u32 %s107, %s108
      %p110 = scmp.eq.s32.totalorder %s109, 0
      %s112 = sadd.s32 %s111, 1
      %s113 = scalar_select %p110, %s111, %s112
      %p116 = pneg %p110
      %p117 = scmp.eq.s32.totalorder %s10, 3
      %p118 = por %p116, %p117
      %p119 = scmp.ne.s32.totalorder %s111, %s114
      %p120 = scmp.eq.s32.totalorder %s10, 0
      %p121 = por %p119, %p120
      %p122 = scmp.ne.s32.totalorder %s111, %s114
      %p123 = scmp.eq.s32.totalorder %s15, 3
      %p124 = por %p122, %p123
      %p125 = scmp.ne.s32.totalorder %s114, %s115
      %p126 = scmp.eq.s32.totalorder %s15, 0
      %p127 = por %p125, %p126
      %p128 = scmp.ne.s32.totalorder %s114, %s115
      %p129 = scmp.eq.s32.totalorder %s16, 3
      %p130 = por %p128, %p129
      %p132 = scmp.ne.s32.totalorder %s115, %s131
      %p133 = scmp.eq.s32.totalorder %s16, 0
      %p134 = por %p132, %p133
      %p135 = scmp.le.s32.totalorder 1, %s10
      %p136 = scmp.lt.s32.totalorder %s10, 5
      %p137 = pnand %p135, %p136
      %p138 = pneg %p137
      // Predicated region
      $region9: #{decoder_block_forward.4} parent=5 // pred_check
        _
      $region10: #{decoder_block_forward.4} parent=5 // pred_check_branch
        %140 = sbr.rel (%p137) target = $region12
      $region11: #{decoder_block_forward.4} parent=5 // pred_region
        %s141 = ssub.s32 %s10, 1
        // Predicated region
        $region13: #{decoder_block_forward.4} parent=11 // pred_check
          %p142 = pneg %p71
        $region14: #{decoder_block_forward.4} parent=11 // pred_check_branch
          %144 = sbr.rel (%p142) target = $region16
        $region15: #{decoder_block_forward.4} parent=11 // pred_region
          _
        $region16: #{decoder_block_forward.4} parent=11 // pred_fallthru
          _
      $region12: #{decoder_block_forward.4} parent=5 // pred_fallthru
        _
      %p145 = scmp.lt.s32.totalorder %s10, 4
      // Predicated region
      $region17: #{decoder_block_forward.4} parent=5 // pred_check
        %p146 = pneg %p145
      $region18: #{decoder_block_forward.4} parent=5 // pred_check_branch
        %148 = sbr.rel (%p146) target = $region20
      $region19: #{decoder_block_forward.4} parent=5 // pred_region
        // Predicated region
        $region21: #{decoder_block_forward.4} parent=19 // pred_check
          %p149 = pneg %p44
        $region22: #{decoder_block_forward.4} parent=19 // pred_check_branch
          %151 = sbr.rel (%p149) target = $region24
        $region23: #{decoder_block_forward.4} parent=19 // pred_region
          %s152 = sand.u32 %s34, 1
          %s153 = sand.u32 %s34, 1
          %s154 = smul.addr %s153, 288
          %s155 = scalar_lea.vmem [#allocation2], %s154
          %s156 = smul.u32 8, %s18
          %s157 = smul.addr %s156, 3
          %s158 = smul.addr %s17, 48
          %s159 = sadd.s32 %s157, %s158
          %s160 = smul.addr %s159, 4
          %s161 = scalar_lea.vmem %s0, %s160
          // Predicated region
          $region25: #{decoder_block_forward.4} parent=23 // pred_check
            _
          $region26: #{decoder_block_forward.4} parent=23 // pred_check_branch
            %163 = sbr.rel (0) target = $region28
          $region27: #{decoder_block_forward.4} parent=23 // pred_region
            // Predicated region
            $region29: #{decoder_block_forward.4} parent=27 // pred_check
              _
            $region30: #{decoder_block_forward.4} parent=27 // pred_check_branch
              %165 = sbr.rel target = $region32
            $region31: #{decoder_block_forward.4} parent=27 // pred_region
              // Predicated region
              $region44: #{decoder_block_forward.4} parent=31 // pred_check
                _
              $region45: #{decoder_block_forward.4} parent=31 // pred_check_branch
                %323 = sbr.rel (0) target = $region47
              $region46: #{decoder_block_forward.4} parent=31 // pred_region
                loop: start=0, step=1, limit=1
                $region48: #{decoder_block_forward.4} parent=46 // loop_pre_header
                  _
                $region49: #{decoder_block_forward.4} parent=46 // loop_header
                  %s325 = sphi 0, %s329
                  %p326 = scmp.ge.s32.totalorder %s325, 1
                  %s330 = sphi %s161, %s161
                  %s331 = sphi %s155, %s155
                $region50: #{decoder_block_forward.4} parent=46 // loop_header_branch
                  %328 = sbr.rel (%p326) target = $region54
                $region51: #{decoder_block_forward.4} parent=46 // loop_body
                  _
                $region52: #{decoder_block_forward.4} parent=46 // loop_footer
                  %s329 = sadd.s32 1, %s325
                $region53: #{decoder_block_forward.4} parent=46 // loop_footer_branch
                  %324 = sbr.rel target = $region49
                $region54: #{decoder_block_forward.4} parent=46 // loop_exit
                  _
                %s333 = ssub.s32 16, 1
                loop: start=0, step=1, limit=1
                $region55: #{decoder_block_forward.4} parent=46 // loop_pre_header
                  _
                $region56: #{decoder_block_forward.4} parent=46 // loop_header
                  %s335 = sphi 0, %s339
                  %p336 = scmp.ge.s32.totalorder %s335, 1
                  %s340 = sphi %s161, %s161
                  %s341 = sphi %s155, %s155
                $region57: #{decoder_block_forward.4} parent=46 // loop_header_branch
                  %338 = sbr.rel (%p336) target = $region61
                $region58: #{decoder_block_forward.4} parent=46 // loop_body
                  %v342 = vld [vmem:[%s340] sm:%s333]
                  %343 = vst [vmem:[%s341] sm:%s333] %v342
                  %v344 = vld [vmem:[%s340 + $0x4] sm:%s333]
                  %345 = vst [vmem:[%s341 + $0x4] sm:%s333] %v344
                  %v346 = vld [vmem:[%s340 + $0x8] sm:%s333]
                  %347 = vst [vmem:[%s341 + $0x8] sm:%s333] %v346
                  %v348 = vld [vmem:[%s340 + $0xc] sm:%s333]
                  %349 = vst [vmem:[%s341 + $0xc] sm:%s333] %v348
                  %v350 = vld [vmem:[%s340 + $0x10] sm:%s333]
                  %351 = vst [vmem:[%s341 + $0x10] sm:%s333] %v350
                  %v352 = vld [vmem:[%s340 + $0x14] sm:%s333]
                  %353 = vst [vmem:[%s341 + $0x14] sm:%s333] %v352
                  %v354 = vld [vmem:[%s340 + $0x18] sm:%s333]
                  %355 = vst [vmem:[%s341 + $0x18] sm:%s333] %v354
                  %v356 = vld [vmem:[%s340 + $0x1c] sm:%s333]
                  %357 = vst [vmem:[%s341 + $0x1c] sm:%s333] %v356
                  %v358 = vld [vmem:[%s340 + $0x20] sm:%s333]
                  %359 = vst [vmem:[%s341 + $0x20] sm:%s333] %v358
                  %v360 = vld [vmem:[%s340 + $0x24] sm:%s333]
                  %361 = vst [vmem:[%s341 + $0x24] sm:%s333] %v360
                  %v362 = vld [vmem:[%s340 + $0x28] sm:%s333]
                  %363 = vst [vmem:[%s341 + $0x28] sm:%s333] %v362
                  %v364 = vld [vmem:[%s340 + $0x2c] sm:%s333]
                  %365 = vst [vmem:[%s341 + $0x2c] sm:%s333] %v364
                  %v366 = vld [vmem:[%s340 + $0x30] sm:%s333]
                  %367 = vst [vmem:[%s341 + $0x30] sm:%s333] %v366
                  %v368 = vld [vmem:[%s340 + $0x34] sm:%s333]
                  %369 = vst [vmem:[%s341 + $0x34] sm:%s333] %v368
                  %v370 = vld [vmem:[%s340 + $0x38] sm:%s333]
                  %371 = vst [vmem:[%s341 + $0x38] sm:%s333] %v370
                  %v372 = vld [vmem:[%s340 + $0x3c] sm:%s333]
                  %373 = vst [vmem:[%s341 + $0x3c] sm:%s333] %v372
                  %v374 = vld [vmem:[%s340 + $0x40] sm:%s333]
                  %375 = vst [vmem:[%s341 + $0x40] sm:%s333] %v374
                  %v376 = vld [vmem:[%s340 + $0x44] sm:%s333]
                  %377 = vst [vmem:[%s341 + $0x44] sm:%s333] %v376
                  %v378 = vld [vmem:[%s340 + $0x48] sm:%s333]
                  %379 = vst [vmem:[%s341 + $0x48] sm:%s333] %v378
                  %v380 = vld [vmem:[%s340 + $0x4c] sm:%s333]
                  %381 = vst [vmem:[%s341 + $0x4c] sm:%s333] %v380
                  %v382 = vld [vmem:[%s340 + $0x50] sm:%s333]
                  %383 = vst [vmem:[%s341 + $0x50] sm:%s333] %v382
                  %v384 = vld [vmem:[%s340 + $0x54] sm:%s333]
                  %385 = vst [vmem:[%s341 + $0x54] sm:%s333] %v384
                  %v386 = vld [vmem:[%s340 + $0x58] sm:%s333]
                  %387 = vst [vmem:[%s341 + $0x58] sm:%s333] %v386
                  %v388 = vld [vmem:[%s340 + $0x5c] sm:%s333]
                  %389 = vst [vmem:[%s341 + $0x5c] sm:%s333] %v388
                  %v390 = vld [vmem:[%s340 + $0x180] sm:%s333]
                  %391 = vst [vmem:[%s341 + $0x60] sm:%s333] %v390
                  %v392 = vld [vmem:[%s340 + $0x184] sm:%s333]
                  %393 = vst [vmem:[%s341 + $0x64] sm:%s333] %v392
                  %v394 = vld [vmem:[%s340 + $0x188] sm:%s333]
                  %395 = vst [vmem:[%s341 + $0x68] sm:%s333] %v394
                  %v396 = vld [vmem:[%s340 + $0x18c] sm:%s333]
                  %397 = vst [vmem:[%s341 + $0x6c] sm:%s333] %v396
                  %v398 = vld [vmem:[%s340 + $0x190] sm:%s333]
                  %399 = vst [vmem:[%s341 + $0x70] sm:%s333] %v398
                  %v400 = vld [vmem:[%s340 + $0x194] sm:%s333]
                  %401 = vst [vmem:[%s341 + $0x74] sm:%s333] %v400
                  %v402 = vld [vmem:[%s340 + $0x198] sm:%s333]
                  %403 = vst [vmem:[%s341 + $0x78] sm:%s333] %v402
                  %v404 = vld [vmem:[%s340 + $0x19c] sm:%s333]
                  %405 = vst [vmem:[%s341 + $0x7c] sm:%s333] %v404
                  %v406 = vld [vmem:[%s340 + $0x1a0] sm:%s333]
                  %407 = vst [vmem:[%s341 + $0x80] sm:%s333] %v406
                  %v408 = vld [vmem:[%s340 + $0x1a4] sm:%s333]
                  %409 = vst [vmem:[%s341 + $0x84] sm:%s333] %v408
                  %v410 = vld [vmem:[%s340 + $0x1a8] sm:%s333]
                  %411 = vst [vmem:[%s341 + $0x88] sm:%s333] %v410
                  %v412 = vld [vmem:[%s340 + $0x1ac] sm:%s333]
                  %413 = vst [vmem:[%s341 + $0x8c] sm:%s333] %v412
                  %v414 = vld [vmem:[%s340 + $0x1b0] sm:%s333]
                  %415 = vst [vmem:[%s341 + $0x90] sm:%s333] %v414
                  %v416 = vld [vmem:[%s340 + $0x1b4] sm:%s333]
                  %417 = vst [vmem:[%s341 + $0x94] sm:%s333] %v416
                  %v418 = vld [vmem:[%s340 + $0x1b8] sm:%s333]
                  %419 = vst [vmem:[%s341 + $0x98] sm:%s333] %v418
                  %v420 = vld [vmem:[%s340 + $0x1bc] sm:%s333]
                  %421 = vst [vmem:[%s341 + $0x9c] sm:%s333] %v420
                  %v422 = vld [vmem:[%s340 + $0x1c0] sm:%s333]
                  %423 = vst [vmem:[%s341 + $0xa0] sm:%s333] %v422
                  %v424 = vld [vmem:[%s340 + $0x1c4] sm:%s333]
                  %425 = vst [vmem:[%s341 + $0xa4] sm:%s333] %v424
                  %v426 = vld [vmem:[%s340 + $0x1c8] sm:%s333]
                  %427 = vst [vmem:[%s341 + $0xa8] sm:%s333] %v426
                  %v428 = vld [vmem:[%s340 + $0x1cc] sm:%s333]
                  %429 = vst [vmem:[%s341 + $0xac] sm:%s333] %v428
                  %v430 = vld [vmem:[%s340 + $0x1d0] sm:%s333]
                  %431 = vst [vmem:[%s341 + $0xb0] sm:%s333] %v430
                  %v432 = vld [vmem:[%s340 + $0x1d4] sm:%s333]
                  %433 = vst [vmem:[%s341 + $0xb4] sm:%s333] %v432
                  %v434 = vld [vmem:[%s340 + $0x1d8] sm:%s333]
                  %435 = vst [vmem:[%s341 + $0xb8] sm:%s333] %v434
                  %v436 = vld [vmem:[%s340 + $0x1dc] sm:%s333]
                  %437 = vst [vmem:[%s341 + $0xbc] sm:%s333] %v436
                  %v438 = vld [vmem:[%s340 + $0x300] sm:%s333]
                  %439 = vst [vmem:[%s341 + $0xc0] sm:%s333] %v438
                  %v440 = vld [vmem:[%s340 + $0x304] sm:%s333]
                  %441 = vst [vmem:[%s341 + $0xc4] sm:%s333] %v440
                  %v442 = vld [vmem:[%s340 + $0x308] sm:%s333]
                  %443 = vst [vmem:[%s341 + $0xc8] sm:%s333] %v442
                  %v444 = vld [vmem:[%s340 + $0x30c] sm:%s333]
                  %445 = vst [vmem:[%s341 + $0xcc] sm:%s333] %v444
                  %v446 = vld [vmem:[%s340 + $0x310] sm:%s333]
                  %447 = vst [vmem:[%s341 + $0xd0] sm:%s333] %v446
                  %v448 = vld [vmem:[%s340 + $0x314] sm:%s333]
                  %449 = vst [vmem:[%s341 + $0xd4] sm:%s333] %v448
                  %v450 = vld [vmem:[%s340 + $0x318] sm:%s333]
                  %451 = vst [vmem:[%s341 + $0xd8] sm:%s333] %v450
                  %v452 = vld [vmem:[%s340 + $0x31c] sm:%s333]
                  %453 = vst [vmem:[%s341 + $0xdc] sm:%s333] %v452
                  %v454 = vld [vmem:[%s340 + $0x320] sm:%s333]
                  %455 = vst [vmem:[%s341 + $0xe0] sm:%s333] %v454
                  %v456 = vld [vmem:[%s340 + $0x324] sm:%s333]
                  %457 = vst [vmem:[%s341 + $0xe4] sm:%s333] %v456
                  %v458 = vld [vmem:[%s340 + $0x328] sm:%s333]
                  %459 = vst [vmem:[%s341 + $0xe8] sm:%s333] %v458
                  %v460 = vld [vmem:[%s340 + $0x32c] sm:%s333]
                  %461 = vst [vmem:[%s341 + $0xec] sm:%s333] %v460
                  %v462 = vld [vmem:[%s340 + $0x330] sm:%s333]
                  %463 = vst [vmem:[%s341 + $0xf0] sm:%s333] %v462
                  %v464 = vld [vmem:[%s340 + $0x334] sm:%s333]
                  %465 = vst [vmem:[%s341 + $0xf4] sm:%s333] %v464
                  %v466 = vld [vmem:[%s340 + $0x338] sm:%s333]
                  %467 = vst [vmem:[%s341 + $0xf8] sm:%s333] %v466
                  %v468 = vld [vmem:[%s340 + $0x33c] sm:%s333]
                  %469 = vst [vmem:[%s341 + $0xfc] sm:%s333] %v468
                  %v470 = vld [vmem:[%s340 + $0x340] sm:%s333]
                  %471 = vst [vmem:[%s341 + $0x100] sm:%s333] %v470
                  %v472 = vld [vmem:[%s340 + $0x344] sm:%s333]
                  %473 = vst [vmem:[%s341 + $0x104] sm:%s333] %v472
                  %v474 = vld [vmem:[%s340 + $0x348] sm:%s333]
                  %475 = vst [vmem:[%s341 + $0x108] sm:%s333] %v474
                  %v476 = vld [vmem:[%s340 + $0x34c] sm:%s333]
                  %477 = vst [vmem:[%s341 + $0x10c] sm:%s333] %v476
                  %v478 = vld [vmem:[%s340 + $0x350] sm:%s333]
                  %479 = vst [vmem:[%s341 + $0x110] sm:%s333] %v478
                  %v480 = vld [vmem:[%s340 + $0x354] sm:%s333]
                  %481 = vst [vmem:[%s341 + $0x114] sm:%s333] %v480
                  %v482 = vld [vmem:[%s340 + $0x358] sm:%s333]
                  %483 = vst [vmem:[%s341 + $0x118] sm:%s333] %v482
                  %v484 = vld [vmem:[%s340 + $0x35c] sm:%s333]
                  %485 = vst [vmem:[%s341 + $0x11c] sm:%s333] %v484
                $region59: #{decoder_block_forward.4} parent=46 // loop_footer
                  %s339 = sadd.s32 1, %s335
                $region60: #{decoder_block_forward.4} parent=46 // loop_footer_branch
                  %334 = sbr.rel target = $region56
                $region61: #{decoder_block_forward.4} parent=46 // loop_exit
                  _
              $region47: #{decoder_block_forward.4} parent=31 // pred_fallthru
                _
            $region32: #{decoder_block_forward.4} parent=27 // pred_fallthru
              _
            // Predicated region
            $region33: #{decoder_block_forward.4} parent=27 // pred_check
              _
            $region34: #{decoder_block_forward.4} parent=27 // pred_check_branch
              %167 = sbr.rel (0) target = $region36
            $region35: #{decoder_block_forward.4} parent=27 // pred_region
              %s169 = ssub.s32 16, 1
              loop: start=0, step=1, limit=1
              $region37: #{decoder_block_forward.4} parent=35 // loop_pre_header
                _
              $region38: #{decoder_block_forward.4} parent=35 // loop_header
                %s171 = sphi 0, %s175
                %p172 = scmp.ge.s32.totalorder %s171, 1
                %s176 = sphi %s161, %s161
                %s177 = sphi %s155, %s155
              $region39: #{decoder_block_forward.4} parent=35 // loop_header_branch
                %174 = sbr.rel (%p172) target = $region43
              $region40: #{decoder_block_forward.4} parent=35 // loop_body
                %v178 = vld [vmem:[%s176] sm:%s169]
                %179 = vst [vmem:[%s177] sm:%s169] %v178
                %v180 = vld [vmem:[%s176 + $0x4] sm:%s169]
                %181 = vst [vmem:[%s177 + $0x4] sm:%s169] %v180
                %v182 = vld [vmem:[%s176 + $0x8] sm:%s169]
                %183 = vst [vmem:[%s177 + $0x8] sm:%s169] %v182
                %v184 = vld [vmem:[%s176 + $0xc] sm:%s169]
                %185 = vst [vmem:[%s177 + $0xc] sm:%s169] %v184
                %v186 = vld [vmem:[%s176 + $0x10] sm:%s169]
                %187 = vst [vmem:[%s177 + $0x10] sm:%s169] %v186
                %v188 = vld [vmem:[%s176 + $0x14] sm:%s169]
                %189 = vst [vmem:[%s177 + $0x14] sm:%s169] %v188
                %v190 = vld [vmem:[%s176 + $0x18] sm:%s169]
                %191 = vst [vmem:[%s177 + $0x18] sm:%s169] %v190
                %v192 = vld [vmem:[%s176 + $0x1c] sm:%s169]
                %193 = vst [vmem:[%s177 + $0x1c] sm:%s169] %v192
                %v194 = vld [vmem:[%s176 + $0x20] sm:%s169]
                %195 = vst [vmem:[%s177 + $0x20] sm:%s169] %v194
                %v196 = vld [vmem:[%s176 + $0x24] sm:%s169]
                %197 = vst [vmem:[%s177 + $0x24] sm:%s169] %v196
                %v198 = vld [vmem:[%s176 + $0x28] sm:%s169]
                %199 = vst [vmem:[%s177 + $0x28] sm:%s169] %v198
                %v200 = vld [vmem:[%s176 + $0x2c] sm:%s169]
                %201 = vst [vmem:[%s177 + $0x2c] sm:%s169] %v200
                %v202 = vld [vmem:[%s176 + $0x30] sm:%s169]
                %203 = vst [vmem:[%s177 + $0x30] sm:%s169] %v202
                %v204 = vld [vmem:[%s176 + $0x34] sm:%s169]
                %205 = vst [vmem:[%s177 + $0x34] sm:%s169] %v204
                %v206 = vld [vmem:[%s176 + $0x38] sm:%s169]
                %207 = vst [vmem:[%s177 + $0x38] sm:%s169] %v206
                %v208 = vld [vmem:[%s176 + $0x3c] sm:%s169]
                %209 = vst [vmem:[%s177 + $0x3c] sm:%s169] %v208
                %v210 = vld [vmem:[%s176 + $0x40] sm:%s169]
                %211 = vst [vmem:[%s177 + $0x40] sm:%s169] %v210
                %v212 = vld [vmem:[%s176 + $0x44] sm:%s169]
                %213 = vst [vmem:[%s177 + $0x44] sm:%s169] %v212
                %v214 = vld [vmem:[%s176 + $0x48] sm:%s169]
                %215 = vst [vmem:[%s177 + $0x48] sm:%s169] %v214
                %v216 = vld [vmem:[%s176 + $0x4c] sm:%s169]
                %217 = vst [vmem:[%s177 + $0x4c] sm:%s169] %v216
                %v218 = vld [vmem:[%s176 + $0x50] sm:%s169]
                %219 = vst [vmem:[%s177 + $0x50] sm:%s169] %v218
                %v220 = vld [vmem:[%s176 + $0x54] sm:%s169]
                %221 = vst [vmem:[%s177 + $0x54] sm:%s169] %v220
                %v222 = vld [vmem:[%s176 + $0x58] sm:%s169]
                %223 = vst [vmem:[%s177 + $0x58] sm:%s169] %v222
                %v224 = vld [vmem:[%s176 + $0x5c] sm:%s169]
                %225 = vst [vmem:[%s177 + $0x5c] sm:%s169] %v224
                %v226 = vld [vmem:[%s176 + $0x180] sm:%s169]
                %227 = vst [vmem:[%s177 + $0x60] sm:%s169] %v226
                %v228 = vld [vmem:[%s176 + $0x184] sm:%s169]
                %229 = vst [vmem:[%s177 + $0x64] sm:%s169] %v228
                %v230 = vld [vmem:[%s176 + $0x188] sm:%s169]
                %231 = vst [vmem:[%s177 + $0x68] sm:%s169] %v230
                %v232 = vld [vmem:[%s176 + $0x18c] sm:%s169]
                %233 = vst [vmem:[%s177 + $0x6c] sm:%s169] %v232
                %v234 = vld [vmem:[%s176 + $0x190] sm:%s169]
                %235 = vst [vmem:[%s177 + $0x70] sm:%s169] %v234
                %v236 = vld [vmem:[%s176 + $0x194] sm:%s169]
                %237 = vst [vmem:[%s177 + $0x74] sm:%s169] %v236
                %v238 = vld [vmem:[%s176 + $0x198] sm:%s169]
                %239 = vst [vmem:[%s177 + $0x78] sm:%s169] %v238
                %v240 = vld [vmem:[%s176 + $0x19c] sm:%s169]
                %241 = vst [vmem:[%s177 + $0x7c] sm:%s169] %v240
                %v242 = vld [vmem:[%s176 + $0x1a0] sm:%s169]
                %243 = vst [vmem:[%s177 + $0x80] sm:%s169] %v242
                %v244 = vld [vmem:[%s176 + $0x1a4] sm:%s169]
                %245 = vst [vmem:[%s177 + $0x84] sm:%s169] %v244
                %v246 = vld [vmem:[%s176 + $0x1a8] sm:%s169]
                %247 = vst [vmem:[%s177 + $0x88] sm:%s169] %v246
                %v248 = vld [vmem:[%s176 + $0x1ac] sm:%s169]
                %249 = vst [vmem:[%s177 + $0x8c] sm:%s169] %v248
                %v250 = vld [vmem:[%s176 + $0x1b0] sm:%s169]
                %251 = vst [vmem:[%s177 + $0x90] sm:%s169] %v250
                %v252 = vld [vmem:[%s176 + $0x1b4] sm:%s169]
                %253 = vst [vmem:[%s177 + $0x94] sm:%s169] %v252
                %v254 = vld [vmem:[%s176 + $0x1b8] sm:%s169]
                %255 = vst [vmem:[%s177 + $0x98] sm:%s169] %v254
                %v256 = vld [vmem:[%s176 + $0x1bc] sm:%s169]
                %257 = vst [vmem:[%s177 + $0x9c] sm:%s169] %v256
                %v258 = vld [vmem:[%s176 + $0x1c0] sm:%s169]
                %259 = vst [vmem:[%s177 + $0xa0] sm:%s169] %v258
                %v260 = vld [vmem:[%s176 + $0x1c4] sm:%s169]
                %261 = vst [vmem:[%s177 + $0xa4] sm:%s169] %v260
                %v262 = vld [vmem:[%s176 + $0x1c8] sm:%s169]
                %263 = vst [vmem:[%s177 + $0xa8] sm:%s169] %v262
                %v264 = vld [vmem:[%s176 + $0x1cc] sm:%s169]
                %265 = vst [vmem:[%s177 + $0xac] sm:%s169] %v264
                %v266 = vld [vmem:[%s176 + $0x1d0] sm:%s169]
                %267 = vst [vmem:[%s177 + $0xb0] sm:%s169] %v266
                %v268 = vld [vmem:[%s176 + $0x1d4] sm:%s169]
                %269 = vst [vmem:[%s177 + $0xb4] sm:%s169] %v268
                %v270 = vld [vmem:[%s176 + $0x1d8] sm:%s169]
                %271 = vst [vmem:[%s177 + $0xb8] sm:%s169] %v270
                %v272 = vld [vmem:[%s176 + $0x1dc] sm:%s169]
                %273 = vst [vmem:[%s177 + $0xbc] sm:%s169] %v272
                %v274 = vld [vmem:[%s176 + $0x300] sm:%s169]
                %275 = vst [vmem:[%s177 + $0xc0] sm:%s169] %v274
                %v276 = vld [vmem:[%s176 + $0x304] sm:%s169]
                %277 = vst [vmem:[%s177 + $0xc4] sm:%s169] %v276
                %v278 = vld [vmem:[%s176 + $0x308] sm:%s169]
                %279 = vst [vmem:[%s177 + $0xc8] sm:%s169] %v278
                %v280 = vld [vmem:[%s176 + $0x30c] sm:%s169]
                %281 = vst [vmem:[%s177 + $0xcc] sm:%s169] %v280
                %v282 = vld [vmem:[%s176 + $0x310] sm:%s169]
                %283 = vst [vmem:[%s177 + $0xd0] sm:%s169] %v282
                %v284 = vld [vmem:[%s176 + $0x314] sm:%s169]
                %285 = vst [vmem:[%s177 + $0xd4] sm:%s169] %v284
                %v286 = vld [vmem:[%s176 + $0x318] sm:%s169]
                %287 = vst [vmem:[%s177 + $0xd8] sm:%s169] %v286
                %v288 = vld [vmem:[%s176 + $0x31c] sm:%s169]
                %289 = vst [vmem:[%s177 + $0xdc] sm:%s169] %v288
                %v290 = vld [vmem:[%s176 + $0x320] sm:%s169]
                %291 = vst [vmem:[%s177 + $0xe0] sm:%s169] %v290
                %v292 = vld [vmem:[%s176 + $0x324] sm:%s169]
                %293 = vst [vmem:[%s177 + $0xe4] sm:%s169] %v292
                %v294 = vld [vmem:[%s176 + $0x328] sm:%s169]
                %295 = vst [vmem:[%s177 + $0xe8] sm:%s169] %v294
                %v296 = vld [vmem:[%s176 + $0x32c] sm:%s169]
                %297 = vst [vmem:[%s177 + $0xec] sm:%s169] %v296
                %v298 = vld [vmem:[%s176 + $0x330] sm:%s169]
                %299 = vst [vmem:[%s177 + $0xf0] sm:%s169] %v298
                %v300 = vld [vmem:[%s176 + $0x334] sm:%s169]
                %301 = vst [vmem:[%s177 + $0xf4] sm:%s169] %v300
                %v302 = vld [vmem:[%s176 + $0x338] sm:%s169]
                %303 = vst [vmem:[%s177 + $0xf8] sm:%s169] %v302
                %v304 = vld [vmem:[%s176 + $0x33c] sm:%s169]
                %305 = vst [vmem:[%s177 + $0xfc] sm:%s169] %v304
                %v306 = vld [vmem:[%s176 + $0x340] sm:%s169]
                %307 = vst [vmem:[%s177 + $0x100] sm:%s169] %v306
                %v308 = vld [vmem:[%s176 + $0x344] sm:%s169]
                %309 = vst [vmem:[%s177 + $0x104] sm:%s169] %v308
                %v310 = vld [vmem:[%s176 + $0x348] sm:%s169]
                %311 = vst [vmem:[%s177 + $0x108] sm:%s169] %v310
                %v312 = vld [vmem:[%s176 + $0x34c] sm:%s169]
                %313 = vst [vmem:[%s177 + $0x10c] sm:%s169] %v312
                %v314 = vld [vmem:[%s176 + $0x350] sm:%s169]
                %315 = vst [vmem:[%s177 + $0x110] sm:%s169] %v314
                %v316 = vld [vmem:[%s176 + $0x354] sm:%s169]
                %317 = vst [vmem:[%s177 + $0x114] sm:%s169] %v316
                %v318 = vld [vmem:[%s176 + $0x358] sm:%s169]
                %319 = vst [vmem:[%s177 + $0x118] sm:%s169] %v318
                %v320 = vld [vmem:[%s176 + $0x35c] sm:%s169]
                %321 = vst [vmem:[%s177 + $0x11c] sm:%s169] %v320
              $region41: #{decoder_block_forward.4} parent=35 // loop_footer
                %s175 = sadd.s32 1, %s171
              $region42: #{decoder_block_forward.4} parent=35 // loop_footer_branch
                %170 = sbr.rel target = $region38
              $region43: #{decoder_block_forward.4} parent=35 // loop_exit
                _
            $region36: #{decoder_block_forward.4} parent=27 // pred_fallthru
              _
          $region28: #{decoder_block_forward.4} parent=23 // pred_fallthru
            _
          %486 = vnop
        $region24: #{decoder_block_forward.4} parent=19 // pred_fallthru
          _
      $region20: #{decoder_block_forward.4} parent=5 // pred_fallthru
        _
      %p487 = scmp.le.s32.totalorder 1, %s10
      %p488 = scmp.lt.s32.totalorder %s10, 5
      %p489 = pnand %p487, %p488
      %p490 = pneg %p489
      // Predicated region
      $region62: #{decoder_block_forward.4} parent=5 // pred_check
        _
      $region63: #{decoder_block_forward.4} parent=5 // pred_check_branch
        %492 = sbr.rel (%p489) target = $region65
      $region64: #{decoder_block_forward.4} parent=5 // pred_region
        %s493 = ssub.s32 %s10, 1
        %s494 = sand.u32 %s37, 1
        %s495 = sand.u32 %s37, 1
        %s496 = smul.addr %s495, 288
        %s497 = scalar_lea.vmem [#allocation2], %s496
        // Predicated region
        $region66: #{decoder_block_forward.4} parent=64 // pred_check
          %p498 = pneg %p50
        $region67: #{decoder_block_forward.4} parent=64 // pred_check_branch
          %500 = sbr.rel (%p498) target = $region69
        $region68: #{decoder_block_forward.4} parent=64 // pred_region
          _
        $region69: #{decoder_block_forward.4} parent=64 // pred_fallthru
          _
        %s501 = sand.u32 %s37, 1
        %s502 = sand.u32 %s37, 1
        %s503 = smul.addr %s502, 288
        %s504 = scalar_lea.vmem [#allocation2], %s503
        %p505 = pneg %p50
        %p506 = pneg %p47
        %p507 = pneg %p71
        %p508 = pneg %p68
        %p509 = pneg %p99
        %p510 = pneg %p96
        %s511 = smul.u32 8, %s20
        %p512 = scmp.lt.s32.totalorder %s19, 1
        %s513 = scalar_select %p512, %s19, 1
        %p514 = scmp.lt.s32.totalorder %s511, 15
        %s515 = scalar_select %p514, %s511, 15
        %s516 = smul.addr %s515, 2
        %s517 = smul.addr %s513, 32
        %s518 = sadd.s32 %s516, %s517
        %s519 = smul.addr %s518, 8
        %s520 = scalar_lea.vmem %s2, %s519
        %p521 = pneg %p127
        %p522 = pneg %p124
        %p523 = scmp.lt.s32.totalorder %s19, 1
        %s524 = scalar_select %p523, %s19, 1
        %p525 = scmp.lt.s32.totalorder %s20, 1
        %s526 = scalar_select %p525, %s20, 1
        %s527 = smul.addr %s524, 2
        %s528 = sadd.s32 %s526, %s527
        %s529 = smul.addr %s528, 2
        %s530 = scalar_lea.vmem %s3, %s529
        %s531 = smul.u32 8, %s20
        %s532 = smul.u32 8, %s20
        %p533 = scmp.lt.s32.totalorder %s19, 1
        %s534 = scalar_select %p533, %s19, 1
        %p535 = scmp.lt.s32.totalorder %s532, 15
        %s536 = scalar_select %p535, %s532, 15
        %s537 = smul.addr %s536, 2
        %s538 = smul.addr %s534, 32
        %s539 = sadd.s32 %s537, %s538
        %s540 = smul.addr %s539, 8
        %s541 = scalar_lea.vmem %s2, %s540
        %s542 = smul.u32 8, %s20
        %p543 = scmp.lt.s32.totalorder %s19, 1
        %s544 = scalar_select %p543, %s19, 1
        %p545 = scmp.lt.s32.totalorder %s20, 1
        %s546 = scalar_select %p545, %s20, 1
        %s547 = smul.addr %s544, 2
        %s548 = sadd.s32 %s546, %s547
        %s549 = smul.addr %s548, 2
        %s550 = scalar_lea.vmem %s3, %s549
        %v551 = vld [vmem:[%s497] sm:$0xf]
        %v552 = vld [vmem:[%s497 + $0x4] sm:$0xf]
        %v553 = vld [vmem:[%s497 + $0xc] sm:$0xf]
        %v554 = vld [vmem:[%s497 + $0x10] sm:$0xf]
        %v555 = vld [vmem:[%s497 + $0x18] sm:$0xf]
        %v556 = vld [vmem:[%s497 + $0x1c] sm:$0xf]
        %v557 = vld [vmem:[%s497 + $0x24] sm:$0xf]
        %v558 = vld [vmem:[%s497 + $0x28] sm:$0xf]
        %v559 = vld [vmem:[%s497 + $0x30] sm:$0xf]
        %v560 = vld [vmem:[%s497 + $0x34] sm:$0xf]
        %v561 = vld [vmem:[%s497 + $0x3c] sm:$0xf]
        %v562 = vld [vmem:[%s497 + $0x40] sm:$0xf]
        %v563 = vld [vmem:[%s497 + $0x48] sm:$0xf]
        %v564 = vld [vmem:[%s497 + $0x4c] sm:$0xf]
        %v565 = vld [vmem:[%s497 + $0x54] sm:$0xf]
        %v566 = vld [vmem:[%s497 + $0x58] sm:$0xf]
        %v567 = vld [vmem:[%s497 + $0x8] sm:$0x1]
        %v568 = vld [vmem:[%s497 + $0x14] sm:$0x1]
        %v569 = vld [vmem:[%s497 + $0x20] sm:$0x1]
        %v570 = vld [vmem:[%s497 + $0x2c] sm:$0x1]
        %v571 = vld [vmem:[%s497 + $0x38] sm:$0x1]
        %v572 = vld [vmem:[%s497 + $0x44] sm:$0x1]
        %v573 = vld [vmem:[%s497 + $0x50] sm:$0x1]
        %v574 = vld [vmem:[%s497 + $0x5c] sm:$0x1]
        %vm575 = vsmask.f32 3328
        %vm576 = vsmask.f32 7440
        %vm577 = vmor %vm575, %vm576
        %v579 = vshrl.u32 %v551, 16
        %v581 = vrot.slane %v579, 4
        %v582 = vshll.u32 %v551, 16
        %v584 = vrot.slane %v582, 5
        %v585 = vor.u32 %v581, %v584
        %v586 = vrot.slane %v585, 4
        %v588 = vshll.u32 %v552, 16
        %v590 = vrot.slane %v588, 5
        %v591 = vsel %vm577, %v586, %v590
        %v592 = vshrl.u32 %v552, 16
        %v594 = vrot.slane %v592, 4
        %v595 = vor.u32 %v594, %v590
        %v596 = vrot.slane %v595, 4
        %v598 = vshll.u32 %v567, 16
        %v600 = vrot.slane %v598, 5
        %v601 = vsel %vm577, %v596, %v600
        %v603 = vshrl.u32 %v553, 16
        %v605 = vrot.slane %v603, 4
        %v606 = vshll.u32 %v553, 16
        %v608 = vrot.slane %v606, 5
        %v609 = vor.u32 %v605, %v608
        %v610 = vrot.slane %v609, 4
        %v612 = vshll.u32 %v554, 16
        %v614 = vrot.slane %v612, 5
        %v615 = vsel %vm577, %v610, %v614
        %v616 = vshrl.u32 %v554, 16
        %v618 = vrot.slane %v616, 4
        %v619 = vor.u32 %v618, %v614
        %v620 = vrot.slane %v619, 4
        %v622 = vshll.u32 %v568, 16
        %v624 = vrot.slane %v622, 5
        %v625 = vsel %vm577, %v620, %v624
        %v627 = vshrl.u32 %v555, 16
        %v629 = vrot.slane %v627, 4
        %v630 = vshll.u32 %v555, 16
        %v632 = vrot.slane %v630, 5
        %v633 = vor.u32 %v629, %v632
        %v634 = vrot.slane %v633, 4
        %v636 = vshll.u32 %v556, 16
        %v638 = vrot.slane %v636, 5
        %v639 = vsel %vm577, %v634, %v638
        %v640 = vshrl.u32 %v556, 16
        %v642 = vrot.slane %v640, 4
        %v643 = vor.u32 %v642, %v638
        %v644 = vrot.slane %v643, 4
        %v646 = vshll.u32 %v569, 16
        %v648 = vrot.slane %v646, 5
        %v649 = vsel %vm577, %v644, %v648
        %v651 = vshrl.u32 %v557, 16
        %v653 = vrot.slane %v651, 4
        %v654 = vshll.u32 %v557, 16
        %v656 = vrot.slane %v654, 5
        %v657 = vor.u32 %v653, %v656
        %v658 = vrot.slane %v657, 4
        %v660 = vshll.u32 %v558, 16
        %v662 = vrot.slane %v660, 5
        %v663 = vsel %vm577, %v658, %v662
        %v664 = vshrl.u32 %v558, 16
        %v666 = vrot.slane %v664, 4
        %v667 = vor.u32 %v666, %v662
        %v668 = vrot.slane %v667, 4
        %v670 = vshll.u32 %v570, 16
        %v672 = vrot.slane %v670, 5
        %v673 = vsel %vm577, %v668, %v672
        %v675 = vshrl.u32 %v559, 16
        %v677 = vrot.slane %v675, 4
        %v678 = vshll.u32 %v559, 16
        %v680 = vrot.slane %v678, 5
        %v681 = vor.u32 %v677, %v680
        %v682 = vrot.slane %v681, 4
        %v684 = vshll.u32 %v560, 16
        %v686 = vrot.slane %v684, 5
        %v687 = vsel %vm577, %v682, %v686
        %v688 = vshrl.u32 %v560, 16
        %v690 = vrot.slane %v688, 4
        %v691 = vor.u32 %v690, %v686
        %v692 = vrot.slane %v691, 4
        %v694 = vshll.u32 %v571, 16
        %v696 = vrot.slane %v694, 5
        %v697 = vsel %vm577, %v692, %v696
        %v699 = vshrl.u32 %v561, 16
        %v701 = vrot.slane %v699, 4
        %v702 = vshll.u32 %v561, 16
        %v704 = vrot.slane %v702, 5
        %v705 = vor.u32 %v701, %v704
        %v706 = vrot.slane %v705, 4
        %v708 = vshll.u32 %v562, 16
        %v710 = vrot.slane %v708, 5
        %v711 = vsel %vm577, %v706, %v710
        %v712 = vshrl.u32 %v562, 16
        %v714 = vrot.slane %v712, 4
        %v715 = vor.u32 %v714, %v710
        %v716 = vrot.slane %v715, 4
        %v718 = vshll.u32 %v572, 16
        %v720 = vrot.slane %v718, 5
        %v721 = vsel %vm577, %v716, %v720
        %v723 = vshrl.u32 %v563, 16
        %v725 = vrot.slane %v723, 4
        %v726 = vshll.u32 %v563, 16
        %v728 = vrot.slane %v726, 5
        %v729 = vor.u32 %v725, %v728
        %v730 = vrot.slane %v729, 4
        %v732 = vshll.u32 %v564, 16
        %v734 = vrot.slane %v732, 5
        %v735 = vsel %vm577, %v730, %v734
        %v736 = vshrl.u32 %v564, 16
        %v738 = vrot.slane %v736, 4
        %v739 = vor.u32 %v738, %v734
        %v740 = vrot.slane %v739, 4
        %v742 = vshll.u32 %v573, 16
        %v744 = vrot.slane %v742, 5
        %v745 = vsel %vm577, %v740, %v744
        %v747 = vshrl.u32 %v565, 16
        %v749 = vrot.slane %v747, 4
        %v750 = vshll.u32 %v565, 16
        %v752 = vrot.slane %v750, 5
        %v753 = vor.u32 %v749, %v752
        %v754 = vrot.slane %v753, 4
        %v756 = vshll.u32 %v566, 16
        %v758 = vrot.slane %v756, 5
        %v759 = vsel %vm577, %v754, %v758
        %v760 = vshrl.u32 %v566, 16
        %v762 = vrot.slane %v760, 4
        %v763 = vor.u32 %v762, %v758
        %v764 = vrot.slane %v763, 4
        %v766 = vshll.u32 %v574, 16
        %v768 = vrot.slane %v766, 5
        %v769 = vsel %vm577, %v764, %v768
        %v770 = vld [vmem:[%s497] sm:$0xe]
        %v771 = vld [vmem:[%s497 + $0xc] sm:$0xe]
        %v772 = vld [vmem:[%s497 + $0x18] sm:$0xe]
        %v773 = vld [vmem:[%s497 + $0x24] sm:$0xe]
        %v774 = vld [vmem:[%s497 + $0x30] sm:$0xe]
        %v775 = vld [vmem:[%s497 + $0x3c] sm:$0xe]
        %v776 = vld [vmem:[%s497 + $0x48] sm:$0xe]
        %v777 = vld [vmem:[%s497 + $0x54] sm:$0xe]
        %vm802 = vcmask 1042432
        %vm803 = vcmask 1046532
        %vm804 = vmor %vm802, %vm803
        %v805 = vrot.slane %v770, 5
        %v806 = vrot.slane %v805, 4
        %v807 = vrot.slane %v552, 5
        %v808 = vsel %vm804, %v806, %v807
        %v809 = vrot.slane %v807, 4
        %v810 = vrot.slane %v567, 5
        %v811 = vsel %vm804, %v809, %v810
        %v812 = vrot.slane %v771, 5
        %v813 = vrot.slane %v812, 4
        %v814 = vrot.slane %v554, 5
        %v815 = vsel %vm804, %v813, %v814
        %v816 = vrot.slane %v814, 4
        %v817 = vrot.slane %v568, 5
        %v818 = vsel %vm804, %v816, %v817
        %v819 = vrot.slane %v772, 5
        %v820 = vrot.slane %v819, 4
        %v821 = vrot.slane %v556, 5
        %v822 = vsel %vm804, %v820, %v821
        %v823 = vrot.slane %v821, 4
        %v824 = vrot.slane %v569, 5
        %v825 = vsel %vm804, %v823, %v824
        %v826 = vrot.slane %v773, 5
        %v827 = vrot.slane %v826, 4
        %v828 = vrot.slane %v558, 5
        %v829 = vsel %vm804, %v827, %v828
        %v830 = vrot.slane %v828, 4
        %v831 = vrot.slane %v570, 5
        %v832 = vsel %vm804, %v830, %v831
        %v833 = vrot.slane %v774, 5
        %v834 = vrot.slane %v833, 4
        %v835 = vrot.slane %v560, 5
        %v836 = vsel %vm804, %v834, %v835
        %v837 = vrot.slane %v835, 4
        %v838 = vrot.slane %v571, 5
        %v839 = vsel %vm804, %v837, %v838
        %v840 = vrot.slane %v775, 5
        %v841 = vrot.slane %v840, 4
        %v842 = vrot.slane %v562, 5
        %v843 = vsel %vm804, %v841, %v842
        %v844 = vrot.slane %v842, 4
        %v845 = vrot.slane %v572, 5
        %v846 = vsel %vm804, %v844, %v845
        %v847 = vrot.slane %v776, 5
        %v848 = vrot.slane %v847, 4
        %v849 = vrot.slane %v564, 5
        %v850 = vsel %vm804, %v848, %v849
        %v851 = vrot.slane %v849, 4
        %v852 = vrot.slane %v573, 5
        %v853 = vsel %vm804, %v851, %v852
        %v854 = vrot.slane %v777, 5
        %v855 = vrot.slane %v854, 4
        %v856 = vrot.slane %v566, 5
        %v857 = vsel %vm804, %v855, %v856
        %v858 = vrot.slane %v856, 4
        %v859 = vrot.slane %v574, 5
        %v860 = vsel %vm804, %v858, %v859
        %s861 = scalar_lea.vmem %s497, 96 [#allocation2]
        %v862 = vld [vmem:[%s861] sm:$0xf]
        %v863 = vld [vmem:[%s861 + $0x4] sm:$0xf]
        %v864 = vld [vmem:[%s861 + $0xc] sm:$0xf]
        %v865 = vld [vmem:[%s861 + $0x10] sm:$0xf]
        %v866 = vld [vmem:[%s861 + $0x18] sm:$0xf]
        %v867 = vld [vmem:[%s861 + $0x1c] sm:$0xf]
        %v868 = vld [vmem:[%s861 + $0x24] sm:$0xf]
        %v869 = vld [vmem:[%s861 + $0x28] sm:$0xf]
        %v870 = vld [vmem:[%s861 + $0x30] sm:$0xf]
        %v871 = vld [vmem:[%s861 + $0x34] sm:$0xf]
        %v872 = vld [vmem:[%s861 + $0x3c] sm:$0xf]
        %v873 = vld [vmem:[%s861 + $0x40] sm:$0xf]
        %v874 = vld [vmem:[%s861 + $0x48] sm:$0xf]
        %v875 = vld [vmem:[%s861 + $0x4c] sm:$0xf]
        %v876 = vld [vmem:[%s861 + $0x54] sm:$0xf]
        %v877 = vld [vmem:[%s861 + $0x58] sm:$0xf]
        %v878 = vld [vmem:[%s861 + $0x8] sm:$0x1]
        %v879 = vld [vmem:[%s861 + $0x14] sm:$0x1]
        %v880 = vld [vmem:[%s861 + $0x20] sm:$0x1]
        %v881 = vld [vmem:[%s861 + $0x2c] sm:$0x1]
        %v882 = vld [vmem:[%s861 + $0x38] sm:$0x1]
        %v883 = vld [vmem:[%s861 + $0x44] sm:$0x1]
        %v884 = vld [vmem:[%s861 + $0x50] sm:$0x1]
        %v885 = vld [vmem:[%s861 + $0x5c] sm:$0x1]
        %v887 = vshrl.u32 %v862, 16
        %v889 = vrot.slane %v887, 4
        %v890 = vshll.u32 %v862, 16
        %v892 = vrot.slane %v890, 5
        %v893 = vor.u32 %v889, %v892
        %v894 = vrot.slane %v893, 4
        %v896 = vshll.u32 %v863, 16
        %v898 = vrot.slane %v896, 5
        %v899 = vsel %vm577, %v894, %v898
        %v900 = vshrl.u32 %v863, 16
        %v902 = vrot.slane %v900, 4
        %v903 = vor.u32 %v902, %v898
        %v904 = vrot.slane %v903, 4
        %v906 = vshll.u32 %v878, 16
        %v908 = vrot.slane %v906, 5
        %v909 = vsel %vm577, %v904, %v908
        %v911 = vshrl.u32 %v864, 16
        %v913 = vrot.slane %v911, 4
        %v914 = vshll.u32 %v864, 16
        %v916 = vrot.slane %v914, 5
        %v917 = vor.u32 %v913, %v916
        %v918 = vrot.slane %v917, 4
        %v920 = vshll.u32 %v865, 16
        %v922 = vrot.slane %v920, 5
        %v923 = vsel %vm577, %v918, %v922
        %v924 = vshrl.u32 %v865, 16
        %v926 = vrot.slane %v924, 4
        %v927 = vor.u32 %v926, %v922
        %v928 = vrot.slane %v927, 4
        %v930 = vshll.u32 %v879, 16
        %v932 = vrot.slane %v930, 5
        %v933 = vsel %vm577, %v928, %v932
        %v935 = vshrl.u32 %v866, 16
        %v937 = vrot.slane %v935, 4
        %v938 = vshll.u32 %v866, 16
        %v940 = vrot.slane %v938, 5
        %v941 = vor.u32 %v937, %v940
        %v942 = vrot.slane %v941, 4
        %v944 = vshll.u32 %v867, 16
        %v946 = vrot.slane %v944, 5
        %v947 = vsel %vm577, %v942, %v946
        %v948 = vshrl.u32 %v867, 16
        %v950 = vrot.slane %v948, 4
        %v951 = vor.u32 %v950, %v946
        %v952 = vrot.slane %v951, 4
        %v954 = vshll.u32 %v880, 16
        %v956 = vrot.slane %v954, 5
        %v957 = vsel %vm577, %v952, %v956
        %v959 = vshrl.u32 %v868, 16
        %v961 = vrot.slane %v959, 4
        %v962 = vshll.u32 %v868, 16
        %v964 = vrot.slane %v962, 5
        %v965 = vor.u32 %v961, %v964
        %v966 = vrot.slane %v965, 4
        %v968 = vshll.u32 %v869, 16
        %v970 = vrot.slane %v968, 5
        %v971 = vsel %vm577, %v966, %v970
        %v972 = vshrl.u32 %v869, 16
        %v974 = vrot.slane %v972, 4
        %v975 = vor.u32 %v974, %v970
        %v976 = vrot.slane %v975, 4
        %v978 = vshll.u32 %v881, 16
        %v980 = vrot.slane %v978, 5
        %v981 = vsel %vm577, %v976, %v980
        %v983 = vshrl.u32 %v870, 16
        %v985 = vrot.slane %v983, 4
        %v986 = vshll.u32 %v870, 16
        %v988 = vrot.slane %v986, 5
        %v989 = vor.u32 %v985, %v988
        %v990 = vrot.slane %v989, 4
        %v992 = vshll.u32 %v871, 16
        %v994 = vrot.slane %v992, 5
        %v995 = vsel %vm577, %v990, %v994
        %v996 = vshrl.u32 %v871, 16
        %v998 = vrot.slane %v996, 4
        %v999 = vor.u32 %v998, %v994
        %v1000 = vrot.slane %v999, 4
        %v1002 = vshll.u32 %v882, 16
        %v1004 = vrot.slane %v1002, 5
        %v1005 = vsel %vm577, %v1000, %v1004
        %v1007 = vshrl.u32 %v872, 16
        %v1009 = vrot.slane %v1007, 4
        %v1010 = vshll.u32 %v872, 16
        %v1012 = vrot.slane %v1010, 5
        %v1013 = vor.u32 %v1009, %v1012
        %v1014 = vrot.slane %v1013, 4
        %v1016 = vshll.u32 %v873, 16
        %v1018 = vrot.slane %v1016, 5
        %v1019 = vsel %vm577, %v1014, %v1018
        %v1020 = vshrl.u32 %v873, 16
        %v1022 = vrot.slane %v1020, 4
        %v1023 = vor.u32 %v1022, %v1018
        %v1024 = vrot.slane %v1023, 4
        %v1026 = vshll.u32 %v883, 16
        %v1028 = vrot.slane %v1026, 5
        %v1029 = vsel %vm577, %v1024, %v1028
        %v1031 = vshrl.u32 %v874, 16
        %v1033 = vrot.slane %v1031, 4
        %v1034 = vshll.u32 %v874, 16
        %v1036 = vrot.slane %v1034, 5
        %v1037 = vor.u32 %v1033, %v1036
        %v1038 = vrot.slane %v1037, 4
        %v1040 = vshll.u32 %v875, 16
        %v1042 = vrot.slane %v1040, 5
        %v1043 = vsel %vm577, %v1038, %v1042
        %v1044 = vshrl.u32 %v875, 16
        %v1046 = vrot.slane %v1044, 4
        %v1047 = vor.u32 %v1046, %v1042
        %v1048 = vrot.slane %v1047, 4
        %v1050 = vshll.u32 %v884, 16
        %v1052 = vrot.slane %v1050, 5
        %v1053 = vsel %vm577, %v1048, %v1052
        %v1055 = vshrl.u32 %v876, 16
        %v1057 = vrot.slane %v1055, 4
        %v1058 = vshll.u32 %v876, 16
        %v1060 = vrot.slane %v1058, 5
        %v1061 = vor.u32 %v1057, %v1060
        %v1062 = vrot.slane %v1061, 4
        %v1064 = vshll.u32 %v877, 16
        %v1066 = vrot.slane %v1064, 5
        %v1067 = vsel %vm577, %v1062, %v1066
        %v1068 = vshrl.u32 %v877, 16
        %v1070 = vrot.slane %v1068, 4
        %v1071 = vor.u32 %v1070, %v1066
        %v1072 = vrot.slane %v1071, 4
        %v1074 = vshll.u32 %v885, 16
        %v1076 = vrot.slane %v1074, 5
        %v1077 = vsel %vm577, %v1072, %v1076
        %v1078 = vld [vmem:[%s861] sm:$0xe]
        %v1079 = vld [vmem:[%s861 + $0xc] sm:$0xe]
        %v1080 = vld [vmem:[%s861 + $0x18] sm:$0xe]
        %v1081 = vld [vmem:[%s861 + $0x24] sm:$0xe]
        %v1082 = vld [vmem:[%s861 + $0x30] sm:$0xe]
        %v1083 = vld [vmem:[%s861 + $0x3c] sm:$0xe]
        %v1084 = vld [vmem:[%s861 + $0x48] sm:$0xe]
        %v1085 = vld [vmem:[%s861 + $0x54] sm:$0xe]
        %v1110 = vrot.slane %v1078, 5
        %v1111 = vrot.slane %v1110, 4
        %v1112 = vrot.slane %v863, 5
        %v1113 = vsel %vm804, %v1111, %v1112
        %v1114 = vrot.slane %v1112, 4
        %v1115 = vrot.slane %v878, 5
        %v1116 = vsel %vm804, %v1114, %v1115
        %v1117 = vrot.slane %v1079, 5
        %v1118 = vrot.slane %v1117, 4
        %v1119 = vrot.slane %v865, 5
        %v1120 = vsel %vm804, %v1118, %v1119
        %v1121 = vrot.slane %v1119, 4
        %v1122 = vrot.slane %v879, 5
        %v1123 = vsel %vm804, %v1121, %v1122
        %v1124 = vrot.slane %v1080, 5
        %v1125 = vrot.slane %v1124, 4
        %v1126 = vrot.slane %v867, 5
        %v1127 = vsel %vm804, %v1125, %v1126
        %v1128 = vrot.slane %v1126, 4
        %v1129 = vrot.slane %v880, 5
        %v1130 = vsel %vm804, %v1128, %v1129
        %v1131 = vrot.slane %v1081, 5
        %v1132 = vrot.slane %v1131, 4
        %v1133 = vrot.slane %v869, 5
        %v1134 = vsel %vm804, %v1132, %v1133
        %v1135 = vrot.slane %v1133, 4
        %v1136 = vrot.slane %v881, 5
        %v1137 = vsel %vm804, %v1135, %v1136
        %v1138 = vrot.slane %v1082, 5
        %v1139 = vrot.slane %v1138, 4
        %v1140 = vrot.slane %v871, 5
        %v1141 = vsel %vm804, %v1139, %v1140
        %v1142 = vrot.slane %v1140, 4
        %v1143 = vrot.slane %v882, 5
        %v1144 = vsel %vm804, %v1142, %v1143
        %v1145 = vrot.slane %v1083, 5
        %v1146 = vrot.slane %v1145, 4
        %v1147 = vrot.slane %v873, 5
        %v1148 = vsel %vm804, %v1146, %v1147
        %v1149 = vrot.slane %v1147, 4
        %v1150 = vrot.slane %v883, 5
        %v1151 = vsel %vm804, %v1149, %v1150
        %v1152 = vrot.slane %v1084, 5
        %v1153 = vrot.slane %v1152, 4
        %v1154 = vrot.slane %v875, 5
        %v1155 = vsel %vm804, %v1153, %v1154
        %v1156 = vrot.slane %v1154, 4
        %v1157 = vrot.slane %v884, 5
        %v1158 = vsel %vm804, %v1156, %v1157
        %v1159 = vrot.slane %v1085, 5
        %v1160 = vrot.slane %v1159, 4
        %v1161 = vrot.slane %v877, 5
        %v1162 = vsel %vm804, %v1160, %v1161
        %v1163 = vrot.slane %v1161, 4
        %v1164 = vrot.slane %v885, 5
        %v1165 = vsel %vm804, %v1163, %v1164
        %s1166 = scalar_lea.vmem %s497, 192 [#allocation2]
        %v1167 = vld [vmem:[%s1166] sm:$0xf]
        %v1168 = vld [vmem:[%s1166 + $0x4] sm:$0xf]
        %v1169 = vld [vmem:[%s1166 + $0xc] sm:$0xf]
        %v1170 = vld [vmem:[%s1166 + $0x10] sm:$0xf]
        %v1171 = vld [vmem:[%s1166 + $0x18] sm:$0xf]
        %v1172 = vld [vmem:[%s1166 + $0x1c] sm:$0xf]
        %v1173 = vld [vmem:[%s1166 + $0x24] sm:$0xf]
        %v1174 = vld [vmem:[%s1166 + $0x28] sm:$0xf]
        %v1175 = vld [vmem:[%s1166 + $0x30] sm:$0xf]
        %v1176 = vld [vmem:[%s1166 + $0x34] sm:$0xf]
        %v1177 = vld [vmem:[%s1166 + $0x3c] sm:$0xf]
        %v1178 = vld [vmem:[%s1166 + $0x40] sm:$0xf]
        %v1179 = vld [vmem:[%s1166 + $0x48] sm:$0xf]
        %v1180 = vld [vmem:[%s1166 + $0x4c] sm:$0xf]
        %v1181 = vld [vmem:[%s1166 + $0x54] sm:$0xf]
        %v1182 = vld [vmem:[%s1166 + $0x58] sm:$0xf]
        %v1183 = vld [vmem:[%s1166 + $0x8] sm:$0x1]
        %v1184 = vld [vmem:[%s1166 + $0x14] sm:$0x1]
        %v1185 = vld [vmem:[%s1166 + $0x20] sm:$0x1]
        %v1186 = vld [vmem:[%s1166 + $0x2c] sm:$0x1]
        %v1187 = vld [vmem:[%s1166 + $0x38] sm:$0x1]
        %v1188 = vld [vmem:[%s1166 + $0x44] sm:$0x1]
        %v1189 = vld [vmem:[%s1166 + $0x50] sm:$0x1]
        %v1190 = vld [vmem:[%s1166 + $0x5c] sm:$0x1]
        %v1192 = vshrl.u32 %v1167, 16
        %v1194 = vrot.slane %v1192, 4
        %v1195 = vshll.u32 %v1167, 16
        %v1197 = vrot.slane %v1195, 5
        %v1198 = vor.u32 %v1194, %v1197
        %v1199 = vrot.slane %v1198, 4
        %v1201 = vshll.u32 %v1168, 16
        %v1203 = vrot.slane %v1201, 5
        %v1204 = vsel %vm577, %v1199, %v1203
        %v1205 = vshrl.u32 %v1168, 16
        %v1207 = vrot.slane %v1205, 4
        %v1208 = vor.u32 %v1207, %v1203
        %v1209 = vrot.slane %v1208, 4
        %v1211 = vshll.u32 %v1183, 16
        %v1213 = vrot.slane %v1211, 5
        %v1214 = vsel %vm577, %v1209, %v1213
        %v1216 = vshrl.u32 %v1169, 16
        %v1218 = vrot.slane %v1216, 4
        %v1219 = vshll.u32 %v1169, 16
        %v1221 = vrot.slane %v1219, 5
        %v1222 = vor.u32 %v1218, %v1221
        %v1223 = vrot.slane %v1222, 4
        %v1225 = vshll.u32 %v1170, 16
        %v1227 = vrot.slane %v1225, 5
        %v1228 = vsel %vm577, %v1223, %v1227
        %v1229 = vshrl.u32 %v1170, 16
        %v1231 = vrot.slane %v1229, 4
        %v1232 = vor.u32 %v1231, %v1227
        %v1233 = vrot.slane %v1232, 4
        %v1235 = vshll.u32 %v1184, 16
        %v1237 = vrot.slane %v1235, 5
        %v1238 = vsel %vm577, %v1233, %v1237
        %v1240 = vshrl.u32 %v1171, 16
        %v1242 = vrot.slane %v1240, 4
        %v1243 = vshll.u32 %v1171, 16
        %v1245 = vrot.slane %v1243, 5
        %v1246 = vor.u32 %v1242, %v1245
        %v1247 = vrot.slane %v1246, 4
        %v1249 = vshll.u32 %v1172, 16
        %v1251 = vrot.slane %v1249, 5
        %v1252 = vsel %vm577, %v1247, %v1251
        %v1253 = vshrl.u32 %v1172, 16
        %v1255 = vrot.slane %v1253, 4
        %v1256 = vor.u32 %v1255, %v1251
        %v1257 = vrot.slane %v1256, 4
        %v1259 = vshll.u32 %v1185, 16
        %v1261 = vrot.slane %v1259, 5
        %v1262 = vsel %vm577, %v1257, %v1261
        %v1264 = vshrl.u32 %v1173, 16
        %v1266 = vrot.slane %v1264, 4
        %v1267 = vshll.u32 %v1173, 16
        %v1269 = vrot.slane %v1267, 5
        %v1270 = vor.u32 %v1266, %v1269
        %v1271 = vrot.slane %v1270, 4
        %v1273 = vshll.u32 %v1174, 16
        %v1275 = vrot.slane %v1273, 5
        %v1276 = vsel %vm577, %v1271, %v1275
        %v1277 = vshrl.u32 %v1174, 16
        %v1279 = vrot.slane %v1277, 4
        %v1280 = vor.u32 %v1279, %v1275
        %v1281 = vrot.slane %v1280, 4
        %v1283 = vshll.u32 %v1186, 16
        %v1285 = vrot.slane %v1283, 5
        %v1286 = vsel %vm577, %v1281, %v1285
        %v1288 = vshrl.u32 %v1175, 16
        %v1290 = vrot.slane %v1288, 4
        %v1291 = vshll.u32 %v1175, 16
        %v1293 = vrot.slane %v1291, 5
        %v1294 = vor.u32 %v1290, %v1293
        %v1295 = vrot.slane %v1294, 4
        %v1297 = vshll.u32 %v1176, 16
        %v1299 = vrot.slane %v1297, 5
        %v1300 = vsel %vm577, %v1295, %v1299
        %v1301 = vshrl.u32 %v1176, 16
        %v1303 = vrot.slane %v1301, 4
        %v1304 = vor.u32 %v1303, %v1299
        %v1305 = vrot.slane %v1304, 4
        %v1307 = vshll.u32 %v1187, 16
        %v1309 = vrot.slane %v1307, 5
        %v1310 = vsel %vm577, %v1305, %v1309
        %v1312 = vshrl.u32 %v1177, 16
        %v1314 = vrot.slane %v1312, 4
        %v1315 = vshll.u32 %v1177, 16
        %v1317 = vrot.slane %v1315, 5
        %v1318 = vor.u32 %v1314, %v1317
        %v1319 = vrot.slane %v1318, 4
        %v1321 = vshll.u32 %v1178, 16
        %v1323 = vrot.slane %v1321, 5
        %v1324 = vsel %vm577, %v1319, %v1323
        %v1325 = vshrl.u32 %v1178, 16
        %v1327 = vrot.slane %v1325, 4
        %v1328 = vor.u32 %v1327, %v1323
        %v1329 = vrot.slane %v1328, 4
        %v1331 = vshll.u32 %v1188, 16
        %v1333 = vrot.slane %v1331, 5
        %v1334 = vsel %vm577, %v1329, %v1333
        %v1336 = vshrl.u32 %v1179, 16
        %v1338 = vrot.slane %v1336, 4
        %v1339 = vshll.u32 %v1179, 16
        %v1341 = vrot.slane %v1339, 5
        %v1342 = vor.u32 %v1338, %v1341
        %v1343 = vrot.slane %v1342, 4
        %v1345 = vshll.u32 %v1180, 16
        %v1347 = vrot.slane %v1345, 5
        %v1348 = vsel %vm577, %v1343, %v1347
        %v1349 = vshrl.u32 %v1180, 16
        %v1351 = vrot.slane %v1349, 4
        %v1352 = vor.u32 %v1351, %v1347
        %v1353 = vrot.slane %v1352, 4
        %v1355 = vshll.u32 %v1189, 16
        %v1357 = vrot.slane %v1355, 5
        %v1358 = vsel %vm577, %v1353, %v1357
        %v1360 = vshrl.u32 %v1181, 16
        %v1362 = vrot.slane %v1360, 4
        %v1363 = vshll.u32 %v1181, 16
        %v1365 = vrot.slane %v1363, 5
        %v1366 = vor.u32 %v1362, %v1365
        %v1367 = vrot.slane %v1366, 4
        %v1369 = vshll.u32 %v1182, 16
        %v1371 = vrot.slane %v1369, 5
        %v1372 = vsel %vm577, %v1367, %v1371
        %v1373 = vshrl.u32 %v1182, 16
        %v1375 = vrot.slane %v1373, 4
        %v1376 = vor.u32 %v1375, %v1371
        %v1377 = vrot.slane %v1376, 4
        %v1379 = vshll.u32 %v1190, 16
        %v1381 = vrot.slane %v1379, 5
        %v1382 = vsel %vm577, %v1377, %v1381
        %v1383 = vld [vmem:[%s1166] sm:$0xe]
        %v1384 = vld [vmem:[%s1166 + $0xc] sm:$0xe]
        %v1385 = vld [vmem:[%s1166 + $0x18] sm:$0xe]
        %v1386 = vld [vmem:[%s1166 + $0x24] sm:$0xe]
        %v1387 = vld [vmem:[%s1166 + $0x30] sm:$0xe]
        %v1388 = vld [vmem:[%s1166 + $0x3c] sm:$0xe]
        %v1389 = vld [vmem:[%s1166 + $0x48] sm:$0xe]
        %v1390 = vld [vmem:[%s1166 + $0x54] sm:$0xe]
        %v1415 = vrot.slane %v1383, 5
        %v1416 = vrot.slane %v1415, 4
        %v1417 = vrot.slane %v1168, 5
        %v1418 = vsel %vm804, %v1416, %v1417
        %v1419 = vrot.slane %v1417, 4
        %v1420 = vrot.slane %v1183, 5
        %v1421 = vsel %vm804, %v1419, %v1420
        %v1422 = vrot.slane %v1384, 5
        %v1423 = vrot.slane %v1422, 4
        %v1424 = vrot.slane %v1170, 5
        %v1425 = vsel %vm804, %v1423, %v1424
        %v1426 = vrot.slane %v1424, 4
        %v1427 = vrot.slane %v1184, 5
        %v1428 = vsel %vm804, %v1426, %v1427
        %v1429 = vrot.slane %v1385, 5
        %v1430 = vrot.slane %v1429, 4
        %v1431 = vrot.slane %v1172, 5
        %v1432 = vsel %vm804, %v1430, %v1431
        %v1433 = vrot.slane %v1431, 4
        %v1434 = vrot.slane %v1185, 5
        %v1435 = vsel %vm804, %v1433, %v1434
        %v1436 = vrot.slane %v1386, 5
        %v1437 = vrot.slane %v1436, 4
        %v1438 = vrot.slane %v1174, 5
        %v1439 = vsel %vm804, %v1437, %v1438
        %v1440 = vrot.slane %v1438, 4
        %v1441 = vrot.slane %v1186, 5
        %v1442 = vsel %vm804, %v1440, %v1441
        %v1443 = vrot.slane %v1387, 5
        %v1444 = vrot.slane %v1443, 4
        %v1445 = vrot.slane %v1176, 5
        %v1446 = vsel %vm804, %v1444, %v1445
        %v1447 = vrot.slane %v1445, 4
        %v1448 = vrot.slane %v1187, 5
        %v1449 = vsel %vm804, %v1447, %v1448
        %v1450 = vrot.slane %v1388, 5
        %v1451 = vrot.slane %v1450, 4
        %v1452 = vrot.slane %v1178, 5
        %v1453 = vsel %vm804, %v1451, %v1452
        %v1454 = vrot.slane %v1452, 4
        %v1455 = vrot.slane %v1188, 5
        %v1456 = vsel %vm804, %v1454, %v1455
        %v1457 = vrot.slane %v1389, 5
        %v1458 = vrot.slane %v1457, 4
        %v1459 = vrot.slane %v1180, 5
        %v1460 = vsel %vm804, %v1458, %v1459
        %v1461 = vrot.slane %v1459, 4
        %v1462 = vrot.slane %v1189, 5
        %v1463 = vsel %vm804, %v1461, %v1462
        %v1464 = vrot.slane %v1390, 5
        %v1465 = vrot.slane %v1464, 4
        %v1466 = vrot.slane %v1182, 5
        %v1467 = vsel %vm804, %v1465, %v1466
        %v1468 = vrot.slane %v1466, 4
        %v1469 = vrot.slane %v1190, 5
        %v1470 = vsel %vm804, %v1468, %v1469
        %v1479 = vunpack.c.l.b16 %v551
        %v1480 = vunpack.c.l.b16 %v552
        %v1481 = vunpack.c.l.b16 %v553
        %v1482 = vunpack.c.l.b16 %v554
        %v1483 = vunpack.c.l.b16 %v555
        %v1484 = vunpack.c.l.b16 %v556
        %v1485 = vunpack.c.l.b16 %v557
        %v1486 = vunpack.c.l.b16 %v558
        %v1487 = vunpack.c.l.b16 %v559
        %v1488 = vunpack.c.l.b16 %v560
        %v1489 = vunpack.c.l.b16 %v561
        %v1490 = vunpack.c.l.b16 %v562
        %v1491 = vunpack.c.l.b16 %v563
        %v1492 = vunpack.c.l.b16 %v564
        %v1493 = vunpack.c.l.b16 %v565
        %v1494 = vunpack.c.l.b16 %v566
        %v1495 = vpack.c.b16 %v1480, %v1479
        %v1496 = vpack.c.b16 %v1482, %v1481
        %v1497 = vpack.c.b16 %v1484, %v1483
        %v1498 = vpack.c.b16 %v1486, %v1485
        %v1499 = vpack.c.b16 %v1488, %v1487
        %v1500 = vpack.c.b16 %v1490, %v1489
        %v1501 = vpack.c.b16 %v1492, %v1491
        %v1502 = vpack.c.b16 %v1494, %v1493
        %v1511 = vunpack.c.l.b16 %v591
        %v1512 = vunpack.c.l.b16 %v601
        %v1513 = vunpack.c.l.b16 %v615
        %v1514 = vunpack.c.l.b16 %v625
        %v1515 = vunpack.c.l.b16 %v639
        %v1516 = vunpack.c.l.b16 %v649
        %v1517 = vunpack.c.l.b16 %v663
        %v1518 = vunpack.c.l.b16 %v673
        %v1519 = vunpack.c.l.b16 %v687
        %v1520 = vunpack.c.l.b16 %v697
        %v1521 = vunpack.c.l.b16 %v711
        %v1522 = vunpack.c.l.b16 %v721
        %v1523 = vunpack.c.l.b16 %v735
        %v1524 = vunpack.c.l.b16 %v745
        %v1525 = vunpack.c.l.b16 %v759
        %v1526 = vunpack.c.l.b16 %v769
        %v1527 = vpack.c.b16 %v1512, %v1511
        %v1528 = vpack.c.b16 %v1514, %v1513
        %v1529 = vpack.c.b16 %v1516, %v1515
        %v1530 = vpack.c.b16 %v1518, %v1517
        %v1531 = vpack.c.b16 %v1520, %v1519
        %v1532 = vpack.c.b16 %v1522, %v1521
        %v1533 = vpack.c.b16 %v1524, %v1523
        %v1534 = vpack.c.b16 %v1526, %v1525
        %v1543 = vunpack.c.l.b16 %v808
        %v1544 = vunpack.c.l.b16 %v811
        %v1545 = vunpack.c.l.b16 %v815
        %v1546 = vunpack.c.l.b16 %v818
        %v1547 = vunpack.c.l.b16 %v822
        %v1548 = vunpack.c.l.b16 %v825
        %v1549 = vunpack.c.l.b16 %v829
        %v1550 = vunpack.c.l.b16 %v832
        %v1551 = vunpack.c.l.b16 %v836
        %v1552 = vunpack.c.l.b16 %v839
        %v1553 = vunpack.c.l.b16 %v843
        %v1554 = vunpack.c.l.b16 %v846
        %v1555 = vunpack.c.l.b16 %v850
        %v1556 = vunpack.c.l.b16 %v853
        %v1557 = vunpack.c.l.b16 %v857
        %v1558 = vunpack.c.l.b16 %v860
        %v1559 = vpack.c.b16 %v1544, %v1543
        %v1560 = vpack.c.b16 %v1546, %v1545
        %v1561 = vpack.c.b16 %v1548, %v1547
        %v1562 = vpack.c.b16 %v1550, %v1549
        %v1563 = vpack.c.b16 %v1552, %v1551
        %v1564 = vpack.c.b16 %v1554, %v1553
        %v1565 = vpack.c.b16 %v1556, %v1555
        %v1566 = vpack.c.b16 %v1558, %v1557
        %v1583 = vunpack.c.l.b16 %v862
        %v1584 = vunpack.c.l.b16 %v863
        %v1585 = vunpack.c.l.b16 %v864
        %v1586 = vunpack.c.l.b16 %v865
        %v1587 = vunpack.c.l.b16 %v866
        %v1588 = vunpack.c.l.b16 %v867
        %v1589 = vunpack.c.l.b16 %v868
        %v1590 = vunpack.c.l.b16 %v869
        %v1591 = vunpack.c.l.b16 %v870
        %v1592 = vunpack.c.l.b16 %v871
        %v1593 = vunpack.c.l.b16 %v872
        %v1594 = vunpack.c.l.b16 %v873
        %v1595 = vunpack.c.l.b16 %v874
        %v1596 = vunpack.c.l.b16 %v875
        %v1597 = vunpack.c.l.b16 %v876
        %v1598 = vunpack.c.l.b16 %v877
        %v1599 = vpack.c.b16 %v1584, %v1583
        %v1600 = vpack.c.b16 %v1586, %v1585
        %v1601 = vpack.c.b16 %v1588, %v1587
        %v1602 = vpack.c.b16 %v1590, %v1589
        %v1603 = vpack.c.b16 %v1592, %v1591
        %v1604 = vpack.c.b16 %v1594, %v1593
        %v1605 = vpack.c.b16 %v1596, %v1595
        %v1606 = vpack.c.b16 %v1598, %v1597
        %v1615 = vunpack.c.l.b16 %v899
        %v1616 = vunpack.c.l.b16 %v909
        %v1617 = vunpack.c.l.b16 %v923
        %v1618 = vunpack.c.l.b16 %v933
        %v1619 = vunpack.c.l.b16 %v947
        %v1620 = vunpack.c.l.b16 %v957
        %v1621 = vunpack.c.l.b16 %v971
        %v1622 = vunpack.c.l.b16 %v981
        %v1623 = vunpack.c.l.b16 %v995
        %v1624 = vunpack.c.l.b16 %v1005
        %v1625 = vunpack.c.l.b16 %v1019
        %v1626 = vunpack.c.l.b16 %v1029
        %v1627 = vunpack.c.l.b16 %v1043
        %v1628 = vunpack.c.l.b16 %v1053
        %v1629 = vunpack.c.l.b16 %v1067
        %v1630 = vunpack.c.l.b16 %v1077
        %v1631 = vpack.c.b16 %v1616, %v1615
        %v1632 = vpack.c.b16 %v1618, %v1617
        %v1633 = vpack.c.b16 %v1620, %v1619
        %v1634 = vpack.c.b16 %v1622, %v1621
        %v1635 = vpack.c.b16 %v1624, %v1623
        %v1636 = vpack.c.b16 %v1626, %v1625
        %v1637 = vpack.c.b16 %v1628, %v1627
        %v1638 = vpack.c.b16 %v1630, %v1629
        %v1647 = vunpack.c.l.b16 %v1113
        %v1648 = vunpack.c.l.b16 %v1116
        %v1649 = vunpack.c.l.b16 %v1120
        %v1650 = vunpack.c.l.b16 %v1123
        %v1651 = vunpack.c.l.b16 %v1127
        %v1652 = vunpack.c.l.b16 %v1130
        %v1653 = vunpack.c.l.b16 %v1134
        %v1654 = vunpack.c.l.b16 %v1137
        %v1655 = vunpack.c.l.b16 %v1141
        %v1656 = vunpack.c.l.b16 %v1144
        %v1657 = vunpack.c.l.b16 %v1148
        %v1658 = vunpack.c.l.b16 %v1151
        %v1659 = vunpack.c.l.b16 %v1155
        %v1660 = vunpack.c.l.b16 %v1158
        %v1661 = vunpack.c.l.b16 %v1162
        %v1662 = vunpack.c.l.b16 %v1165
        %v1663 = vpack.c.b16 %v1648, %v1647
        %v1664 = vpack.c.b16 %v1650, %v1649
        %v1665 = vpack.c.b16 %v1652, %v1651
        %v1666 = vpack.c.b16 %v1654, %v1653
        %v1667 = vpack.c.b16 %v1656, %v1655
        %v1668 = vpack.c.b16 %v1658, %v1657
        %v1669 = vpack.c.b16 %v1660, %v1659
        %v1670 = vpack.c.b16 %v1662, %v1661
        %v1687 = vunpack.c.l.b16 %v1167
        %v1688 = vunpack.c.l.b16 %v1168
        %v1689 = vunpack.c.l.b16 %v1169
        %v1690 = vunpack.c.l.b16 %v1170
        %v1691 = vunpack.c.l.b16 %v1171
        %v1692 = vunpack.c.l.b16 %v1172
        %v1693 = vunpack.c.l.b16 %v1173
        %v1694 = vunpack.c.l.b16 %v1174
        %v1695 = vunpack.c.l.b16 %v1175
        %v1696 = vunpack.c.l.b16 %v1176
        %v1697 = vunpack.c.l.b16 %v1177
        %v1698 = vunpack.c.l.b16 %v1178
        %v1699 = vunpack.c.l.b16 %v1179
        %v1700 = vunpack.c.l.b16 %v1180
        %v1701 = vunpack.c.l.b16 %v1181
        %v1702 = vunpack.c.l.b16 %v1182
        %v1703 = vpack.c.b16 %v1688, %v1687
        %v1704 = vpack.c.b16 %v1690, %v1689
        %v1705 = vpack.c.b16 %v1692, %v1691
        %v1706 = vpack.c.b16 %v1694, %v1693
        %v1707 = vpack.c.b16 %v1696, %v1695
        %v1708 = vpack.c.b16 %v1698, %v1697
        %v1709 = vpack.c.b16 %v1700, %v1699
        %v1710 = vpack.c.b16 %v1702, %v1701
        %v1719 = vunpack.c.l.b16 %v1204
        %v1720 = vunpack.c.l.b16 %v1214
        %v1721 = vunpack.c.l.b16 %v1228
        %v1722 = vunpack.c.l.b16 %v1238
        %v1723 = vunpack.c.l.b16 %v1252
        %v1724 = vunpack.c.l.b16 %v1262
        %v1725 = vunpack.c.l.b16 %v1276
        %v1726 = vunpack.c.l.b16 %v1286
        %v1727 = vunpack.c.l.b16 %v1300
        %v1728 = vunpack.c.l.b16 %v1310
        %v1729 = vunpack.c.l.b16 %v1324
        %v1730 = vunpack.c.l.b16 %v1334
        %v1731 = vunpack.c.l.b16 %v1348
        %v1732 = vunpack.c.l.b16 %v1358
        %v1733 = vunpack.c.l.b16 %v1372
        %v1734 = vunpack.c.l.b16 %v1382
        %v1735 = vpack.c.b16 %v1720, %v1719
        %v1736 = vpack.c.b16 %v1722, %v1721
        %v1737 = vpack.c.b16 %v1724, %v1723
        %v1738 = vpack.c.b16 %v1726, %v1725
        %v1739 = vpack.c.b16 %v1728, %v1727
        %v1740 = vpack.c.b16 %v1730, %v1729
        %v1741 = vpack.c.b16 %v1732, %v1731
        %v1742 = vpack.c.b16 %v1734, %v1733
        %v1751 = vunpack.c.l.b16 %v1418
        %v1752 = vunpack.c.l.b16 %v1421
        %v1753 = vunpack.c.l.b16 %v1425
        %v1754 = vunpack.c.l.b16 %v1428
        %v1755 = vunpack.c.l.b16 %v1432
        %v1756 = vunpack.c.l.b16 %v1435
        %v1757 = vunpack.c.l.b16 %v1439
        %v1758 = vunpack.c.l.b16 %v1442
        %v1759 = vunpack.c.l.b16 %v1446
        %v1760 = vunpack.c.l.b16 %v1449
        %v1761 = vunpack.c.l.b16 %v1453
        %v1762 = vunpack.c.l.b16 %v1456
        %v1763 = vunpack.c.l.b16 %v1460
        %v1764 = vunpack.c.l.b16 %v1463
        %v1765 = vunpack.c.l.b16 %v1467
        %v1766 = vunpack.c.l.b16 %v1470
        %v1767 = vpack.c.b16 %v1752, %v1751
        %v1768 = vpack.c.b16 %v1754, %v1753
        %v1769 = vpack.c.b16 %v1756, %v1755
        %v1770 = vpack.c.b16 %v1758, %v1757
        %v1771 = vpack.c.b16 %v1760, %v1759
        %v1772 = vpack.c.b16 %v1762, %v1761
        %v1773 = vpack.c.b16 %v1764, %v1763
        %v1774 = vpack.c.b16 %v1766, %v1765
        %v1783 = vld [vmem:[%s1] sm:$0xf]
        %v1784 = vld [vmem:[%s1 + $0x4] sm:$0xf]
        %v1785 = vld [vmem:[%s1 + $0x8] sm:$0xf]
        %v1786 = vld [vmem:[%s1 + $0xc] sm:$0xf]
        %v1787 = vld [vmem:[%s1 + $0x10] sm:$0xf]
        %v1788 = vld [vmem:[%s1 + $0x14] sm:$0xf]
        %v1789 = vld [vmem:[%s1 + $0x18] sm:$0xf]
        %v1790 = vld [vmem:[%s1 + $0x1c] sm:$0xf]
        %v1791 = vld [vmem:[%s1 + $0x20] sm:$0xf]
        %v1792 = vld [vmem:[%s1 + $0x24] sm:$0xf]
        %v1793 = vld [vmem:[%s1 + $0x28] sm:$0xf]
        %v1794 = vld [vmem:[%s1 + $0x2c] sm:$0xf]
        %v1795 = vld [vmem:[%s1 + $0x30] sm:$0xf]
        %v1796 = vld [vmem:[%s1 + $0x34] sm:$0xf]
        %v1797 = vld [vmem:[%s1 + $0x38] sm:$0xf]
        %v1798 = vld [vmem:[%s1 + $0x3c] sm:$0xf]
        %v1799 = vld [vmem:[%s1 + $0x40] sm:$0xf]
        %v1800 = vld [vmem:[%s1 + $0x44] sm:$0xf]
        %v1801 = vld [vmem:[%s1 + $0x48] sm:$0xf]
        %v1802 = vld [vmem:[%s1 + $0x4c] sm:$0xf]
        %v1803 = vld [vmem:[%s1 + $0x50] sm:$0xf]
        %v1804 = vld [vmem:[%s1 + $0x54] sm:$0xf]
        %v1805 = vld [vmem:[%s1 + $0x58] sm:$0xf]
        %v1806 = vld [vmem:[%s1 + $0x5c] sm:$0xf]
        %v1807 = vld [vmem:[%s1 + $0x60] sm:$0xf]
        %v1808 = vld [vmem:[%s1 + $0x64] sm:$0xf]
        %v1809 = vld [vmem:[%s1 + $0x68] sm:$0xf]
        %v1810 = vld [vmem:[%s1 + $0x6c] sm:$0xf]
        %v1811 = vld [vmem:[%s1 + $0x70] sm:$0xf]
        %v1812 = vld [vmem:[%s1 + $0x74] sm:$0xf]
        %v1813 = vld [vmem:[%s1 + $0x78] sm:$0xf]
        %v1814 = vld [vmem:[%s1 + $0x7c] sm:$0xf]
        %v1815 = vld [vmem:[%s1 + $0x80] sm:$0xf]
        %v1816 = vld [vmem:[%s1 + $0x84] sm:$0xf]
        %v1817 = vld [vmem:[%s1 + $0x88] sm:$0xf]
        %v1818 = vld [vmem:[%s1 + $0x8c] sm:$0xf]
        %v1819 = vld [vmem:[%s1 + $0x90] sm:$0xf]
        %v1820 = vld [vmem:[%s1 + $0x94] sm:$0xf]
        %v1821 = vld [vmem:[%s1 + $0x98] sm:$0xf]
        %v1822 = vld [vmem:[%s1 + $0x9c] sm:$0xf]
        %v1823 = vld [vmem:[%s1 + $0xa0] sm:$0xf]
        %v1824 = vld [vmem:[%s1 + $0xa4] sm:$0xf]
        %v1825 = vld [vmem:[%s1 + $0xa8] sm:$0xf]
        %v1826 = vld [vmem:[%s1 + $0xac] sm:$0xf]
        %v1827 = vld [vmem:[%s1 + $0xb0] sm:$0xf]
        %v1828 = vld [vmem:[%s1 + $0xb4] sm:$0xf]
        %v1829 = vld [vmem:[%s1 + $0xb8] sm:$0xf]
        %v1830 = vld [vmem:[%s1 + $0xbc] sm:$0xf]
        %v1831 = vld [vmem:[%s1 + $0xc0] sm:$0xf]
        %v1832 = vld [vmem:[%s1 + $0xc4] sm:$0xf]
        %v1833 = vld [vmem:[%s1 + $0xc8] sm:$0xf]
        %v1834 = vld [vmem:[%s1 + $0xcc] sm:$0xf]
        %v1835 = vld [vmem:[%s1 + $0xd0] sm:$0xf]
        %v1836 = vld [vmem:[%s1 + $0xd4] sm:$0xf]
        %v1837 = vld [vmem:[%s1 + $0xd8] sm:$0xf]
        %v1838 = vld [vmem:[%s1 + $0xdc] sm:$0xf]
        %v1839 = vld [vmem:[%s1 + $0xe0] sm:$0xf]
        %v1840 = vld [vmem:[%s1 + $0xe4] sm:$0xf]
        %v1841 = vld [vmem:[%s1 + $0xe8] sm:$0xf]
        %v1842 = vld [vmem:[%s1 + $0xec] sm:$0xf]
        %v1843 = vld [vmem:[%s1 + $0xf0] sm:$0xf]
        %v1844 = vld [vmem:[%s1 + $0xf4] sm:$0xf]
        %v1845 = vld [vmem:[%s1 + $0xf8] sm:$0xf]
        %v1846 = vld [vmem:[%s1 + $0xfc] sm:$0xf]
        %v1847 = vld [vmem:[%s1 + $0x100] sm:$0xf]
        %v1848 = vld [vmem:[%s1 + $0x104] sm:$0xf]
        %v1849 = vld [vmem:[%s1 + $0x108] sm:$0xf]
        %v1850 = vld [vmem:[%s1 + $0x10c] sm:$0xf]
        %v1851 = vld [vmem:[%s1 + $0x110] sm:$0xf]
        %v1852 = vld [vmem:[%s1 + $0x114] sm:$0xf]
        %v1853 = vld [vmem:[%s1 + $0x118] sm:$0xf]
        %v1854 = vld [vmem:[%s1 + $0x11c] sm:$0xf]
        %v1855 = vld [vmem:[%s1 + $0x120] sm:$0xf]
        %v1856 = vld [vmem:[%s1 + $0x124] sm:$0xf]
        %v1857 = vld [vmem:[%s1 + $0x128] sm:$0xf]
        %v1858 = vld [vmem:[%s1 + $0x12c] sm:$0xf]
        %v1859 = vld [vmem:[%s1 + $0x130] sm:$0xf]
        %v1860 = vld [vmem:[%s1 + $0x134] sm:$0xf]
        %v1861 = vld [vmem:[%s1 + $0x138] sm:$0xf]
        %v1862 = vld [vmem:[%s1 + $0x13c] sm:$0xf]
        %v1863 = vld [vmem:[%s1 + $0x140] sm:$0xf]
        %v1864 = vld [vmem:[%s1 + $0x144] sm:$0xf]
        %v1865 = vld [vmem:[%s1 + $0x148] sm:$0xf]
        %v1866 = vld [vmem:[%s1 + $0x14c] sm:$0xf]
        %v1867 = vld [vmem:[%s1 + $0x150] sm:$0xf]
        %v1868 = vld [vmem:[%s1 + $0x154] sm:$0xf]
        %v1869 = vld [vmem:[%s1 + $0x158] sm:$0xf]
        %v1870 = vld [vmem:[%s1 + $0x15c] sm:$0xf]
        %v1871 = vld [vmem:[%s1 + $0x160] sm:$0xf]
        %v1872 = vld [vmem:[%s1 + $0x164] sm:$0xf]
        %v1873 = vld [vmem:[%s1 + $0x168] sm:$0xf]
        %v1874 = vld [vmem:[%s1 + $0x16c] sm:$0xf]
        %v1875 = vld [vmem:[%s1 + $0x170] sm:$0xf]
        %v1876 = vld [vmem:[%s1 + $0x174] sm:$0xf]
        %v1877 = vld [vmem:[%s1 + $0x178] sm:$0xf]
        %v1878 = vld [vmem:[%s1 + $0x17c] sm:$0xf]
        %v1879 = vld [vmem:[%s1 + $0x180] sm:$0xf]
        %v1880 = vld [vmem:[%s1 + $0x184] sm:$0xf]
        %v1881 = vld [vmem:[%s1 + $0x188] sm:$0xf]
        %v1882 = vld [vmem:[%s1 + $0x18c] sm:$0xf]
        %v1883 = vld [vmem:[%s1 + $0x190] sm:$0xf]
        %v1884 = vld [vmem:[%s1 + $0x194] sm:$0xf]
        %v1885 = vld [vmem:[%s1 + $0x198] sm:$0xf]
        %v1886 = vld [vmem:[%s1 + $0x19c] sm:$0xf]
        %v1887 = vld [vmem:[%s1 + $0x1a0] sm:$0xf]
        %v1888 = vld [vmem:[%s1 + $0x1a4] sm:$0xf]
        %v1889 = vld [vmem:[%s1 + $0x1a8] sm:$0xf]
        %v1890 = vld [vmem:[%s1 + $0x1ac] sm:$0xf]
        %v1891 = vld [vmem:[%s1 + $0x1b0] sm:$0xf]
        %v1892 = vld [vmem:[%s1 + $0x1b4] sm:$0xf]
        %v1893 = vld [vmem:[%s1 + $0x1b8] sm:$0xf]
        %v1894 = vld [vmem:[%s1 + $0x1bc] sm:$0xf]
        %v1895 = vld [vmem:[%s1 + $0x1c0] sm:$0xf]
        %v1896 = vld [vmem:[%s1 + $0x1c4] sm:$0xf]
        %v1897 = vld [vmem:[%s1 + $0x1c8] sm:$0xf]
        %v1898 = vld [vmem:[%s1 + $0x1cc] sm:$0xf]
        %v1899 = vld [vmem:[%s1 + $0x1d0] sm:$0xf]
        %v1900 = vld [vmem:[%s1 + $0x1d4] sm:$0xf]
        %v1901 = vld [vmem:[%s1 + $0x1d8] sm:$0xf]
        %v1902 = vld [vmem:[%s1 + $0x1dc] sm:$0xf]
        %v1903 = vld [vmem:[%s1 + $0x1e0] sm:$0xf]
        %v1904 = vld [vmem:[%s1 + $0x1e4] sm:$0xf]
        %v1905 = vld [vmem:[%s1 + $0x1e8] sm:$0xf]
        %v1906 = vld [vmem:[%s1 + $0x1ec] sm:$0xf]
        %v1907 = vld [vmem:[%s1 + $0x1f0] sm:$0xf]
        %v1908 = vld [vmem:[%s1 + $0x1f4] sm:$0xf]
        %v1909 = vld [vmem:[%s1 + $0x1f8] sm:$0xf]
        %v1910 = vld [vmem:[%s1 + $0x1fc] sm:$0xf]
        %v1911 = vld [vmem:[%s1 + $0x200] sm:$0xf]
        %v1912 = vld [vmem:[%s1 + $0x204] sm:$0xf]
        %v1913 = vld [vmem:[%s1 + $0x208] sm:$0xf]
        %v1914 = vld [vmem:[%s1 + $0x20c] sm:$0xf]
        %v1915 = vld [vmem:[%s1 + $0x210] sm:$0xf]
        %v1916 = vld [vmem:[%s1 + $0x214] sm:$0xf]
        %v1917 = vld [vmem:[%s1 + $0x218] sm:$0xf]
        %v1918 = vld [vmem:[%s1 + $0x21c] sm:$0xf]
        %v1919 = vld [vmem:[%s1 + $0x220] sm:$0xf]
        %v1920 = vld [vmem:[%s1 + $0x224] sm:$0xf]
        %v1921 = vld [vmem:[%s1 + $0x228] sm:$0xf]
        %v1922 = vld [vmem:[%s1 + $0x22c] sm:$0xf]
        %v1923 = vld [vmem:[%s1 + $0x230] sm:$0xf]
        %v1924 = vld [vmem:[%s1 + $0x234] sm:$0xf]
        %v1925 = vld [vmem:[%s1 + $0x238] sm:$0xf]
        %v1926 = vld [vmem:[%s1 + $0x23c] sm:$0xf]
        %v2071 = vunpack.c.l.b16 %v1783
        %v2072 = vunpack.c.l.b16 %v1784
        %v2073 = vunpack.c.l.b16 %v1785
        %v2074 = vunpack.c.l.b16 %v1786
        %v2075 = vunpack.c.l.b16 %v1787
        %v2076 = vunpack.c.l.b16 %v1788
        %v2077 = vunpack.c.l.b16 %v1789
        %v2078 = vunpack.c.l.b16 %v1790
        %v2079 = vunpack.c.l.b16 %v1791
        %v2080 = vunpack.c.l.b16 %v1792
        %v2081 = vunpack.c.l.b16 %v1793
        %v2082 = vunpack.c.l.b16 %v1794
        %v2083 = vunpack.c.l.b16 %v1795
        %v2084 = vunpack.c.l.b16 %v1796
        %v2085 = vunpack.c.l.b16 %v1797
        %v2086 = vunpack.c.l.b16 %v1798
        %v2087 = vunpack.c.l.b16 %v1799
        %v2088 = vunpack.c.l.b16 %v1800
        %v2089 = vunpack.c.l.b16 %v1801
        %v2090 = vunpack.c.l.b16 %v1802
        %v2091 = vunpack.c.l.b16 %v1803
        %v2092 = vunpack.c.l.b16 %v1804
        %v2093 = vunpack.c.l.b16 %v1805
        %v2094 = vunpack.c.l.b16 %v1806
        %v2095 = vunpack.c.l.b16 %v1807
        %v2096 = vunpack.c.l.b16 %v1808
        %v2097 = vunpack.c.l.b16 %v1809
        %v2098 = vunpack.c.l.b16 %v1810
        %v2099 = vunpack.c.l.b16 %v1811
        %v2100 = vunpack.c.l.b16 %v1812
        %v2101 = vunpack.c.l.b16 %v1813
        %v2102 = vunpack.c.l.b16 %v1814
        %v2103 = vunpack.c.l.b16 %v1815
        %v2104 = vunpack.c.l.b16 %v1816
        %v2105 = vunpack.c.l.b16 %v1817
        %v2106 = vunpack.c.l.b16 %v1818
        %v2107 = vunpack.c.l.b16 %v1819
        %v2108 = vunpack.c.l.b16 %v1820
        %v2109 = vunpack.c.l.b16 %v1821
        %v2110 = vunpack.c.l.b16 %v1822
        %v2111 = vunpack.c.l.b16 %v1823
        %v2112 = vunpack.c.l.b16 %v1824
        %v2113 = vunpack.c.l.b16 %v1825
        %v2114 = vunpack.c.l.b16 %v1826
        %v2115 = vunpack.c.l.b16 %v1827
        %v2116 = vunpack.c.l.b16 %v1828
        %v2117 = vunpack.c.l.b16 %v1829
        %v2118 = vunpack.c.l.b16 %v1830
        %v2119 = vunpack.c.l.b16 %v1831
        %v2120 = vunpack.c.l.b16 %v1832
        %v2121 = vunpack.c.l.b16 %v1833
        %v2122 = vunpack.c.l.b16 %v1834
        %v2123 = vunpack.c.l.b16 %v1835
        %v2124 = vunpack.c.l.b16 %v1836
        %v2125 = vunpack.c.l.b16 %v1837
        %v2126 = vunpack.c.l.b16 %v1838
        %v2127 = vunpack.c.l.b16 %v1839
        %v2128 = vunpack.c.l.b16 %v1840
        %v2129 = vunpack.c.l.b16 %v1841
        %v2130 = vunpack.c.l.b16 %v1842
        %v2131 = vunpack.c.l.b16 %v1843
        %v2132 = vunpack.c.l.b16 %v1844
        %v2133 = vunpack.c.l.b16 %v1845
        %v2134 = vunpack.c.l.b16 %v1846
        %v2135 = vunpack.c.l.b16 %v1847
        %v2136 = vunpack.c.l.b16 %v1848
        %v2137 = vunpack.c.l.b16 %v1849
        %v2138 = vunpack.c.l.b16 %v1850
        %v2139 = vunpack.c.l.b16 %v1851
        %v2140 = vunpack.c.l.b16 %v1852
        %v2141 = vunpack.c.l.b16 %v1853
        %v2142 = vunpack.c.l.b16 %v1854
        %v2143 = vunpack.c.l.b16 %v1855
        %v2144 = vunpack.c.l.b16 %v1856
        %v2145 = vunpack.c.l.b16 %v1857
        %v2146 = vunpack.c.l.b16 %v1858
        %v2147 = vunpack.c.l.b16 %v1859
        %v2148 = vunpack.c.l.b16 %v1860
        %v2149 = vunpack.c.l.b16 %v1861
        %v2150 = vunpack.c.l.b16 %v1862
        %v2151 = vunpack.c.l.b16 %v1863
        %v2152 = vunpack.c.l.b16 %v1864
        %v2153 = vunpack.c.l.b16 %v1865
        %v2154 = vunpack.c.l.b16 %v1866
        %v2155 = vunpack.c.l.b16 %v1867
        %v2156 = vunpack.c.l.b16 %v1868
        %v2157 = vunpack.c.l.b16 %v1869
        %v2158 = vunpack.c.l.b16 %v1870
        %v2159 = vunpack.c.l.b16 %v1871
        %v2160 = vunpack.c.l.b16 %v1872
        %v2161 = vunpack.c.l.b16 %v1873
        %v2162 = vunpack.c.l.b16 %v1874
        %v2163 = vunpack.c.l.b16 %v1875
        %v2164 = vunpack.c.l.b16 %v1876
        %v2165 = vunpack.c.l.b16 %v1877
        %v2166 = vunpack.c.l.b16 %v1878
        %v2167 = vunpack.c.l.b16 %v1879
        %v2168 = vunpack.c.l.b16 %v1880
        %v2169 = vunpack.c.l.b16 %v1881
        %v2170 = vunpack.c.l.b16 %v1882
        %v2171 = vunpack.c.l.b16 %v1883
        %v2172 = vunpack.c.l.b16 %v1884
        %v2173 = vunpack.c.l.b16 %v1885
        %v2174 = vunpack.c.l.b16 %v1886
        %v2175 = vunpack.c.l.b16 %v1887
        %v2176 = vunpack.c.l.b16 %v1888
        %v2177 = vunpack.c.l.b16 %v1889
        %v2178 = vunpack.c.l.b16 %v1890
        %v2179 = vunpack.c.l.b16 %v1891
        %v2180 = vunpack.c.l.b16 %v1892
        %v2181 = vunpack.c.l.b16 %v1893
        %v2182 = vunpack.c.l.b16 %v1894
        %v2183 = vunpack.c.l.b16 %v1895
        %v2184 = vunpack.c.l.b16 %v1896
        %v2185 = vunpack.c.l.b16 %v1897
        %v2186 = vunpack.c.l.b16 %v1898
        %v2187 = vunpack.c.l.b16 %v1899
        %v2188 = vunpack.c.l.b16 %v1900
        %v2189 = vunpack.c.l.b16 %v1901
        %v2190 = vunpack.c.l.b16 %v1902
        %v2191 = vunpack.c.l.b16 %v1903
        %v2192 = vunpack.c.l.b16 %v1904
        %v2193 = vunpack.c.l.b16 %v1905
        %v2194 = vunpack.c.l.b16 %v1906
        %v2195 = vunpack.c.l.b16 %v1907
        %v2196 = vunpack.c.l.b16 %v1908
        %v2197 = vunpack.c.l.b16 %v1909
        %v2198 = vunpack.c.l.b16 %v1910
        %v2199 = vunpack.c.l.b16 %v1911
        %v2200 = vunpack.c.l.b16 %v1912
        %v2201 = vunpack.c.l.b16 %v1913
        %v2202 = vunpack.c.l.b16 %v1914
        %v2203 = vunpack.c.l.b16 %v1915
        %v2204 = vunpack.c.l.b16 %v1916
        %v2205 = vunpack.c.l.b16 %v1917
        %v2206 = vunpack.c.l.b16 %v1918
        %v2207 = vunpack.c.l.b16 %v1919
        %v2208 = vunpack.c.l.b16 %v1920
        %v2209 = vunpack.c.l.b16 %v1921
        %v2210 = vunpack.c.l.b16 %v1922
        %v2211 = vunpack.c.l.b16 %v1923
        %v2212 = vunpack.c.l.b16 %v1924
        %v2213 = vunpack.c.l.b16 %v1925
        %v2214 = vunpack.c.l.b16 %v1926
        %v2215 = vpack.c.b16 %v2072, %v2071
        %v2216 = vpack.c.b16 %v2074, %v2073
        %v2217 = vpack.c.b16 %v2076, %v2075
        %v2218 = vpack.c.b16 %v2078, %v2077
        %v2219 = vpack.c.b16 %v2080, %v2079
        %v2220 = vpack.c.b16 %v2082, %v2081
        %v2221 = vpack.c.b16 %v2084, %v2083
        %v2222 = vpack.c.b16 %v2086, %v2085
        %v2223 = vpack.c.b16 %v2088, %v2087
        %v2224 = vpack.c.b16 %v2090, %v2089
        %v2225 = vpack.c.b16 %v2092, %v2091
        %v2226 = vpack.c.b16 %v2094, %v2093
        %v2227 = vpack.c.b16 %v2096, %v2095
        %v2228 = vpack.c.b16 %v2098, %v2097
        %v2229 = vpack.c.b16 %v2100, %v2099
        %v2230 = vpack.c.b16 %v2102, %v2101
        %v2231 = vpack.c.b16 %v2104, %v2103
        %v2232 = vpack.c.b16 %v2106, %v2105
        %v2233 = vpack.c.b16 %v2108, %v2107
        %v2234 = vpack.c.b16 %v2110, %v2109
        %v2235 = vpack.c.b16 %v2112, %v2111
        %v2236 = vpack.c.b16 %v2114, %v2113
        %v2237 = vpack.c.b16 %v2116, %v2115
        %v2238 = vpack.c.b16 %v2118, %v2117
        %v2239 = vpack.c.b16 %v2120, %v2119
        %v2240 = vpack.c.b16 %v2122, %v2121
        %v2241 = vpack.c.b16 %v2124, %v2123
        %v2242 = vpack.c.b16 %v2126, %v2125
        %v2243 = vpack.c.b16 %v2128, %v2127
        %v2244 = vpack.c.b16 %v2130, %v2129
        %v2245 = vpack.c.b16 %v2132, %v2131
        %v2246 = vpack.c.b16 %v2134, %v2133
        %v2247 = vpack.c.b16 %v2136, %v2135
        %v2248 = vpack.c.b16 %v2138, %v2137
        %v2249 = vpack.c.b16 %v2140, %v2139
        %v2250 = vpack.c.b16 %v2142, %v2141
        %v2251 = vpack.c.b16 %v2144, %v2143
        %v2252 = vpack.c.b16 %v2146, %v2145
        %v2253 = vpack.c.b16 %v2148, %v2147
        %v2254 = vpack.c.b16 %v2150, %v2149
        %v2255 = vpack.c.b16 %v2152, %v2151
        %v2256 = vpack.c.b16 %v2154, %v2153
        %v2257 = vpack.c.b16 %v2156, %v2155
        %v2258 = vpack.c.b16 %v2158, %v2157
        %v2259 = vpack.c.b16 %v2160, %v2159
        %v2260 = vpack.c.b16 %v2162, %v2161
        %v2261 = vpack.c.b16 %v2164, %v2163
        %v2262 = vpack.c.b16 %v2166, %v2165
        %v2263 = vpack.c.b16 %v2168, %v2167
        %v2264 = vpack.c.b16 %v2170, %v2169
        %v2265 = vpack.c.b16 %v2172, %v2171
        %v2266 = vpack.c.b16 %v2174, %v2173
        %v2267 = vpack.c.b16 %v2176, %v2175
        %v2268 = vpack.c.b16 %v2178, %v2177
        %v2269 = vpack.c.b16 %v2180, %v2179
        %v2270 = vpack.c.b16 %v2182, %v2181
        %v2271 = vpack.c.b16 %v2184, %v2183
        %v2272 = vpack.c.b16 %v2186, %v2185
        %v2273 = vpack.c.b16 %v2188, %v2187
        %v2274 = vpack.c.b16 %v2190, %v2189
        %v2275 = vpack.c.b16 %v2192, %v2191
        %v2276 = vpack.c.b16 %v2194, %v2193
        %v2277 = vpack.c.b16 %v2196, %v2195
        %v2278 = vpack.c.b16 %v2198, %v2197
        %v2279 = vpack.c.b16 %v2200, %v2199
        %v2280 = vpack.c.b16 %v2202, %v2201
        %v2281 = vpack.c.b16 %v2204, %v2203
        %v2282 = vpack.c.b16 %v2206, %v2205
        %v2283 = vpack.c.b16 %v2208, %v2207
        %v2284 = vpack.c.b16 %v2210, %v2209
        %v2285 = vpack.c.b16 %v2212, %v2211
        %v2286 = vpack.c.b16 %v2214, %v2213
        %2359 = vmatpush.bf16.msra.mxu0 %v2222
        %2360 = vmatpush.bf16.msra.mxu0 %v2221
        %2361 = vmatpush.bf16.msra.mxu0 %v2220
        %2362 = vmatpush.bf16.msra.mxu0 %v2219
        %2363 = vmatpush.bf16.msra.mxu0 %v2218
        %2364 = vmatpush.bf16.msra.mxu0 %v2217
        %2365 = vmatpush.bf16.msra.mxu0 %v2216
        %2366 = vmatpush.bf16.msra.mxu0 %v2215
        %2367 = vmatmul.bf16.gmra.mxu0 %v1495
        %v2368 = vpop.f32.mrf.mxu0
        %v2369 = vadd.f32 0.0, %v2368
        %v2370 = vpop.f32.mrf.mxu0
        %v2371 = vadd.f32 0.0, %v2370
        %2372 = vmatmul.bf16.gmra.mxu0 %v1496
        %v2373 = vpop.f32.mrf.mxu0
        %v2374 = vadd.f32 0.0, %v2373
        %v2375 = vpop.f32.mrf.mxu0
        %v2376 = vadd.f32 0.0, %v2375
        %2377 = vmatmul.bf16.gmra.mxu0 %v1497
        %v2378 = vpop.f32.mrf.mxu0
        %v2379 = vadd.f32 0.0, %v2378
        %v2380 = vpop.f32.mrf.mxu0
        %v2381 = vadd.f32 0.0, %v2380
        %2382 = vmatmul.bf16.gmra.mxu0 %v1498
        %v2383 = vpop.f32.mrf.mxu0
        %v2384 = vadd.f32 0.0, %v2383
        %v2385 = vpop.f32.mrf.mxu0
        %v2386 = vadd.f32 0.0, %v2385
        %2387 = vmatmul.bf16.gmra.mxu0 %v1499
        %v2388 = vpop.f32.mrf.mxu0
        %v2389 = vadd.f32 0.0, %v2388
        %v2390 = vpop.f32.mrf.mxu0
        %v2391 = vadd.f32 0.0, %v2390
        %2392 = vmatmul.bf16.gmra.mxu0 %v1500
        %v2393 = vpop.f32.mrf.mxu0
        %v2394 = vadd.f32 0.0, %v2393
        %v2395 = vpop.f32.mrf.mxu0
        %v2396 = vadd.f32 0.0, %v2395
        %2397 = vmatmul.bf16.gmra.mxu0 %v1501
        %v2398 = vpop.f32.mrf.mxu0
        %v2399 = vadd.f32 0.0, %v2398
        %v2400 = vpop.f32.mrf.mxu0
        %v2401 = vadd.f32 0.0, %v2400
        %2402 = vmatmul.bf16.gmra.mxu0 %v1502
        %v2403 = vpop.f32.mrf.mxu0
        %v2404 = vadd.f32 0.0, %v2403
        %v2405 = vpop.f32.mrf.mxu0
        %v2406 = vadd.f32 0.0, %v2405
        %2407 = vdwg.mxu0
        %2408 = vmatpush.bf16.msra.mxu0 %v2230
        %2409 = vmatpush.bf16.msra.mxu0 %v2229
        %2410 = vmatpush.bf16.msra.mxu0 %v2228
        %2411 = vmatpush.bf16.msra.mxu0 %v2227
        %2412 = vmatpush.bf16.msra.mxu0 %v2226
        %2413 = vmatpush.bf16.msra.mxu0 %v2225
        %2414 = vmatpush.bf16.msra.mxu0 %v2224
        %2415 = vmatpush.bf16.msra.mxu0 %v2223
        %2416 = vmatmul.bf16.gmra.mxu0 %v1527
        %v2417 = vpop.f32.mrf.mxu0
        %v2418 = vadd.f32 %v2369, %v2417
        %v2419 = vpop.f32.mrf.mxu0
        %v2420 = vadd.f32 %v2371, %v2419
        %2421 = vmatmul.bf16.gmra.mxu0 %v1528
        %v2422 = vpop.f32.mrf.mxu0
        %v2423 = vadd.f32 %v2374, %v2422
        %v2424 = vpop.f32.mrf.mxu0
        %v2425 = vadd.f32 %v2376, %v2424
        %2426 = vmatmul.bf16.gmra.mxu0 %v1529
        %v2427 = vpop.f32.mrf.mxu0
        %v2428 = vadd.f32 %v2379, %v2427
        %v2429 = vpop.f32.mrf.mxu0
        %v2430 = vadd.f32 %v2381, %v2429
        %2431 = vmatmul.bf16.gmra.mxu0 %v1530
        %v2432 = vpop.f32.mrf.mxu0
        %v2433 = vadd.f32 %v2384, %v2432
        %v2434 = vpop.f32.mrf.mxu0
        %v2435 = vadd.f32 %v2386, %v2434
        %2436 = vmatmul.bf16.gmra.mxu0 %v1531
        %v2437 = vpop.f32.mrf.mxu0
        %v2438 = vadd.f32 %v2389, %v2437
        %v2439 = vpop.f32.mrf.mxu0
        %v2440 = vadd.f32 %v2391, %v2439
        %2441 = vmatmul.bf16.gmra.mxu0 %v1532
        %v2442 = vpop.f32.mrf.mxu0
        %v2443 = vadd.f32 %v2394, %v2442
        %v2444 = vpop.f32.mrf.mxu0
        %v2445 = vadd.f32 %v2396, %v2444
        %2446 = vmatmul.bf16.gmra.mxu0 %v1533
        %v2447 = vpop.f32.mrf.mxu0
        %v2448 = vadd.f32 %v2399, %v2447
        %v2449 = vpop.f32.mrf.mxu0
        %v2450 = vadd.f32 %v2401, %v2449
        %2451 = vmatmul.bf16.gmra.mxu0 %v1534
        %v2452 = vpop.f32.mrf.mxu0
        %v2453 = vadd.f32 %v2404, %v2452
        %v2454 = vpop.f32.mrf.mxu0
        %v2455 = vadd.f32 %v2406, %v2454
        %2456 = vdwg.mxu0
        %2457 = vmatpush.bf16.msra.mxu0 %v2238
        %2458 = vmatpush.bf16.msra.mxu0 %v2237
        %2459 = vmatpush.bf16.msra.mxu0 %v2236
        %2460 = vmatpush.bf16.msra.mxu0 %v2235
        %2461 = vmatpush.bf16.msra.mxu0 %v2234
        %2462 = vmatpush.bf16.msra.mxu0 %v2233
        %2463 = vmatpush.bf16.msra.mxu0 %v2232
        %2464 = vmatpush.bf16.msra.mxu0 %v2231
        %2465 = vmatmul.bf16.gmra.mxu0 %v1559
        %v2466 = vpop.f32.mrf.mxu0
        %v2467 = vadd.f32 %v2418, %v2466
        %v2468 = vpop.f32.mrf.mxu0
        %v2469 = vadd.f32 %v2420, %v2468
        %2470 = vmatmul.bf16.gmra.mxu0 %v1560
        %v2471 = vpop.f32.mrf.mxu0
        %v2472 = vadd.f32 %v2423, %v2471
        %v2473 = vpop.f32.mrf.mxu0
        %v2474 = vadd.f32 %v2425, %v2473
        %2475 = vmatmul.bf16.gmra.mxu0 %v1561
        %v2476 = vpop.f32.mrf.mxu0
        %v2477 = vadd.f32 %v2428, %v2476
        %v2478 = vpop.f32.mrf.mxu0
        %v2479 = vadd.f32 %v2430, %v2478
        %2480 = vmatmul.bf16.gmra.mxu0 %v1562
        %v2481 = vpop.f32.mrf.mxu0
        %v2482 = vadd.f32 %v2433, %v2481
        %v2483 = vpop.f32.mrf.mxu0
        %v2484 = vadd.f32 %v2435, %v2483
        %2485 = vmatmul.bf16.gmra.mxu0 %v1563
        %v2486 = vpop.f32.mrf.mxu0
        %v2487 = vadd.f32 %v2438, %v2486
        %v2488 = vpop.f32.mrf.mxu0
        %v2489 = vadd.f32 %v2440, %v2488
        %2490 = vmatmul.bf16.gmra.mxu0 %v1564
        %v2491 = vpop.f32.mrf.mxu0
        %v2492 = vadd.f32 %v2443, %v2491
        %v2493 = vpop.f32.mrf.mxu0
        %v2494 = vadd.f32 %v2445, %v2493
        %2495 = vmatmul.bf16.gmra.mxu0 %v1565
        %v2496 = vpop.f32.mrf.mxu0
        %v2497 = vadd.f32 %v2448, %v2496
        %v2498 = vpop.f32.mrf.mxu0
        %v2499 = vadd.f32 %v2450, %v2498
        %2500 = vmatmul.bf16.gmra.mxu0 %v1566
        %v2501 = vpop.f32.mrf.mxu0
        %v2502 = vadd.f32 %v2453, %v2501
        %v2503 = vpop.f32.mrf.mxu0
        %v2504 = vadd.f32 %v2455, %v2503
        %2505 = vdwg.mxu0
        %2506 = vmatpush.bf16.msra.mxu0 %v2246
        %2507 = vmatpush.bf16.msra.mxu0 %v2245
        %2508 = vmatpush.bf16.msra.mxu0 %v2244
        %2509 = vmatpush.bf16.msra.mxu0 %v2243
        %2510 = vmatpush.bf16.msra.mxu0 %v2242
        %2511 = vmatpush.bf16.msra.mxu0 %v2241
        %2512 = vmatpush.bf16.msra.mxu0 %v2240
        %2513 = vmatpush.bf16.msra.mxu0 %v2239
        %2514 = vmatmul.bf16.gmra.mxu0 %v1599
        %v2515 = vpop.f32.mrf.mxu0
        %v2516 = vadd.f32 %v2467, %v2515
        %v2517 = vpop.f32.mrf.mxu0
        %v2518 = vadd.f32 %v2469, %v2517
        %2519 = vmatmul.bf16.gmra.mxu0 %v1600
        %v2520 = vpop.f32.mrf.mxu0
        %v2521 = vadd.f32 %v2472, %v2520
        %v2522 = vpop.f32.mrf.mxu0
        %v2523 = vadd.f32 %v2474, %v2522
        %2524 = vmatmul.bf16.gmra.mxu0 %v1601
        %v2525 = vpop.f32.mrf.mxu0
        %v2526 = vadd.f32 %v2477, %v2525
        %v2527 = vpop.f32.mrf.mxu0
        %v2528 = vadd.f32 %v2479, %v2527
        %2529 = vmatmul.bf16.gmra.mxu0 %v1602
        %v2530 = vpop.f32.mrf.mxu0
        %v2531 = vadd.f32 %v2482, %v2530
        %v2532 = vpop.f32.mrf.mxu0
        %v2533 = vadd.f32 %v2484, %v2532
        %2534 = vmatmul.bf16.gmra.mxu0 %v1603
        %v2535 = vpop.f32.mrf.mxu0
        %v2536 = vadd.f32 %v2487, %v2535
        %v2537 = vpop.f32.mrf.mxu0
        %v2538 = vadd.f32 %v2489, %v2537
        %2539 = vmatmul.bf16.gmra.mxu0 %v1604
        %v2540 = vpop.f32.mrf.mxu0
        %v2541 = vadd.f32 %v2492, %v2540
        %v2542 = vpop.f32.mrf.mxu0
        %v2543 = vadd.f32 %v2494, %v2542
        %2544 = vmatmul.bf16.gmra.mxu0 %v1605
        %v2545 = vpop.f32.mrf.mxu0
        %v2546 = vadd.f32 %v2497, %v2545
        %v2547 = vpop.f32.mrf.mxu0
        %v2548 = vadd.f32 %v2499, %v2547
        %2549 = vmatmul.bf16.gmra.mxu0 %v1606
        %v2550 = vpop.f32.mrf.mxu0
        %v2551 = vadd.f32 %v2502, %v2550
        %v2552 = vpop.f32.mrf.mxu0
        %v2553 = vadd.f32 %v2504, %v2552
        %2554 = vdwg.mxu0
        %2555 = vmatpush.bf16.msra.mxu0 %v2254
        %2556 = vmatpush.bf16.msra.mxu0 %v2253
        %2557 = vmatpush.bf16.msra.mxu0 %v2252
        %2558 = vmatpush.bf16.msra.mxu0 %v2251
        %2559 = vmatpush.bf16.msra.mxu0 %v2250
        %2560 = vmatpush.bf16.msra.mxu0 %v2249
        %2561 = vmatpush.bf16.msra.mxu0 %v2248
        %2562 = vmatpush.bf16.msra.mxu0 %v2247
        %2563 = vmatmul.bf16.gmra.mxu0 %v1631
        %v2564 = vpop.f32.mrf.mxu0
        %v2565 = vadd.f32 %v2516, %v2564
        %v2566 = vpop.f32.mrf.mxu0
        %v2567 = vadd.f32 %v2518, %v2566
        %2568 = vmatmul.bf16.gmra.mxu0 %v1632
        %v2569 = vpop.f32.mrf.mxu0
        %v2570 = vadd.f32 %v2521, %v2569
        %v2571 = vpop.f32.mrf.mxu0
        %v2572 = vadd.f32 %v2523, %v2571
        %2573 = vmatmul.bf16.gmra.mxu0 %v1633
        %v2574 = vpop.f32.mrf.mxu0
        %v2575 = vadd.f32 %v2526, %v2574
        %v2576 = vpop.f32.mrf.mxu0
        %v2577 = vadd.f32 %v2528, %v2576
        %2578 = vmatmul.bf16.gmra.mxu0 %v1634
        %v2579 = vpop.f32.mrf.mxu0
        %v2580 = vadd.f32 %v2531, %v2579
        %v2581 = vpop.f32.mrf.mxu0
        %v2582 = vadd.f32 %v2533, %v2581
        %2583 = vmatmul.bf16.gmra.mxu0 %v1635
        %v2584 = vpop.f32.mrf.mxu0
        %v2585 = vadd.f32 %v2536, %v2584
        %v2586 = vpop.f32.mrf.mxu0
        %v2587 = vadd.f32 %v2538, %v2586
        %2588 = vmatmul.bf16.gmra.mxu0 %v1636
        %v2589 = vpop.f32.mrf.mxu0
        %v2590 = vadd.f32 %v2541, %v2589
        %v2591 = vpop.f32.mrf.mxu0
        %v2592 = vadd.f32 %v2543, %v2591
        %2593 = vmatmul.bf16.gmra.mxu0 %v1637
        %v2594 = vpop.f32.mrf.mxu0
        %v2595 = vadd.f32 %v2546, %v2594
        %v2596 = vpop.f32.mrf.mxu0
        %v2597 = vadd.f32 %v2548, %v2596
        %2598 = vmatmul.bf16.gmra.mxu0 %v1638
        %v2599 = vpop.f32.mrf.mxu0
        %v2600 = vadd.f32 %v2551, %v2599
        %v2601 = vpop.f32.mrf.mxu0
        %v2602 = vadd.f32 %v2553, %v2601
        %2603 = vdwg.mxu0
        %2604 = vmatpush.bf16.msra.mxu0 %v2262
        %2605 = vmatpush.bf16.msra.mxu0 %v2261
        %2606 = vmatpush.bf16.msra.mxu0 %v2260
        %2607 = vmatpush.bf16.msra.mxu0 %v2259
        %2608 = vmatpush.bf16.msra.mxu0 %v2258
        %2609 = vmatpush.bf16.msra.mxu0 %v2257
        %2610 = vmatpush.bf16.msra.mxu0 %v2256
        %2611 = vmatpush.bf16.msra.mxu0 %v2255
        %2612 = vmatmul.bf16.gmra.mxu0 %v1663
        %v2613 = vpop.f32.mrf.mxu0
        %v2614 = vadd.f32 %v2565, %v2613
        %v2615 = vpop.f32.mrf.mxu0
        %v2616 = vadd.f32 %v2567, %v2615
        %2617 = vmatmul.bf16.gmra.mxu0 %v1664
        %v2618 = vpop.f32.mrf.mxu0
        %v2619 = vadd.f32 %v2570, %v2618
        %v2620 = vpop.f32.mrf.mxu0
        %v2621 = vadd.f32 %v2572, %v2620
        %2622 = vmatmul.bf16.gmra.mxu0 %v1665
        %v2623 = vpop.f32.mrf.mxu0
        %v2624 = vadd.f32 %v2575, %v2623
        %v2625 = vpop.f32.mrf.mxu0
        %v2626 = vadd.f32 %v2577, %v2625
        %2627 = vmatmul.bf16.gmra.mxu0 %v1666
        %v2628 = vpop.f32.mrf.mxu0
        %v2629 = vadd.f32 %v2580, %v2628
        %v2630 = vpop.f32.mrf.mxu0
        %v2631 = vadd.f32 %v2582, %v2630
        %2632 = vmatmul.bf16.gmra.mxu0 %v1667
        %v2633 = vpop.f32.mrf.mxu0
        %v2634 = vadd.f32 %v2585, %v2633
        %v2635 = vpop.f32.mrf.mxu0
        %v2636 = vadd.f32 %v2587, %v2635
        %2637 = vmatmul.bf16.gmra.mxu0 %v1668
        %v2638 = vpop.f32.mrf.mxu0
        %v2639 = vadd.f32 %v2590, %v2638
        %v2640 = vpop.f32.mrf.mxu0
        %v2641 = vadd.f32 %v2592, %v2640
        %2642 = vmatmul.bf16.gmra.mxu0 %v1669
        %v2643 = vpop.f32.mrf.mxu0
        %v2644 = vadd.f32 %v2595, %v2643
        %v2645 = vpop.f32.mrf.mxu0
        %v2646 = vadd.f32 %v2597, %v2645
        %2647 = vmatmul.bf16.gmra.mxu0 %v1670
        %v2648 = vpop.f32.mrf.mxu0
        %v2649 = vadd.f32 %v2600, %v2648
        %v2650 = vpop.f32.mrf.mxu0
        %v2651 = vadd.f32 %v2602, %v2650
        %2652 = vdwg.mxu0
        %2653 = vmatpush.bf16.msra.mxu0 %v2270
        %2654 = vmatpush.bf16.msra.mxu0 %v2269
        %2655 = vmatpush.bf16.msra.mxu0 %v2268
        %2656 = vmatpush.bf16.msra.mxu0 %v2267
        %2657 = vmatpush.bf16.msra.mxu0 %v2266
        %2658 = vmatpush.bf16.msra.mxu0 %v2265
        %2659 = vmatpush.bf16.msra.mxu0 %v2264
        %2660 = vmatpush.bf16.msra.mxu0 %v2263
        %2661 = vmatmul.bf16.gmra.mxu0 %v1703
        %v2662 = vpop.f32.mrf.mxu0
        %v2663 = vadd.f32 %v2614, %v2662
        %v2664 = vpop.f32.mrf.mxu0
        %v2665 = vadd.f32 %v2616, %v2664
        %2666 = vmatmul.bf16.gmra.mxu0 %v1704
        %v2667 = vpop.f32.mrf.mxu0
        %v2668 = vadd.f32 %v2619, %v2667
        %v2669 = vpop.f32.mrf.mxu0
        %v2670 = vadd.f32 %v2621, %v2669
        %2671 = vmatmul.bf16.gmra.mxu0 %v1705
        %v2672 = vpop.f32.mrf.mxu0
        %v2673 = vadd.f32 %v2624, %v2672
        %v2674 = vpop.f32.mrf.mxu0
        %v2675 = vadd.f32 %v2626, %v2674
        %2676 = vmatmul.bf16.gmra.mxu0 %v1706
        %v2677 = vpop.f32.mrf.mxu0
        %v2678 = vadd.f32 %v2629, %v2677
        %v2679 = vpop.f32.mrf.mxu0
        %v2680 = vadd.f32 %v2631, %v2679
        %2681 = vmatmul.bf16.gmra.mxu0 %v1707
        %v2682 = vpop.f32.mrf.mxu0
        %v2683 = vadd.f32 %v2634, %v2682
        %v2684 = vpop.f32.mrf.mxu0
        %v2685 = vadd.f32 %v2636, %v2684
        %2686 = vmatmul.bf16.gmra.mxu0 %v1708
        %v2687 = vpop.f32.mrf.mxu0
        %v2688 = vadd.f32 %v2639, %v2687
        %v2689 = vpop.f32.mrf.mxu0
        %v2690 = vadd.f32 %v2641, %v2689
        %2691 = vmatmul.bf16.gmra.mxu0 %v1709
        %v2692 = vpop.f32.mrf.mxu0
        %v2693 = vadd.f32 %v2644, %v2692
        %v2694 = vpop.f32.mrf.mxu0
        %v2695 = vadd.f32 %v2646, %v2694
        %2696 = vmatmul.bf16.gmra.mxu0 %v1710
        %v2697 = vpop.f32.mrf.mxu0
        %v2698 = vadd.f32 %v2649, %v2697
        %v2699 = vpop.f32.mrf.mxu0
        %v2700 = vadd.f32 %v2651, %v2699
        %2701 = vdwg.mxu0
        %2702 = vmatpush.bf16.msra.mxu0 %v2278
        %2703 = vmatpush.bf16.msra.mxu0 %v2277
        %2704 = vmatpush.bf16.msra.mxu0 %v2276
        %2705 = vmatpush.bf16.msra.mxu0 %v2275
        %2706 = vmatpush.bf16.msra.mxu0 %v2274
        %2707 = vmatpush.bf16.msra.mxu0 %v2273
        %2708 = vmatpush.bf16.msra.mxu0 %v2272
        %2709 = vmatpush.bf16.msra.mxu0 %v2271
        %2710 = vmatmul.bf16.gmra.mxu0 %v1735
        %v2711 = vpop.f32.mrf.mxu0
        %v2712 = vadd.f32 %v2663, %v2711
        %v2713 = vpop.f32.mrf.mxu0
        %v2714 = vadd.f32 %v2665, %v2713
        %2715 = vmatmul.bf16.gmra.mxu0 %v1736
        %v2716 = vpop.f32.mrf.mxu0
        %v2717 = vadd.f32 %v2668, %v2716
        %v2718 = vpop.f32.mrf.mxu0
        %v2719 = vadd.f32 %v2670, %v2718
        %2720 = vmatmul.bf16.gmra.mxu0 %v1737
        %v2721 = vpop.f32.mrf.mxu0
        %v2722 = vadd.f32 %v2673, %v2721
        %v2723 = vpop.f32.mrf.mxu0
        %v2724 = vadd.f32 %v2675, %v2723
        %2725 = vmatmul.bf16.gmra.mxu0 %v1738
        %v2726 = vpop.f32.mrf.mxu0
        %v2727 = vadd.f32 %v2678, %v2726
        %v2728 = vpop.f32.mrf.mxu0
        %v2729 = vadd.f32 %v2680, %v2728
        %2730 = vmatmul.bf16.gmra.mxu0 %v1739
        %v2731 = vpop.f32.mrf.mxu0
        %v2732 = vadd.f32 %v2683, %v2731
        %v2733 = vpop.f32.mrf.mxu0
        %v2734 = vadd.f32 %v2685, %v2733
        %2735 = vmatmul.bf16.gmra.mxu0 %v1740
        %v2736 = vpop.f32.mrf.mxu0
        %v2737 = vadd.f32 %v2688, %v2736
        %v2738 = vpop.f32.mrf.mxu0
        %v2739 = vadd.f32 %v2690, %v2738
        %2740 = vmatmul.bf16.gmra.mxu0 %v1741
        %v2741 = vpop.f32.mrf.mxu0
        %v2742 = vadd.f32 %v2693, %v2741
        %v2743 = vpop.f32.mrf.mxu0
        %v2744 = vadd.f32 %v2695, %v2743
        %2745 = vmatmul.bf16.gmra.mxu0 %v1742
        %v2746 = vpop.f32.mrf.mxu0
        %v2747 = vadd.f32 %v2698, %v2746
        %v2748 = vpop.f32.mrf.mxu0
        %v2749 = vadd.f32 %v2700, %v2748
        %2750 = vdwg.mxu0
        %2751 = vmatpush.bf16.msra.mxu0 %v2286
        %2752 = vmatpush.bf16.msra.mxu0 %v2285
        %2753 = vmatpush.bf16.msra.mxu0 %v2284
        %2754 = vmatpush.bf16.msra.mxu0 %v2283
        %2755 = vmatpush.bf16.msra.mxu0 %v2282
        %2756 = vmatpush.bf16.msra.mxu0 %v2281
        %2757 = vmatpush.bf16.msra.mxu0 %v2280
        %2758 = vmatpush.bf16.msra.mxu0 %v2279
        %2759 = vmatmul.bf16.gmra.mxu0 %v1767
        %v2760 = vpop.f32.mrf.mxu0
        %v2761 = vadd.f32 %v2712, %v2760
        %v2762 = vpop.f32.mrf.mxu0
        %v2763 = vadd.f32 %v2714, %v2762
        %2764 = vmatmul.bf16.gmra.mxu0 %v1768
        %v2765 = vpop.f32.mrf.mxu0
        %v2766 = vadd.f32 %v2717, %v2765
        %v2767 = vpop.f32.mrf.mxu0
        %v2768 = vadd.f32 %v2719, %v2767
        %2769 = vmatmul.bf16.gmra.mxu0 %v1769
        %v2770 = vpop.f32.mrf.mxu0
        %v2771 = vadd.f32 %v2722, %v2770
        %v2772 = vpop.f32.mrf.mxu0
        %v2773 = vadd.f32 %v2724, %v2772
        %2774 = vmatmul.bf16.gmra.mxu0 %v1770
        %v2775 = vpop.f32.mrf.mxu0
        %v2776 = vadd.f32 %v2727, %v2775
        %v2777 = vpop.f32.mrf.mxu0
        %v2778 = vadd.f32 %v2729, %v2777
        %2779 = vmatmul.bf16.gmra.mxu0 %v1771
        %v2780 = vpop.f32.mrf.mxu0
        %v2781 = vadd.f32 %v2732, %v2780
        %v2782 = vpop.f32.mrf.mxu0
        %v2783 = vadd.f32 %v2734, %v2782
        %2784 = vmatmul.bf16.gmra.mxu0 %v1772
        %v2785 = vpop.f32.mrf.mxu0
        %v2786 = vadd.f32 %v2737, %v2785
        %v2787 = vpop.f32.mrf.mxu0
        %v2788 = vadd.f32 %v2739, %v2787
        %2789 = vmatmul.bf16.gmra.mxu0 %v1773
        %v2790 = vpop.f32.mrf.mxu0
        %v2791 = vadd.f32 %v2742, %v2790
        %v2792 = vpop.f32.mrf.mxu0
        %v2793 = vadd.f32 %v2744, %v2792
        %2794 = vmatmul.bf16.gmra.mxu0 %v1774
        %v2795 = vpop.f32.mrf.mxu0
        %v2796 = vadd.f32 %v2747, %v2795
        %v2797 = vpop.f32.mrf.mxu0
        %v2798 = vadd.f32 %v2749, %v2797
        %2799 = vdwg.mxu0
        %2800 = vst [vmem:[%s541] sm:$0xff] %v2761
        %2801 = vst [vmem:[%s541 + $0x8] sm:$0xff] %v2763
        %2802 = vst [vmem:[%s541 + $0x10] sm:$0xff] %v2766
        %2803 = vst [vmem:[%s541 + $0x18] sm:$0xff] %v2768
        %2804 = vst [vmem:[%s541 + $0x20] sm:$0xff] %v2771
        %2805 = vst [vmem:[%s541 + $0x28] sm:$0xff] %v2773
        %2806 = vst [vmem:[%s541 + $0x30] sm:$0xff] %v2776
        %2807 = vst [vmem:[%s541 + $0x38] sm:$0xff] %v2778
        %2808 = vst [vmem:[%s541 + $0x40] sm:$0xff] %v2781
        %2809 = vst [vmem:[%s541 + $0x48] sm:$0xff] %v2783
        %2810 = vst [vmem:[%s541 + $0x50] sm:$0xff] %v2786
        %2811 = vst [vmem:[%s541 + $0x58] sm:$0xff] %v2788
        %2812 = vst [vmem:[%s541 + $0x60] sm:$0xff] %v2791
        %2813 = vst [vmem:[%s541 + $0x68] sm:$0xff] %v2793
        %2814 = vst [vmem:[%s541 + $0x70] sm:$0xff] %v2796
        %2815 = vst [vmem:[%s541 + $0x78] sm:$0xff] %v2798
        %v2816 = vadd.f32 %v2761, %v2763
        %v2817 = vadd.f32 %v2816, %v2766
        %v2818 = vadd.f32 %v2817, %v2768
        %v2819 = vadd.f32 %v2818, %v2771
        %v2820 = vadd.f32 %v2819, %v2773
        %v2821 = vadd.f32 %v2820, %v2776
        %v2822 = vadd.f32 %v2821, %v2778
        %v2823 = vadd.f32 %v2822, %v2781
        %v2824 = vadd.f32 %v2823, %v2783
        %v2825 = vadd.f32 %v2824, %v2786
        %v2826 = vadd.f32 %v2825, %v2788
        %v2827 = vadd.f32 %v2826, %v2791
        %v2828 = vadd.f32 %v2827, %v2793
        %v2829 = vadd.f32 %v2828, %v2796
        %v2830 = vadd.f32 %v2829, %v2798
        %v2831 = vrot.slane %v2830, 4
        %v2832 = vadd.f32 %v2830, %v2831
        %v2833 = vrot.slane %v2832, 2
        %v2834 = vadd.f32 %v2832, %v2833
        %v2835 = vrot.slane %v2834, 1
        %v2836 = vadd.f32 %v2834, %v2835
        %v2837 = vmul.f32 %v2761, %v2761
        %v2838 = vmul.f32 %v2763, %v2763
        %v2839 = vmul.f32 %v2766, %v2766
        %v2840 = vmul.f32 %v2768, %v2768
        %v2841 = vmul.f32 %v2771, %v2771
        %v2842 = vmul.f32 %v2773, %v2773
        %v2843 = vmul.f32 %v2776, %v2776
        %v2844 = vmul.f32 %v2778, %v2778
        %v2845 = vmul.f32 %v2781, %v2781
        %v2846 = vmul.f32 %v2783, %v2783
        %v2847 = vmul.f32 %v2786, %v2786
        %v2848 = vmul.f32 %v2788, %v2788
        %v2849 = vmul.f32 %v2791, %v2791
        %v2850 = vmul.f32 %v2793, %v2793
        %v2851 = vmul.f32 %v2796, %v2796
        %v2852 = vmul.f32 %v2798, %v2798
        %v2853 = vadd.f32 %v2837, %v2838
        %v2854 = vadd.f32 %v2853, %v2839
        %v2855 = vadd.f32 %v2854, %v2840
        %v2856 = vadd.f32 %v2855, %v2841
        %v2857 = vadd.f32 %v2856, %v2842
        %v2858 = vadd.f32 %v2857, %v2843
        %v2859 = vadd.f32 %v2858, %v2844
        %v2860 = vadd.f32 %v2859, %v2845
        %v2861 = vadd.f32 %v2860, %v2846
        %v2862 = vadd.f32 %v2861, %v2847
        %v2863 = vadd.f32 %v2862, %v2848
        %v2864 = vadd.f32 %v2863, %v2849
        %v2865 = vadd.f32 %v2864, %v2850
        %v2866 = vadd.f32 %v2865, %v2851
        %v2867 = vadd.f32 %v2866, %v2852
        %v2868 = vrot.slane %v2867, 4
        %v2869 = vadd.f32 %v2867, %v2868
        %v2870 = vrot.slane %v2869, 2
        %v2871 = vadd.f32 %v2869, %v2870
        %v2872 = vrot.slane %v2871, 1
        %v2873 = vadd.f32 %v2871, %v2872
        %vm2874 = vcmask 1040384
        %v2875 = vsel %vm2874, %v2836, %v2873
        %2876 = vst [vmem:[%s550] sm:$0x3] %v2875
        %s2877 = smul.u32 8, %s20
        %p2878 = scmp.lt.s32.totalorder %s19, 1
        %s2879 = scalar_select %p2878, %s19, 1
        %p2880 = scmp.lt.s32.totalorder %s2877, 15
        %s2881 = scalar_select %p2880, %s2877, 15
        %s2882 = smul.addr %s2881, 2
        %s2883 = smul.addr %s2879, 32
        %s2884 = sadd.s32 %s2882, %s2883
        %s2885 = smul.addr %s2884, 8
        %s2886 = scalar_lea.vmem %s2, %s2885
        %p2887 = scmp.lt.s32.totalorder %s19, 1
        %s2888 = scalar_select %p2887, %s19, 1
        %p2889 = scmp.lt.s32.totalorder %s20, 1
        %s2890 = scalar_select %p2889, %s20, 1
        %s2891 = smul.addr %s2888, 2
        %s2892 = sadd.s32 %s2890, %s2891
        %s2893 = smul.addr %s2892, 2
        %s2894 = scalar_lea.vmem %s3, %s2893
        // Predicated region
        $region70: #{decoder_block_forward.4} parent=64 // pred_check
          %p2895 = pneg %p96
        $region71: #{decoder_block_forward.4} parent=64 // pred_check_branch
          %2897 = sbr.rel (%p2895) target = $region73
        $region72: #{decoder_block_forward.4} parent=64 // pred_region
          %s2898 = smul.u32 8, %s20
        $region73: #{decoder_block_forward.4} parent=64 // pred_fallthru
          _
        // Predicated region
        $region74: #{decoder_block_forward.4} parent=64 // pred_check
          %p2899 = pneg %p124
        $region75: #{decoder_block_forward.4} parent=64 // pred_check_branch
          %2901 = sbr.rel (%p2899) target = $region77
        $region76: #{decoder_block_forward.4} parent=64 // pred_region
          _
        $region77: #{decoder_block_forward.4} parent=64 // pred_fallthru
          _
      $region65: #{decoder_block_forward.4} parent=5 // pred_fallthru
        _
      %p2902 = scmp.le.s32.totalorder 2, %s10
      // Predicated region
      $region78: #{decoder_block_forward.4} parent=5 // pred_check
        %p2903 = pneg %p2902
      $region79: #{decoder_block_forward.4} parent=5 // pred_check_branch
        %2905 = sbr.rel (%p2903) target = $region81
      $region80: #{decoder_block_forward.4} parent=5 // pred_region
        %s2906 = ssub.s32 %s10, 2
        // Predicated region
        $region82: #{decoder_block_forward.4} parent=80 // pred_check
          %p2907 = pneg %p102
        $region83: #{decoder_block_forward.4} parent=80 // pred_check_branch
          %2909 = sbr.rel (%p2907) target = $region85
        $region84: #{decoder_block_forward.4} parent=80 // pred_region
          %s2910 = smul.u32 8, %s22
          %p2911 = scmp.lt.s32.totalorder %s21, 1
          %s2912 = scalar_select %p2911, %s21, 1
          %p2913 = scmp.lt.s32.totalorder %s2910, 15
          %s2914 = scalar_select %p2913, %s2910, 15
          %s2915 = smul.addr %s2914, 2
          %s2916 = smul.addr %s2912, 32
          %s2917 = sadd.s32 %s2915, %s2916
          %s2918 = smul.addr %s2917, 8
          %s2919 = scalar_lea.vmem %s2, %s2918
        $region85: #{decoder_block_forward.4} parent=80 // pred_fallthru
          _
        // Predicated region
        $region86: #{decoder_block_forward.4} parent=80 // pred_check
          %p2920 = pneg %p130
        $region87: #{decoder_block_forward.4} parent=80 // pred_check_branch
          %2922 = sbr.rel (%p2920) target = $region89
        $region88: #{decoder_block_forward.4} parent=80 // pred_region
          %p2923 = scmp.lt.s32.totalorder %s21, 1
          %s2924 = scalar_select %p2923, %s21, 1
          %p2925 = scmp.lt.s32.totalorder %s22, 1
          %s2926 = scalar_select %p2925, %s22, 1
          %s2927 = smul.addr %s2924, 2
          %s2928 = sadd.s32 %s2926, %s2927
          %s2929 = smul.addr %s2928, 2
          %s2930 = scalar_lea.vmem %s3, %s2929
        $region89: #{decoder_block_forward.4} parent=80 // pred_fallthru
          _
      $region81: #{decoder_block_forward.4} parent=5 // pred_fallthru
        _
    $region6: #{decoder_block_forward.4} parent=1 // loop_footer
      %s14 = sadd.s32 1, %s10
    $region7: #{decoder_block_forward.4} parent=1 // loop_footer_branch
      %9 = sbr.rel target = $region3
    $region8: #{decoder_block_forward.4} parent=1 // loop_exit
      _

// kernel: decoder_block_forward.7
$region0: #{decoder_block_forward.7}
  #allocation0 [shape = 'u32[]', space=smem, size = 0x4, offset = 0x4, fixed_abs, tag = 'smem constant byte address 0x4 - core index']
  #allocation1 [shape = 'u32[72,128]{1,0:T(1,128)}', space=vmem, size = 0x9000, scoped, tag = 'internal scratch']
  %s0 = inlined_call_operand.vmem [shape: f32[1024,256], index: 0, kind: input, shape index: {}]
  %s1 = inlined_call_operand.vmem [shape: f32[1,256], index: 1, kind: input, shape index: {}]
  %s2 = inlined_call_operand.vmem [shape: f32[1,256], index: 2, kind: input, shape index: {}]
  %s3 = inlined_call_operand.vmem [shape: f32[1024,256], index: 3, kind: output, shape index: {}]
  %s4 = sld [smem:[#allocation0]]
  $region45: #{decoder_block_forward.7} parent=0
    _
  %s6 = ssub.s32 1, %s4
  %s7 = scalar_select 0, %s6, %s4
  loop: start=0, step=1, limit=6
  $region2: #{decoder_block_forward.7} parent=0 // loop_pre_header
    _
  $region3: #{decoder_block_forward.7} parent=0 // loop_header
    %s9 = sphi 0, %s13
    %p10 = scmp.ge.s32.totalorder %s9, 6
    %s19 = sphi 0, %s21
    %s22 = sphi 0, %s19
    %s23 = sphi 0, %s22
    %s39 = sphi 0, %s23
    %s43 = sphi 0, %s43
    %s45 = sphi 0, %s43
    %s46 = sphi 0, %s45
    %s60 = sphi 0, %s46
    %s64 = sphi 0, %s64
    %s66 = sphi 0, %s64
    %s67 = sphi 0, %s66
    %s81 = sphi 0, %s67
    %s87 = sphi 0, %s89
    %s90 = sphi 0, %s87
    %s91 = sphi 0, %s90
    %s107 = sphi 0, %s91
  $region4: #{decoder_block_forward.7} parent=0 // loop_header_branch
    %12 = sbr.rel (%p10) target = $region8
  $region5: #{decoder_block_forward.7} parent=0 // loop_body
    %s14 = ssub.s32 %s9, 1
    %s15 = ssub.s32 %s9, 2
    %s16 = sadd.s32 %s9, 1
    %s17 = ssub.s32 %s9, %s16
    %p18 = scmp.eq.s32.totalorder %s17, 0
    %s20 = sadd.s32 %s19, 1
    %s21 = scalar_select %p18, %s19, %s20
    %p24 = pneg %p18
    %p25 = scmp.eq.s32.totalorder %s9, 3
    %p26 = por %p24, %p25
    %p27 = scmp.ne.s32.totalorder %s19, %s22
    %p28 = scmp.eq.s32.totalorder %s9, 0
    %p29 = por %p27, %p28
    %p30 = scmp.ne.s32.totalorder %s19, %s22
    %p31 = scmp.eq.s32.totalorder %s14, 3
    %p32 = por %p30, %p31
    %p33 = scmp.ne.s32.totalorder %s22, %s23
    %p34 = scmp.eq.s32.totalorder %s14, 0
    %p35 = por %p33, %p34
    %p36 = scmp.ne.s32.totalorder %s22, %s23
    %p37 = scmp.eq.s32.totalorder %s15, 3
    %p38 = por %p36, %p37
    %p40 = scmp.ne.s32.totalorder %s23, %s39
    %p41 = scmp.eq.s32.totalorder %s15, 0
    %p42 = por %p40, %p41
    %s44 = sadd.s32 %s43, 1
    %p47 = scmp.eq.s32.totalorder %s9, 3
    %p48 = scmp.ne.s32.totalorder %s43, %s45
    %p49 = scmp.eq.s32.totalorder %s9, 0
    %p50 = por %p48, %p49
    %p51 = scmp.ne.s32.totalorder %s43, %s45
    %p52 = scmp.eq.s32.totalorder %s14, 3
    %p53 = por %p51, %p52
    %p54 = scmp.ne.s32.totalorder %s45, %s46
    %p55 = scmp.eq.s32.totalorder %s14, 0
    %p56 = por %p54, %p55
    %p57 = scmp.ne.s32.totalorder %s45, %s46
    %p58 = scmp.eq.s32.totalorder %s15, 3
    %p59 = por %p57, %p58
    %p61 = scmp.ne.s32.totalorder %s46, %s60
    %p62 = scmp.eq.s32.totalorder %s15, 0
    %p63 = por %p61, %p62
    %s65 = sadd.s32 %s64, 1
    %p68 = scmp.eq.s32.totalorder %s9, 3
    %p69 = scmp.ne.s32.totalorder %s64, %s66
    %p70 = scmp.eq.s32.totalorder %s9, 0
    %p71 = por %p69, %p70
    %p72 = scmp.ne.s32.totalorder %s64, %s66
    %p73 = scmp.eq.s32.totalorder %s14, 3
    %p74 = por %p72, %p73
    %p75 = scmp.ne.s32.totalorder %s66, %s67
    %p76 = scmp.eq.s32.totalorder %s14, 0
    %p77 = por %p75, %p76
    %p78 = scmp.ne.s32.totalorder %s66, %s67
    %p79 = scmp.eq.s32.totalorder %s15, 3
    %p80 = por %p78, %p79
    %p82 = scmp.ne.s32.totalorder %s67, %s81
    %p83 = scmp.eq.s32.totalorder %s15, 0
    %p84 = por %p82, %p83
    %s85 = ssub.s32 %s9, %s16
    %p86 = scmp.eq.s32.totalorder %s85, 0
    %s88 = sadd.s32 %s87, 1
    %s89 = scalar_select %p86, %s87, %s88
    %p92 = pneg %p86
    %p93 = scmp.eq.s32.totalorder %s9, 3
    %p94 = por %p92, %p93
    %p95 = scmp.ne.s32.totalorder %s87, %s90
    %p96 = scmp.eq.s32.totalorder %s9, 0
    %p97 = por %p95, %p96
    %p98 = scmp.ne.s32.totalorder %s87, %s90
    %p99 = scmp.eq.s32.totalorder %s14, 3
    %p100 = por %p98, %p99
    %p101 = scmp.ne.s32.totalorder %s90, %s91
    %p102 = scmp.eq.s32.totalorder %s14, 0
    %p103 = por %p101, %p102
    %p104 = scmp.ne.s32.totalorder %s90, %s91
    %p105 = scmp.eq.s32.totalorder %s15, 3
    %p106 = por %p104, %p105
    %p108 = scmp.ne.s32.totalorder %s91, %s107
    %p109 = scmp.eq.s32.totalorder %s15, 0
    %p110 = por %p108, %p109
    %p111 = scmp.le.s32.totalorder 1, %s9
    %p112 = scmp.lt.s32.totalorder %s9, 5
    %p113 = pnand %p111, %p112
    %p114 = pneg %p113
    // Predicated region
    $region9: #{decoder_block_forward.7} parent=5 // pred_check
      _
    $region10: #{decoder_block_forward.7} parent=5 // pred_check_branch
      %116 = sbr.rel (%p113) target = $region12
    $region11: #{decoder_block_forward.7} parent=5 // pred_region
      %s117 = ssub.s32 %s9, 1
      // Predicated region
      $region13: #{decoder_block_forward.7} parent=11 // pred_check
        %p118 = pneg %p56
      $region14: #{decoder_block_forward.7} parent=11 // pred_check_branch
        %120 = sbr.rel (%p118) target = $region16
      $region15: #{decoder_block_forward.7} parent=11 // pred_region
        _
      $region16: #{decoder_block_forward.7} parent=11 // pred_fallthru
        _
      // Predicated region
      $region17: #{decoder_block_forward.7} parent=11 // pred_check
        %p121 = pneg %p77
      $region18: #{decoder_block_forward.7} parent=11 // pred_check_branch
        %123 = sbr.rel (%p121) target = $region20
      $region19: #{decoder_block_forward.7} parent=11 // pred_region
        _
      $region20: #{decoder_block_forward.7} parent=11 // pred_fallthru
        _
    $region12: #{decoder_block_forward.7} parent=5 // pred_fallthru
      _
    %p124 = scmp.lt.s32.totalorder %s9, 4
    // Predicated region
    $region21: #{decoder_block_forward.7} parent=5 // pred_check
      %p125 = pneg %p124
    $region22: #{decoder_block_forward.7} parent=5 // pred_check_branch
      %127 = sbr.rel (%p125) target = $region24
    $region23: #{decoder_block_forward.7} parent=5 // pred_region
      // Predicated region
      $region25: #{decoder_block_forward.7} parent=23 // pred_check
        %p128 = pneg %p29
      $region26: #{decoder_block_forward.7} parent=23 // pred_check_branch
        %130 = sbr.rel (%p128) target = $region28
      $region27: #{decoder_block_forward.7} parent=23 // pred_region
        %s131 = smul.u32 32, %s9
        %p132 = scmp.lt.s32.totalorder %s131, 127
        %s133 = scalar_select %p132, %s131, 127
        %s134 = smul.addr %s133, 2
        %s135 = smul.addr %s134, 8
        %s136 = scalar_lea.vmem %s0, %s135
        %s137 = smul.u32 32, %s9
      $region28: #{decoder_block_forward.7} parent=23 // pred_fallthru
        _
    $region24: #{decoder_block_forward.7} parent=5 // pred_fallthru
      _
    %p138 = scmp.le.s32.totalorder 1, %s9
    %p139 = scmp.lt.s32.totalorder %s9, 5
    %p140 = pnand %p138, %p139
    %p141 = pneg %p140
    // Predicated region
    $region29: #{decoder_block_forward.7} parent=5 // pred_check
      _
    $region30: #{decoder_block_forward.7} parent=5 // pred_check_branch
      %143 = sbr.rel (%p140) target = $region32
    $region31: #{decoder_block_forward.7} parent=5 // pred_region
      %s144 = ssub.s32 %s9, 1
      %s145 = smul.u32 32, %s14
      %p146 = scmp.lt.s32.totalorder %s145, 127
      %s147 = scalar_select %p146, %s145, 127
      %s148 = smul.addr %s147, 2
      %s149 = smul.addr %s148, 8
      %s150 = scalar_lea.vmem %s0, %s149
      %p151 = pneg %p35
      %p152 = pneg %p32
      %p153 = pneg %p56
      %p154 = pneg %p53
      %p155 = pneg %p77
      %p156 = pneg %p74
      %p157 = pneg %p103
      %p158 = pneg %p100
      %s159 = smul.u32 32, %s14
      %p160 = scmp.lt.s32.totalorder %s159, 127
      %s161 = scalar_select %p160, %s159, 127
      %s162 = smul.addr %s161, 2
      %s163 = smul.addr %s162, 8
      %s164 = scalar_lea.vmem %s3, %s163
      %s165 = smul.u32 32, %s14
      %p166 = scmp.lt.s32.totalorder %s165, 127
      %s167 = scalar_select %p166, %s165, 127
      %s168 = smul.addr %s167, 2
      %s169 = smul.addr %s168, 8
      %s170 = scalar_lea.vmem %s0, %s169
      %s171 = smul.u32 32, %s14
      %s172 = smul.u32 32, %s14
      %p173 = scmp.lt.s32.totalorder %s172, 127
      %s174 = scalar_select %p173, %s172, 127
      %s175 = smul.addr %s174, 2
      %s176 = smul.addr %s175, 8
      %s177 = scalar_lea.vmem %s3, %s176
      %s178 = smul.u32 32, %s14
      %v179 = vld [vmem:[%s170] sm:$0xff]
      %v180 = vld [vmem:[%s170 + $0x8] sm:$0xff]
      %v181 = vld [vmem:[%s170 + $0x10] sm:$0xff]
      %v182 = vld [vmem:[%s170 + $0x18] sm:$0xff]
      %v183 = vld [vmem:[%s170 + $0x20] sm:$0xff]
      %v184 = vld [vmem:[%s170 + $0x28] sm:$0xff]
      %v185 = vld [vmem:[%s170 + $0x30] sm:$0xff]
      %v186 = vld [vmem:[%s170 + $0x38] sm:$0xff]
      %v187 = vld [vmem:[%s170 + $0x40] sm:$0xff]
      %v188 = vld [vmem:[%s170 + $0x48] sm:$0xff]
      %v189 = vld [vmem:[%s170 + $0x50] sm:$0xff]
      %v190 = vld [vmem:[%s170 + $0x58] sm:$0xff]
      %v191 = vld [vmem:[%s170 + $0x60] sm:$0xff]
      %v192 = vld [vmem:[%s170 + $0x68] sm:$0xff]
      %v193 = vld [vmem:[%s170 + $0x70] sm:$0xff]
      %v194 = vld [vmem:[%s170 + $0x78] sm:$0xff]
      %v195 = vld [vmem:[%s170 + $0x80] sm:$0xff]
      %v196 = vld [vmem:[%s170 + $0x88] sm:$0xff]
      %v197 = vld [vmem:[%s170 + $0x90] sm:$0xff]
      %v198 = vld [vmem:[%s170 + $0x98] sm:$0xff]
      %v199 = vld [vmem:[%s170 + $0xa0] sm:$0xff]
      %v200 = vld [vmem:[%s170 + $0xa8] sm:$0xff]
      %v201 = vld [vmem:[%s170 + $0xb0] sm:$0xff]
      %v202 = vld [vmem:[%s170 + $0xb8] sm:$0xff]
      %v203 = vld [vmem:[%s170 + $0xc0] sm:$0xff]
      %v204 = vld [vmem:[%s170 + $0xc8] sm:$0xff]
      %v205 = vld [vmem:[%s170 + $0xd0] sm:$0xff]
      %v206 = vld [vmem:[%s170 + $0xd8] sm:$0xff]
      %v207 = vld [vmem:[%s170 + $0xe0] sm:$0xff]
      %v208 = vld [vmem:[%s170 + $0xe8] sm:$0xff]
      %v209 = vld [vmem:[%s170 + $0xf0] sm:$0xff]
      %v210 = vld [vmem:[%s170 + $0xf8] sm:$0xff]
      %v211 = vld [vmem:[%s170 + $0x100] sm:$0xff]
      %v212 = vld [vmem:[%s170 + $0x108] sm:$0xff]
      %v213 = vld [vmem:[%s170 + $0x110] sm:$0xff]
      %v214 = vld [vmem:[%s170 + $0x118] sm:$0xff]
      %v215 = vld [vmem:[%s170 + $0x120] sm:$0xff]
      %v216 = vld [vmem:[%s170 + $0x128] sm:$0xff]
      %v217 = vld [vmem:[%s170 + $0x130] sm:$0xff]
      %v218 = vld [vmem:[%s170 + $0x138] sm:$0xff]
      %v219 = vld [vmem:[%s170 + $0x140] sm:$0xff]
      %v220 = vld [vmem:[%s170 + $0x148] sm:$0xff]
      %v221 = vld [vmem:[%s170 + $0x150] sm:$0xff]
      %v222 = vld [vmem:[%s170 + $0x158] sm:$0xff]
      %v223 = vld [vmem:[%s170 + $0x160] sm:$0xff]
      %v224 = vld [vmem:[%s170 + $0x168] sm:$0xff]
      %v225 = vld [vmem:[%s170 + $0x170] sm:$0xff]
      %v226 = vld [vmem:[%s170 + $0x178] sm:$0xff]
      %v227 = vld [vmem:[%s170 + $0x180] sm:$0xff]
      %v228 = vld [vmem:[%s170 + $0x188] sm:$0xff]
      %v229 = vld [vmem:[%s170 + $0x190] sm:$0xff]
      %v230 = vld [vmem:[%s170 + $0x198] sm:$0xff]
      %v231 = vld [vmem:[%s170 + $0x1a0] sm:$0xff]
      %v232 = vld [vmem:[%s170 + $0x1a8] sm:$0xff]
      %v233 = vld [vmem:[%s170 + $0x1b0] sm:$0xff]
      %v234 = vld [vmem:[%s170 + $0x1b8] sm:$0xff]
      %v235 = vld [vmem:[%s170 + $0x1c0] sm:$0xff]
      %v236 = vld [vmem:[%s170 + $0x1c8] sm:$0xff]
      %v237 = vld [vmem:[%s170 + $0x1d0] sm:$0xff]
      %v238 = vld [vmem:[%s170 + $0x1d8] sm:$0xff]
      %v239 = vld [vmem:[%s170 + $0x1e0] sm:$0xff]
      %v240 = vld [vmem:[%s170 + $0x1e8] sm:$0xff]
      %v241 = vld [vmem:[%s170 + $0x1f0] sm:$0xff]
      %v242 = vld [vmem:[%s170 + $0x1f8] sm:$0xff]
      %v243 = vld [vmem:[%s1] sm:$0x3]
      %v245 = vperm.slane %v243, 0
      %v246 = vperm.slane %v243, 1
      %v249 = vmul.f32 %v179, %v245
      %v250 = vmul.f32 %v180, %v246
      %v251 = vmul.f32 %v181, %v245
      %v252 = vmul.f32 %v182, %v246
      %v253 = vmul.f32 %v183, %v245
      %v254 = vmul.f32 %v184, %v246
      %v255 = vmul.f32 %v185, %v245
      %v256 = vmul.f32 %v186, %v246
      %v257 = vmul.f32 %v187, %v245
      %v258 = vmul.f32 %v188, %v246
      %v259 = vmul.f32 %v189, %v245
      %v260 = vmul.f32 %v190, %v246
      %v261 = vmul.f32 %v191, %v245
      %v262 = vmul.f32 %v192, %v246
      %v263 = vmul.f32 %v193, %v245
      %v264 = vmul.f32 %v194, %v246
      %v265 = vmul.f32 %v195, %v245
      %v266 = vmul.f32 %v196, %v246
      %v267 = vmul.f32 %v197, %v245
      %v268 = vmul.f32 %v198, %v246
      %v269 = vmul.f32 %v199, %v245
      %v270 = vmul.f32 %v200, %v246
      %v271 = vmul.f32 %v201, %v245
      %v272 = vmul.f32 %v202, %v246
      %v273 = vmul.f32 %v203, %v245
      %v274 = vmul.f32 %v204, %v246
      %v275 = vmul.f32 %v205, %v245
      %v276 = vmul.f32 %v206, %v246
      %v277 = vmul.f32 %v207, %v245
      %v278 = vmul.f32 %v208, %v246
      %v279 = vmul.f32 %v209, %v245
      %v280 = vmul.f32 %v210, %v246
      %v281 = vmul.f32 %v211, %v245
      %v282 = vmul.f32 %v212, %v246
      %v283 = vmul.f32 %v213, %v245
      %v284 = vmul.f32 %v214, %v246
      %v285 = vmul.f32 %v215, %v245
      %v286 = vmul.f32 %v216, %v246
      %v287 = vmul.f32 %v217, %v245
      %v288 = vmul.f32 %v218, %v246
      %v289 = vmul.f32 %v219, %v245
      %v290 = vmul.f32 %v220, %v246
      %v291 = vmul.f32 %v221, %v245
      %v292 = vmul.f32 %v222, %v246
      %v293 = vmul.f32 %v223, %v245
      %v294 = vmul.f32 %v224, %v246
      %v295 = vmul.f32 %v225, %v245
      %v296 = vmul.f32 %v226, %v246
      %v297 = vmul.f32 %v227, %v245
      %v298 = vmul.f32 %v228, %v246
      %v299 = vmul.f32 %v229, %v245
      %v300 = vmul.f32 %v230, %v246
      %v301 = vmul.f32 %v231, %v245
      %v302 = vmul.f32 %v232, %v246
      %v303 = vmul.f32 %v233, %v245
      %v304 = vmul.f32 %v234, %v246
      %v305 = vmul.f32 %v235, %v245
      %v306 = vmul.f32 %v236, %v246
      %v307 = vmul.f32 %v237, %v245
      %v308 = vmul.f32 %v238, %v246
      %v309 = vmul.f32 %v239, %v245
      %v310 = vmul.f32 %v240, %v246
      %v311 = vmul.f32 %v241, %v245
      %v312 = vmul.f32 %v242, %v246
      %v313 = vld [vmem:[%s2] sm:$0x3]
      %v315 = vperm.slane %v313, 0
      %v316 = vperm.slane %v313, 1
      %v319 = vadd.f32 %v249, %v315
      %v320 = vadd.f32 %v250, %v316
      %v321 = vadd.f32 %v251, %v315
      %v322 = vadd.f32 %v252, %v316
      %v323 = vadd.f32 %v253, %v315
      %v324 = vadd.f32 %v254, %v316
      %v325 = vadd.f32 %v255, %v315
      %v326 = vadd.f32 %v256, %v316
      %v327 = vadd.f32 %v257, %v315
      %v328 = vadd.f32 %v258, %v316
      %v329 = vadd.f32 %v259, %v315
      %v330 = vadd.f32 %v260, %v316
      %v331 = vadd.f32 %v261, %v315
      %v332 = vadd.f32 %v262, %v316
      %v333 = vadd.f32 %v263, %v315
      %v334 = vadd.f32 %v264, %v316
      %v335 = vadd.f32 %v265, %v315
      %v336 = vadd.f32 %v266, %v316
      %v337 = vadd.f32 %v267, %v315
      %v338 = vadd.f32 %v268, %v316
      %v339 = vadd.f32 %v269, %v315
      %v340 = vadd.f32 %v270, %v316
      %v341 = vadd.f32 %v271, %v315
      %v342 = vadd.f32 %v272, %v316
      %v343 = vadd.f32 %v273, %v315
      %v344 = vadd.f32 %v274, %v316
      %v345 = vadd.f32 %v275, %v315
      %v346 = vadd.f32 %v276, %v316
      %v347 = vadd.f32 %v277, %v315
      %v348 = vadd.f32 %v278, %v316
      %v349 = vadd.f32 %v279, %v315
      %v350 = vadd.f32 %v280, %v316
      %v351 = vadd.f32 %v281, %v315
      %v352 = vadd.f32 %v282, %v316
      %v353 = vadd.f32 %v283, %v315
      %v354 = vadd.f32 %v284, %v316
      %v355 = vadd.f32 %v285, %v315
      %v356 = vadd.f32 %v286, %v316
      %v357 = vadd.f32 %v287, %v315
      %v358 = vadd.f32 %v288, %v316
      %v359 = vadd.f32 %v289, %v315
      %v360 = vadd.f32 %v290, %v316
      %v361 = vadd.f32 %v291, %v315
      %v362 = vadd.f32 %v292, %v316
      %v363 = vadd.f32 %v293, %v315
      %v364 = vadd.f32 %v294, %v316
      %v365 = vadd.f32 %v295, %v315
      %v366 = vadd.f32 %v296, %v316
      %v367 = vadd.f32 %v297, %v315
      %v368 = vadd.f32 %v298, %v316
      %v369 = vadd.f32 %v299, %v315
      %v370 = vadd.f32 %v300, %v316
      %v371 = vadd.f32 %v301, %v315
      %v372 = vadd.f32 %v302, %v316
      %v373 = vadd.f32 %v303, %v315
      %v374 = vadd.f32 %v304, %v316
      %v375 = vadd.f32 %v305, %v315
      %v376 = vadd.f32 %v306, %v316
      %v377 = vadd.f32 %v307, %v315
      %v378 = vadd.f32 %v308, %v316
      %v379 = vadd.f32 %v309, %v315
      %v380 = vadd.f32 %v310, %v316
      %v381 = vadd.f32 %v311, %v315
      %v382 = vadd.f32 %v312, %v316
      %v383 = vmax.f32 %v319, 0.0
      %v384 = vmax.f32 %v320, 0.0
      %v385 = vmax.f32 %v321, 0.0
      %v386 = vmax.f32 %v322, 0.0
      %v387 = vmax.f32 %v323, 0.0
      %v388 = vmax.f32 %v324, 0.0
      %v389 = vmax.f32 %v325, 0.0
      %v390 = vmax.f32 %v326, 0.0
      %v391 = vmax.f32 %v327, 0.0
      %v392 = vmax.f32 %v328, 0.0
      %v393 = vmax.f32 %v329, 0.0
      %v394 = vmax.f32 %v330, 0.0
      %v395 = vmax.f32 %v331, 0.0
      %v396 = vmax.f32 %v332, 0.0
      %v397 = vmax.f32 %v333, 0.0
      %v398 = vmax.f32 %v334, 0.0
      %v399 = vmax.f32 %v335, 0.0
      %v400 = vmax.f32 %v336, 0.0
      %v401 = vmax.f32 %v337, 0.0
      %v402 = vmax.f32 %v338, 0.0
      %v403 = vmax.f32 %v339, 0.0
      %v404 = vmax.f32 %v340, 0.0
      %v405 = vmax.f32 %v341, 0.0
      %v406 = vmax.f32 %v342, 0.0
      %v407 = vmax.f32 %v343, 0.0
      %v408 = vmax.f32 %v344, 0.0
      %v409 = vmax.f32 %v345, 0.0
      %v410 = vmax.f32 %v346, 0.0
      %v411 = vmax.f32 %v347, 0.0
      %v412 = vmax.f32 %v348, 0.0
      %v413 = vmax.f32 %v349, 0.0
      %v414 = vmax.f32 %v350, 0.0
      %v415 = vmax.f32 %v351, 0.0
      %v416 = vmax.f32 %v352, 0.0
      %v417 = vmax.f32 %v353, 0.0
      %v418 = vmax.f32 %v354, 0.0
      %v419 = vmax.f32 %v355, 0.0
      %v420 = vmax.f32 %v356, 0.0
      %v421 = vmax.f32 %v357, 0.0
      %v422 = vmax.f32 %v358, 0.0
      %v423 = vmax.f32 %v359, 0.0
      %v424 = vmax.f32 %v360, 0.0
      %v425 = vmax.f32 %v361, 0.0
      %v426 = vmax.f32 %v362, 0.0
      %v427 = vmax.f32 %v363, 0.0
      %v428 = vmax.f32 %v364, 0.0
      %v429 = vmax.f32 %v365, 0.0
      %v430 = vmax.f32 %v366, 0.0
      %v431 = vmax.f32 %v367, 0.0
      %v432 = vmax.f32 %v368, 0.0
      %v433 = vmax.f32 %v369, 0.0
      %v434 = vmax.f32 %v370, 0.0
      %v435 = vmax.f32 %v371, 0.0
      %v436 = vmax.f32 %v372, 0.0
      %v437 = vmax.f32 %v373, 0.0
      %v438 = vmax.f32 %v374, 0.0
      %v439 = vmax.f32 %v375, 0.0
      %v440 = vmax.f32 %v376, 0.0
      %v441 = vmax.f32 %v377, 0.0
      %v442 = vmax.f32 %v378, 0.0
      %v443 = vmax.f32 %v379, 0.0
      %v444 = vmax.f32 %v380, 0.0
      %v445 = vmax.f32 %v381, 0.0
      %v446 = vmax.f32 %v382, 0.0
      %447 = vst [vmem:[%s177] sm:$0xff] %v383
      %448 = vst [vmem:[%s177 + $0x8] sm:$0xff] %v384
      %449 = vst [vmem:[%s177 + $0x10] sm:$0xff] %v385
      %450 = vst [vmem:[%s177 + $0x18] sm:$0xff] %v386
      %451 = vst [vmem:[%s177 + $0x20] sm:$0xff] %v387
      %452 = vst [vmem:[%s177 + $0x28] sm:$0xff] %v388
      %453 = vst [vmem:[%s177 + $0x30] sm:$0xff] %v389
      %454 = vst [vmem:[%s177 + $0x38] sm:$0xff] %v390
      %455 = vst [vmem:[%s177 + $0x40] sm:$0xff] %v391
      %456 = vst [vmem:[%s177 + $0x48] sm:$0xff] %v392
      %457 = vst [vmem:[%s177 + $0x50] sm:$0xff] %v393
      %458 = vst [vmem:[%s177 + $0x58] sm:$0xff] %v394
      %459 = vst [vmem:[%s177 + $0x60] sm:$0xff] %v395
      %460 = vst [vmem:[%s177 + $0x68] sm:$0xff] %v396
      %461 = vst [vmem:[%s177 + $0x70] sm:$0xff] %v397
      %462 = vst [vmem:[%s177 + $0x78] sm:$0xff] %v398
      %463 = vst [vmem:[%s177 + $0x80] sm:$0xff] %v399
      %464 = vst [vmem:[%s177 + $0x88] sm:$0xff] %v400
      %465 = vst [vmem:[%s177 + $0x90] sm:$0xff] %v401
      %466 = vst [vmem:[%s177 + $0x98] sm:$0xff] %v402
      %467 = vst [vmem:[%s177 + $0xa0] sm:$0xff] %v403
      %468 = vst [vmem:[%s177 + $0xa8] sm:$0xff] %v404
      %469 = vst [vmem:[%s177 + $0xb0] sm:$0xff] %v405
      %470 = vst [vmem:[%s177 + $0xb8] sm:$0xff] %v406
      %471 = vst [vmem:[%s177 + $0xc0] sm:$0xff] %v407
      %472 = vst [vmem:[%s177 + $0xc8] sm:$0xff] %v408
      %473 = vst [vmem:[%s177 + $0xd0] sm:$0xff] %v409
      %474 = vst [vmem:[%s177 + $0xd8] sm:$0xff] %v410
      %475 = vst [vmem:[%s177 + $0xe0] sm:$0xff] %v411
      %476 = vst [vmem:[%s177 + $0xe8] sm:$0xff] %v412
      %477 = vst [vmem:[%s177 + $0xf0] sm:$0xff] %v413
      %478 = vst [vmem:[%s177 + $0xf8] sm:$0xff] %v414
      %479 = vst [vmem:[%s177 + $0x100] sm:$0xff] %v415
      %480 = vst [vmem:[%s177 + $0x108] sm:$0xff] %v416
      %481 = vst [vmem:[%s177 + $0x110] sm:$0xff] %v417
      %482 = vst [vmem:[%s177 + $0x118] sm:$0xff] %v418
      %483 = vst [vmem:[%s177 + $0x120] sm:$0xff] %v419
      %484 = vst [vmem:[%s177 + $0x128] sm:$0xff] %v420
      %485 = vst [vmem:[%s177 + $0x130] sm:$0xff] %v421
      %486 = vst [vmem:[%s177 + $0x138] sm:$0xff] %v422
      %487 = vst [vmem:[%s177 + $0x140] sm:$0xff] %v423
      %488 = vst [vmem:[%s177 + $0x148] sm:$0xff] %v424
      %489 = vst [vmem:[%s177 + $0x150] sm:$0xff] %v425
      %490 = vst [vmem:[%s177 + $0x158] sm:$0xff] %v426
      %491 = vst [vmem:[%s177 + $0x160] sm:$0xff] %v427
      %492 = vst [vmem:[%s177 + $0x168] sm:$0xff] %v428
      %493 = vst [vmem:[%s177 + $0x170] sm:$0xff] %v429
      %494 = vst [vmem:[%s177 + $0x178] sm:$0xff] %v430
      %495 = vst [vmem:[%s177 + $0x180] sm:$0xff] %v431
      %496 = vst [vmem:[%s177 + $0x188] sm:$0xff] %v432
      %497 = vst [vmem:[%s177 + $0x190] sm:$0xff] %v433
      %498 = vst [vmem:[%s177 + $0x198] sm:$0xff] %v434
      %499 = vst [vmem:[%s177 + $0x1a0] sm:$0xff] %v435
      %500 = vst [vmem:[%s177 + $0x1a8] sm:$0xff] %v436
      %501 = vst [vmem:[%s177 + $0x1b0] sm:$0xff] %v437
      %502 = vst [vmem:[%s177 + $0x1b8] sm:$0xff] %v438
      %503 = vst [vmem:[%s177 + $0x1c0] sm:$0xff] %v439
      %504 = vst [vmem:[%s177 + $0x1c8] sm:$0xff] %v440
      %505 = vst [vmem:[%s177 + $0x1d0] sm:$0xff] %v441
      %506 = vst [vmem:[%s177 + $0x1d8] sm:$0xff] %v442
      %507 = vst [vmem:[%s177 + $0x1e0] sm:$0xff] %v443
      %508 = vst [vmem:[%s177 + $0x1e8] sm:$0xff] %v444
      %509 = vst [vmem:[%s177 + $0x1f0] sm:$0xff] %v445
      %510 = vst [vmem:[%s177 + $0x1f8] sm:$0xff] %v446
      %s511 = smul.u32 32, %s14
      %p512 = scmp.lt.s32.totalorder %s511, 127
      %s513 = scalar_select %p512, %s511, 127
      %s514 = smul.addr %s513, 2
      %s515 = smul.addr %s514, 8
      %s516 = scalar_lea.vmem %s3, %s515
      // Predicated region
      $region33: #{decoder_block_forward.7} parent=31 // pred_check
        %p517 = pneg %p100
      $region34: #{decoder_block_forward.7} parent=31 // pred_check_branch
        %519 = sbr.rel (%p517) target = $region36
      $region35: #{decoder_block_forward.7} parent=31 // pred_region
        %s520 = smul.u32 32, %s14
      $region36: #{decoder_block_forward.7} parent=31 // pred_fallthru
        _
    $region32: #{decoder_block_forward.7} parent=5 // pred_fallthru
      _
    %p521 = scmp.le.s32.totalorder 2, %s9
    // Predicated region
    $region37: #{decoder_block_forward.7} parent=5 // pred_check
      %p522 = pneg %p521
    $region38: #{decoder_block_forward.7} parent=5 // pred_check_branch
      %524 = sbr.rel (%p522) target = $region40
    $region39: #{decoder_block_forward.7} parent=5 // pred_region
      %s525 = ssub.s32 %s9, 2
      // Predicated region
      $region41: #{decoder_block_forward.7} parent=39 // pred_check
        %p526 = pneg %p106
      $region42: #{decoder_block_forward.7} parent=39 // pred_check_branch
        %528 = sbr.rel (%p526) target = $region44
      $region43: #{decoder_block_forward.7} parent=39 // pred_region
        %s529 = smul.u32 32, %s15
        %p530 = scmp.lt.s32.totalorder %s529, 127
        %s531 = scalar_select %p530, %s529, 127
        %s532 = smul.addr %s531, 2
        %s533 = smul.addr %s532, 8
        %s534 = scalar_lea.vmem %s3, %s533
      $region44: #{decoder_block_forward.7} parent=39 // pred_fallthru
        _
    $region40: #{decoder_block_forward.7} parent=5 // pred_fallthru
      _
  $region6: #{decoder_block_forward.7} parent=0 // loop_footer
    %s13 = sadd.s32 1, %s9
  $region7: #{decoder_block_forward.7} parent=0 // loop_footer_branch
    %8 = sbr.rel target = $region3
  $region8: #{decoder_block_forward.7} parent=0 // loop_exit
    _

// kernel: decoder_block_forward.6
$region0: #{decoder_block_forward.6}
  #allocation0 [shape = 'u32[]', space=smem, size = 0x4, offset = 0x4, fixed_abs, tag = 'smem constant byte address 0x4 - core index']
  #allocation1 [shape = 'u32[72,128]{1,0:T(1,128)}', space=vmem, size = 0x9000, scoped, tag = 'internal scratch']
  %s0 = inlined_call_operand.vmem [shape: bf16[3,2,16,18,128], index: 0, kind: input, shape index: {}]
  %s1 = inlined_call_operand.vmem [shape: bf16[2,2,512,128], index: 1, kind: input, shape index: {}]
  %s2 = inlined_call_operand.vmem [shape: f32[2,16,2,16,256], index: 2, kind: output, shape index: {0}]
  %s3 = inlined_call_operand.vmem [shape: f32[2,2,2,128], index: 3, kind: output, shape index: {1}]
  %4 = xla_tuple %s2, %s3
  %s5 = sld [smem:[#allocation0]]
  $region90: #{decoder_block_forward.6} parent=0
    _
  %s7 = ssub.s32 1, %s5
  %s8 = scalar_select 0, %s7, %s5
  $region1: #{decoder_block_forward.6} parent=0
    #allocation2 [shape = 'u8[294912]{0}', space=vmem, size = 0x48000, scoped, tag = 'input window, operand 0']
    loop: start=0, step=1, limit=6
    $region2: #{decoder_block_forward.6} parent=1 // loop_pre_header
      _
    $region3: #{decoder_block_forward.6} parent=1 // loop_header
      %s10 = sphi 0, %s14
      %p11 = scmp.ge.s32.totalorder %s10, 6
      %s17 = sphi 0, %s29
      %s18 = sphi 0, %s25
      %s19 = sphi 0, %s17
      %s20 = sphi 0, %s18
      %s21 = sphi 0, %s19
      %s22 = sphi 0, %s20
      %s34 = sphi 0, %s36
      %s37 = sphi 0, %s34
      %s38 = sphi 0, %s37
      %s54 = sphi 0, %s38
      %s58 = sphi 0, %s58
      %s60 = sphi 0, %s58
      %s61 = sphi 0, %s60
      %s75 = sphi 0, %s61
      %s83 = sphi 0, %s85
      %s86 = sphi 0, %s83
      %s87 = sphi 0, %s86
      %s103 = sphi 0, %s87
      %s111 = sphi 0, %s113
      %s114 = sphi 0, %s111
      %s115 = sphi 0, %s114
      %s131 = sphi 0, %s115
    $region4: #{decoder_block_forward.6} parent=1 // loop_header_branch
      %13 = sbr.rel (%p11) target = $region8
    $region5: #{decoder_block_forward.6} parent=1 // loop_body
      %s15 = ssub.s32 %s10, 1
      %s16 = ssub.s32 %s10, 2
      %s23 = sadd.s32 1, %s18
      %p24 = scmp.ge.s32.totalorder %s23, 2
      %s25 = scalar_select %p24, 0, %s23
      %s26 = sadd.s32 1, %s17
      %s27 = scalar_select %p24, %s26, %s17
      %p28 = scmp.ge.s32.totalorder %s27, 2
      %s29 = scalar_select %p28, 0, %s27
      %s30 = ssub.s32 %s17, %s29
      %s31 = ssub.s32 %s18, %s25
      %s32 = sor.u32 %s30, %s31
      %p33 = scmp.eq.s32.totalorder %s32, 0
      %s35 = sadd.s32 %s34, 1
      %s36 = scalar_select %p33, %s34, %s35
      %p39 = pneg %p33
      %p40 = scmp.eq.s32.totalorder %s10, 3
      %p41 = por %p39, %p40
      %p42 = scmp.ne.s32.totalorder %s34, %s37
      %p43 = scmp.eq.s32.totalorder %s10, 0
      %p44 = por %p42, %p43
      %p45 = scmp.ne.s32.totalorder %s34, %s37
      %p46 = scmp.eq.s32.totalorder %s15, 3
      %p47 = por %p45, %p46
      %p48 = scmp.ne.s32.totalorder %s37, %s38
      %p49 = scmp.eq.s32.totalorder %s15, 0
      %p50 = por %p48, %p49
      %p51 = scmp.ne.s32.totalorder %s37, %s38
      %p52 = scmp.eq.s32.totalorder %s16, 3
      %p53 = por %p51, %p52
      %p55 = scmp.ne.s32.totalorder %s38, %s54
      %p56 = scmp.eq.s32.totalorder %s16, 0
      %p57 = por %p55, %p56
      %s59 = sadd.s32 %s58, 1
      %p62 = scmp.eq.s32.totalorder %s10, 3
      %p63 = scmp.ne.s32.totalorder %s58, %s60
      %p64 = scmp.eq.s32.totalorder %s10, 0
      %p65 = por %p63, %p64
      %p66 = scmp.ne.s32.totalorder %s58, %s60
      %p67 = scmp.eq.s32.totalorder %s15, 3
      %p68 = por %p66, %p67
      %p69 = scmp.ne.s32.totalorder %s60, %s61
      %p70 = scmp.eq.s32.totalorder %s15, 0
      %p71 = por %p69, %p70
      %p72 = scmp.ne.s32.totalorder %s60, %s61
      %p73 = scmp.eq.s32.totalorder %s16, 3
      %p74 = por %p72, %p73
      %p76 = scmp.ne.s32.totalorder %s61, %s75
      %p77 = scmp.eq.s32.totalorder %s16, 0
      %p78 = por %p76, %p77
      %s79 = ssub.s32 %s17, %s29
      %s80 = ssub.s32 %s18, %s25
      %s81 = sor.u32 %s79, %s80
      %p82 = scmp.eq.s32.totalorder %s81, 0
      %s84 = sadd.s32 %s83, 1
      %s85 = scalar_select %p82, %s83, %s84
      %p88 = pneg %p82
      %p89 = scmp.eq.s32.totalorder %s10, 3
      %p90 = por %p88, %p89
      %p91 = scmp.ne.s32.totalorder %s83, %s86
      %p92 = scmp.eq.s32.totalorder %s10, 0
      %p93 = por %p91, %p92
      %p94 = scmp.ne.s32.totalorder %s83, %s86
      %p95 = scmp.eq.s32.totalorder %s15, 3
      %p96 = por %p94, %p95
      %p97 = scmp.ne.s32.totalorder %s86, %s87
      %p98 = scmp.eq.s32.totalorder %s15, 0
      %p99 = por %p97, %p98
      %p100 = scmp.ne.s32.totalorder %s86, %s87
      %p101 = scmp.eq.s32.totalorder %s16, 3
      %p102 = por %p100, %p101
      %p104 = scmp.ne.s32.totalorder %s87, %s103
      %p105 = scmp.eq.s32.totalorder %s16, 0
      %p106 = por %p104, %p105
      %s107 = ssub.s32 %s17, %s29
      %s108 = ssub.s32 %s18, %s25
      %s109 = sor.u32 %s107, %s108
      %p110 = scmp.eq.s32.totalorder %s109, 0
      %s112 = sadd.s32 %s111, 1
      %s113 = scalar_select %p110, %s111, %s112
      %p116 = pneg %p110
      %p117 = scmp.eq.s32.totalorder %s10, 3
      %p118 = por %p116, %p117
      %p119 = scmp.ne.s32.totalorder %s111, %s114
      %p120 = scmp.eq.s32.totalorder %s10, 0
      %p121 = por %p119, %p120
      %p122 = scmp.ne.s32.totalorder %s111, %s114
      %p123 = scmp.eq.s32.totalorder %s15, 3
      %p124 = por %p122, %p123
      %p125 = scmp.ne.s32.totalorder %s114, %s115
      %p126 = scmp.eq.s32.totalorder %s15, 0
      %p127 = por %p125, %p126
      %p128 = scmp.ne.s32.totalorder %s114, %s115
      %p129 = scmp.eq.s32.totalorder %s16, 3
      %p130 = por %p128, %p129
      %p132 = scmp.ne.s32.totalorder %s115, %s131
      %p133 = scmp.eq.s32.totalorder %s16, 0
      %p134 = por %p132, %p133
      %p135 = scmp.le.s32.totalorder 1, %s10
      %p136 = scmp.lt.s32.totalorder %s10, 5
      %p137 = pnand %p135, %p136
      %p138 = pneg %p137
      // Predicated region
      $region9: #{decoder_block_forward.6} parent=5 // pred_check
        _
      $region10: #{decoder_block_forward.6} parent=5 // pred_check_branch
        %140 = sbr.rel (%p137) target = $region12
      $region11: #{decoder_block_forward.6} parent=5 // pred_region
        %s141 = ssub.s32 %s10, 1
        // Predicated region
        $region13: #{decoder_block_forward.6} parent=11 // pred_check
          %p142 = pneg %p71
        $region14: #{decoder_block_forward.6} parent=11 // pred_check_branch
          %144 = sbr.rel (%p142) target = $region16
        $region15: #{decoder_block_forward.6} parent=11 // pred_region
          _
        $region16: #{decoder_block_forward.6} parent=11 // pred_fallthru
          _
      $region12: #{decoder_block_forward.6} parent=5 // pred_fallthru
        _
      %p145 = scmp.lt.s32.totalorder %s10, 4
      // Predicated region
      $region17: #{decoder_block_forward.6} parent=5 // pred_check
        %p146 = pneg %p145
      $region18: #{decoder_block_forward.6} parent=5 // pred_check_branch
        %148 = sbr.rel (%p146) target = $region20
      $region19: #{decoder_block_forward.6} parent=5 // pred_region
        // Predicated region
        $region21: #{decoder_block_forward.6} parent=19 // pred_check
          %p149 = pneg %p44
        $region22: #{decoder_block_forward.6} parent=19 // pred_check_branch
          %151 = sbr.rel (%p149) target = $region24
        $region23: #{decoder_block_forward.6} parent=19 // pred_region
          %s152 = sand.u32 %s34, 1
          %s153 = sand.u32 %s34, 1
          %s154 = smul.addr %s153, 288
          %s155 = scalar_lea.vmem [#allocation2], %s154
          %s156 = smul.u32 8, %s18
          %s157 = smul.addr %s156, 3
          %s158 = smul.addr %s17, 48
          %s159 = sadd.s32 %s157, %s158
          %s160 = smul.addr %s159, 4
          %s161 = scalar_lea.vmem %s0, %s160
          // Predicated region
          $region25: #{decoder_block_forward.6} parent=23 // pred_check
            _
          $region26: #{decoder_block_forward.6} parent=23 // pred_check_branch
            %163 = sbr.rel (0) target = $region28
          $region27: #{decoder_block_forward.6} parent=23 // pred_region
            // Predicated region
            $region29: #{decoder_block_forward.6} parent=27 // pred_check
              _
            $region30: #{decoder_block_forward.6} parent=27 // pred_check_branch
              %165 = sbr.rel target = $region32
            $region31: #{decoder_block_forward.6} parent=27 // pred_region
              // Predicated region
              $region44: #{decoder_block_forward.6} parent=31 // pred_check
                _
              $region45: #{decoder_block_forward.6} parent=31 // pred_check_branch
                %323 = sbr.rel (0) target = $region47
              $region46: #{decoder_block_forward.6} parent=31 // pred_region
                loop: start=0, step=1, limit=1
                $region48: #{decoder_block_forward.6} parent=46 // loop_pre_header
                  _
                $region49: #{decoder_block_forward.6} parent=46 // loop_header
                  %s325 = sphi 0, %s329
                  %p326 = scmp.ge.s32.totalorder %s325, 1
                  %s330 = sphi %s161, %s161
                  %s331 = sphi %s155, %s155
                $region50: #{decoder_block_forward.6} parent=46 // loop_header_branch
                  %328 = sbr.rel (%p326) target = $region54
                $region51: #{decoder_block_forward.6} parent=46 // loop_body
                  _
                $region52: #{decoder_block_forward.6} parent=46 // loop_footer
                  %s329 = sadd.s32 1, %s325
                $region53: #{decoder_block_forward.6} parent=46 // loop_footer_branch
                  %324 = sbr.rel target = $region49
                $region54: #{decoder_block_forward.6} parent=46 // loop_exit
                  _
                %s333 = ssub.s32 16, 1
                loop: start=0, step=1, limit=1
                $region55: #{decoder_block_forward.6} parent=46 // loop_pre_header
                  _
                $region56: #{decoder_block_forward.6} parent=46 // loop_header
                  %s335 = sphi 0, %s339
                  %p336 = scmp.ge.s32.totalorder %s335, 1
                  %s340 = sphi %s161, %s161
                  %s341 = sphi %s155, %s155
                $region57: #{decoder_block_forward.6} parent=46 // loop_header_branch
                  %338 = sbr.rel (%p336) target = $region61
                $region58: #{decoder_block_forward.6} parent=46 // loop_body
                  %v342 = vld [vmem:[%s340] sm:%s333]
                  %343 = vst [vmem:[%s341] sm:%s333] %v342
                  %v344 = vld [vmem:[%s340 + $0x4] sm:%s333]
                  %345 = vst [vmem:[%s341 + $0x4] sm:%s333] %v344
                  %v346 = vld [vmem:[%s340 + $0x8] sm:%s333]
                  %347 = vst [vmem:[%s341 + $0x8] sm:%s333] %v346
                  %v348 = vld [vmem:[%s340 + $0xc] sm:%s333]
                  %349 = vst [vmem:[%s341 + $0xc] sm:%s333] %v348
                  %v350 = vld [vmem:[%s340 + $0x10] sm:%s333]
                  %351 = vst [vmem:[%s341 + $0x10] sm:%s333] %v350
                  %v352 = vld [vmem:[%s340 + $0x14] sm:%s333]
                  %353 = vst [vmem:[%s341 + $0x14] sm:%s333] %v352
                  %v354 = vld [vmem:[%s340 + $0x18] sm:%s333]
                  %355 = vst [vmem:[%s341 + $0x18] sm:%s333] %v354
                  %v356 = vld [vmem:[%s340 + $0x1c] sm:%s333]
                  %357 = vst [vmem:[%s341 + $0x1c] sm:%s333] %v356
                  %v358 = vld [vmem:[%s340 + $0x20] sm:%s333]
                  %359 = vst [vmem:[%s341 + $0x20] sm:%s333] %v358
                  %v360 = vld [vmem:[%s340 + $0x24] sm:%s333]
                  %361 = vst [vmem:[%s341 + $0x24] sm:%s333] %v360
                  %v362 = vld [vmem:[%s340 + $0x28] sm:%s333]
                  %363 = vst [vmem:[%s341 + $0x28] sm:%s333] %v362
                  %v364 = vld [vmem:[%s340 + $0x2c] sm:%s333]
                  %365 = vst [vmem:[%s341 + $0x2c] sm:%s333] %v364
                  %v366 = vld [vmem:[%s340 + $0x30] sm:%s333]
                  %367 = vst [vmem:[%s341 + $0x30] sm:%s333] %v366
                  %v368 = vld [vmem:[%s340 + $0x34] sm:%s333]
                  %369 = vst [vmem:[%s341 + $0x34] sm:%s333] %v368
                  %v370 = vld [vmem:[%s340 + $0x38] sm:%s333]
                  %371 = vst [vmem:[%s341 + $0x38] sm:%s333] %v370
                  %v372 = vld [vmem:[%s340 + $0x3c] sm:%s333]
                  %373 = vst [vmem:[%s341 + $0x3c] sm:%s333] %v372
                  %v374 = vld [vmem:[%s340 + $0x40] sm:%s333]
                  %375 = vst [vmem:[%s341 + $0x40] sm:%s333] %v374
                  %v376 = vld [vmem:[%s340 + $0x44] sm:%s333]
                  %377 = vst [vmem:[%s341 + $0x44] sm:%s333] %v376
                  %v378 = vld [vmem:[%s340 + $0x48] sm:%s333]
                  %379 = vst [vmem:[%s341 + $0x48] sm:%s333] %v378
                  %v380 = vld [vmem:[%s340 + $0x4c] sm:%s333]
                  %381 = vst [vmem:[%s341 + $0x4c] sm:%s333] %v380
                  %v382 = vld [vmem:[%s340 + $0x50] sm:%s333]
                  %383 = vst [vmem:[%s341 + $0x50] sm:%s333] %v382
                  %v384 = vld [vmem:[%s340 + $0x54] sm:%s333]
                  %385 = vst [vmem:[%s341 + $0x54] sm:%s333] %v384
                  %v386 = vld [vmem:[%s340 + $0x58] sm:%s333]
                  %387 = vst [vmem:[%s341 + $0x58] sm:%s333] %v386
                  %v388 = vld [vmem:[%s340 + $0x5c] sm:%s333]
                  %389 = vst [vmem:[%s341 + $0x5c] sm:%s333] %v388
                  %v390 = vld [vmem:[%s340 + $0x180] sm:%s333]
                  %391 = vst [vmem:[%s341 + $0x60] sm:%s333] %v390
                  %v392 = vld [vmem:[%s340 + $0x184] sm:%s333]
                  %393 = vst [vmem:[%s341 + $0x64] sm:%s333] %v392
                  %v394 = vld [vmem:[%s340 + $0x188] sm:%s333]
                  %395 = vst [vmem:[%s341 + $0x68] sm:%s333] %v394
                  %v396 = vld [vmem:[%s340 + $0x18c] sm:%s333]
                  %397 = vst [vmem:[%s341 + $0x6c] sm:%s333] %v396
                  %v398 = vld [vmem:[%s340 + $0x190] sm:%s333]
                  %399 = vst [vmem:[%s341 + $0x70] sm:%s333] %v398
                  %v400 = vld [vmem:[%s340 + $0x194] sm:%s333]
                  %401 = vst [vmem:[%s341 + $0x74] sm:%s333] %v400
                  %v402 = vld [vmem:[%s340 + $0x198] sm:%s333]
                  %403 = vst [vmem:[%s341 + $0x78] sm:%s333] %v402
                  %v404 = vld [vmem:[%s340 + $0x19c] sm:%s333]
                  %405 = vst [vmem:[%s341 + $0x7c] sm:%s333] %v404
                  %v406 = vld [vmem:[%s340 + $0x1a0] sm:%s333]
                  %407 = vst [vmem:[%s341 + $0x80] sm:%s333] %v406
                  %v408 = vld [vmem:[%s340 + $0x1a4] sm:%s333]
                  %409 = vst [vmem:[%s341 + $0x84] sm:%s333] %v408
                  %v410 = vld [vmem:[%s340 + $0x1a8] sm:%s333]
                  %411 = vst [vmem:[%s341 + $0x88] sm:%s333] %v410
                  %v412 = vld [vmem:[%s340 + $0x1ac] sm:%s333]
                  %413 = vst [vmem:[%s341 + $0x8c] sm:%s333] %v412
                  %v414 = vld [vmem:[%s340 + $0x1b0] sm:%s333]
                  %415 = vst [vmem:[%s341 + $0x90] sm:%s333] %v414
                  %v416 = vld [vmem:[%s340 + $0x1b4] sm:%s333]
                  %417 = vst [vmem:[%s341 + $0x94] sm:%s333] %v416
                  %v418 = vld [vmem:[%s340 + $0x1b8] sm:%s333]
                  %419 = vst [vmem:[%s341 + $0x98] sm:%s333] %v418
                  %v420 = vld [vmem:[%s340 + $0x1bc] sm:%s333]
                  %421 = vst [vmem:[%s341 + $0x9c] sm:%s333] %v420
                  %v422 = vld [vmem:[%s340 + $0x1c0] sm:%s333]
                  %423 = vst [vmem:[%s341 + $0xa0] sm:%s333] %v422
                  %v424 = vld [vmem:[%s340 + $0x1c4] sm:%s333]
                  %425 = vst [vmem:[%s341 + $0xa4] sm:%s333] %v424
                  %v426 = vld [vmem:[%s340 + $0x1c8] sm:%s333]
                  %427 = vst [vmem:[%s341 + $0xa8] sm:%s333] %v426
                  %v428 = vld [vmem:[%s340 + $0x1cc] sm:%s333]
                  %429 = vst [vmem:[%s341 + $0xac] sm:%s333] %v428
                  %v430 = vld [vmem:[%s340 + $0x1d0] sm:%s333]
                  %431 = vst [vmem:[%s341 + $0xb0] sm:%s333] %v430
                  %v432 = vld [vmem:[%s340 + $0x1d4] sm:%s333]
                  %433 = vst [vmem:[%s341 + $0xb4] sm:%s333] %v432
                  %v434 = vld [vmem:[%s340 + $0x1d8] sm:%s333]
                  %435 = vst [vmem:[%s341 + $0xb8] sm:%s333] %v434
                  %v436 = vld [vmem:[%s340 + $0x1dc] sm:%s333]
                  %437 = vst [vmem:[%s341 + $0xbc] sm:%s333] %v436
                  %v438 = vld [vmem:[%s340 + $0x300] sm:%s333]
                  %439 = vst [vmem:[%s341 + $0xc0] sm:%s333] %v438
                  %v440 = vld [vmem:[%s340 + $0x304] sm:%s333]
                  %441 = vst [vmem:[%s341 + $0xc4] sm:%s333] %v440
                  %v442 = vld [vmem:[%s340 + $0x308] sm:%s333]
                  %443 = vst [vmem:[%s341 + $0xc8] sm:%s333] %v442
                  %v444 = vld [vmem:[%s340 + $0x30c] sm:%s333]
                  %445 = vst [vmem:[%s341 + $0xcc] sm:%s333] %v444
                  %v446 = vld [vmem:[%s340 + $0x310] sm:%s333]
                  %447 = vst [vmem:[%s341 + $0xd0] sm:%s333] %v446
                  %v448 = vld [vmem:[%s340 + $0x314] sm:%s333]
                  %449 = vst [vmem:[%s341 + $0xd4] sm:%s333] %v448
                  %v450 = vld [vmem:[%s340 + $0x318] sm:%s333]
                  %451 = vst [vmem:[%s341 + $0xd8] sm:%s333] %v450
                  %v452 = vld [vmem:[%s340 + $0x31c] sm:%s333]
                  %453 = vst [vmem:[%s341 + $0xdc] sm:%s333] %v452
                  %v454 = vld [vmem:[%s340 + $0x320] sm:%s333]
                  %455 = vst [vmem:[%s341 + $0xe0] sm:%s333] %v454
                  %v456 = vld [vmem:[%s340 + $0x324] sm:%s333]
                  %457 = vst [vmem:[%s341 + $0xe4] sm:%s333] %v456
                  %v458 = vld [vmem:[%s340 + $0x328] sm:%s333]
                  %459 = vst [vmem:[%s341 + $0xe8] sm:%s333] %v458
                  %v460 = vld [vmem:[%s340 + $0x32c] sm:%s333]
                  %461 = vst [vmem:[%s341 + $0xec] sm:%s333] %v460
                  %v462 = vld [vmem:[%s340 + $0x330] sm:%s333]
                  %463 = vst [vmem:[%s341 + $0xf0] sm:%s333] %v462
                  %v464 = vld [vmem:[%s340 + $0x334] sm:%s333]
                  %465 = vst [vmem:[%s341 + $0xf4] sm:%s333] %v464
                  %v466 = vld [vmem:[%s340 + $0x338] sm:%s333]
                  %467 = vst [vmem:[%s341 + $0xf8] sm:%s333] %v466
                  %v468 = vld [vmem:[%s340 + $0x33c] sm:%s333]
                  %469 = vst [vmem:[%s341 + $0xfc] sm:%s333] %v468
                  %v470 = vld [vmem:[%s340 + $0x340] sm:%s333]
                  %471 = vst [vmem:[%s341 + $0x100] sm:%s333] %v470
                  %v472 = vld [vmem:[%s340 + $0x344] sm:%s333]
                  %473 = vst [vmem:[%s341 + $0x104] sm:%s333] %v472
                  %v474 = vld [vmem:[%s340 + $0x348] sm:%s333]
                  %475 = vst [vmem:[%s341 + $0x108] sm:%s333] %v474
                  %v476 = vld [vmem:[%s340 + $0x34c] sm:%s333]
                  %477 = vst [vmem:[%s341 + $0x10c] sm:%s333] %v476
                  %v478 = vld [vmem:[%s340 + $0x350] sm:%s333]
                  %479 = vst [vmem:[%s341 + $0x110] sm:%s333] %v478
                  %v480 = vld [vmem:[%s340 + $0x354] sm:%s333]
                  %481 = vst [vmem:[%s341 + $0x114] sm:%s333] %v480
                  %v482 = vld [vmem:[%s340 + $0x358] sm:%s333]
                  %483 = vst [vmem:[%s341 + $0x118] sm:%s333] %v482
                  %v484 = vld [vmem:[%s340 + $0x35c] sm:%s333]
                  %485 = vst [vmem:[%s341 + $0x11c] sm:%s333] %v484
                $region59: #{decoder_block_forward.6} parent=46 // loop_footer
                  %s339 = sadd.s32 1, %s335
                $region60: #{decoder_block_forward.6} parent=46 // loop_footer_branch
                  %334 = sbr.rel target = $region56
                $region61: #{decoder_block_forward.6} parent=46 // loop_exit
                  _
              $region47: #{decoder_block_forward.6} parent=31 // pred_fallthru
                _
            $region32: #{decoder_block_forward.6} parent=27 // pred_fallthru
              _
            // Predicated region
            $region33: #{decoder_block_forward.6} parent=27 // pred_check
              _
            $region34: #{decoder_block_forward.6} parent=27 // pred_check_branch
              %167 = sbr.rel (0) target = $region36
            $region35: #{decoder_block_forward.6} parent=27 // pred_region
              %s169 = ssub.s32 16, 1
              loop: start=0, step=1, limit=1
              $region37: #{decoder_block_forward.6} parent=35 // loop_pre_header
                _
              $region38: #{decoder_block_forward.6} parent=35 // loop_header
                %s171 = sphi 0, %s175
                %p172 = scmp.ge.s32.totalorder %s171, 1
                %s176 = sphi %s161, %s161
                %s177 = sphi %s155, %s155
              $region39: #{decoder_block_forward.6} parent=35 // loop_header_branch
                %174 = sbr.rel (%p172) target = $region43
              $region40: #{decoder_block_forward.6} parent=35 // loop_body
                %v178 = vld [vmem:[%s176] sm:%s169]
                %179 = vst [vmem:[%s177] sm:%s169] %v178
                %v180 = vld [vmem:[%s176 + $0x4] sm:%s169]
                %181 = vst [vmem:[%s177 + $0x4] sm:%s169] %v180
                %v182 = vld [vmem:[%s176 + $0x8] sm:%s169]
                %183 = vst [vmem:[%s177 + $0x8] sm:%s169] %v182
                %v184 = vld [vmem:[%s176 + $0xc] sm:%s169]
                %185 = vst [vmem:[%s177 + $0xc] sm:%s169] %v184
                %v186 = vld [vmem:[%s176 + $0x10] sm:%s169]
                %187 = vst [vmem:[%s177 + $0x10] sm:%s169] %v186
                %v188 = vld [vmem:[%s176 + $0x14] sm:%s169]
                %189 = vst [vmem:[%s177 + $0x14] sm:%s169] %v188
                %v190 = vld [vmem:[%s176 + $0x18] sm:%s169]
                %191 = vst [vmem:[%s177 + $0x18] sm:%s169] %v190
                %v192 = vld [vmem:[%s176 + $0x1c] sm:%s169]
                %193 = vst [vmem:[%s177 + $0x1c] sm:%s169] %v192
                %v194 = vld [vmem:[%s176 + $0x20] sm:%s169]
                %195 = vst [vmem:[%s177 + $0x20] sm:%s169] %v194
                %v196 = vld [vmem:[%s176 + $0x24] sm:%s169]
                %197 = vst [vmem:[%s177 + $0x24] sm:%s169] %v196
                %v198 = vld [vmem:[%s176 + $0x28] sm:%s169]
                %199 = vst [vmem:[%s177 + $0x28] sm:%s169] %v198
                %v200 = vld [vmem:[%s176 + $0x2c] sm:%s169]
                %201 = vst [vmem:[%s177 + $0x2c] sm:%s169] %v200
                %v202 = vld [vmem:[%s176 + $0x30] sm:%s169]
                %203 = vst [vmem:[%s177 + $0x30] sm:%s169] %v202
                %v204 = vld [vmem:[%s176 + $0x34] sm:%s169]
                %205 = vst [vmem:[%s177 + $0x34] sm:%s169] %v204
                %v206 = vld [vmem:[%s176 + $0x38] sm:%s169]
                %207 = vst [vmem:[%s177 + $0x38] sm:%s169] %v206
                %v208 = vld [vmem:[%s176 + $0x3c] sm:%s169]
                %209 = vst [vmem:[%s177 + $0x3c] sm:%s169] %v208
                %v210 = vld [vmem:[%s176 + $0x40] sm:%s169]
                %211 = vst [vmem:[%s177 + $0x40] sm:%s169] %v210
                %v212 = vld [vmem:[%s176 + $0x44] sm:%s169]
                %213 = vst [vmem:[%s177 + $0x44] sm:%s169] %v212
                %v214 = vld [vmem:[%s176 + $0x48] sm:%s169]
                %215 = vst [vmem:[%s177 + $0x48] sm:%s169] %v214
                %v216 = vld [vmem:[%s176 + $0x4c] sm:%s169]
                %217 = vst [vmem:[%s177 + $0x4c] sm:%s169] %v216
                %v218 = vld [vmem:[%s176 + $0x50] sm:%s169]
                %219 = vst [vmem:[%s177 + $0x50] sm:%s169] %v218
                %v220 = vld [vmem:[%s176 + $0x54] sm:%s169]
                %221 = vst [vmem:[%s177 + $0x54] sm:%s169] %v220
                %v222 = vld [vmem:[%s176 + $0x58] sm:%s169]
                %223 = vst [vmem:[%s177 + $0x58] sm:%s169] %v222
                %v224 = vld [vmem:[%s176 + $0x5c] sm:%s169]
                %225 = vst [vmem:[%s177 + $0x5c] sm:%s169] %v224
                %v226 = vld [vmem:[%s176 + $0x180] sm:%s169]
                %227 = vst [vmem:[%s177 + $0x60] sm:%s169] %v226
                %v228 = vld [vmem:[%s176 + $0x184] sm:%s169]
                %229 = vst [vmem:[%s177 + $0x64] sm:%s169] %v228
                %v230 = vld [vmem:[%s176 + $0x188] sm:%s169]
                %231 = vst [vmem:[%s177 + $0x68] sm:%s169] %v230
                %v232 = vld [vmem:[%s176 + $0x18c] sm:%s169]
                %233 = vst [vmem:[%s177 + $0x6c] sm:%s169] %v232
                %v234 = vld [vmem:[%s176 + $0x190] sm:%s169]
                %235 = vst [vmem:[%s177 + $0x70] sm:%s169] %v234
                %v236 = vld [vmem:[%s176 + $0x194] sm:%s169]
                %237 = vst [vmem:[%s177 + $0x74] sm:%s169] %v236
                %v238 = vld [vmem:[%s176 + $0x198] sm:%s169]
                %239 = vst [vmem:[%s177 + $0x78] sm:%s169] %v238
                %v240 = vld [vmem:[%s176 + $0x19c] sm:%s169]
                %241 = vst [vmem:[%s177 + $0x7c] sm:%s169] %v240
                %v242 = vld [vmem:[%s176 + $0x1a0] sm:%s169]
                %243 = vst [vmem:[%s177 + $0x80] sm:%s169] %v242
                %v244 = vld [vmem:[%s176 + $0x1a4] sm:%s169]
                %245 = vst [vmem:[%s177 + $0x84] sm:%s169] %v244
                %v246 = vld [vmem:[%s176 + $0x1a8] sm:%s169]
                %247 = vst [vmem:[%s177 + $0x88] sm:%s169] %v246
                %v248 = vld [vmem:[%s176 + $0x1ac] sm:%s169]
                %249 = vst [vmem:[%s177 + $0x8c] sm:%s169] %v248
                %v250 = vld [vmem:[%s176 + $0x1b0] sm:%s169]
                %251 = vst [vmem:[%s177 + $0x90] sm:%s169] %v250
                %v252 = vld [vmem:[%s176 + $0x1b4] sm:%s169]
                %253 = vst [vmem:[%s177 + $0x94] sm:%s169] %v252
                %v254 = vld [vmem:[%s176 + $0x1b8] sm:%s169]
                %255 = vst [vmem:[%s177 + $0x98] sm:%s169] %v254
                %v256 = vld [vmem:[%s176 + $0x1bc] sm:%s169]
                %257 = vst [vmem:[%s177 + $0x9c] sm:%s169] %v256
                %v258 = vld [vmem:[%s176 + $0x1c0] sm:%s169]
                %259 = vst [vmem:[%s177 + $0xa0] sm:%s169] %v258
                %v260 = vld [vmem:[%s176 + $0x1c4] sm:%s169]
                %261 = vst [vmem:[%s177 + $0xa4] sm:%s169] %v260
                %v262 = vld [vmem:[%s176 + $0x1c8] sm:%s169]
                %263 = vst [vmem:[%s177 + $0xa8] sm:%s169] %v262
                %v264 = vld [vmem:[%s176 + $0x1cc] sm:%s169]
                %265 = vst [vmem:[%s177 + $0xac] sm:%s169] %v264
                %v266 = vld [vmem:[%s176 + $0x1d0] sm:%s169]
                %267 = vst [vmem:[%s177 + $0xb0] sm:%s169] %v266
                %v268 = vld [vmem:[%s176 + $0x1d4] sm:%s169]
                %269 = vst [vmem:[%s177 + $0xb4] sm:%s169] %v268
                %v270 = vld [vmem:[%s176 + $0x1d8] sm:%s169]
                %271 = vst [vmem:[%s177 + $0xb8] sm:%s169] %v270
                %v272 = vld [vmem:[%s176 + $0x1dc] sm:%s169]
                %273 = vst [vmem:[%s177 + $0xbc] sm:%s169] %v272
                %v274 = vld [vmem:[%s176 + $0x300] sm:%s169]
                %275 = vst [vmem:[%s177 + $0xc0] sm:%s169] %v274
                %v276 = vld [vmem:[%s176 + $0x304] sm:%s169]
                %277 = vst [vmem:[%s177 + $0xc4] sm:%s169] %v276
                %v278 = vld [vmem:[%s176 + $0x308] sm:%s169]
                %279 = vst [vmem:[%s177 + $0xc8] sm:%s169] %v278
                %v280 = vld [vmem:[%s176 + $0x30c] sm:%s169]
                %281 = vst [vmem:[%s177 + $0xcc] sm:%s169] %v280
                %v282 = vld [vmem:[%s176 + $0x310] sm:%s169]
                %283 = vst [vmem:[%s177 + $0xd0] sm:%s169] %v282
                %v284 = vld [vmem:[%s176 + $0x314] sm:%s169]
                %285 = vst [vmem:[%s177 + $0xd4] sm:%s169] %v284
                %v286 = vld [vmem:[%s176 + $0x318] sm:%s169]
                %287 = vst [vmem:[%s177 + $0xd8] sm:%s169] %v286
                %v288 = vld [vmem:[%s176 + $0x31c] sm:%s169]
                %289 = vst [vmem:[%s177 + $0xdc] sm:%s169] %v288
                %v290 = vld [vmem:[%s176 + $0x320] sm:%s169]
                %291 = vst [vmem:[%s177 + $0xe0] sm:%s169] %v290
                %v292 = vld [vmem:[%s176 + $0x324] sm:%s169]
                %293 = vst [vmem:[%s177 + $0xe4] sm:%s169] %v292
                %v294 = vld [vmem:[%s176 + $0x328] sm:%s169]
                %295 = vst [vmem:[%s177 + $0xe8] sm:%s169] %v294
                %v296 = vld [vmem:[%s176 + $0x32c] sm:%s169]
                %297 = vst [vmem:[%s177 + $0xec] sm:%s169] %v296
                %v298 = vld [vmem:[%s176 + $0x330] sm:%s169]
                %299 = vst [vmem:[%s177 + $0xf0] sm:%s169] %v298
                %v300 = vld [vmem:[%s176 + $0x334] sm:%s169]
                %301 = vst [vmem:[%s177 + $0xf4] sm:%s169] %v300
                %v302 = vld [vmem:[%s176 + $0x338] sm:%s169]
                %303 = vst [vmem:[%s177 + $0xf8] sm:%s169] %v302
                %v304 = vld [vmem:[%s176 + $0x33c] sm:%s169]
                %305 = vst [vmem:[%s177 + $0xfc] sm:%s169] %v304
                %v306 = vld [vmem:[%s176 + $0x340] sm:%s169]
                %307 = vst [vmem:[%s177 + $0x100] sm:%s169] %v306
                %v308 = vld [vmem:[%s176 + $0x344] sm:%s169]
                %309 = vst [vmem:[%s177 + $0x104] sm:%s169] %v308
                %v310 = vld [vmem:[%s176 + $0x348] sm:%s169]
                %311 = vst [vmem:[%s177 + $0x108] sm:%s169] %v310
                %v312 = vld [vmem:[%s176 + $0x34c] sm:%s169]
                %313 = vst [vmem:[%s177 + $0x10c] sm:%s169] %v312
                %v314 = vld [vmem:[%s176 + $0x350] sm:%s169]
                %315 = vst [vmem:[%s177 + $0x110] sm:%s169] %v314
                %v316 = vld [vmem:[%s176 + $0x354] sm:%s169]
                %317 = vst [vmem:[%s177 + $0x114] sm:%s169] %v316
                %v318 = vld [vmem:[%s176 + $0x358] sm:%s169]
                %319 = vst [vmem:[%s177 + $0x118] sm:%s169] %v318
                %v320 = vld [vmem:[%s176 + $0x35c] sm:%s169]
                %321 = vst [vmem:[%s177 + $0x11c] sm:%s169] %v320
              $region41: #{decoder_block_forward.6} parent=35 // loop_footer
                %s175 = sadd.s32 1, %s171
              $region42: #{decoder_block_forward.6} parent=35 // loop_footer_branch
                %170 = sbr.rel target = $region38
              $region43: #{decoder_block_forward.6} parent=35 // loop_exit
                _
            $region36: #{decoder_block_forward.6} parent=27 // pred_fallthru
              _
          $region28: #{decoder_block_forward.6} parent=23 // pred_fallthru
            _
          %486 = vnop
        $region24: #{decoder_block_forward.6} parent=19 // pred_fallthru
          _
      $region20: #{decoder_block_forward.6} parent=5 // pred_fallthru
        _
      %p487 = scmp.le.s32.totalorder 1, %s10
      %p488 = scmp.lt.s32.totalorder %s10, 5
      %p489 = pnand %p487, %p488
      %p490 = pneg %p489
      // Predicated region
      $region62: #{decoder_block_forward.6} parent=5 // pred_check
        _
      $region63: #{decoder_block_forward.6} parent=5 // pred_check_branch
        %492 = sbr.rel (%p489) target = $region65
      $region64: #{decoder_block_forward.6} parent=5 // pred_region
        %s493 = ssub.s32 %s10, 1
        %s494 = sand.u32 %s37, 1
        %s495 = sand.u32 %s37, 1
        %s496 = smul.addr %s495, 288
        %s497 = scalar_lea.vmem [#allocation2], %s496
        // Predicated region
        $region66: #{decoder_block_forward.6} parent=64 // pred_check
          %p498 = pneg %p50
        $region67: #{decoder_block_forward.6} parent=64 // pred_check_branch
          %500 = sbr.rel (%p498) target = $region69
        $region68: #{decoder_block_forward.6} parent=64 // pred_region
          _
        $region69: #{decoder_block_forward.6} parent=64 // pred_fallthru
          _
        %s501 = sand.u32 %s37, 1
        %s502 = sand.u32 %s37, 1
        %s503 = smul.addr %s502, 288
        %s504 = scalar_lea.vmem [#allocation2], %s503
        %p505 = pneg %p50
        %p506 = pneg %p47
        %p507 = pneg %p71
        %p508 = pneg %p68
        %p509 = pneg %p99
        %p510 = pneg %p96
        %s511 = smul.u32 8, %s20
        %p512 = scmp.lt.s32.totalorder %s19, 1
        %s513 = scalar_select %p512, %s19, 1
        %p514 = scmp.lt.s32.totalorder %s511, 15
        %s515 = scalar_select %p514, %s511, 15
        %s516 = smul.addr %s515, 8
        %s517 = smul.addr %s513, 128
        %s518 = sadd.s32 %s516, %s517
        %s519 = smul.addr %s518, 8
        %s520 = scalar_lea.vmem %s2, %s519
        %p521 = pneg %p127
        %p522 = pneg %p124
        %p523 = scmp.lt.s32.totalorder %s19, 1
        %s524 = scalar_select %p523, %s19, 1
        %p525 = scmp.lt.s32.totalorder %s20, 1
        %s526 = scalar_select %p525, %s20, 1
        %s527 = smul.addr %s524, 2
        %s528 = sadd.s32 %s526, %s527
        %s529 = smul.addr %s528, 2
        %s530 = scalar_lea.vmem %s3, %s529
        %s531 = smul.u32 8, %s20
        %s532 = smul.u32 8, %s20
        %p533 = scmp.lt.s32.totalorder %s19, 1
        %s534 = scalar_select %p533, %s19, 1
        %p535 = scmp.lt.s32.totalorder %s532, 15
        %s536 = scalar_select %p535, %s532, 15
        %s537 = smul.addr %s536, 8
        %s538 = smul.addr %s534, 128
        %s539 = sadd.s32 %s537, %s538
        %s540 = smul.addr %s539, 8
        %s541 = scalar_lea.vmem %s2, %s540
        %s542 = smul.u32 8, %s20
        %p543 = scmp.lt.s32.totalorder %s19, 1
        %s544 = scalar_select %p543, %s19, 1
        %p545 = scmp.lt.s32.totalorder %s20, 1
        %s546 = scalar_select %p545, %s20, 1
        %s547 = smul.addr %s544, 2
        %s548 = sadd.s32 %s546, %s547
        %s549 = smul.addr %s548, 2
        %s550 = scalar_lea.vmem %s3, %s549
        %s551 = scalar_lea.vmem %s497, 96 [#allocation2]
        %v552 = vld [vmem:[%s551] sm:$0xf]
        %v553 = vld [vmem:[%s551 + $0x4] sm:$0xf]
        %v554 = vld [vmem:[%s551 + $0x8] sm:$0x1]
        %v555 = vld [vmem:[%s551 + $0xc] sm:$0xf]
        %v556 = vld [vmem:[%s551 + $0x10] sm:$0xf]
        %v557 = vld [vmem:[%s551 + $0x14] sm:$0x1]
        %v558 = vld [vmem:[%s551 + $0x18] sm:$0xf]
        %v559 = vld [vmem:[%s551 + $0x1c] sm:$0xf]
        %v560 = vld [vmem:[%s551 + $0x20] sm:$0x1]
        %v561 = vld [vmem:[%s551 + $0x24] sm:$0xf]
        %v562 = vld [vmem:[%s551 + $0x28] sm:$0xf]
        %v563 = vld [vmem:[%s551 + $0x2c] sm:$0x1]
        %v564 = vld [vmem:[%s551 + $0x30] sm:$0xf]
        %v565 = vld [vmem:[%s551 + $0x34] sm:$0xf]
        %v566 = vld [vmem:[%s551 + $0x38] sm:$0x1]
        %v567 = vld [vmem:[%s551 + $0x3c] sm:$0xf]
        %v568 = vld [vmem:[%s551 + $0x40] sm:$0xf]
        %v569 = vld [vmem:[%s551 + $0x44] sm:$0x1]
        %v570 = vld [vmem:[%s551 + $0x48] sm:$0xf]
        %v571 = vld [vmem:[%s551 + $0x4c] sm:$0xf]
        %v572 = vld [vmem:[%s551 + $0x50] sm:$0x1]
        %v573 = vld [vmem:[%s551 + $0x54] sm:$0xf]
        %v574 = vld [vmem:[%s551 + $0x58] sm:$0xf]
        %v575 = vld [vmem:[%s551 + $0x5c] sm:$0x1]
        %vm576 = vsmask.f32 3328
        %vm577 = vsmask.f32 7440
        %vm578 = vmor %vm576, %vm577
        %v580 = vshrl.u32 %v552, 16
        %v582 = vrot.slane %v580, 4
        %v583 = vshll.u32 %v552, 16
        %v585 = vrot.slane %v583, 5
        %v586 = vor.u32 %v582, %v585
        %v587 = vrot.slane %v586, 4
        %v589 = vshll.u32 %v553, 16
        %v591 = vrot.slane %v589, 5
        %v592 = vsel %vm578, %v587, %v591
        %v593 = vshrl.u32 %v553, 16
        %v595 = vrot.slane %v593, 4
        %v596 = vor.u32 %v595, %v591
        %v597 = vrot.slane %v596, 4
        %v599 = vshll.u32 %v554, 16
        %v601 = vrot.slane %v599, 5
        %v602 = vsel %vm578, %v597, %v601
        %v604 = vshrl.u32 %v555, 16
        %v606 = vrot.slane %v604, 4
        %v607 = vshll.u32 %v555, 16
        %v609 = vrot.slane %v607, 5
        %v610 = vor.u32 %v606, %v609
        %v611 = vrot.slane %v610, 4
        %v613 = vshll.u32 %v556, 16
        %v615 = vrot.slane %v613, 5
        %v616 = vsel %vm578, %v611, %v615
        %v617 = vshrl.u32 %v556, 16
        %v619 = vrot.slane %v617, 4
        %v620 = vor.u32 %v619, %v615
        %v621 = vrot.slane %v620, 4
        %v623 = vshll.u32 %v557, 16
        %v625 = vrot.slane %v623, 5
        %v626 = vsel %vm578, %v621, %v625
        %v628 = vshrl.u32 %v558, 16
        %v630 = vrot.slane %v628, 4
        %v631 = vshll.u32 %v558, 16
        %v633 = vrot.slane %v631, 5
        %v634 = vor.u32 %v630, %v633
        %v635 = vrot.slane %v634, 4
        %v637 = vshll.u32 %v559, 16
        %v639 = vrot.slane %v637, 5
        %v640 = vsel %vm578, %v635, %v639
        %v641 = vshrl.u32 %v559, 16
        %v643 = vrot.slane %v641, 4
        %v644 = vor.u32 %v643, %v639
        %v645 = vrot.slane %v644, 4
        %v647 = vshll.u32 %v560, 16
        %v649 = vrot.slane %v647, 5
        %v650 = vsel %vm578, %v645, %v649
        %v652 = vshrl.u32 %v561, 16
        %v654 = vrot.slane %v652, 4
        %v655 = vshll.u32 %v561, 16
        %v657 = vrot.slane %v655, 5
        %v658 = vor.u32 %v654, %v657
        %v659 = vrot.slane %v658, 4
        %v661 = vshll.u32 %v562, 16
        %v663 = vrot.slane %v661, 5
        %v664 = vsel %vm578, %v659, %v663
        %v665 = vshrl.u32 %v562, 16
        %v667 = vrot.slane %v665, 4
        %v668 = vor.u32 %v667, %v663
        %v669 = vrot.slane %v668, 4
        %v671 = vshll.u32 %v563, 16
        %v673 = vrot.slane %v671, 5
        %v674 = vsel %vm578, %v669, %v673
        %v676 = vshrl.u32 %v564, 16
        %v678 = vrot.slane %v676, 4
        %v679 = vshll.u32 %v564, 16
        %v681 = vrot.slane %v679, 5
        %v682 = vor.u32 %v678, %v681
        %v683 = vrot.slane %v682, 4
        %v685 = vshll.u32 %v565, 16
        %v687 = vrot.slane %v685, 5
        %v688 = vsel %vm578, %v683, %v687
        %v689 = vshrl.u32 %v565, 16
        %v691 = vrot.slane %v689, 4
        %v692 = vor.u32 %v691, %v687
        %v693 = vrot.slane %v692, 4
        %v695 = vshll.u32 %v566, 16
        %v697 = vrot.slane %v695, 5
        %v698 = vsel %vm578, %v693, %v697
        %v700 = vshrl.u32 %v567, 16
        %v702 = vrot.slane %v700, 4
        %v703 = vshll.u32 %v567, 16
        %v705 = vrot.slane %v703, 5
        %v706 = vor.u32 %v702, %v705
        %v707 = vrot.slane %v706, 4
        %v709 = vshll.u32 %v568, 16
        %v711 = vrot.slane %v709, 5
        %v712 = vsel %vm578, %v707, %v711
        %v713 = vshrl.u32 %v568, 16
        %v715 = vrot.slane %v713, 4
        %v716 = vor.u32 %v715, %v711
        %v717 = vrot.slane %v716, 4
        %v719 = vshll.u32 %v569, 16
        %v721 = vrot.slane %v719, 5
        %v722 = vsel %vm578, %v717, %v721
        %v724 = vshrl.u32 %v570, 16
        %v726 = vrot.slane %v724, 4
        %v727 = vshll.u32 %v570, 16
        %v729 = vrot.slane %v727, 5
        %v730 = vor.u32 %v726, %v729
        %v731 = vrot.slane %v730, 4
        %v733 = vshll.u32 %v571, 16
        %v735 = vrot.slane %v733, 5
        %v736 = vsel %vm578, %v731, %v735
        %v737 = vshrl.u32 %v571, 16
        %v739 = vrot.slane %v737, 4
        %v740 = vor.u32 %v739, %v735
        %v741 = vrot.slane %v740, 4
        %v743 = vshll.u32 %v572, 16
        %v745 = vrot.slane %v743, 5
        %v746 = vsel %vm578, %v741, %v745
        %v748 = vshrl.u32 %v573, 16
        %v750 = vrot.slane %v748, 4
        %v751 = vshll.u32 %v573, 16
        %v753 = vrot.slane %v751, 5
        %v754 = vor.u32 %v750, %v753
        %v755 = vrot.slane %v754, 4
        %v757 = vshll.u32 %v574, 16
        %v759 = vrot.slane %v757, 5
        %v760 = vsel %vm578, %v755, %v759
        %v761 = vshrl.u32 %v574, 16
        %v763 = vrot.slane %v761, 4
        %v764 = vor.u32 %v763, %v759
        %v765 = vrot.slane %v764, 4
        %v767 = vshll.u32 %v575, 16
        %v769 = vrot.slane %v767, 5
        %v770 = vsel %vm578, %v765, %v769
        %v771 = vld [vmem:[%s497] sm:$0xf]
        %v772 = vld [vmem:[%s497 + $0x4] sm:$0xf]
        %v773 = vld [vmem:[%s497 + $0x8] sm:$0x1]
        %v774 = vld [vmem:[%s497 + $0xc] sm:$0xf]
        %v775 = vld [vmem:[%s497 + $0x10] sm:$0xf]
        %v776 = vld [vmem:[%s497 + $0x14] sm:$0x1]
        %v777 = vld [vmem:[%s497 + $0x18] sm:$0xf]
        %v778 = vld [vmem:[%s497 + $0x1c] sm:$0xf]
        %v779 = vld [vmem:[%s497 + $0x20] sm:$0x1]
        %v780 = vld [vmem:[%s497 + $0x24] sm:$0xf]
        %v781 = vld [vmem:[%s497 + $0x28] sm:$0xf]
        %v782 = vld [vmem:[%s497 + $0x2c] sm:$0x1]
        %v783 = vld [vmem:[%s497 + $0x30] sm:$0xf]
        %v784 = vld [vmem:[%s497 + $0x34] sm:$0xf]
        %v785 = vld [vmem:[%s497 + $0x38] sm:$0x1]
        %v786 = vld [vmem:[%s497 + $0x3c] sm:$0xf]
        %v787 = vld [vmem:[%s497 + $0x40] sm:$0xf]
        %v788 = vld [vmem:[%s497 + $0x44] sm:$0x1]
        %v789 = vld [vmem:[%s497 + $0x48] sm:$0xf]
        %v790 = vld [vmem:[%s497 + $0x4c] sm:$0xf]
        %v791 = vld [vmem:[%s497 + $0x50] sm:$0x1]
        %v792 = vld [vmem:[%s497 + $0x54] sm:$0xf]
        %v793 = vld [vmem:[%s497 + $0x58] sm:$0xf]
        %v794 = vld [vmem:[%s497 + $0x5c] sm:$0x1]
        %v796 = vshrl.u32 %v771, 16
        %v798 = vrot.slane %v796, 4
        %v799 = vshll.u32 %v771, 16
        %v801 = vrot.slane %v799, 5
        %v802 = vor.u32 %v798, %v801
        %v803 = vrot.slane %v802, 4
        %v805 = vshll.u32 %v772, 16
        %v807 = vrot.slane %v805, 5
        %v808 = vsel %vm578, %v803, %v807
        %v809 = vshrl.u32 %v772, 16
        %v811 = vrot.slane %v809, 4
        %v812 = vor.u32 %v811, %v807
        %v813 = vrot.slane %v812, 4
        %v815 = vshll.u32 %v773, 16
        %v817 = vrot.slane %v815, 5
        %v818 = vsel %vm578, %v813, %v817
        %v820 = vshrl.u32 %v774, 16
        %v822 = vrot.slane %v820, 4
        %v823 = vshll.u32 %v774, 16
        %v825 = vrot.slane %v823, 5
        %v826 = vor.u32 %v822, %v825
        %v827 = vrot.slane %v826, 4
        %v829 = vshll.u32 %v775, 16
        %v831 = vrot.slane %v829, 5
        %v832 = vsel %vm578, %v827, %v831
        %v833 = vshrl.u32 %v775, 16
        %v835 = vrot.slane %v833, 4
        %v836 = vor.u32 %v835, %v831
        %v837 = vrot.slane %v836, 4
        %v839 = vshll.u32 %v776, 16
        %v841 = vrot.slane %v839, 5
        %v842 = vsel %vm578, %v837, %v841
        %v844 = vshrl.u32 %v777, 16
        %v846 = vrot.slane %v844, 4
        %v847 = vshll.u32 %v777, 16
        %v849 = vrot.slane %v847, 5
        %v850 = vor.u32 %v846, %v849
        %v851 = vrot.slane %v850, 4
        %v853 = vshll.u32 %v778, 16
        %v855 = vrot.slane %v853, 5
        %v856 = vsel %vm578, %v851, %v855
        %v857 = vshrl.u32 %v778, 16
        %v859 = vrot.slane %v857, 4
        %v860 = vor.u32 %v859, %v855
        %v861 = vrot.slane %v860, 4
        %v863 = vshll.u32 %v779, 16
        %v865 = vrot.slane %v863, 5
        %v866 = vsel %vm578, %v861, %v865
        %v868 = vshrl.u32 %v780, 16
        %v870 = vrot.slane %v868, 4
        %v871 = vshll.u32 %v780, 16
        %v873 = vrot.slane %v871, 5
        %v874 = vor.u32 %v870, %v873
        %v875 = vrot.slane %v874, 4
        %v877 = vshll.u32 %v781, 16
        %v879 = vrot.slane %v877, 5
        %v880 = vsel %vm578, %v875, %v879
        %v881 = vshrl.u32 %v781, 16
        %v883 = vrot.slane %v881, 4
        %v884 = vor.u32 %v883, %v879
        %v885 = vrot.slane %v884, 4
        %v887 = vshll.u32 %v782, 16
        %v889 = vrot.slane %v887, 5
        %v890 = vsel %vm578, %v885, %v889
        %v892 = vshrl.u32 %v783, 16
        %v894 = vrot.slane %v892, 4
        %v895 = vshll.u32 %v783, 16
        %v897 = vrot.slane %v895, 5
        %v898 = vor.u32 %v894, %v897
        %v899 = vrot.slane %v898, 4
        %v901 = vshll.u32 %v784, 16
        %v903 = vrot.slane %v901, 5
        %v904 = vsel %vm578, %v899, %v903
        %v905 = vshrl.u32 %v784, 16
        %v907 = vrot.slane %v905, 4
        %v908 = vor.u32 %v907, %v903
        %v909 = vrot.slane %v908, 4
        %v911 = vshll.u32 %v785, 16
        %v913 = vrot.slane %v911, 5
        %v914 = vsel %vm578, %v909, %v913
        %v916 = vshrl.u32 %v786, 16
        %v918 = vrot.slane %v916, 4
        %v919 = vshll.u32 %v786, 16
        %v921 = vrot.slane %v919, 5
        %v922 = vor.u32 %v918, %v921
        %v923 = vrot.slane %v922, 4
        %v925 = vshll.u32 %v787, 16
        %v927 = vrot.slane %v925, 5
        %v928 = vsel %vm578, %v923, %v927
        %v929 = vshrl.u32 %v787, 16
        %v931 = vrot.slane %v929, 4
        %v932 = vor.u32 %v931, %v927
        %v933 = vrot.slane %v932, 4
        %v935 = vshll.u32 %v788, 16
        %v937 = vrot.slane %v935, 5
        %v938 = vsel %vm578, %v933, %v937
        %v940 = vshrl.u32 %v789, 16
        %v942 = vrot.slane %v940, 4
        %v943 = vshll.u32 %v789, 16
        %v945 = vrot.slane %v943, 5
        %v946 = vor.u32 %v942, %v945
        %v947 = vrot.slane %v946, 4
        %v949 = vshll.u32 %v790, 16
        %v951 = vrot.slane %v949, 5
        %v952 = vsel %vm578, %v947, %v951
        %v953 = vshrl.u32 %v790, 16
        %v955 = vrot.slane %v953, 4
        %v956 = vor.u32 %v955, %v951
        %v957 = vrot.slane %v956, 4
        %v959 = vshll.u32 %v791, 16
        %v961 = vrot.slane %v959, 5
        %v962 = vsel %vm578, %v957, %v961
        %v964 = vshrl.u32 %v792, 16
        %v966 = vrot.slane %v964, 4
        %v967 = vshll.u32 %v792, 16
        %v969 = vrot.slane %v967, 5
        %v970 = vor.u32 %v966, %v969
        %v971 = vrot.slane %v970, 4
        %v973 = vshll.u32 %v793, 16
        %v975 = vrot.slane %v973, 5
        %v976 = vsel %vm578, %v971, %v975
        %v977 = vshrl.u32 %v793, 16
        %v979 = vrot.slane %v977, 4
        %v980 = vor.u32 %v979, %v975
        %v981 = vrot.slane %v980, 4
        %v983 = vshll.u32 %v794, 16
        %v985 = vrot.slane %v983, 5
        %v986 = vsel %vm578, %v981, %v985
        %v987 = vunpack.c.l.b16 %v592
        %v988 = vunpack.c.l.b16 %v602
        %v989 = vunpack.c.l.b16 %v616
        %v990 = vunpack.c.l.b16 %v626
        %v991 = vunpack.c.l.b16 %v640
        %v992 = vunpack.c.l.b16 %v650
        %v993 = vunpack.c.l.b16 %v664
        %v994 = vunpack.c.l.b16 %v674
        %v995 = vunpack.c.l.b16 %v688
        %v996 = vunpack.c.l.b16 %v698
        %v997 = vunpack.c.l.b16 %v712
        %v998 = vunpack.c.l.b16 %v722
        %v999 = vunpack.c.l.b16 %v736
        %v1000 = vunpack.c.l.b16 %v746
        %v1001 = vunpack.c.l.b16 %v760
        %v1002 = vunpack.c.l.b16 %v770
        %v1003 = vpack.c.b16 %v988, %v987
        %v1004 = vpack.c.b16 %v990, %v989
        %v1005 = vpack.c.b16 %v992, %v991
        %v1006 = vpack.c.b16 %v994, %v993
        %v1007 = vpack.c.b16 %v996, %v995
        %v1008 = vpack.c.b16 %v998, %v997
        %v1009 = vpack.c.b16 %v1000, %v999
        %v1010 = vpack.c.b16 %v1002, %v1001
        %v1035 = vunpack.c.l.b16 %v552
        %v1036 = vunpack.c.l.b16 %v553
        %v1037 = vunpack.c.l.b16 %v555
        %v1038 = vunpack.c.l.b16 %v556
        %v1039 = vunpack.c.l.b16 %v558
        %v1040 = vunpack.c.l.b16 %v559
        %v1041 = vunpack.c.l.b16 %v561
        %v1042 = vunpack.c.l.b16 %v562
        %v1043 = vunpack.c.l.b16 %v564
        %v1044 = vunpack.c.l.b16 %v565
        %v1045 = vunpack.c.l.b16 %v567
        %v1046 = vunpack.c.l.b16 %v568
        %v1047 = vunpack.c.l.b16 %v570
        %v1048 = vunpack.c.l.b16 %v571
        %v1049 = vunpack.c.l.b16 %v573
        %v1050 = vunpack.c.l.b16 %v574
        %v1051 = vpack.c.b16 %v1036, %v1035
        %v1052 = vpack.c.b16 %v1038, %v1037
        %v1053 = vpack.c.b16 %v1040, %v1039
        %v1054 = vpack.c.b16 %v1042, %v1041
        %v1055 = vpack.c.b16 %v1044, %v1043
        %v1056 = vpack.c.b16 %v1046, %v1045
        %v1057 = vpack.c.b16 %v1048, %v1047
        %v1058 = vpack.c.b16 %v1050, %v1049
        %v1067 = vunpack.c.l.b16 %v808
        %v1068 = vunpack.c.l.b16 %v818
        %v1069 = vunpack.c.l.b16 %v832
        %v1070 = vunpack.c.l.b16 %v842
        %v1071 = vunpack.c.l.b16 %v856
        %v1072 = vunpack.c.l.b16 %v866
        %v1073 = vunpack.c.l.b16 %v880
        %v1074 = vunpack.c.l.b16 %v890
        %v1075 = vunpack.c.l.b16 %v904
        %v1076 = vunpack.c.l.b16 %v914
        %v1077 = vunpack.c.l.b16 %v928
        %v1078 = vunpack.c.l.b16 %v938
        %v1079 = vunpack.c.l.b16 %v952
        %v1080 = vunpack.c.l.b16 %v962
        %v1081 = vunpack.c.l.b16 %v976
        %v1082 = vunpack.c.l.b16 %v986
        %v1083 = vpack.c.b16 %v1068, %v1067
        %v1084 = vpack.c.b16 %v1070, %v1069
        %v1085 = vpack.c.b16 %v1072, %v1071
        %v1086 = vpack.c.b16 %v1074, %v1073
        %v1087 = vpack.c.b16 %v1076, %v1075
        %v1088 = vpack.c.b16 %v1078, %v1077
        %v1089 = vpack.c.b16 %v1080, %v1079
        %v1090 = vpack.c.b16 %v1082, %v1081
        %v1115 = vunpack.c.l.b16 %v771
        %v1116 = vunpack.c.l.b16 %v772
        %v1117 = vunpack.c.l.b16 %v774
        %v1118 = vunpack.c.l.b16 %v775
        %v1119 = vunpack.c.l.b16 %v777
        %v1120 = vunpack.c.l.b16 %v778
        %v1121 = vunpack.c.l.b16 %v780
        %v1122 = vunpack.c.l.b16 %v781
        %v1123 = vunpack.c.l.b16 %v783
        %v1124 = vunpack.c.l.b16 %v784
        %v1125 = vunpack.c.l.b16 %v786
        %v1126 = vunpack.c.l.b16 %v787
        %v1127 = vunpack.c.l.b16 %v789
        %v1128 = vunpack.c.l.b16 %v790
        %v1129 = vunpack.c.l.b16 %v792
        %v1130 = vunpack.c.l.b16 %v793
        %v1131 = vpack.c.b16 %v1116, %v1115
        %v1132 = vpack.c.b16 %v1118, %v1117
        %v1133 = vpack.c.b16 %v1120, %v1119
        %v1134 = vpack.c.b16 %v1122, %v1121
        %v1135 = vpack.c.b16 %v1124, %v1123
        %v1136 = vpack.c.b16 %v1126, %v1125
        %v1137 = vpack.c.b16 %v1128, %v1127
        %v1138 = vpack.c.b16 %v1130, %v1129
        %v1147 = vld [vmem:[%s1] sm:$0xf]
        %v1148 = vld [vmem:[%s1 + $0x4] sm:$0xf]
        %v1149 = vld [vmem:[%s1 + $0x8] sm:$0xf]
        %v1150 = vld [vmem:[%s1 + $0xc] sm:$0xf]
        %v1151 = vld [vmem:[%s1 + $0x10] sm:$0xf]
        %v1152 = vld [vmem:[%s1 + $0x14] sm:$0xf]
        %v1153 = vld [vmem:[%s1 + $0x18] sm:$0xf]
        %v1154 = vld [vmem:[%s1 + $0x1c] sm:$0xf]
        %v1155 = vld [vmem:[%s1 + $0x20] sm:$0xf]
        %v1156 = vld [vmem:[%s1 + $0x24] sm:$0xf]
        %v1157 = vld [vmem:[%s1 + $0x28] sm:$0xf]
        %v1158 = vld [vmem:[%s1 + $0x2c] sm:$0xf]
        %v1159 = vld [vmem:[%s1 + $0x30] sm:$0xf]
        %v1160 = vld [vmem:[%s1 + $0x34] sm:$0xf]
        %v1161 = vld [vmem:[%s1 + $0x38] sm:$0xf]
        %v1162 = vld [vmem:[%s1 + $0x3c] sm:$0xf]
        %v1163 = vld [vmem:[%s1 + $0x40] sm:$0xf]
        %v1164 = vld [vmem:[%s1 + $0x44] sm:$0xf]
        %v1165 = vld [vmem:[%s1 + $0x48] sm:$0xf]
        %v1166 = vld [vmem:[%s1 + $0x4c] sm:$0xf]
        %v1167 = vld [vmem:[%s1 + $0x50] sm:$0xf]
        %v1168 = vld [vmem:[%s1 + $0x54] sm:$0xf]
        %v1169 = vld [vmem:[%s1 + $0x58] sm:$0xf]
        %v1170 = vld [vmem:[%s1 + $0x5c] sm:$0xf]
        %v1171 = vld [vmem:[%s1 + $0x60] sm:$0xf]
        %v1172 = vld [vmem:[%s1 + $0x64] sm:$0xf]
        %v1173 = vld [vmem:[%s1 + $0x68] sm:$0xf]
        %v1174 = vld [vmem:[%s1 + $0x6c] sm:$0xf]
        %v1175 = vld [vmem:[%s1 + $0x70] sm:$0xf]
        %v1176 = vld [vmem:[%s1 + $0x74] sm:$0xf]
        %v1177 = vld [vmem:[%s1 + $0x78] sm:$0xf]
        %v1178 = vld [vmem:[%s1 + $0x7c] sm:$0xf]
        %v1179 = vld [vmem:[%s1 + $0x80] sm:$0xf]
        %v1180 = vld [vmem:[%s1 + $0x84] sm:$0xf]
        %v1181 = vld [vmem:[%s1 + $0x88] sm:$0xf]
        %v1182 = vld [vmem:[%s1 + $0x8c] sm:$0xf]
        %v1183 = vld [vmem:[%s1 + $0x90] sm:$0xf]
        %v1184 = vld [vmem:[%s1 + $0x94] sm:$0xf]
        %v1185 = vld [vmem:[%s1 + $0x98] sm:$0xf]
        %v1186 = vld [vmem:[%s1 + $0x9c] sm:$0xf]
        %v1187 = vld [vmem:[%s1 + $0xa0] sm:$0xf]
        %v1188 = vld [vmem:[%s1 + $0xa4] sm:$0xf]
        %v1189 = vld [vmem:[%s1 + $0xa8] sm:$0xf]
        %v1190 = vld [vmem:[%s1 + $0xac] sm:$0xf]
        %v1191 = vld [vmem:[%s1 + $0xb0] sm:$0xf]
        %v1192 = vld [vmem:[%s1 + $0xb4] sm:$0xf]
        %v1193 = vld [vmem:[%s1 + $0xb8] sm:$0xf]
        %v1194 = vld [vmem:[%s1 + $0xbc] sm:$0xf]
        %v1195 = vld [vmem:[%s1 + $0xc0] sm:$0xf]
        %v1196 = vld [vmem:[%s1 + $0xc4] sm:$0xf]
        %v1197 = vld [vmem:[%s1 + $0xc8] sm:$0xf]
        %v1198 = vld [vmem:[%s1 + $0xcc] sm:$0xf]
        %v1199 = vld [vmem:[%s1 + $0xd0] sm:$0xf]
        %v1200 = vld [vmem:[%s1 + $0xd4] sm:$0xf]
        %v1201 = vld [vmem:[%s1 + $0xd8] sm:$0xf]
        %v1202 = vld [vmem:[%s1 + $0xdc] sm:$0xf]
        %v1203 = vld [vmem:[%s1 + $0xe0] sm:$0xf]
        %v1204 = vld [vmem:[%s1 + $0xe4] sm:$0xf]
        %v1205 = vld [vmem:[%s1 + $0xe8] sm:$0xf]
        %v1206 = vld [vmem:[%s1 + $0xec] sm:$0xf]
        %v1207 = vld [vmem:[%s1 + $0xf0] sm:$0xf]
        %v1208 = vld [vmem:[%s1 + $0xf4] sm:$0xf]
        %v1209 = vld [vmem:[%s1 + $0xf8] sm:$0xf]
        %v1210 = vld [vmem:[%s1 + $0xfc] sm:$0xf]
        %v1275 = vunpack.c.l.b16 %v1147
        %v1276 = vunpack.c.l.b16 %v1148
        %v1277 = vunpack.c.l.b16 %v1149
        %v1278 = vunpack.c.l.b16 %v1150
        %v1279 = vunpack.c.l.b16 %v1151
        %v1280 = vunpack.c.l.b16 %v1152
        %v1281 = vunpack.c.l.b16 %v1153
        %v1282 = vunpack.c.l.b16 %v1154
        %v1283 = vunpack.c.l.b16 %v1155
        %v1284 = vunpack.c.l.b16 %v1156
        %v1285 = vunpack.c.l.b16 %v1157
        %v1286 = vunpack.c.l.b16 %v1158
        %v1287 = vunpack.c.l.b16 %v1159
        %v1288 = vunpack.c.l.b16 %v1160
        %v1289 = vunpack.c.l.b16 %v1161
        %v1290 = vunpack.c.l.b16 %v1162
        %v1291 = vunpack.c.l.b16 %v1163
        %v1292 = vunpack.c.l.b16 %v1164
        %v1293 = vunpack.c.l.b16 %v1165
        %v1294 = vunpack.c.l.b16 %v1166
        %v1295 = vunpack.c.l.b16 %v1167
        %v1296 = vunpack.c.l.b16 %v1168
        %v1297 = vunpack.c.l.b16 %v1169
        %v1298 = vunpack.c.l.b16 %v1170
        %v1299 = vunpack.c.l.b16 %v1171
        %v1300 = vunpack.c.l.b16 %v1172
        %v1301 = vunpack.c.l.b16 %v1173
        %v1302 = vunpack.c.l.b16 %v1174
        %v1303 = vunpack.c.l.b16 %v1175
        %v1304 = vunpack.c.l.b16 %v1176
        %v1305 = vunpack.c.l.b16 %v1177
        %v1306 = vunpack.c.l.b16 %v1178
        %v1307 = vunpack.c.l.b16 %v1179
        %v1308 = vunpack.c.l.b16 %v1180
        %v1309 = vunpack.c.l.b16 %v1181
        %v1310 = vunpack.c.l.b16 %v1182
        %v1311 = vunpack.c.l.b16 %v1183
        %v1312 = vunpack.c.l.b16 %v1184
        %v1313 = vunpack.c.l.b16 %v1185
        %v1314 = vunpack.c.l.b16 %v1186
        %v1315 = vunpack.c.l.b16 %v1187
        %v1316 = vunpack.c.l.b16 %v1188
        %v1317 = vunpack.c.l.b16 %v1189
        %v1318 = vunpack.c.l.b16 %v1190
        %v1319 = vunpack.c.l.b16 %v1191
        %v1320 = vunpack.c.l.b16 %v1192
        %v1321 = vunpack.c.l.b16 %v1193
        %v1322 = vunpack.c.l.b16 %v1194
        %v1323 = vunpack.c.l.b16 %v1195
        %v1324 = vunpack.c.l.b16 %v1196
        %v1325 = vunpack.c.l.b16 %v1197
        %v1326 = vunpack.c.l.b16 %v1198
        %v1327 = vunpack.c.l.b16 %v1199
        %v1328 = vunpack.c.l.b16 %v1200
        %v1329 = vunpack.c.l.b16 %v1201
        %v1330 = vunpack.c.l.b16 %v1202
        %v1331 = vunpack.c.l.b16 %v1203
        %v1332 = vunpack.c.l.b16 %v1204
        %v1333 = vunpack.c.l.b16 %v1205
        %v1334 = vunpack.c.l.b16 %v1206
        %v1335 = vunpack.c.l.b16 %v1207
        %v1336 = vunpack.c.l.b16 %v1208
        %v1337 = vunpack.c.l.b16 %v1209
        %v1338 = vunpack.c.l.b16 %v1210
        %v1339 = vpack.c.b16 %v1276, %v1275
        %v1340 = vpack.c.b16 %v1278, %v1277
        %v1341 = vpack.c.b16 %v1280, %v1279
        %v1342 = vpack.c.b16 %v1282, %v1281
        %v1343 = vpack.c.b16 %v1284, %v1283
        %v1344 = vpack.c.b16 %v1286, %v1285
        %v1345 = vpack.c.b16 %v1288, %v1287
        %v1346 = vpack.c.b16 %v1290, %v1289
        %v1347 = vpack.c.b16 %v1292, %v1291
        %v1348 = vpack.c.b16 %v1294, %v1293
        %v1349 = vpack.c.b16 %v1296, %v1295
        %v1350 = vpack.c.b16 %v1298, %v1297
        %v1351 = vpack.c.b16 %v1300, %v1299
        %v1352 = vpack.c.b16 %v1302, %v1301
        %v1353 = vpack.c.b16 %v1304, %v1303
        %v1354 = vpack.c.b16 %v1306, %v1305
        %v1355 = vpack.c.b16 %v1308, %v1307
        %v1356 = vpack.c.b16 %v1310, %v1309
        %v1357 = vpack.c.b16 %v1312, %v1311
        %v1358 = vpack.c.b16 %v1314, %v1313
        %v1359 = vpack.c.b16 %v1316, %v1315
        %v1360 = vpack.c.b16 %v1318, %v1317
        %v1361 = vpack.c.b16 %v1320, %v1319
        %v1362 = vpack.c.b16 %v1322, %v1321
        %v1363 = vpack.c.b16 %v1324, %v1323
        %v1364 = vpack.c.b16 %v1326, %v1325
        %v1365 = vpack.c.b16 %v1328, %v1327
        %v1366 = vpack.c.b16 %v1330, %v1329
        %v1367 = vpack.c.b16 %v1332, %v1331
        %v1368 = vpack.c.b16 %v1334, %v1333
        %v1369 = vpack.c.b16 %v1336, %v1335
        %v1370 = vpack.c.b16 %v1338, %v1337
        %1403 = vmatpush.bf16.msra.mxu0 %v1346
        %1404 = vmatpush.bf16.msra.mxu0 %v1345
        %1405 = vmatpush.bf16.msra.mxu0 %v1344
        %1406 = vmatpush.bf16.msra.mxu0 %v1343
        %1407 = vmatpush.bf16.msra.mxu0 %v1342
        %1408 = vmatpush.bf16.msra.mxu0 %v1341
        %1409 = vmatpush.bf16.msra.mxu0 %v1340
        %1410 = vmatpush.bf16.msra.mxu0 %v1339
        %1411 = vmatmul.bf16.gmra.mxu0 %v1003
        %v1412 = vpop.f32.mrf.mxu0
        %v1413 = vadd.f32 0.0, %v1412
        %v1414 = vpop.f32.mrf.mxu0
        %v1415 = vadd.f32 0.0, %v1414
        %1416 = vmatmul.bf16.gmra.mxu0 %v1004
        %v1417 = vpop.f32.mrf.mxu0
        %v1418 = vadd.f32 0.0, %v1417
        %v1419 = vpop.f32.mrf.mxu0
        %v1420 = vadd.f32 0.0, %v1419
        %1421 = vmatmul.bf16.gmra.mxu0 %v1005
        %v1422 = vpop.f32.mrf.mxu0
        %v1423 = vadd.f32 0.0, %v1422
        %v1424 = vpop.f32.mrf.mxu0
        %v1425 = vadd.f32 0.0, %v1424
        %1426 = vmatmul.bf16.gmra.mxu0 %v1006
        %v1427 = vpop.f32.mrf.mxu0
        %v1428 = vadd.f32 0.0, %v1427
        %v1429 = vpop.f32.mrf.mxu0
        %v1430 = vadd.f32 0.0, %v1429
        %1431 = vmatmul.bf16.gmra.mxu0 %v1007
        %v1432 = vpop.f32.mrf.mxu0
        %v1433 = vadd.f32 0.0, %v1432
        %v1434 = vpop.f32.mrf.mxu0
        %v1435 = vadd.f32 0.0, %v1434
        %1436 = vmatmul.bf16.gmra.mxu0 %v1008
        %v1437 = vpop.f32.mrf.mxu0
        %v1438 = vadd.f32 0.0, %v1437
        %v1439 = vpop.f32.mrf.mxu0
        %v1440 = vadd.f32 0.0, %v1439
        %1441 = vmatmul.bf16.gmra.mxu0 %v1009
        %v1442 = vpop.f32.mrf.mxu0
        %v1443 = vadd.f32 0.0, %v1442
        %v1444 = vpop.f32.mrf.mxu0
        %v1445 = vadd.f32 0.0, %v1444
        %1446 = vmatmul.bf16.gmra.mxu0 %v1010
        %v1447 = vpop.f32.mrf.mxu0
        %v1448 = vadd.f32 0.0, %v1447
        %v1449 = vpop.f32.mrf.mxu0
        %v1450 = vadd.f32 0.0, %v1449
        %1451 = vdwg.mxu0
        %1452 = vmatpush.bf16.msra.mxu0 %v1354
        %1453 = vmatpush.bf16.msra.mxu0 %v1353
        %1454 = vmatpush.bf16.msra.mxu0 %v1352
        %1455 = vmatpush.bf16.msra.mxu0 %v1351
        %1456 = vmatpush.bf16.msra.mxu0 %v1350
        %1457 = vmatpush.bf16.msra.mxu0 %v1349
        %1458 = vmatpush.bf16.msra.mxu0 %v1348
        %1459 = vmatpush.bf16.msra.mxu0 %v1347
        %1460 = vmatmul.bf16.gmra.mxu0 %v1051
        %v1461 = vpop.f32.mrf.mxu0
        %v1462 = vadd.f32 %v1413, %v1461
        %v1463 = vpop.f32.mrf.mxu0
        %v1464 = vadd.f32 %v1415, %v1463
        %1465 = vmatmul.bf16.gmra.mxu0 %v1052
        %v1466 = vpop.f32.mrf.mxu0
        %v1467 = vadd.f32 %v1418, %v1466
        %v1468 = vpop.f32.mrf.mxu0
        %v1469 = vadd.f32 %v1420, %v1468
        %1470 = vmatmul.bf16.gmra.mxu0 %v1053
        %v1471 = vpop.f32.mrf.mxu0
        %v1472 = vadd.f32 %v1423, %v1471
        %v1473 = vpop.f32.mrf.mxu0
        %v1474 = vadd.f32 %v1425, %v1473
        %1475 = vmatmul.bf16.gmra.mxu0 %v1054
        %v1476 = vpop.f32.mrf.mxu0
        %v1477 = vadd.f32 %v1428, %v1476
        %v1478 = vpop.f32.mrf.mxu0
        %v1479 = vadd.f32 %v1430, %v1478
        %1480 = vmatmul.bf16.gmra.mxu0 %v1055
        %v1481 = vpop.f32.mrf.mxu0
        %v1482 = vadd.f32 %v1433, %v1481
        %v1483 = vpop.f32.mrf.mxu0
        %v1484 = vadd.f32 %v1435, %v1483
        %1485 = vmatmul.bf16.gmra.mxu0 %v1056
        %v1486 = vpop.f32.mrf.mxu0
        %v1487 = vadd.f32 %v1438, %v1486
        %v1488 = vpop.f32.mrf.mxu0
        %v1489 = vadd.f32 %v1440, %v1488
        %1490 = vmatmul.bf16.gmra.mxu0 %v1057
        %v1491 = vpop.f32.mrf.mxu0
        %v1492 = vadd.f32 %v1443, %v1491
        %v1493 = vpop.f32.mrf.mxu0
        %v1494 = vadd.f32 %v1445, %v1493
        %1495 = vmatmul.bf16.gmra.mxu0 %v1058
        %v1496 = vpop.f32.mrf.mxu0
        %v1497 = vadd.f32 %v1448, %v1496
        %v1498 = vpop.f32.mrf.mxu0
        %v1499 = vadd.f32 %v1450, %v1498
        %1500 = vdwg.mxu0
        %1501 = vmatpush.bf16.msra.mxu0 %v1362
        %1502 = vmatpush.bf16.msra.mxu0 %v1361
        %1503 = vmatpush.bf16.msra.mxu0 %v1360
        %1504 = vmatpush.bf16.msra.mxu0 %v1359
        %1505 = vmatpush.bf16.msra.mxu0 %v1358
        %1506 = vmatpush.bf16.msra.mxu0 %v1357
        %1507 = vmatpush.bf16.msra.mxu0 %v1356
        %1508 = vmatpush.bf16.msra.mxu0 %v1355
        %1509 = vmatmul.bf16.gmra.mxu0 %v1083
        %v1510 = vpop.f32.mrf.mxu0
        %v1511 = vadd.f32 %v1462, %v1510
        %v1512 = vpop.f32.mrf.mxu0
        %v1513 = vadd.f32 %v1464, %v1512
        %1514 = vmatmul.bf16.gmra.mxu0 %v1084
        %v1515 = vpop.f32.mrf.mxu0
        %v1516 = vadd.f32 %v1467, %v1515
        %v1517 = vpop.f32.mrf.mxu0
        %v1518 = vadd.f32 %v1469, %v1517
        %1519 = vmatmul.bf16.gmra.mxu0 %v1085
        %v1520 = vpop.f32.mrf.mxu0
        %v1521 = vadd.f32 %v1472, %v1520
        %v1522 = vpop.f32.mrf.mxu0
        %v1523 = vadd.f32 %v1474, %v1522
        %1524 = vmatmul.bf16.gmra.mxu0 %v1086
        %v1525 = vpop.f32.mrf.mxu0
        %v1526 = vadd.f32 %v1477, %v1525
        %v1527 = vpop.f32.mrf.mxu0
        %v1528 = vadd.f32 %v1479, %v1527
        %1529 = vmatmul.bf16.gmra.mxu0 %v1087
        %v1530 = vpop.f32.mrf.mxu0
        %v1531 = vadd.f32 %v1482, %v1530
        %v1532 = vpop.f32.mrf.mxu0
        %v1533 = vadd.f32 %v1484, %v1532
        %1534 = vmatmul.bf16.gmra.mxu0 %v1088
        %v1535 = vpop.f32.mrf.mxu0
        %v1536 = vadd.f32 %v1487, %v1535
        %v1537 = vpop.f32.mrf.mxu0
        %v1538 = vadd.f32 %v1489, %v1537
        %1539 = vmatmul.bf16.gmra.mxu0 %v1089
        %v1540 = vpop.f32.mrf.mxu0
        %v1541 = vadd.f32 %v1492, %v1540
        %v1542 = vpop.f32.mrf.mxu0
        %v1543 = vadd.f32 %v1494, %v1542
        %1544 = vmatmul.bf16.gmra.mxu0 %v1090
        %v1545 = vpop.f32.mrf.mxu0
        %v1546 = vadd.f32 %v1497, %v1545
        %v1547 = vpop.f32.mrf.mxu0
        %v1548 = vadd.f32 %v1499, %v1547
        %1549 = vdwg.mxu0
        %1550 = vmatpush.bf16.msra.mxu0 %v1370
        %1551 = vmatpush.bf16.msra.mxu0 %v1369
        %1552 = vmatpush.bf16.msra.mxu0 %v1368
        %1553 = vmatpush.bf16.msra.mxu0 %v1367
        %1554 = vmatpush.bf16.msra.mxu0 %v1366
        %1555 = vmatpush.bf16.msra.mxu0 %v1365
        %1556 = vmatpush.bf16.msra.mxu0 %v1364
        %1557 = vmatpush.bf16.msra.mxu0 %v1363
        %1558 = vmatmul.bf16.gmra.mxu0 %v1131
        %v1559 = vpop.f32.mrf.mxu0
        %v1560 = vadd.f32 %v1511, %v1559
        %v1561 = vpop.f32.mrf.mxu0
        %v1562 = vadd.f32 %v1513, %v1561
        %1563 = vmatmul.bf16.gmra.mxu0 %v1132
        %v1564 = vpop.f32.mrf.mxu0
        %v1565 = vadd.f32 %v1516, %v1564
        %v1566 = vpop.f32.mrf.mxu0
        %v1567 = vadd.f32 %v1518, %v1566
        %1568 = vmatmul.bf16.gmra.mxu0 %v1133
        %v1569 = vpop.f32.mrf.mxu0
        %v1570 = vadd.f32 %v1521, %v1569
        %v1571 = vpop.f32.mrf.mxu0
        %v1572 = vadd.f32 %v1523, %v1571
        %1573 = vmatmul.bf16.gmra.mxu0 %v1134
        %v1574 = vpop.f32.mrf.mxu0
        %v1575 = vadd.f32 %v1526, %v1574
        %v1576 = vpop.f32.mrf.mxu0
        %v1577 = vadd.f32 %v1528, %v1576
        %1578 = vmatmul.bf16.gmra.mxu0 %v1135
        %v1579 = vpop.f32.mrf.mxu0
        %v1580 = vadd.f32 %v1531, %v1579
        %v1581 = vpop.f32.mrf.mxu0
        %v1582 = vadd.f32 %v1533, %v1581
        %1583 = vmatmul.bf16.gmra.mxu0 %v1136
        %v1584 = vpop.f32.mrf.mxu0
        %v1585 = vadd.f32 %v1536, %v1584
        %v1586 = vpop.f32.mrf.mxu0
        %v1587 = vadd.f32 %v1538, %v1586
        %1588 = vmatmul.bf16.gmra.mxu0 %v1137
        %v1589 = vpop.f32.mrf.mxu0
        %v1590 = vadd.f32 %v1541, %v1589
        %v1591 = vpop.f32.mrf.mxu0
        %v1592 = vadd.f32 %v1543, %v1591
        %1593 = vmatmul.bf16.gmra.mxu0 %v1138
        %v1594 = vpop.f32.mrf.mxu0
        %v1595 = vadd.f32 %v1546, %v1594
        %v1596 = vpop.f32.mrf.mxu0
        %v1597 = vadd.f32 %v1548, %v1596
        %1598 = vdwg.mxu0
        %v1599 = vadd.f32 %v1560, %v1562
        %v1600 = vadd.f32 %v1599, %v1565
        %v1601 = vadd.f32 %v1600, %v1567
        %v1602 = vadd.f32 %v1601, %v1570
        %v1603 = vadd.f32 %v1602, %v1572
        %v1604 = vadd.f32 %v1603, %v1575
        %v1605 = vadd.f32 %v1604, %v1577
        %v1606 = vadd.f32 %v1605, %v1580
        %v1607 = vadd.f32 %v1606, %v1582
        %v1608 = vadd.f32 %v1607, %v1585
        %v1609 = vadd.f32 %v1608, %v1587
        %v1610 = vadd.f32 %v1609, %v1590
        %v1611 = vadd.f32 %v1610, %v1592
        %v1612 = vadd.f32 %v1611, %v1595
        %v1613 = vadd.f32 %v1612, %v1597
        %v1614 = vrot.slane %v1613, 4
        %v1615 = vadd.f32 %v1613, %v1614
        %v1616 = vrot.slane %v1615, 2
        %v1617 = vadd.f32 %v1615, %v1616
        %v1618 = vrot.slane %v1617, 1
        %v1619 = vadd.f32 %v1617, %v1618
        %v1620 = vadd.f32 %v1619, 0.0
        %v1621 = vmul.f32 %v1560, %v1560
        %v1622 = vmul.f32 %v1562, %v1562
        %v1623 = vmul.f32 %v1565, %v1565
        %v1624 = vmul.f32 %v1567, %v1567
        %v1625 = vmul.f32 %v1570, %v1570
        %v1626 = vmul.f32 %v1572, %v1572
        %v1627 = vmul.f32 %v1575, %v1575
        %v1628 = vmul.f32 %v1577, %v1577
        %v1629 = vmul.f32 %v1580, %v1580
        %v1630 = vmul.f32 %v1582, %v1582
        %v1631 = vmul.f32 %v1585, %v1585
        %v1632 = vmul.f32 %v1587, %v1587
        %v1633 = vmul.f32 %v1590, %v1590
        %v1634 = vmul.f32 %v1592, %v1592
        %v1635 = vmul.f32 %v1595, %v1595
        %v1636 = vmul.f32 %v1597, %v1597
        %v1637 = vadd.f32 %v1621, %v1622
        %v1638 = vadd.f32 %v1637, %v1623
        %v1639 = vadd.f32 %v1638, %v1624
        %v1640 = vadd.f32 %v1639, %v1625
        %v1641 = vadd.f32 %v1640, %v1626
        %v1642 = vadd.f32 %v1641, %v1627
        %v1643 = vadd.f32 %v1642, %v1628
        %v1644 = vadd.f32 %v1643, %v1629
        %v1645 = vadd.f32 %v1644, %v1630
        %v1646 = vadd.f32 %v1645, %v1631
        %v1647 = vadd.f32 %v1646, %v1632
        %v1648 = vadd.f32 %v1647, %v1633
        %v1649 = vadd.f32 %v1648, %v1634
        %v1650 = vadd.f32 %v1649, %v1635
        %v1651 = vadd.f32 %v1650, %v1636
        %v1652 = vrot.slane %v1651, 4
        %v1653 = vadd.f32 %v1651, %v1652
        %v1654 = vrot.slane %v1653, 2
        %v1655 = vadd.f32 %v1653, %v1654
        %v1656 = vrot.slane %v1655, 1
        %v1657 = vadd.f32 %v1655, %v1656
        %v1658 = vadd.f32 %v1657, 0.0
        %v1659 = vld [vmem:[%s551] sm:$0xe]
        %v1660 = vld [vmem:[%s551 + $0xc] sm:$0xe]
        %v1661 = vld [vmem:[%s551 + $0x18] sm:$0xe]
        %v1662 = vld [vmem:[%s551 + $0x24] sm:$0xe]
        %v1663 = vld [vmem:[%s551 + $0x30] sm:$0xe]
        %v1664 = vld [vmem:[%s551 + $0x3c] sm:$0xe]
        %v1665 = vld [vmem:[%s551 + $0x48] sm:$0xe]
        %v1666 = vld [vmem:[%s551 + $0x54] sm:$0xe]
        %vm1683 = vcmask 1042432
        %vm1684 = vcmask 1046532
        %vm1685 = vmor %vm1683, %vm1684
        %v1686 = vrot.slane %v1659, 5
        %v1687 = vrot.slane %v1686, 4
        %v1688 = vrot.slane %v553, 5
        %v1689 = vsel %vm1685, %v1687, %v1688
        %v1690 = vrot.slane %v1688, 4
        %v1691 = vrot.slane %v554, 5
        %v1692 = vsel %vm1685, %v1690, %v1691
        %v1693 = vrot.slane %v1660, 5
        %v1694 = vrot.slane %v1693, 4
        %v1695 = vrot.slane %v556, 5
        %v1696 = vsel %vm1685, %v1694, %v1695
        %v1697 = vrot.slane %v1695, 4
        %v1698 = vrot.slane %v557, 5
        %v1699 = vsel %vm1685, %v1697, %v1698
        %v1700 = vrot.slane %v1661, 5
        %v1701 = vrot.slane %v1700, 4
        %v1702 = vrot.slane %v559, 5
        %v1703 = vsel %vm1685, %v1701, %v1702
        %v1704 = vrot.slane %v1702, 4
        %v1705 = vrot.slane %v560, 5
        %v1706 = vsel %vm1685, %v1704, %v1705
        %v1707 = vrot.slane %v1662, 5
        %v1708 = vrot.slane %v1707, 4
        %v1709 = vrot.slane %v562, 5
        %v1710 = vsel %vm1685, %v1708, %v1709
        %v1711 = vrot.slane %v1709, 4
        %v1712 = vrot.slane %v563, 5
        %v1713 = vsel %vm1685, %v1711, %v1712
        %v1714 = vrot.slane %v1663, 5
        %v1715 = vrot.slane %v1714, 4
        %v1716 = vrot.slane %v565, 5
        %v1717 = vsel %vm1685, %v1715, %v1716
        %v1718 = vrot.slane %v1716, 4
        %v1719 = vrot.slane %v566, 5
        %v1720 = vsel %vm1685, %v1718, %v1719
        %v1721 = vrot.slane %v1664, 5
        %v1722 = vrot.slane %v1721, 4
        %v1723 = vrot.slane %v568, 5
        %v1724 = vsel %vm1685, %v1722, %v1723
        %v1725 = vrot.slane %v1723, 4
        %v1726 = vrot.slane %v569, 5
        %v1727 = vsel %vm1685, %v1725, %v1726
        %v1728 = vrot.slane %v1665, 5
        %v1729 = vrot.slane %v1728, 4
        %v1730 = vrot.slane %v571, 5
        %v1731 = vsel %vm1685, %v1729, %v1730
        %v1732 = vrot.slane %v1730, 4
        %v1733 = vrot.slane %v572, 5
        %v1734 = vsel %vm1685, %v1732, %v1733
        %v1735 = vrot.slane %v1666, 5
        %v1736 = vrot.slane %v1735, 4
        %v1737 = vrot.slane %v574, 5
        %v1738 = vsel %vm1685, %v1736, %v1737
        %v1739 = vrot.slane %v1737, 4
        %v1740 = vrot.slane %v575, 5
        %v1741 = vsel %vm1685, %v1739, %v1740
        %v1742 = vld [vmem:[%s497] sm:$0xe]
        %v1743 = vld [vmem:[%s497 + $0xc] sm:$0xe]
        %v1744 = vld [vmem:[%s497 + $0x18] sm:$0xe]
        %v1745 = vld [vmem:[%s497 + $0x24] sm:$0xe]
        %v1746 = vld [vmem:[%s497 + $0x30] sm:$0xe]
        %v1747 = vld [vmem:[%s497 + $0x3c] sm:$0xe]
        %v1748 = vld [vmem:[%s497 + $0x48] sm:$0xe]
        %v1749 = vld [vmem:[%s497 + $0x54] sm:$0xe]
        %v1766 = vrot.slane %v1742, 5
        %v1767 = vrot.slane %v1766, 4
        %v1768 = vrot.slane %v772, 5
        %v1769 = vsel %vm1685, %v1767, %v1768
        %v1770 = vrot.slane %v1768, 4
        %v1771 = vrot.slane %v773, 5
        %v1772 = vsel %vm1685, %v1770, %v1771
        %v1773 = vrot.slane %v1743, 5
        %v1774 = vrot.slane %v1773, 4
        %v1775 = vrot.slane %v775, 5
        %v1776 = vsel %vm1685, %v1774, %v1775
        %v1777 = vrot.slane %v1775, 4
        %v1778 = vrot.slane %v776, 5
        %v1779 = vsel %vm1685, %v1777, %v1778
        %v1780 = vrot.slane %v1744, 5
        %v1781 = vrot.slane %v1780, 4
        %v1782 = vrot.slane %v778, 5
        %v1783 = vsel %vm1685, %v1781, %v1782
        %v1784 = vrot.slane %v1782, 4
        %v1785 = vrot.slane %v779, 5
        %v1786 = vsel %vm1685, %v1784, %v1785
        %v1787 = vrot.slane %v1745, 5
        %v1788 = vrot.slane %v1787, 4
        %v1789 = vrot.slane %v781, 5
        %v1790 = vsel %vm1685, %v1788, %v1789
        %v1791 = vrot.slane %v1789, 4
        %v1792 = vrot.slane %v782, 5
        %v1793 = vsel %vm1685, %v1791, %v1792
        %v1794 = vrot.slane %v1746, 5
        %v1795 = vrot.slane %v1794, 4
        %v1796 = vrot.slane %v784, 5
        %v1797 = vsel %vm1685, %v1795, %v1796
        %v1798 = vrot.slane %v1796, 4
        %v1799 = vrot.slane %v785, 5
        %v1800 = vsel %vm1685, %v1798, %v1799
        %v1801 = vrot.slane %v1747, 5
        %v1802 = vrot.slane %v1801, 4
        %v1803 = vrot.slane %v787, 5
        %v1804 = vsel %vm1685, %v1802, %v1803
        %v1805 = vrot.slane %v1803, 4
        %v1806 = vrot.slane %v788, 5
        %v1807 = vsel %vm1685, %v1805, %v1806
        %v1808 = vrot.slane %v1748, 5
        %v1809 = vrot.slane %v1808, 4
        %v1810 = vrot.slane %v790, 5
        %v1811 = vsel %vm1685, %v1809, %v1810
        %v1812 = vrot.slane %v1810, 4
        %v1813 = vrot.slane %v791, 5
        %v1814 = vsel %vm1685, %v1812, %v1813
        %v1815 = vrot.slane %v1749, 5
        %v1816 = vrot.slane %v1815, 4
        %v1817 = vrot.slane %v793, 5
        %v1818 = vsel %vm1685, %v1816, %v1817
        %v1819 = vrot.slane %v1817, 4
        %v1820 = vrot.slane %v794, 5
        %v1821 = vsel %vm1685, %v1819, %v1820
        %v1822 = vunpack.c.l.b16 %v1689
        %v1823 = vunpack.c.l.b16 %v1692
        %v1824 = vunpack.c.l.b16 %v1696
        %v1825 = vunpack.c.l.b16 %v1699
        %v1826 = vunpack.c.l.b16 %v1703
        %v1827 = vunpack.c.l.b16 %v1706
        %v1828 = vunpack.c.l.b16 %v1710
        %v1829 = vunpack.c.l.b16 %v1713
        %v1830 = vunpack.c.l.b16 %v1717
        %v1831 = vunpack.c.l.b16 %v1720
        %v1832 = vunpack.c.l.b16 %v1724
        %v1833 = vunpack.c.l.b16 %v1727
        %v1834 = vunpack.c.l.b16 %v1731
        %v1835 = vunpack.c.l.b16 %v1734
        %v1836 = vunpack.c.l.b16 %v1738
        %v1837 = vunpack.c.l.b16 %v1741
        %v1838 = vpack.c.b16 %v1823, %v1822
        %v1839 = vpack.c.b16 %v1825, %v1824
        %v1840 = vpack.c.b16 %v1827, %v1826
        %v1841 = vpack.c.b16 %v1829, %v1828
        %v1842 = vpack.c.b16 %v1831, %v1830
        %v1843 = vpack.c.b16 %v1833, %v1832
        %v1844 = vpack.c.b16 %v1835, %v1834
        %v1845 = vpack.c.b16 %v1837, %v1836
        %v1854 = vunpack.c.l.b16 %v1769
        %v1855 = vunpack.c.l.b16 %v1772
        %v1856 = vunpack.c.l.b16 %v1776
        %v1857 = vunpack.c.l.b16 %v1779
        %v1858 = vunpack.c.l.b16 %v1783
        %v1859 = vunpack.c.l.b16 %v1786
        %v1860 = vunpack.c.l.b16 %v1790
        %v1861 = vunpack.c.l.b16 %v1793
        %v1862 = vunpack.c.l.b16 %v1797
        %v1863 = vunpack.c.l.b16 %v1800
        %v1864 = vunpack.c.l.b16 %v1804
        %v1865 = vunpack.c.l.b16 %v1807
        %v1866 = vunpack.c.l.b16 %v1811
        %v1867 = vunpack.c.l.b16 %v1814
        %v1868 = vunpack.c.l.b16 %v1818
        %v1869 = vunpack.c.l.b16 %v1821
        %v1870 = vpack.c.b16 %v1855, %v1854
        %v1871 = vpack.c.b16 %v1857, %v1856
        %v1872 = vpack.c.b16 %v1859, %v1858
        %v1873 = vpack.c.b16 %v1861, %v1860
        %v1874 = vpack.c.b16 %v1863, %v1862
        %v1875 = vpack.c.b16 %v1865, %v1864
        %v1876 = vpack.c.b16 %v1867, %v1866
        %v1877 = vpack.c.b16 %v1869, %v1868
        %s1886 = scalar_lea.vmem %s1, 256
        %v1887 = vld [vmem:[%s1886] sm:$0xf]
        %v1888 = vld [vmem:[%s1886 + $0x4] sm:$0xf]
        %v1889 = vld [vmem:[%s1886 + $0x8] sm:$0xf]
        %v1890 = vld [vmem:[%s1886 + $0xc] sm:$0xf]
        %v1891 = vld [vmem:[%s1886 + $0x10] sm:$0xf]
        %v1892 = vld [vmem:[%s1886 + $0x14] sm:$0xf]
        %v1893 = vld [vmem:[%s1886 + $0x18] sm:$0xf]
        %v1894 = vld [vmem:[%s1886 + $0x1c] sm:$0xf]
        %v1895 = vld [vmem:[%s1886 + $0x20] sm:$0xf]
        %v1896 = vld [vmem:[%s1886 + $0x24] sm:$0xf]
        %v1897 = vld [vmem:[%s1886 + $0x28] sm:$0xf]
        %v1898 = vld [vmem:[%s1886 + $0x2c] sm:$0xf]
        %v1899 = vld [vmem:[%s1886 + $0x30] sm:$0xf]
        %v1900 = vld [vmem:[%s1886 + $0x34] sm:$0xf]
        %v1901 = vld [vmem:[%s1886 + $0x38] sm:$0xf]
        %v1902 = vld [vmem:[%s1886 + $0x3c] sm:$0xf]
        %v1903 = vld [vmem:[%s1886 + $0x40] sm:$0xf]
        %v1904 = vld [vmem:[%s1886 + $0x44] sm:$0xf]
        %v1905 = vld [vmem:[%s1886 + $0x48] sm:$0xf]
        %v1906 = vld [vmem:[%s1886 + $0x4c] sm:$0xf]
        %v1907 = vld [vmem:[%s1886 + $0x50] sm:$0xf]
        %v1908 = vld [vmem:[%s1886 + $0x54] sm:$0xf]
        %v1909 = vld [vmem:[%s1886 + $0x58] sm:$0xf]
        %v1910 = vld [vmem:[%s1886 + $0x5c] sm:$0xf]
        %v1911 = vld [vmem:[%s1886 + $0x60] sm:$0xf]
        %v1912 = vld [vmem:[%s1886 + $0x64] sm:$0xf]
        %v1913 = vld [vmem:[%s1886 + $0x68] sm:$0xf]
        %v1914 = vld [vmem:[%s1886 + $0x6c] sm:$0xf]
        %v1915 = vld [vmem:[%s1886 + $0x70] sm:$0xf]
        %v1916 = vld [vmem:[%s1886 + $0x74] sm:$0xf]
        %v1917 = vld [vmem:[%s1886 + $0x78] sm:$0xf]
        %v1918 = vld [vmem:[%s1886 + $0x7c] sm:$0xf]
        %v1919 = vld [vmem:[%s1886 + $0x80] sm:$0xf]
        %v1920 = vld [vmem:[%s1886 + $0x84] sm:$0xf]
        %v1921 = vld [vmem:[%s1886 + $0x88] sm:$0xf]
        %v1922 = vld [vmem:[%s1886 + $0x8c] sm:$0xf]
        %v1923 = vld [vmem:[%s1886 + $0x90] sm:$0xf]
        %v1924 = vld [vmem:[%s1886 + $0x94] sm:$0xf]
        %v1925 = vld [vmem:[%s1886 + $0x98] sm:$0xf]
        %v1926 = vld [vmem:[%s1886 + $0x9c] sm:$0xf]
        %v1927 = vld [vmem:[%s1886 + $0xa0] sm:$0xf]
        %v1928 = vld [vmem:[%s1886 + $0xa4] sm:$0xf]
        %v1929 = vld [vmem:[%s1886 + $0xa8] sm:$0xf]
        %v1930 = vld [vmem:[%s1886 + $0xac] sm:$0xf]
        %v1931 = vld [vmem:[%s1886 + $0xb0] sm:$0xf]
        %v1932 = vld [vmem:[%s1886 + $0xb4] sm:$0xf]
        %v1933 = vld [vmem:[%s1886 + $0xb8] sm:$0xf]
        %v1934 = vld [vmem:[%s1886 + $0xbc] sm:$0xf]
        %v1935 = vld [vmem:[%s1886 + $0xc0] sm:$0xf]
        %v1936 = vld [vmem:[%s1886 + $0xc4] sm:$0xf]
        %v1937 = vld [vmem:[%s1886 + $0xc8] sm:$0xf]
        %v1938 = vld [vmem:[%s1886 + $0xcc] sm:$0xf]
        %v1939 = vld [vmem:[%s1886 + $0xd0] sm:$0xf]
        %v1940 = vld [vmem:[%s1886 + $0xd4] sm:$0xf]
        %v1941 = vld [vmem:[%s1886 + $0xd8] sm:$0xf]
        %v1942 = vld [vmem:[%s1886 + $0xdc] sm:$0xf]
        %v1943 = vld [vmem:[%s1886 + $0xe0] sm:$0xf]
        %v1944 = vld [vmem:[%s1886 + $0xe4] sm:$0xf]
        %v1945 = vld [vmem:[%s1886 + $0xe8] sm:$0xf]
        %v1946 = vld [vmem:[%s1886 + $0xec] sm:$0xf]
        %v1947 = vld [vmem:[%s1886 + $0xf0] sm:$0xf]
        %v1948 = vld [vmem:[%s1886 + $0xf4] sm:$0xf]
        %v1949 = vld [vmem:[%s1886 + $0xf8] sm:$0xf]
        %v1950 = vld [vmem:[%s1886 + $0xfc] sm:$0xf]
        %v2015 = vunpack.c.l.b16 %v1887
        %v2016 = vunpack.c.l.b16 %v1888
        %v2017 = vunpack.c.l.b16 %v1889
        %v2018 = vunpack.c.l.b16 %v1890
        %v2019 = vunpack.c.l.b16 %v1891
        %v2020 = vunpack.c.l.b16 %v1892
        %v2021 = vunpack.c.l.b16 %v1893
        %v2022 = vunpack.c.l.b16 %v1894
        %v2023 = vunpack.c.l.b16 %v1895
        %v2024 = vunpack.c.l.b16 %v1896
        %v2025 = vunpack.c.l.b16 %v1897
        %v2026 = vunpack.c.l.b16 %v1898
        %v2027 = vunpack.c.l.b16 %v1899
        %v2028 = vunpack.c.l.b16 %v1900
        %v2029 = vunpack.c.l.b16 %v1901
        %v2030 = vunpack.c.l.b16 %v1902
        %v2031 = vunpack.c.l.b16 %v1903
        %v2032 = vunpack.c.l.b16 %v1904
        %v2033 = vunpack.c.l.b16 %v1905
        %v2034 = vunpack.c.l.b16 %v1906
        %v2035 = vunpack.c.l.b16 %v1907
        %v2036 = vunpack.c.l.b16 %v1908
        %v2037 = vunpack.c.l.b16 %v1909
        %v2038 = vunpack.c.l.b16 %v1910
        %v2039 = vunpack.c.l.b16 %v1911
        %v2040 = vunpack.c.l.b16 %v1912
        %v2041 = vunpack.c.l.b16 %v1913
        %v2042 = vunpack.c.l.b16 %v1914
        %v2043 = vunpack.c.l.b16 %v1915
        %v2044 = vunpack.c.l.b16 %v1916
        %v2045 = vunpack.c.l.b16 %v1917
        %v2046 = vunpack.c.l.b16 %v1918
        %v2047 = vunpack.c.l.b16 %v1919
        %v2048 = vunpack.c.l.b16 %v1920
        %v2049 = vunpack.c.l.b16 %v1921
        %v2050 = vunpack.c.l.b16 %v1922
        %v2051 = vunpack.c.l.b16 %v1923
        %v2052 = vunpack.c.l.b16 %v1924
        %v2053 = vunpack.c.l.b16 %v1925
        %v2054 = vunpack.c.l.b16 %v1926
        %v2055 = vunpack.c.l.b16 %v1927
        %v2056 = vunpack.c.l.b16 %v1928
        %v2057 = vunpack.c.l.b16 %v1929
        %v2058 = vunpack.c.l.b16 %v1930
        %v2059 = vunpack.c.l.b16 %v1931
        %v2060 = vunpack.c.l.b16 %v1932
        %v2061 = vunpack.c.l.b16 %v1933
        %v2062 = vunpack.c.l.b16 %v1934
        %v2063 = vunpack.c.l.b16 %v1935
        %v2064 = vunpack.c.l.b16 %v1936
        %v2065 = vunpack.c.l.b16 %v1937
        %v2066 = vunpack.c.l.b16 %v1938
        %v2067 = vunpack.c.l.b16 %v1939
        %v2068 = vunpack.c.l.b16 %v1940
        %v2069 = vunpack.c.l.b16 %v1941
        %v2070 = vunpack.c.l.b16 %v1942
        %v2071 = vunpack.c.l.b16 %v1943
        %v2072 = vunpack.c.l.b16 %v1944
        %v2073 = vunpack.c.l.b16 %v1945
        %v2074 = vunpack.c.l.b16 %v1946
        %v2075 = vunpack.c.l.b16 %v1947
        %v2076 = vunpack.c.l.b16 %v1948
        %v2077 = vunpack.c.l.b16 %v1949
        %v2078 = vunpack.c.l.b16 %v1950
        %v2079 = vpack.c.b16 %v2016, %v2015
        %v2080 = vpack.c.b16 %v2018, %v2017
        %v2081 = vpack.c.b16 %v2020, %v2019
        %v2082 = vpack.c.b16 %v2022, %v2021
        %v2083 = vpack.c.b16 %v2024, %v2023
        %v2084 = vpack.c.b16 %v2026, %v2025
        %v2085 = vpack.c.b16 %v2028, %v2027
        %v2086 = vpack.c.b16 %v2030, %v2029
        %v2087 = vpack.c.b16 %v2032, %v2031
        %v2088 = vpack.c.b16 %v2034, %v2033
        %v2089 = vpack.c.b16 %v2036, %v2035
        %v2090 = vpack.c.b16 %v2038, %v2037
        %v2091 = vpack.c.b16 %v2040, %v2039
        %v2092 = vpack.c.b16 %v2042, %v2041
        %v2093 = vpack.c.b16 %v2044, %v2043
        %v2094 = vpack.c.b16 %v2046, %v2045
        %v2095 = vpack.c.b16 %v2048, %v2047
        %v2096 = vpack.c.b16 %v2050, %v2049
        %v2097 = vpack.c.b16 %v2052, %v2051
        %v2098 = vpack.c.b16 %v2054, %v2053
        %v2099 = vpack.c.b16 %v2056, %v2055
        %v2100 = vpack.c.b16 %v2058, %v2057
        %v2101 = vpack.c.b16 %v2060, %v2059
        %v2102 = vpack.c.b16 %v2062, %v2061
        %v2103 = vpack.c.b16 %v2064, %v2063
        %v2104 = vpack.c.b16 %v2066, %v2065
        %v2105 = vpack.c.b16 %v2068, %v2067
        %v2106 = vpack.c.b16 %v2070, %v2069
        %v2107 = vpack.c.b16 %v2072, %v2071
        %v2108 = vpack.c.b16 %v2074, %v2073
        %v2109 = vpack.c.b16 %v2076, %v2075
        %v2110 = vpack.c.b16 %v2078, %v2077
        %2143 = vmatpush.bf16.msra.mxu0 %v2086
        %2144 = vmatpush.bf16.msra.mxu0 %v2085
        %2145 = vmatpush.bf16.msra.mxu0 %v2084
        %2146 = vmatpush.bf16.msra.mxu0 %v2083
        %2147 = vmatpush.bf16.msra.mxu0 %v2082
        %2148 = vmatpush.bf16.msra.mxu0 %v2081
        %2149 = vmatpush.bf16.msra.mxu0 %v2080
        %2150 = vmatpush.bf16.msra.mxu0 %v2079
        %2151 = vmatmul.bf16.gmra.mxu0 %v1838
        %v2152 = vpop.f32.mrf.mxu0
        %v2153 = vadd.f32 0.0, %v2152
        %v2154 = vpop.f32.mrf.mxu0
        %v2155 = vadd.f32 0.0, %v2154
        %2156 = vmatmul.bf16.gmra.mxu0 %v1839
        %v2157 = vpop.f32.mrf.mxu0
        %v2158 = vadd.f32 0.0, %v2157
        %v2159 = vpop.f32.mrf.mxu0
        %v2160 = vadd.f32 0.0, %v2159
        %2161 = vmatmul.bf16.gmra.mxu0 %v1840
        %v2162 = vpop.f32.mrf.mxu0
        %v2163 = vadd.f32 0.0, %v2162
        %v2164 = vpop.f32.mrf.mxu0
        %v2165 = vadd.f32 0.0, %v2164
        %2166 = vmatmul.bf16.gmra.mxu0 %v1841
        %v2167 = vpop.f32.mrf.mxu0
        %v2168 = vadd.f32 0.0, %v2167
        %v2169 = vpop.f32.mrf.mxu0
        %v2170 = vadd.f32 0.0, %v2169
        %2171 = vmatmul.bf16.gmra.mxu0 %v1842
        %v2172 = vpop.f32.mrf.mxu0
        %v2173 = vadd.f32 0.0, %v2172
        %v2174 = vpop.f32.mrf.mxu0
        %v2175 = vadd.f32 0.0, %v2174
        %2176 = vmatmul.bf16.gmra.mxu0 %v1843
        %v2177 = vpop.f32.mrf.mxu0
        %v2178 = vadd.f32 0.0, %v2177
        %v2179 = vpop.f32.mrf.mxu0
        %v2180 = vadd.f32 0.0, %v2179
        %2181 = vmatmul.bf16.gmra.mxu0 %v1844
        %v2182 = vpop.f32.mrf.mxu0
        %v2183 = vadd.f32 0.0, %v2182
        %v2184 = vpop.f32.mrf.mxu0
        %v2185 = vadd.f32 0.0, %v2184
        %2186 = vmatmul.bf16.gmra.mxu0 %v1845
        %v2187 = vpop.f32.mrf.mxu0
        %v2188 = vadd.f32 0.0, %v2187
        %v2189 = vpop.f32.mrf.mxu0
        %v2190 = vadd.f32 0.0, %v2189
        %2191 = vdwg.mxu0
        %2192 = vmatpush.bf16.msra.mxu0 %v2094
        %2193 = vmatpush.bf16.msra.mxu0 %v2093
        %2194 = vmatpush.bf16.msra.mxu0 %v2092
        %2195 = vmatpush.bf16.msra.mxu0 %v2091
        %2196 = vmatpush.bf16.msra.mxu0 %v2090
        %2197 = vmatpush.bf16.msra.mxu0 %v2089
        %2198 = vmatpush.bf16.msra.mxu0 %v2088
        %2199 = vmatpush.bf16.msra.mxu0 %v2087
        %2200 = vmatmul.bf16.gmra.mxu0 %v1003
        %v2201 = vpop.f32.mrf.mxu0
        %v2202 = vadd.f32 %v2153, %v2201
        %v2203 = vpop.f32.mrf.mxu0
        %v2204 = vadd.f32 %v2155, %v2203
        %2205 = vmatmul.bf16.gmra.mxu0 %v1004
        %v2206 = vpop.f32.mrf.mxu0
        %v2207 = vadd.f32 %v2158, %v2206
        %v2208 = vpop.f32.mrf.mxu0
        %v2209 = vadd.f32 %v2160, %v2208
        %2210 = vmatmul.bf16.gmra.mxu0 %v1005
        %v2211 = vpop.f32.mrf.mxu0
        %v2212 = vadd.f32 %v2163, %v2211
        %v2213 = vpop.f32.mrf.mxu0
        %v2214 = vadd.f32 %v2165, %v2213
        %2215 = vmatmul.bf16.gmra.mxu0 %v1006
        %v2216 = vpop.f32.mrf.mxu0
        %v2217 = vadd.f32 %v2168, %v2216
        %v2218 = vpop.f32.mrf.mxu0
        %v2219 = vadd.f32 %v2170, %v2218
        %2220 = vmatmul.bf16.gmra.mxu0 %v1007
        %v2221 = vpop.f32.mrf.mxu0
        %v2222 = vadd.f32 %v2173, %v2221
        %v2223 = vpop.f32.mrf.mxu0
        %v2224 = vadd.f32 %v2175, %v2223
        %2225 = vmatmul.bf16.gmra.mxu0 %v1008
        %v2226 = vpop.f32.mrf.mxu0
        %v2227 = vadd.f32 %v2178, %v2226
        %v2228 = vpop.f32.mrf.mxu0
        %v2229 = vadd.f32 %v2180, %v2228
        %2230 = vmatmul.bf16.gmra.mxu0 %v1009
        %v2231 = vpop.f32.mrf.mxu0
        %v2232 = vadd.f32 %v2183, %v2231
        %v2233 = vpop.f32.mrf.mxu0
        %v2234 = vadd.f32 %v2185, %v2233
        %2235 = vmatmul.bf16.gmra.mxu0 %v1010
        %v2236 = vpop.f32.mrf.mxu0
        %v2237 = vadd.f32 %v2188, %v2236
        %v2238 = vpop.f32.mrf.mxu0
        %v2239 = vadd.f32 %v2190, %v2238
        %2240 = vdwg.mxu0
        %2241 = vmatpush.bf16.msra.mxu0 %v2102
        %2242 = vmatpush.bf16.msra.mxu0 %v2101
        %2243 = vmatpush.bf16.msra.mxu0 %v2100
        %2244 = vmatpush.bf16.msra.mxu0 %v2099
        %2245 = vmatpush.bf16.msra.mxu0 %v2098
        %2246 = vmatpush.bf16.msra.mxu0 %v2097
        %2247 = vmatpush.bf16.msra.mxu0 %v2096
        %2248 = vmatpush.bf16.msra.mxu0 %v2095
        %2249 = vmatmul.bf16.gmra.mxu0 %v1870
        %v2250 = vpop.f32.mrf.mxu0
        %v2251 = vadd.f32 %v2202, %v2250
        %v2252 = vpop.f32.mrf.mxu0
        %v2253 = vadd.f32 %v2204, %v2252
        %2254 = vmatmul.bf16.gmra.mxu0 %v1871
        %v2255 = vpop.f32.mrf.mxu0
        %v2256 = vadd.f32 %v2207, %v2255
        %v2257 = vpop.f32.mrf.mxu0
        %v2258 = vadd.f32 %v2209, %v2257
        %2259 = vmatmul.bf16.gmra.mxu0 %v1872
        %v2260 = vpop.f32.mrf.mxu0
        %v2261 = vadd.f32 %v2212, %v2260
        %v2262 = vpop.f32.mrf.mxu0
        %v2263 = vadd.f32 %v2214, %v2262
        %2264 = vmatmul.bf16.gmra.mxu0 %v1873
        %v2265 = vpop.f32.mrf.mxu0
        %v2266 = vadd.f32 %v2217, %v2265
        %v2267 = vpop.f32.mrf.mxu0
        %v2268 = vadd.f32 %v2219, %v2267
        %2269 = vmatmul.bf16.gmra.mxu0 %v1874
        %v2270 = vpop.f32.mrf.mxu0
        %v2271 = vadd.f32 %v2222, %v2270
        %v2272 = vpop.f32.mrf.mxu0
        %v2273 = vadd.f32 %v2224, %v2272
        %2274 = vmatmul.bf16.gmra.mxu0 %v1875
        %v2275 = vpop.f32.mrf.mxu0
        %v2276 = vadd.f32 %v2227, %v2275
        %v2277 = vpop.f32.mrf.mxu0
        %v2278 = vadd.f32 %v2229, %v2277
        %2279 = vmatmul.bf16.gmra.mxu0 %v1876
        %v2280 = vpop.f32.mrf.mxu0
        %v2281 = vadd.f32 %v2232, %v2280
        %v2282 = vpop.f32.mrf.mxu0
        %v2283 = vadd.f32 %v2234, %v2282
        %2284 = vmatmul.bf16.gmra.mxu0 %v1877
        %v2285 = vpop.f32.mrf.mxu0
        %v2286 = vadd.f32 %v2237, %v2285
        %v2287 = vpop.f32.mrf.mxu0
        %v2288 = vadd.f32 %v2239, %v2287
        %2289 = vdwg.mxu0
        %2290 = vmatpush.bf16.msra.mxu0 %v2110
        %2291 = vmatpush.bf16.msra.mxu0 %v2109
        %2292 = vmatpush.bf16.msra.mxu0 %v2108
        %2293 = vmatpush.bf16.msra.mxu0 %v2107
        %2294 = vmatpush.bf16.msra.mxu0 %v2106
        %2295 = vmatpush.bf16.msra.mxu0 %v2105
        %2296 = vmatpush.bf16.msra.mxu0 %v2104
        %2297 = vmatpush.bf16.msra.mxu0 %v2103
        %2298 = vmatmul.bf16.gmra.mxu0 %v1083
        %v2299 = vpop.f32.mrf.mxu0
        %v2300 = vadd.f32 %v2251, %v2299
        %v2301 = vpop.f32.mrf.mxu0
        %v2302 = vadd.f32 %v2253, %v2301
        %2303 = vmatmul.bf16.gmra.mxu0 %v1084
        %v2304 = vpop.f32.mrf.mxu0
        %v2305 = vadd.f32 %v2256, %v2304
        %v2306 = vpop.f32.mrf.mxu0
        %v2307 = vadd.f32 %v2258, %v2306
        %2308 = vmatmul.bf16.gmra.mxu0 %v1085
        %v2309 = vpop.f32.mrf.mxu0
        %v2310 = vadd.f32 %v2261, %v2309
        %v2311 = vpop.f32.mrf.mxu0
        %v2312 = vadd.f32 %v2263, %v2311
        %2313 = vmatmul.bf16.gmra.mxu0 %v1086
        %v2314 = vpop.f32.mrf.mxu0
        %v2315 = vadd.f32 %v2266, %v2314
        %v2316 = vpop.f32.mrf.mxu0
        %v2317 = vadd.f32 %v2268, %v2316
        %2318 = vmatmul.bf16.gmra.mxu0 %v1087
        %v2319 = vpop.f32.mrf.mxu0
        %v2320 = vadd.f32 %v2271, %v2319
        %v2321 = vpop.f32.mrf.mxu0
        %v2322 = vadd.f32 %v2273, %v2321
        %2323 = vmatmul.bf16.gmra.mxu0 %v1088
        %v2324 = vpop.f32.mrf.mxu0
        %v2325 = vadd.f32 %v2276, %v2324
        %v2326 = vpop.f32.mrf.mxu0
        %v2327 = vadd.f32 %v2278, %v2326
        %2328 = vmatmul.bf16.gmra.mxu0 %v1089
        %v2329 = vpop.f32.mrf.mxu0
        %v2330 = vadd.f32 %v2281, %v2329
        %v2331 = vpop.f32.mrf.mxu0
        %v2332 = vadd.f32 %v2283, %v2331
        %2333 = vmatmul.bf16.gmra.mxu0 %v1090
        %v2334 = vpop.f32.mrf.mxu0
        %v2335 = vadd.f32 %v2286, %v2334
        %v2336 = vpop.f32.mrf.mxu0
        %v2337 = vadd.f32 %v2288, %v2336
        %2338 = vdwg.mxu0
        %v2339 = vadd.f32 %v2300, %v2302
        %v2340 = vadd.f32 %v2339, %v2305
        %v2341 = vadd.f32 %v2340, %v2307
        %v2342 = vadd.f32 %v2341, %v2310
        %v2343 = vadd.f32 %v2342, %v2312
        %v2344 = vadd.f32 %v2343, %v2315
        %v2345 = vadd.f32 %v2344, %v2317
        %v2346 = vadd.f32 %v2345, %v2320
        %v2347 = vadd.f32 %v2346, %v2322
        %v2348 = vadd.f32 %v2347, %v2325
        %v2349 = vadd.f32 %v2348, %v2327
        %v2350 = vadd.f32 %v2349, %v2330
        %v2351 = vadd.f32 %v2350, %v2332
        %v2352 = vadd.f32 %v2351, %v2335
        %v2353 = vadd.f32 %v2352, %v2337
        %v2354 = vrot.slane %v2353, 4
        %v2355 = vadd.f32 %v2353, %v2354
        %v2356 = vrot.slane %v2355, 2
        %v2357 = vadd.f32 %v2355, %v2356
        %v2358 = vrot.slane %v2357, 1
        %v2359 = vadd.f32 %v2357, %v2358
        %v2360 = vadd.f32 %v1620, %v2359
        %v2361 = vmul.f32 %v2300, %v2300
        %v2362 = vmul.f32 %v2302, %v2302
        %v2363 = vmul.f32 %v2305, %v2305
        %v2364 = vmul.f32 %v2307, %v2307
        %v2365 = vmul.f32 %v2310, %v2310
        %v2366 = vmul.f32 %v2312, %v2312
        %v2367 = vmul.f32 %v2315, %v2315
        %v2368 = vmul.f32 %v2317, %v2317
        %v2369 = vmul.f32 %v2320, %v2320
        %v2370 = vmul.f32 %v2322, %v2322
        %v2371 = vmul.f32 %v2325, %v2325
        %v2372 = vmul.f32 %v2327, %v2327
        %v2373 = vmul.f32 %v2330, %v2330
        %v2374 = vmul.f32 %v2332, %v2332
        %v2375 = vmul.f32 %v2335, %v2335
        %v2376 = vmul.f32 %v2337, %v2337
        %v2377 = vadd.f32 %v2361, %v2362
        %v2378 = vadd.f32 %v2377, %v2363
        %v2379 = vadd.f32 %v2378, %v2364
        %v2380 = vadd.f32 %v2379, %v2365
        %v2381 = vadd.f32 %v2380, %v2366
        %v2382 = vadd.f32 %v2381, %v2367
        %v2383 = vadd.f32 %v2382, %v2368
        %v2384 = vadd.f32 %v2383, %v2369
        %v2385 = vadd.f32 %v2384, %v2370
        %v2386 = vadd.f32 %v2385, %v2371
        %v2387 = vadd.f32 %v2386, %v2372
        %v2388 = vadd.f32 %v2387, %v2373
        %v2389 = vadd.f32 %v2388, %v2374
        %v2390 = vadd.f32 %v2389, %v2375
        %v2391 = vadd.f32 %v2390, %v2376
        %v2392 = vrot.slane %v2391, 4
        %v2393 = vadd.f32 %v2391, %v2392
        %v2394 = vrot.slane %v2393, 2
        %v2395 = vadd.f32 %v2393, %v2394
        %v2396 = vrot.slane %v2395, 1
        %v2397 = vadd.f32 %v2395, %v2396
        %v2398 = vadd.f32 %v1658, %v2397
        %2399 = vst [vmem:[%s541] sm:$0xff] %v1560
        %2400 = vst [vmem:[%s541 + $0x8] sm:$0xff] %v2300
        %2401 = vst [vmem:[%s541 + $0x10] sm:$0xff] %v1562
        %2402 = vst [vmem:[%s541 + $0x18] sm:$0xff] %v2302
        %2403 = vst [vmem:[%s541 + $0x40] sm:$0xff] %v1565
        %2404 = vst [vmem:[%s541 + $0x48] sm:$0xff] %v2305
        %2405 = vst [vmem:[%s541 + $0x50] sm:$0xff] %v1567
        %2406 = vst [vmem:[%s541 + $0x58] sm:$0xff] %v2307
        %2407 = vst [vmem:[%s541 + $0x80] sm:$0xff] %v1570
        %2408 = vst [vmem:[%s541 + $0x88] sm:$0xff] %v2310
        %2409 = vst [vmem:[%s541 + $0x90] sm:$0xff] %v1572
        %2410 = vst [vmem:[%s541 + $0x98] sm:$0xff] %v2312
        %2411 = vst [vmem:[%s541 + $0xc0] sm:$0xff] %v1575
        %2412 = vst [vmem:[%s541 + $0xc8] sm:$0xff] %v2315
        %2413 = vst [vmem:[%s541 + $0xd0] sm:$0xff] %v1577
        %2414 = vst [vmem:[%s541 + $0xd8] sm:$0xff] %v2317
        %2415 = vst [vmem:[%s541 + $0x100] sm:$0xff] %v1580
        %2416 = vst [vmem:[%s541 + $0x108] sm:$0xff] %v2320
        %2417 = vst [vmem:[%s541 + $0x110] sm:$0xff] %v1582
        %2418 = vst [vmem:[%s541 + $0x118] sm:$0xff] %v2322
        %2419 = vst [vmem:[%s541 + $0x140] sm:$0xff] %v1585
        %2420 = vst [vmem:[%s541 + $0x148] sm:$0xff] %v2325
        %2421 = vst [vmem:[%s541 + $0x150] sm:$0xff] %v1587
        %2422 = vst [vmem:[%s541 + $0x158] sm:$0xff] %v2327
        %2423 = vst [vmem:[%s541 + $0x180] sm:$0xff] %v1590
        %2424 = vst [vmem:[%s541 + $0x188] sm:$0xff] %v2330
        %2425 = vst [vmem:[%s541 + $0x190] sm:$0xff] %v1592
        %2426 = vst [vmem:[%s541 + $0x198] sm:$0xff] %v2332
        %2427 = vst [vmem:[%s541 + $0x1c0] sm:$0xff] %v1595
        %2428 = vst [vmem:[%s541 + $0x1c8] sm:$0xff] %v2335
        %2429 = vst [vmem:[%s541 + $0x1d0] sm:$0xff] %v1597
        %2430 = vst [vmem:[%s541 + $0x1d8] sm:$0xff] %v2337
        %s2431 = scalar_lea.vmem %s497, 192 [#allocation2]
        %v2432 = vld [vmem:[%s2431] sm:$0xf]
        %v2433 = vld [vmem:[%s2431 + $0x4] sm:$0xf]
        %v2434 = vld [vmem:[%s2431 + $0x8] sm:$0x1]
        %v2435 = vld [vmem:[%s2431 + $0xc] sm:$0xf]
        %v2436 = vld [vmem:[%s2431 + $0x10] sm:$0xf]
        %v2437 = vld [vmem:[%s2431 + $0x14] sm:$0x1]
        %v2438 = vld [vmem:[%s2431 + $0x18] sm:$0xf]
        %v2439 = vld [vmem:[%s2431 + $0x1c] sm:$0xf]
        %v2440 = vld [vmem:[%s2431 + $0x20] sm:$0x1]
        %v2441 = vld [vmem:[%s2431 + $0x24] sm:$0xf]
        %v2442 = vld [vmem:[%s2431 + $0x28] sm:$0xf]
        %v2443 = vld [vmem:[%s2431 + $0x2c] sm:$0x1]
        %v2444 = vld [vmem:[%s2431 + $0x30] sm:$0xf]
        %v2445 = vld [vmem:[%s2431 + $0x34] sm:$0xf]
        %v2446 = vld [vmem:[%s2431 + $0x38] sm:$0x1]
        %v2447 = vld [vmem:[%s2431 + $0x3c] sm:$0xf]
        %v2448 = vld [vmem:[%s2431 + $0x40] sm:$0xf]
        %v2449 = vld [vmem:[%s2431 + $0x44] sm:$0x1]
        %v2450 = vld [vmem:[%s2431 + $0x48] sm:$0xf]
        %v2451 = vld [vmem:[%s2431 + $0x4c] sm:$0xf]
        %v2452 = vld [vmem:[%s2431 + $0x50] sm:$0x1]
        %v2453 = vld [vmem:[%s2431 + $0x54] sm:$0xf]
        %v2454 = vld [vmem:[%s2431 + $0x58] sm:$0xf]
        %v2455 = vld [vmem:[%s2431 + $0x5c] sm:$0x1]
        %v2457 = vshrl.u32 %v2432, 16
        %v2459 = vrot.slane %v2457, 4
        %v2460 = vshll.u32 %v2432, 16
        %v2462 = vrot.slane %v2460, 5
        %v2463 = vor.u32 %v2459, %v2462
        %v2464 = vrot.slane %v2463, 4
        %v2466 = vshll.u32 %v2433, 16
        %v2468 = vrot.slane %v2466, 5
        %v2469 = vsel %vm578, %v2464, %v2468
        %v2470 = vshrl.u32 %v2433, 16
        %v2472 = vrot.slane %v2470, 4
        %v2473 = vor.u32 %v2472, %v2468
        %v2474 = vrot.slane %v2473, 4
        %v2476 = vshll.u32 %v2434, 16
        %v2478 = vrot.slane %v2476, 5
        %v2479 = vsel %vm578, %v2474, %v2478
        %v2481 = vshrl.u32 %v2435, 16
        %v2483 = vrot.slane %v2481, 4
        %v2484 = vshll.u32 %v2435, 16
        %v2486 = vrot.slane %v2484, 5
        %v2487 = vor.u32 %v2483, %v2486
        %v2488 = vrot.slane %v2487, 4
        %v2490 = vshll.u32 %v2436, 16
        %v2492 = vrot.slane %v2490, 5
        %v2493 = vsel %vm578, %v2488, %v2492
        %v2494 = vshrl.u32 %v2436, 16
        %v2496 = vrot.slane %v2494, 4
        %v2497 = vor.u32 %v2496, %v2492
        %v2498 = vrot.slane %v2497, 4
        %v2500 = vshll.u32 %v2437, 16
        %v2502 = vrot.slane %v2500, 5
        %v2503 = vsel %vm578, %v2498, %v2502
        %v2505 = vshrl.u32 %v2438, 16
        %v2507 = vrot.slane %v2505, 4
        %v2508 = vshll.u32 %v2438, 16
        %v2510 = vrot.slane %v2508, 5
        %v2511 = vor.u32 %v2507, %v2510
        %v2512 = vrot.slane %v2511, 4
        %v2514 = vshll.u32 %v2439, 16
        %v2516 = vrot.slane %v2514, 5
        %v2517 = vsel %vm578, %v2512, %v2516
        %v2518 = vshrl.u32 %v2439, 16
        %v2520 = vrot.slane %v2518, 4
        %v2521 = vor.u32 %v2520, %v2516
        %v2522 = vrot.slane %v2521, 4
        %v2524 = vshll.u32 %v2440, 16
        %v2526 = vrot.slane %v2524, 5
        %v2527 = vsel %vm578, %v2522, %v2526
        %v2529 = vshrl.u32 %v2441, 16
        %v2531 = vrot.slane %v2529, 4
        %v2532 = vshll.u32 %v2441, 16
        %v2534 = vrot.slane %v2532, 5
        %v2535 = vor.u32 %v2531, %v2534
        %v2536 = vrot.slane %v2535, 4
        %v2538 = vshll.u32 %v2442, 16
        %v2540 = vrot.slane %v2538, 5
        %v2541 = vsel %vm578, %v2536, %v2540
        %v2542 = vshrl.u32 %v2442, 16
        %v2544 = vrot.slane %v2542, 4
        %v2545 = vor.u32 %v2544, %v2540
        %v2546 = vrot.slane %v2545, 4
        %v2548 = vshll.u32 %v2443, 16
        %v2550 = vrot.slane %v2548, 5
        %v2551 = vsel %vm578, %v2546, %v2550
        %v2553 = vshrl.u32 %v2444, 16
        %v2555 = vrot.slane %v2553, 4
        %v2556 = vshll.u32 %v2444, 16
        %v2558 = vrot.slane %v2556, 5
        %v2559 = vor.u32 %v2555, %v2558
        %v2560 = vrot.slane %v2559, 4
        %v2562 = vshll.u32 %v2445, 16
        %v2564 = vrot.slane %v2562, 5
        %v2565 = vsel %vm578, %v2560, %v2564
        %v2566 = vshrl.u32 %v2445, 16
        %v2568 = vrot.slane %v2566, 4
        %v2569 = vor.u32 %v2568, %v2564
        %v2570 = vrot.slane %v2569, 4
        %v2572 = vshll.u32 %v2446, 16
        %v2574 = vrot.slane %v2572, 5
        %v2575 = vsel %vm578, %v2570, %v2574
        %v2577 = vshrl.u32 %v2447, 16
        %v2579 = vrot.slane %v2577, 4
        %v2580 = vshll.u32 %v2447, 16
        %v2582 = vrot.slane %v2580, 5
        %v2583 = vor.u32 %v2579, %v2582
        %v2584 = vrot.slane %v2583, 4
        %v2586 = vshll.u32 %v2448, 16
        %v2588 = vrot.slane %v2586, 5
        %v2589 = vsel %vm578, %v2584, %v2588
        %v2590 = vshrl.u32 %v2448, 16
        %v2592 = vrot.slane %v2590, 4
        %v2593 = vor.u32 %v2592, %v2588
        %v2594 = vrot.slane %v2593, 4
        %v2596 = vshll.u32 %v2449, 16
        %v2598 = vrot.slane %v2596, 5
        %v2599 = vsel %vm578, %v2594, %v2598
        %v2601 = vshrl.u32 %v2450, 16
        %v2603 = vrot.slane %v2601, 4
        %v2604 = vshll.u32 %v2450, 16
        %v2606 = vrot.slane %v2604, 5
        %v2607 = vor.u32 %v2603, %v2606
        %v2608 = vrot.slane %v2607, 4
        %v2610 = vshll.u32 %v2451, 16
        %v2612 = vrot.slane %v2610, 5
        %v2613 = vsel %vm578, %v2608, %v2612
        %v2614 = vshrl.u32 %v2451, 16
        %v2616 = vrot.slane %v2614, 4
        %v2617 = vor.u32 %v2616, %v2612
        %v2618 = vrot.slane %v2617, 4
        %v2620 = vshll.u32 %v2452, 16
        %v2622 = vrot.slane %v2620, 5
        %v2623 = vsel %vm578, %v2618, %v2622
        %v2625 = vshrl.u32 %v2453, 16
        %v2627 = vrot.slane %v2625, 4
        %v2628 = vshll.u32 %v2453, 16
        %v2630 = vrot.slane %v2628, 5
        %v2631 = vor.u32 %v2627, %v2630
        %v2632 = vrot.slane %v2631, 4
        %v2634 = vshll.u32 %v2454, 16
        %v2636 = vrot.slane %v2634, 5
        %v2637 = vsel %vm578, %v2632, %v2636
        %v2638 = vshrl.u32 %v2454, 16
        %v2640 = vrot.slane %v2638, 4
        %v2641 = vor.u32 %v2640, %v2636
        %v2642 = vrot.slane %v2641, 4
        %v2644 = vshll.u32 %v2455, 16
        %v2646 = vrot.slane %v2644, 5
        %v2647 = vsel %vm578, %v2642, %v2646
        %v2648 = vld [vmem:[%s551] sm:$0xf]
        %v2649 = vld [vmem:[%s551 + $0x4] sm:$0xf]
        %v2650 = vld [vmem:[%s551 + $0x8] sm:$0x1]
        %v2651 = vld [vmem:[%s551 + $0xc] sm:$0xf]
        %v2652 = vld [vmem:[%s551 + $0x10] sm:$0xf]
        %v2653 = vld [vmem:[%s551 + $0x14] sm:$0x1]
        %v2654 = vld [vmem:[%s551 + $0x18] sm:$0xf]
        %v2655 = vld [vmem:[%s551 + $0x1c] sm:$0xf]
        %v2656 = vld [vmem:[%s551 + $0x20] sm:$0x1]
        %v2657 = vld [vmem:[%s551 + $0x24] sm:$0xf]
        %v2658 = vld [vmem:[%s551 + $0x28] sm:$0xf]
        %v2659 = vld [vmem:[%s551 + $0x2c] sm:$0x1]
        %v2660 = vld [vmem:[%s551 + $0x30] sm:$0xf]
        %v2661 = vld [vmem:[%s551 + $0x34] sm:$0xf]
        %v2662 = vld [vmem:[%s551 + $0x38] sm:$0x1]
        %v2663 = vld [vmem:[%s551 + $0x3c] sm:$0xf]
        %v2664 = vld [vmem:[%s551 + $0x40] sm:$0xf]
        %v2665 = vld [vmem:[%s551 + $0x44] sm:$0x1]
        %v2666 = vld [vmem:[%s551 + $0x48] sm:$0xf]
        %v2667 = vld [vmem:[%s551 + $0x4c] sm:$0xf]
        %v2668 = vld [vmem:[%s551 + $0x50] sm:$0x1]
        %v2669 = vld [vmem:[%s551 + $0x54] sm:$0xf]
        %v2670 = vld [vmem:[%s551 + $0x58] sm:$0xf]
        %v2671 = vld [vmem:[%s551 + $0x5c] sm:$0x1]
        %v2673 = vshrl.u32 %v2648, 16
        %v2675 = vrot.slane %v2673, 4
        %v2676 = vshll.u32 %v2648, 16
        %v2678 = vrot.slane %v2676, 5
        %v2679 = vor.u32 %v2675, %v2678
        %v2680 = vrot.slane %v2679, 4
        %v2682 = vshll.u32 %v2649, 16
        %v2684 = vrot.slane %v2682, 5
        %v2685 = vsel %vm578, %v2680, %v2684
        %v2686 = vshrl.u32 %v2649, 16
        %v2688 = vrot.slane %v2686, 4
        %v2689 = vor.u32 %v2688, %v2684
        %v2690 = vrot.slane %v2689, 4
        %v2692 = vshll.u32 %v2650, 16
        %v2694 = vrot.slane %v2692, 5
        %v2695 = vsel %vm578, %v2690, %v2694
        %v2697 = vshrl.u32 %v2651, 16
        %v2699 = vrot.slane %v2697, 4
        %v2700 = vshll.u32 %v2651, 16
        %v2702 = vrot.slane %v2700, 5
        %v2703 = vor.u32 %v2699, %v2702
        %v2704 = vrot.slane %v2703, 4
        %v2706 = vshll.u32 %v2652, 16
        %v2708 = vrot.slane %v2706, 5
        %v2709 = vsel %vm578, %v2704, %v2708
        %v2710 = vshrl.u32 %v2652, 16
        %v2712 = vrot.slane %v2710, 4
        %v2713 = vor.u32 %v2712, %v2708
        %v2714 = vrot.slane %v2713, 4
        %v2716 = vshll.u32 %v2653, 16
        %v2718 = vrot.slane %v2716, 5
        %v2719 = vsel %vm578, %v2714, %v2718
        %v2721 = vshrl.u32 %v2654, 16
        %v2723 = vrot.slane %v2721, 4
        %v2724 = vshll.u32 %v2654, 16
        %v2726 = vrot.slane %v2724, 5
        %v2727 = vor.u32 %v2723, %v2726
        %v2728 = vrot.slane %v2727, 4
        %v2730 = vshll.u32 %v2655, 16
        %v2732 = vrot.slane %v2730, 5
        %v2733 = vsel %vm578, %v2728, %v2732
        %v2734 = vshrl.u32 %v2655, 16
        %v2736 = vrot.slane %v2734, 4
        %v2737 = vor.u32 %v2736, %v2732
        %v2738 = vrot.slane %v2737, 4
        %v2740 = vshll.u32 %v2656, 16
        %v2742 = vrot.slane %v2740, 5
        %v2743 = vsel %vm578, %v2738, %v2742
        %v2745 = vshrl.u32 %v2657, 16
        %v2747 = vrot.slane %v2745, 4
        %v2748 = vshll.u32 %v2657, 16
        %v2750 = vrot.slane %v2748, 5
        %v2751 = vor.u32 %v2747, %v2750
        %v2752 = vrot.slane %v2751, 4
        %v2754 = vshll.u32 %v2658, 16
        %v2756 = vrot.slane %v2754, 5
        %v2757 = vsel %vm578, %v2752, %v2756
        %v2758 = vshrl.u32 %v2658, 16
        %v2760 = vrot.slane %v2758, 4
        %v2761 = vor.u32 %v2760, %v2756
        %v2762 = vrot.slane %v2761, 4
        %v2764 = vshll.u32 %v2659, 16
        %v2766 = vrot.slane %v2764, 5
        %v2767 = vsel %vm578, %v2762, %v2766
        %v2769 = vshrl.u32 %v2660, 16
        %v2771 = vrot.slane %v2769, 4
        %v2772 = vshll.u32 %v2660, 16
        %v2774 = vrot.slane %v2772, 5
        %v2775 = vor.u32 %v2771, %v2774
        %v2776 = vrot.slane %v2775, 4
        %v2778 = vshll.u32 %v2661, 16
        %v2780 = vrot.slane %v2778, 5
        %v2781 = vsel %vm578, %v2776, %v2780
        %v2782 = vshrl.u32 %v2661, 16
        %v2784 = vrot.slane %v2782, 4
        %v2785 = vor.u32 %v2784, %v2780
        %v2786 = vrot.slane %v2785, 4
        %v2788 = vshll.u32 %v2662, 16
        %v2790 = vrot.slane %v2788, 5
        %v2791 = vsel %vm578, %v2786, %v2790
        %v2793 = vshrl.u32 %v2663, 16
        %v2795 = vrot.slane %v2793, 4
        %v2796 = vshll.u32 %v2663, 16
        %v2798 = vrot.slane %v2796, 5
        %v2799 = vor.u32 %v2795, %v2798
        %v2800 = vrot.slane %v2799, 4
        %v2802 = vshll.u32 %v2664, 16
        %v2804 = vrot.slane %v2802, 5
        %v2805 = vsel %vm578, %v2800, %v2804
        %v2806 = vshrl.u32 %v2664, 16
        %v2808 = vrot.slane %v2806, 4
        %v2809 = vor.u32 %v2808, %v2804
        %v2810 = vrot.slane %v2809, 4
        %v2812 = vshll.u32 %v2665, 16
        %v2814 = vrot.slane %v2812, 5
        %v2815 = vsel %vm578, %v2810, %v2814
        %v2817 = vshrl.u32 %v2666, 16
        %v2819 = vrot.slane %v2817, 4
        %v2820 = vshll.u32 %v2666, 16
        %v2822 = vrot.slane %v2820, 5
        %v2823 = vor.u32 %v2819, %v2822
        %v2824 = vrot.slane %v2823, 4
        %v2826 = vshll.u32 %v2667, 16
        %v2828 = vrot.slane %v2826, 5
        %v2829 = vsel %vm578, %v2824, %v2828
        %v2830 = vshrl.u32 %v2667, 16
        %v2832 = vrot.slane %v2830, 4
        %v2833 = vor.u32 %v2832, %v2828
        %v2834 = vrot.slane %v2833, 4
        %v2836 = vshll.u32 %v2668, 16
        %v2838 = vrot.slane %v2836, 5
        %v2839 = vsel %vm578, %v2834, %v2838
        %v2841 = vshrl.u32 %v2669, 16
        %v2843 = vrot.slane %v2841, 4
        %v2844 = vshll.u32 %v2669, 16
        %v2846 = vrot.slane %v2844, 5
        %v2847 = vor.u32 %v2843, %v2846
        %v2848 = vrot.slane %v2847, 4
        %v2850 = vshll.u32 %v2670, 16
        %v2852 = vrot.slane %v2850, 5
        %v2853 = vsel %vm578, %v2848, %v2852
        %v2854 = vshrl.u32 %v2670, 16
        %v2856 = vrot.slane %v2854, 4
        %v2857 = vor.u32 %v2856, %v2852
        %v2858 = vrot.slane %v2857, 4
        %v2860 = vshll.u32 %v2671, 16
        %v2862 = vrot.slane %v2860, 5
        %v2863 = vsel %vm578, %v2858, %v2862
        %v2864 = vunpack.c.l.b16 %v2469
        %v2865 = vunpack.c.l.b16 %v2479
        %v2866 = vunpack.c.l.b16 %v2493
        %v2867 = vunpack.c.l.b16 %v2503
        %v2868 = vunpack.c.l.b16 %v2517
        %v2869 = vunpack.c.l.b16 %v2527
        %v2870 = vunpack.c.l.b16 %v2541
        %v2871 = vunpack.c.l.b16 %v2551
        %v2872 = vunpack.c.l.b16 %v2565
        %v2873 = vunpack.c.l.b16 %v2575
        %v2874 = vunpack.c.l.b16 %v2589
        %v2875 = vunpack.c.l.b16 %v2599
        %v2876 = vunpack.c.l.b16 %v2613
        %v2877 = vunpack.c.l.b16 %v2623
        %v2878 = vunpack.c.l.b16 %v2637
        %v2879 = vunpack.c.l.b16 %v2647
        %v2880 = vpack.c.b16 %v2865, %v2864
        %v2881 = vpack.c.b16 %v2867, %v2866
        %v2882 = vpack.c.b16 %v2869, %v2868
        %v2883 = vpack.c.b16 %v2871, %v2870
        %v2884 = vpack.c.b16 %v2873, %v2872
        %v2885 = vpack.c.b16 %v2875, %v2874
        %v2886 = vpack.c.b16 %v2877, %v2876
        %v2887 = vpack.c.b16 %v2879, %v2878
        %v2912 = vunpack.c.l.b16 %v2432
        %v2913 = vunpack.c.l.b16 %v2433
        %v2914 = vunpack.c.l.b16 %v2435
        %v2915 = vunpack.c.l.b16 %v2436
        %v2916 = vunpack.c.l.b16 %v2438
        %v2917 = vunpack.c.l.b16 %v2439
        %v2918 = vunpack.c.l.b16 %v2441
        %v2919 = vunpack.c.l.b16 %v2442
        %v2920 = vunpack.c.l.b16 %v2444
        %v2921 = vunpack.c.l.b16 %v2445
        %v2922 = vunpack.c.l.b16 %v2447
        %v2923 = vunpack.c.l.b16 %v2448
        %v2924 = vunpack.c.l.b16 %v2450
        %v2925 = vunpack.c.l.b16 %v2451
        %v2926 = vunpack.c.l.b16 %v2453
        %v2927 = vunpack.c.l.b16 %v2454
        %v2928 = vpack.c.b16 %v2913, %v2912
        %v2929 = vpack.c.b16 %v2915, %v2914
        %v2930 = vpack.c.b16 %v2917, %v2916
        %v2931 = vpack.c.b16 %v2919, %v2918
        %v2932 = vpack.c.b16 %v2921, %v2920
        %v2933 = vpack.c.b16 %v2923, %v2922
        %v2934 = vpack.c.b16 %v2925, %v2924
        %v2935 = vpack.c.b16 %v2927, %v2926
        %v2944 = vunpack.c.l.b16 %v2685
        %v2945 = vunpack.c.l.b16 %v2695
        %v2946 = vunpack.c.l.b16 %v2709
        %v2947 = vunpack.c.l.b16 %v2719
        %v2948 = vunpack.c.l.b16 %v2733
        %v2949 = vunpack.c.l.b16 %v2743
        %v2950 = vunpack.c.l.b16 %v2757
        %v2951 = vunpack.c.l.b16 %v2767
        %v2952 = vunpack.c.l.b16 %v2781
        %v2953 = vunpack.c.l.b16 %v2791
        %v2954 = vunpack.c.l.b16 %v2805
        %v2955 = vunpack.c.l.b16 %v2815
        %v2956 = vunpack.c.l.b16 %v2829
        %v2957 = vunpack.c.l.b16 %v2839
        %v2958 = vunpack.c.l.b16 %v2853
        %v2959 = vunpack.c.l.b16 %v2863
        %v2960 = vpack.c.b16 %v2945, %v2944
        %v2961 = vpack.c.b16 %v2947, %v2946
        %v2962 = vpack.c.b16 %v2949, %v2948
        %v2963 = vpack.c.b16 %v2951, %v2950
        %v2964 = vpack.c.b16 %v2953, %v2952
        %v2965 = vpack.c.b16 %v2955, %v2954
        %v2966 = vpack.c.b16 %v2957, %v2956
        %v2967 = vpack.c.b16 %v2959, %v2958
        %v2992 = vunpack.c.l.b16 %v2648
        %v2993 = vunpack.c.l.b16 %v2649
        %v2994 = vunpack.c.l.b16 %v2651
        %v2995 = vunpack.c.l.b16 %v2652
        %v2996 = vunpack.c.l.b16 %v2654
        %v2997 = vunpack.c.l.b16 %v2655
        %v2998 = vunpack.c.l.b16 %v2657
        %v2999 = vunpack.c.l.b16 %v2658
        %v3000 = vunpack.c.l.b16 %v2660
        %v3001 = vunpack.c.l.b16 %v2661
        %v3002 = vunpack.c.l.b16 %v2663
        %v3003 = vunpack.c.l.b16 %v2664
        %v3004 = vunpack.c.l.b16 %v2666
        %v3005 = vunpack.c.l.b16 %v2667
        %v3006 = vunpack.c.l.b16 %v2669
        %v3007 = vunpack.c.l.b16 %v2670
        %v3008 = vpack.c.b16 %v2993, %v2992
        %v3009 = vpack.c.b16 %v2995, %v2994
        %v3010 = vpack.c.b16 %v2997, %v2996
        %v3011 = vpack.c.b16 %v2999, %v2998
        %v3012 = vpack.c.b16 %v3001, %v3000
        %v3013 = vpack.c.b16 %v3003, %v3002
        %v3014 = vpack.c.b16 %v3005, %v3004
        %v3015 = vpack.c.b16 %v3007, %v3006
        %s3024 = scalar_lea.vmem %s1, 512
        %v3025 = vld [vmem:[%s3024] sm:$0xf]
        %v3026 = vld [vmem:[%s3024 + $0x4] sm:$0xf]
        %v3027 = vld [vmem:[%s3024 + $0x8] sm:$0xf]
        %v3028 = vld [vmem:[%s3024 + $0xc] sm:$0xf]
        %v3029 = vld [vmem:[%s3024 + $0x10] sm:$0xf]
        %v3030 = vld [vmem:[%s3024 + $0x14] sm:$0xf]
        %v3031 = vld [vmem:[%s3024 + $0x18] sm:$0xf]
        %v3032 = vld [vmem:[%s3024 + $0x1c] sm:$0xf]
        %v3033 = vld [vmem:[%s3024 + $0x20] sm:$0xf]
        %v3034 = vld [vmem:[%s3024 + $0x24] sm:$0xf]
        %v3035 = vld [vmem:[%s3024 + $0x28] sm:$0xf]
        %v3036 = vld [vmem:[%s3024 + $0x2c] sm:$0xf]
        %v3037 = vld [vmem:[%s3024 + $0x30] sm:$0xf]
        %v3038 = vld [vmem:[%s3024 + $0x34] sm:$0xf]
        %v3039 = vld [vmem:[%s3024 + $0x38] sm:$0xf]
        %v3040 = vld [vmem:[%s3024 + $0x3c] sm:$0xf]
        %v3041 = vld [vmem:[%s3024 + $0x40] sm:$0xf]
        %v3042 = vld [vmem:[%s3024 + $0x44] sm:$0xf]
        %v3043 = vld [vmem:[%s3024 + $0x48] sm:$0xf]
        %v3044 = vld [vmem:[%s3024 + $0x4c] sm:$0xf]
        %v3045 = vld [vmem:[%s3024 + $0x50] sm:$0xf]
        %v3046 = vld [vmem:[%s3024 + $0x54] sm:$0xf]
        %v3047 = vld [vmem:[%s3024 + $0x58] sm:$0xf]
        %v3048 = vld [vmem:[%s3024 + $0x5c] sm:$0xf]
        %v3049 = vld [vmem:[%s3024 + $0x60] sm:$0xf]
        %v3050 = vld [vmem:[%s3024 + $0x64] sm:$0xf]
        %v3051 = vld [vmem:[%s3024 + $0x68] sm:$0xf]
        %v3052 = vld [vmem:[%s3024 + $0x6c] sm:$0xf]
        %v3053 = vld [vmem:[%s3024 + $0x70] sm:$0xf]
        %v3054 = vld [vmem:[%s3024 + $0x74] sm:$0xf]
        %v3055 = vld [vmem:[%s3024 + $0x78] sm:$0xf]
        %v3056 = vld [vmem:[%s3024 + $0x7c] sm:$0xf]
        %v3057 = vld [vmem:[%s3024 + $0x80] sm:$0xf]
        %v3058 = vld [vmem:[%s3024 + $0x84] sm:$0xf]
        %v3059 = vld [vmem:[%s3024 + $0x88] sm:$0xf]
        %v3060 = vld [vmem:[%s3024 + $0x8c] sm:$0xf]
        %v3061 = vld [vmem:[%s3024 + $0x90] sm:$0xf]
        %v3062 = vld [vmem:[%s3024 + $0x94] sm:$0xf]
        %v3063 = vld [vmem:[%s3024 + $0x98] sm:$0xf]
        %v3064 = vld [vmem:[%s3024 + $0x9c] sm:$0xf]
        %v3065 = vld [vmem:[%s3024 + $0xa0] sm:$0xf]
        %v3066 = vld [vmem:[%s3024 + $0xa4] sm:$0xf]
        %v3067 = vld [vmem:[%s3024 + $0xa8] sm:$0xf]
        %v3068 = vld [vmem:[%s3024 + $0xac] sm:$0xf]
        %v3069 = vld [vmem:[%s3024 + $0xb0] sm:$0xf]
        %v3070 = vld [vmem:[%s3024 + $0xb4] sm:$0xf]
        %v3071 = vld [vmem:[%s3024 + $0xb8] sm:$0xf]
        %v3072 = vld [vmem:[%s3024 + $0xbc] sm:$0xf]
        %v3073 = vld [vmem:[%s3024 + $0xc0] sm:$0xf]
        %v3074 = vld [vmem:[%s3024 + $0xc4] sm:$0xf]
        %v3075 = vld [vmem:[%s3024 + $0xc8] sm:$0xf]
        %v3076 = vld [vmem:[%s3024 + $0xcc] sm:$0xf]
        %v3077 = vld [vmem:[%s3024 + $0xd0] sm:$0xf]
        %v3078 = vld [vmem:[%s3024 + $0xd4] sm:$0xf]
        %v3079 = vld [vmem:[%s3024 + $0xd8] sm:$0xf]
        %v3080 = vld [vmem:[%s3024 + $0xdc] sm:$0xf]
        %v3081 = vld [vmem:[%s3024 + $0xe0] sm:$0xf]
        %v3082 = vld [vmem:[%s3024 + $0xe4] sm:$0xf]
        %v3083 = vld [vmem:[%s3024 + $0xe8] sm:$0xf]
        %v3084 = vld [vmem:[%s3024 + $0xec] sm:$0xf]
        %v3085 = vld [vmem:[%s3024 + $0xf0] sm:$0xf]
        %v3086 = vld [vmem:[%s3024 + $0xf4] sm:$0xf]
        %v3087 = vld [vmem:[%s3024 + $0xf8] sm:$0xf]
        %v3088 = vld [vmem:[%s3024 + $0xfc] sm:$0xf]
        %v3153 = vunpack.c.l.b16 %v3025
        %v3154 = vunpack.c.l.b16 %v3026
        %v3155 = vunpack.c.l.b16 %v3027
        %v3156 = vunpack.c.l.b16 %v3028
        %v3157 = vunpack.c.l.b16 %v3029
        %v3158 = vunpack.c.l.b16 %v3030
        %v3159 = vunpack.c.l.b16 %v3031
        %v3160 = vunpack.c.l.b16 %v3032
        %v3161 = vunpack.c.l.b16 %v3033
        %v3162 = vunpack.c.l.b16 %v3034
        %v3163 = vunpack.c.l.b16 %v3035
        %v3164 = vunpack.c.l.b16 %v3036
        %v3165 = vunpack.c.l.b16 %v3037
        %v3166 = vunpack.c.l.b16 %v3038
        %v3167 = vunpack.c.l.b16 %v3039
        %v3168 = vunpack.c.l.b16 %v3040
        %v3169 = vunpack.c.l.b16 %v3041
        %v3170 = vunpack.c.l.b16 %v3042
        %v3171 = vunpack.c.l.b16 %v3043
        %v3172 = vunpack.c.l.b16 %v3044
        %v3173 = vunpack.c.l.b16 %v3045
        %v3174 = vunpack.c.l.b16 %v3046
        %v3175 = vunpack.c.l.b16 %v3047
        %v3176 = vunpack.c.l.b16 %v3048
        %v3177 = vunpack.c.l.b16 %v3049
        %v3178 = vunpack.c.l.b16 %v3050
        %v3179 = vunpack.c.l.b16 %v3051
        %v3180 = vunpack.c.l.b16 %v3052
        %v3181 = vunpack.c.l.b16 %v3053
        %v3182 = vunpack.c.l.b16 %v3054
        %v3183 = vunpack.c.l.b16 %v3055
        %v3184 = vunpack.c.l.b16 %v3056
        %v3185 = vunpack.c.l.b16 %v3057
        %v3186 = vunpack.c.l.b16 %v3058
        %v3187 = vunpack.c.l.b16 %v3059
        %v3188 = vunpack.c.l.b16 %v3060
        %v3189 = vunpack.c.l.b16 %v3061
        %v3190 = vunpack.c.l.b16 %v3062
        %v3191 = vunpack.c.l.b16 %v3063
        %v3192 = vunpack.c.l.b16 %v3064
        %v3193 = vunpack.c.l.b16 %v3065
        %v3194 = vunpack.c.l.b16 %v3066
        %v3195 = vunpack.c.l.b16 %v3067
        %v3196 = vunpack.c.l.b16 %v3068
        %v3197 = vunpack.c.l.b16 %v3069
        %v3198 = vunpack.c.l.b16 %v3070
        %v3199 = vunpack.c.l.b16 %v3071
        %v3200 = vunpack.c.l.b16 %v3072
        %v3201 = vunpack.c.l.b16 %v3073
        %v3202 = vunpack.c.l.b16 %v3074
        %v3203 = vunpack.c.l.b16 %v3075
        %v3204 = vunpack.c.l.b16 %v3076
        %v3205 = vunpack.c.l.b16 %v3077
        %v3206 = vunpack.c.l.b16 %v3078
        %v3207 = vunpack.c.l.b16 %v3079
        %v3208 = vunpack.c.l.b16 %v3080
        %v3209 = vunpack.c.l.b16 %v3081
        %v3210 = vunpack.c.l.b16 %v3082
        %v3211 = vunpack.c.l.b16 %v3083
        %v3212 = vunpack.c.l.b16 %v3084
        %v3213 = vunpack.c.l.b16 %v3085
        %v3214 = vunpack.c.l.b16 %v3086
        %v3215 = vunpack.c.l.b16 %v3087
        %v3216 = vunpack.c.l.b16 %v3088
        %v3217 = vpack.c.b16 %v3154, %v3153
        %v3218 = vpack.c.b16 %v3156, %v3155
        %v3219 = vpack.c.b16 %v3158, %v3157
        %v3220 = vpack.c.b16 %v3160, %v3159
        %v3221 = vpack.c.b16 %v3162, %v3161
        %v3222 = vpack.c.b16 %v3164, %v3163
        %v3223 = vpack.c.b16 %v3166, %v3165
        %v3224 = vpack.c.b16 %v3168, %v3167
        %v3225 = vpack.c.b16 %v3170, %v3169
        %v3226 = vpack.c.b16 %v3172, %v3171
        %v3227 = vpack.c.b16 %v3174, %v3173
        %v3228 = vpack.c.b16 %v3176, %v3175
        %v3229 = vpack.c.b16 %v3178, %v3177
        %v3230 = vpack.c.b16 %v3180, %v3179
        %v3231 = vpack.c.b16 %v3182, %v3181
        %v3232 = vpack.c.b16 %v3184, %v3183
        %v3233 = vpack.c.b16 %v3186, %v3185
        %v3234 = vpack.c.b16 %v3188, %v3187
        %v3235 = vpack.c.b16 %v3190, %v3189
        %v3236 = vpack.c.b16 %v3192, %v3191
        %v3237 = vpack.c.b16 %v3194, %v3193
        %v3238 = vpack.c.b16 %v3196, %v3195
        %v3239 = vpack.c.b16 %v3198, %v3197
        %v3240 = vpack.c.b16 %v3200, %v3199
        %v3241 = vpack.c.b16 %v3202, %v3201
        %v3242 = vpack.c.b16 %v3204, %v3203
        %v3243 = vpack.c.b16 %v3206, %v3205
        %v3244 = vpack.c.b16 %v3208, %v3207
        %v3245 = vpack.c.b16 %v3210, %v3209
        %v3246 = vpack.c.b16 %v3212, %v3211
        %v3247 = vpack.c.b16 %v3214, %v3213
        %v3248 = vpack.c.b16 %v3216, %v3215
        %3281 = vmatpush.bf16.msra.mxu0 %v3224
        %3282 = vmatpush.bf16.msra.mxu0 %v3223
        %3283 = vmatpush.bf16.msra.mxu0 %v3222
        %3284 = vmatpush.bf16.msra.mxu0 %v3221
        %3285 = vmatpush.bf16.msra.mxu0 %v3220
        %3286 = vmatpush.bf16.msra.mxu0 %v3219
        %3287 = vmatpush.bf16.msra.mxu0 %v3218
        %3288 = vmatpush.bf16.msra.mxu0 %v3217
        %3289 = vmatmul.bf16.gmra.mxu0 %v2880
        %v3290 = vpop.f32.mrf.mxu0
        %v3291 = vadd.f32 0.0, %v3290
        %v3292 = vpop.f32.mrf.mxu0
        %v3293 = vadd.f32 0.0, %v3292
        %3294 = vmatmul.bf16.gmra.mxu0 %v2881
        %v3295 = vpop.f32.mrf.mxu0
        %v3296 = vadd.f32 0.0, %v3295
        %v3297 = vpop.f32.mrf.mxu0
        %v3298 = vadd.f32 0.0, %v3297
        %3299 = vmatmul.bf16.gmra.mxu0 %v2882
        %v3300 = vpop.f32.mrf.mxu0
        %v3301 = vadd.f32 0.0, %v3300
        %v3302 = vpop.f32.mrf.mxu0
        %v3303 = vadd.f32 0.0, %v3302
        %3304 = vmatmul.bf16.gmra.mxu0 %v2883
        %v3305 = vpop.f32.mrf.mxu0
        %v3306 = vadd.f32 0.0, %v3305
        %v3307 = vpop.f32.mrf.mxu0
        %v3308 = vadd.f32 0.0, %v3307
        %3309 = vmatmul.bf16.gmra.mxu0 %v2884
        %v3310 = vpop.f32.mrf.mxu0
        %v3311 = vadd.f32 0.0, %v3310
        %v3312 = vpop.f32.mrf.mxu0
        %v3313 = vadd.f32 0.0, %v3312
        %3314 = vmatmul.bf16.gmra.mxu0 %v2885
        %v3315 = vpop.f32.mrf.mxu0
        %v3316 = vadd.f32 0.0, %v3315
        %v3317 = vpop.f32.mrf.mxu0
        %v3318 = vadd.f32 0.0, %v3317
        %3319 = vmatmul.bf16.gmra.mxu0 %v2886
        %v3320 = vpop.f32.mrf.mxu0
        %v3321 = vadd.f32 0.0, %v3320
        %v3322 = vpop.f32.mrf.mxu0
        %v3323 = vadd.f32 0.0, %v3322
        %3324 = vmatmul.bf16.gmra.mxu0 %v2887
        %v3325 = vpop.f32.mrf.mxu0
        %v3326 = vadd.f32 0.0, %v3325
        %v3327 = vpop.f32.mrf.mxu0
        %v3328 = vadd.f32 0.0, %v3327
        %3329 = vdwg.mxu0
        %3330 = vmatpush.bf16.msra.mxu0 %v3232
        %3331 = vmatpush.bf16.msra.mxu0 %v3231
        %3332 = vmatpush.bf16.msra.mxu0 %v3230
        %3333 = vmatpush.bf16.msra.mxu0 %v3229
        %3334 = vmatpush.bf16.msra.mxu0 %v3228
        %3335 = vmatpush.bf16.msra.mxu0 %v3227
        %3336 = vmatpush.bf16.msra.mxu0 %v3226
        %3337 = vmatpush.bf16.msra.mxu0 %v3225
        %3338 = vmatmul.bf16.gmra.mxu0 %v2928
        %v3339 = vpop.f32.mrf.mxu0
        %v3340 = vadd.f32 %v3291, %v3339
        %v3341 = vpop.f32.mrf.mxu0
        %v3342 = vadd.f32 %v3293, %v3341
        %3343 = vmatmul.bf16.gmra.mxu0 %v2929
        %v3344 = vpop.f32.mrf.mxu0
        %v3345 = vadd.f32 %v3296, %v3344
        %v3346 = vpop.f32.mrf.mxu0
        %v3347 = vadd.f32 %v3298, %v3346
        %3348 = vmatmul.bf16.gmra.mxu0 %v2930
        %v3349 = vpop.f32.mrf.mxu0
        %v3350 = vadd.f32 %v3301, %v3349
        %v3351 = vpop.f32.mrf.mxu0
        %v3352 = vadd.f32 %v3303, %v3351
        %3353 = vmatmul.bf16.gmra.mxu0 %v2931
        %v3354 = vpop.f32.mrf.mxu0
        %v3355 = vadd.f32 %v3306, %v3354
        %v3356 = vpop.f32.mrf.mxu0
        %v3357 = vadd.f32 %v3308, %v3356
        %3358 = vmatmul.bf16.gmra.mxu0 %v2932
        %v3359 = vpop.f32.mrf.mxu0
        %v3360 = vadd.f32 %v3311, %v3359
        %v3361 = vpop.f32.mrf.mxu0
        %v3362 = vadd.f32 %v3313, %v3361
        %3363 = vmatmul.bf16.gmra.mxu0 %v2933
        %v3364 = vpop.f32.mrf.mxu0
        %v3365 = vadd.f32 %v3316, %v3364
        %v3366 = vpop.f32.mrf.mxu0
        %v3367 = vadd.f32 %v3318, %v3366
        %3368 = vmatmul.bf16.gmra.mxu0 %v2934
        %v3369 = vpop.f32.mrf.mxu0
        %v3370 = vadd.f32 %v3321, %v3369
        %v3371 = vpop.f32.mrf.mxu0
        %v3372 = vadd.f32 %v3323, %v3371
        %3373 = vmatmul.bf16.gmra.mxu0 %v2935
        %v3374 = vpop.f32.mrf.mxu0
        %v3375 = vadd.f32 %v3326, %v3374
        %v3376 = vpop.f32.mrf.mxu0
        %v3377 = vadd.f32 %v3328, %v3376
        %3378 = vdwg.mxu0
        %3379 = vmatpush.bf16.msra.mxu0 %v3240
        %3380 = vmatpush.bf16.msra.mxu0 %v3239
        %3381 = vmatpush.bf16.msra.mxu0 %v3238
        %3382 = vmatpush.bf16.msra.mxu0 %v3237
        %3383 = vmatpush.bf16.msra.mxu0 %v3236
        %3384 = vmatpush.bf16.msra.mxu0 %v3235
        %3385 = vmatpush.bf16.msra.mxu0 %v3234
        %3386 = vmatpush.bf16.msra.mxu0 %v3233
        %3387 = vmatmul.bf16.gmra.mxu0 %v2960
        %v3388 = vpop.f32.mrf.mxu0
        %v3389 = vadd.f32 %v3340, %v3388
        %v3390 = vpop.f32.mrf.mxu0
        %v3391 = vadd.f32 %v3342, %v3390
        %3392 = vmatmul.bf16.gmra.mxu0 %v2961
        %v3393 = vpop.f32.mrf.mxu0
        %v3394 = vadd.f32 %v3345, %v3393
        %v3395 = vpop.f32.mrf.mxu0
        %v3396 = vadd.f32 %v3347, %v3395
        %3397 = vmatmul.bf16.gmra.mxu0 %v2962
        %v3398 = vpop.f32.mrf.mxu0
        %v3399 = vadd.f32 %v3350, %v3398
        %v3400 = vpop.f32.mrf.mxu0
        %v3401 = vadd.f32 %v3352, %v3400
        %3402 = vmatmul.bf16.gmra.mxu0 %v2963
        %v3403 = vpop.f32.mrf.mxu0
        %v3404 = vadd.f32 %v3355, %v3403
        %v3405 = vpop.f32.mrf.mxu0
        %v3406 = vadd.f32 %v3357, %v3405
        %3407 = vmatmul.bf16.gmra.mxu0 %v2964
        %v3408 = vpop.f32.mrf.mxu0
        %v3409 = vadd.f32 %v3360, %v3408
        %v3410 = vpop.f32.mrf.mxu0
        %v3411 = vadd.f32 %v3362, %v3410
        %3412 = vmatmul.bf16.gmra.mxu0 %v2965
        %v3413 = vpop.f32.mrf.mxu0
        %v3414 = vadd.f32 %v3365, %v3413
        %v3415 = vpop.f32.mrf.mxu0
        %v3416 = vadd.f32 %v3367, %v3415
        %3417 = vmatmul.bf16.gmra.mxu0 %v2966
        %v3418 = vpop.f32.mrf.mxu0
        %v3419 = vadd.f32 %v3370, %v3418
        %v3420 = vpop.f32.mrf.mxu0
        %v3421 = vadd.f32 %v3372, %v3420
        %3422 = vmatmul.bf16.gmra.mxu0 %v2967
        %v3423 = vpop.f32.mrf.mxu0
        %v3424 = vadd.f32 %v3375, %v3423
        %v3425 = vpop.f32.mrf.mxu0
        %v3426 = vadd.f32 %v3377, %v3425
        %3427 = vdwg.mxu0
        %3428 = vmatpush.bf16.msra.mxu0 %v3248
        %3429 = vmatpush.bf16.msra.mxu0 %v3247
        %3430 = vmatpush.bf16.msra.mxu0 %v3246
        %3431 = vmatpush.bf16.msra.mxu0 %v3245
        %3432 = vmatpush.bf16.msra.mxu0 %v3244
        %3433 = vmatpush.bf16.msra.mxu0 %v3243
        %3434 = vmatpush.bf16.msra.mxu0 %v3242
        %3435 = vmatpush.bf16.msra.mxu0 %v3241
        %3436 = vmatmul.bf16.gmra.mxu0 %v3008
        %v3437 = vpop.f32.mrf.mxu0
        %v3438 = vadd.f32 %v3389, %v3437
        %v3439 = vpop.f32.mrf.mxu0
        %v3440 = vadd.f32 %v3391, %v3439
        %3441 = vmatmul.bf16.gmra.mxu0 %v3009
        %v3442 = vpop.f32.mrf.mxu0
        %v3443 = vadd.f32 %v3394, %v3442
        %v3444 = vpop.f32.mrf.mxu0
        %v3445 = vadd.f32 %v3396, %v3444
        %3446 = vmatmul.bf16.gmra.mxu0 %v3010
        %v3447 = vpop.f32.mrf.mxu0
        %v3448 = vadd.f32 %v3399, %v3447
        %v3449 = vpop.f32.mrf.mxu0
        %v3450 = vadd.f32 %v3401, %v3449
        %3451 = vmatmul.bf16.gmra.mxu0 %v3011
        %v3452 = vpop.f32.mrf.mxu0
        %v3453 = vadd.f32 %v3404, %v3452
        %v3454 = vpop.f32.mrf.mxu0
        %v3455 = vadd.f32 %v3406, %v3454
        %3456 = vmatmul.bf16.gmra.mxu0 %v3012
        %v3457 = vpop.f32.mrf.mxu0
        %v3458 = vadd.f32 %v3409, %v3457
        %v3459 = vpop.f32.mrf.mxu0
        %v3460 = vadd.f32 %v3411, %v3459
        %3461 = vmatmul.bf16.gmra.mxu0 %v3013
        %v3462 = vpop.f32.mrf.mxu0
        %v3463 = vadd.f32 %v3414, %v3462
        %v3464 = vpop.f32.mrf.mxu0
        %v3465 = vadd.f32 %v3416, %v3464
        %3466 = vmatmul.bf16.gmra.mxu0 %v3014
        %v3467 = vpop.f32.mrf.mxu0
        %v3468 = vadd.f32 %v3419, %v3467
        %v3469 = vpop.f32.mrf.mxu0
        %v3470 = vadd.f32 %v3421, %v3469
        %3471 = vmatmul.bf16.gmra.mxu0 %v3015
        %v3472 = vpop.f32.mrf.mxu0
        %v3473 = vadd.f32 %v3424, %v3472
        %v3474 = vpop.f32.mrf.mxu0
        %v3475 = vadd.f32 %v3426, %v3474
        %3476 = vdwg.mxu0
        %v3477 = vadd.f32 %v3438, %v3440
        %v3478 = vadd.f32 %v3477, %v3443
        %v3479 = vadd.f32 %v3478, %v3445
        %v3480 = vadd.f32 %v3479, %v3448
        %v3481 = vadd.f32 %v3480, %v3450
        %v3482 = vadd.f32 %v3481, %v3453
        %v3483 = vadd.f32 %v3482, %v3455
        %v3484 = vadd.f32 %v3483, %v3458
        %v3485 = vadd.f32 %v3484, %v3460
        %v3486 = vadd.f32 %v3485, %v3463
        %v3487 = vadd.f32 %v3486, %v3465
        %v3488 = vadd.f32 %v3487, %v3468
        %v3489 = vadd.f32 %v3488, %v3470
        %v3490 = vadd.f32 %v3489, %v3473
        %v3491 = vadd.f32 %v3490, %v3475
        %v3492 = vrot.slane %v3491, 4
        %v3493 = vadd.f32 %v3491, %v3492
        %v3494 = vrot.slane %v3493, 2
        %v3495 = vadd.f32 %v3493, %v3494
        %v3496 = vrot.slane %v3495, 1
        %v3497 = vadd.f32 %v3495, %v3496
        %v3498 = vadd.f32 %v2360, %v3497
        %v3499 = vmul.f32 %v3438, %v3438
        %v3500 = vmul.f32 %v3440, %v3440
        %v3501 = vmul.f32 %v3443, %v3443
        %v3502 = vmul.f32 %v3445, %v3445
        %v3503 = vmul.f32 %v3448, %v3448
        %v3504 = vmul.f32 %v3450, %v3450
        %v3505 = vmul.f32 %v3453, %v3453
        %v3506 = vmul.f32 %v3455, %v3455
        %v3507 = vmul.f32 %v3458, %v3458
        %v3508 = vmul.f32 %v3460, %v3460
        %v3509 = vmul.f32 %v3463, %v3463
        %v3510 = vmul.f32 %v3465, %v3465
        %v3511 = vmul.f32 %v3468, %v3468
        %v3512 = vmul.f32 %v3470, %v3470
        %v3513 = vmul.f32 %v3473, %v3473
        %v3514 = vmul.f32 %v3475, %v3475
        %v3515 = vadd.f32 %v3499, %v3500
        %v3516 = vadd.f32 %v3515, %v3501
        %v3517 = vadd.f32 %v3516, %v3502
        %v3518 = vadd.f32 %v3517, %v3503
        %v3519 = vadd.f32 %v3518, %v3504
        %v3520 = vadd.f32 %v3519, %v3505
        %v3521 = vadd.f32 %v3520, %v3506
        %v3522 = vadd.f32 %v3521, %v3507
        %v3523 = vadd.f32 %v3522, %v3508
        %v3524 = vadd.f32 %v3523, %v3509
        %v3525 = vadd.f32 %v3524, %v3510
        %v3526 = vadd.f32 %v3525, %v3511
        %v3527 = vadd.f32 %v3526, %v3512
        %v3528 = vadd.f32 %v3527, %v3513
        %v3529 = vadd.f32 %v3528, %v3514
        %v3530 = vrot.slane %v3529, 4
        %v3531 = vadd.f32 %v3529, %v3530
        %v3532 = vrot.slane %v3531, 2
        %v3533 = vadd.f32 %v3531, %v3532
        %v3534 = vrot.slane %v3533, 1
        %v3535 = vadd.f32 %v3533, %v3534
        %v3536 = vadd.f32 %v2398, %v3535
        %v3537 = vld [vmem:[%s2431] sm:$0xe]
        %v3538 = vld [vmem:[%s2431 + $0xc] sm:$0xe]
        %v3539 = vld [vmem:[%s2431 + $0x18] sm:$0xe]
        %v3540 = vld [vmem:[%s2431 + $0x24] sm:$0xe]
        %v3541 = vld [vmem:[%s2431 + $0x30] sm:$0xe]
        %v3542 = vld [vmem:[%s2431 + $0x3c] sm:$0xe]
        %v3543 = vld [vmem:[%s2431 + $0x48] sm:$0xe]
        %v3544 = vld [vmem:[%s2431 + $0x54] sm:$0xe]
        %v3561 = vrot.slane %v3537, 5
        %v3562 = vrot.slane %v3561, 4
        %v3563 = vrot.slane %v2433, 5
        %v3564 = vsel %vm1685, %v3562, %v3563
        %v3565 = vrot.slane %v3563, 4
        %v3566 = vrot.slane %v2434, 5
        %v3567 = vsel %vm1685, %v3565, %v3566
        %v3568 = vrot.slane %v3538, 5
        %v3569 = vrot.slane %v3568, 4
        %v3570 = vrot.slane %v2436, 5
        %v3571 = vsel %vm1685, %v3569, %v3570
        %v3572 = vrot.slane %v3570, 4
        %v3573 = vrot.slane %v2437, 5
        %v3574 = vsel %vm1685, %v3572, %v3573
        %v3575 = vrot.slane %v3539, 5
        %v3576 = vrot.slane %v3575, 4
        %v3577 = vrot.slane %v2439, 5
        %v3578 = vsel %vm1685, %v3576, %v3577
        %v3579 = vrot.slane %v3577, 4
        %v3580 = vrot.slane %v2440, 5
        %v3581 = vsel %vm1685, %v3579, %v3580
        %v3582 = vrot.slane %v3540, 5
        %v3583 = vrot.slane %v3582, 4
        %v3584 = vrot.slane %v2442, 5
        %v3585 = vsel %vm1685, %v3583, %v3584
        %v3586 = vrot.slane %v3584, 4
        %v3587 = vrot.slane %v2443, 5
        %v3588 = vsel %vm1685, %v3586, %v3587
        %v3589 = vrot.slane %v3541, 5
        %v3590 = vrot.slane %v3589, 4
        %v3591 = vrot.slane %v2445, 5
        %v3592 = vsel %vm1685, %v3590, %v3591
        %v3593 = vrot.slane %v3591, 4
        %v3594 = vrot.slane %v2446, 5
        %v3595 = vsel %vm1685, %v3593, %v3594
        %v3596 = vrot.slane %v3542, 5
        %v3597 = vrot.slane %v3596, 4
        %v3598 = vrot.slane %v2448, 5
        %v3599 = vsel %vm1685, %v3597, %v3598
        %v3600 = vrot.slane %v3598, 4
        %v3601 = vrot.slane %v2449, 5
        %v3602 = vsel %vm1685, %v3600, %v3601
        %v3603 = vrot.slane %v3543, 5
        %v3604 = vrot.slane %v3603, 4
        %v3605 = vrot.slane %v2451, 5
        %v3606 = vsel %vm1685, %v3604, %v3605
        %v3607 = vrot.slane %v3605, 4
        %v3608 = vrot.slane %v2452, 5
        %v3609 = vsel %vm1685, %v3607, %v3608
        %v3610 = vrot.slane %v3544, 5
        %v3611 = vrot.slane %v3610, 4
        %v3612 = vrot.slane %v2454, 5
        %v3613 = vsel %vm1685, %v3611, %v3612
        %v3614 = vrot.slane %v3612, 4
        %v3615 = vrot.slane %v2455, 5
        %v3616 = vsel %vm1685, %v3614, %v3615
        %v3617 = vld [vmem:[%s551] sm:$0xe]
        %v3618 = vld [vmem:[%s551 + $0xc] sm:$0xe]
        %v3619 = vld [vmem:[%s551 + $0x18] sm:$0xe]
        %v3620 = vld [vmem:[%s551 + $0x24] sm:$0xe]
        %v3621 = vld [vmem:[%s551 + $0x30] sm:$0xe]
        %v3622 = vld [vmem:[%s551 + $0x3c] sm:$0xe]
        %v3623 = vld [vmem:[%s551 + $0x48] sm:$0xe]
        %v3624 = vld [vmem:[%s551 + $0x54] sm:$0xe]
        %v3641 = vrot.slane %v3617, 5
        %v3642 = vrot.slane %v3641, 4
        %v3643 = vrot.slane %v2649, 5
        %v3644 = vsel %vm1685, %v3642, %v3643
        %v3645 = vrot.slane %v3643, 4
        %v3646 = vrot.slane %v2650, 5
        %v3647 = vsel %vm1685, %v3645, %v3646
        %v3648 = vrot.slane %v3618, 5
        %v3649 = vrot.slane %v3648, 4
        %v3650 = vrot.slane %v2652, 5
        %v3651 = vsel %vm1685, %v3649, %v3650
        %v3652 = vrot.slane %v3650, 4
        %v3653 = vrot.slane %v2653, 5
        %v3654 = vsel %vm1685, %v3652, %v3653
        %v3655 = vrot.slane %v3619, 5
        %v3656 = vrot.slane %v3655, 4
        %v3657 = vrot.slane %v2655, 5
        %v3658 = vsel %vm1685, %v3656, %v3657
        %v3659 = vrot.slane %v3657, 4
        %v3660 = vrot.slane %v2656, 5
        %v3661 = vsel %vm1685, %v3659, %v3660
        %v3662 = vrot.slane %v3620, 5
        %v3663 = vrot.slane %v3662, 4
        %v3664 = vrot.slane %v2658, 5
        %v3665 = vsel %vm1685, %v3663, %v3664
        %v3666 = vrot.slane %v3664, 4
        %v3667 = vrot.slane %v2659, 5
        %v3668 = vsel %vm1685, %v3666, %v3667
        %v3669 = vrot.slane %v3621, 5
        %v3670 = vrot.slane %v3669, 4
        %v3671 = vrot.slane %v2661, 5
        %v3672 = vsel %vm1685, %v3670, %v3671
        %v3673 = vrot.slane %v3671, 4
        %v3674 = vrot.slane %v2662, 5
        %v3675 = vsel %vm1685, %v3673, %v3674
        %v3676 = vrot.slane %v3622, 5
        %v3677 = vrot.slane %v3676, 4
        %v3678 = vrot.slane %v2664, 5
        %v3679 = vsel %vm1685, %v3677, %v3678
        %v3680 = vrot.slane %v3678, 4
        %v3681 = vrot.slane %v2665, 5
        %v3682 = vsel %vm1685, %v3680, %v3681
        %v3683 = vrot.slane %v3623, 5
        %v3684 = vrot.slane %v3683, 4
        %v3685 = vrot.slane %v2667, 5
        %v3686 = vsel %vm1685, %v3684, %v3685
        %v3687 = vrot.slane %v3685, 4
        %v3688 = vrot.slane %v2668, 5
        %v3689 = vsel %vm1685, %v3687, %v3688
        %v3690 = vrot.slane %v3624, 5
        %v3691 = vrot.slane %v3690, 4
        %v3692 = vrot.slane %v2670, 5
        %v3693 = vsel %vm1685, %v3691, %v3692
        %v3694 = vrot.slane %v3692, 4
        %v3695 = vrot.slane %v2671, 5
        %v3696 = vsel %vm1685, %v3694, %v3695
        %v3697 = vunpack.c.l.b16 %v3564
        %v3698 = vunpack.c.l.b16 %v3567
        %v3699 = vunpack.c.l.b16 %v3571
        %v3700 = vunpack.c.l.b16 %v3574
        %v3701 = vunpack.c.l.b16 %v3578
        %v3702 = vunpack.c.l.b16 %v3581
        %v3703 = vunpack.c.l.b16 %v3585
        %v3704 = vunpack.c.l.b16 %v3588
        %v3705 = vunpack.c.l.b16 %v3592
        %v3706 = vunpack.c.l.b16 %v3595
        %v3707 = vunpack.c.l.b16 %v3599
        %v3708 = vunpack.c.l.b16 %v3602
        %v3709 = vunpack.c.l.b16 %v3606
        %v3710 = vunpack.c.l.b16 %v3609
        %v3711 = vunpack.c.l.b16 %v3613
        %v3712 = vunpack.c.l.b16 %v3616
        %v3713 = vpack.c.b16 %v3698, %v3697
        %v3714 = vpack.c.b16 %v3700, %v3699
        %v3715 = vpack.c.b16 %v3702, %v3701
        %v3716 = vpack.c.b16 %v3704, %v3703
        %v3717 = vpack.c.b16 %v3706, %v3705
        %v3718 = vpack.c.b16 %v3708, %v3707
        %v3719 = vpack.c.b16 %v3710, %v3709
        %v3720 = vpack.c.b16 %v3712, %v3711
        %v3729 = vunpack.c.l.b16 %v3644
        %v3730 = vunpack.c.l.b16 %v3647
        %v3731 = vunpack.c.l.b16 %v3651
        %v3732 = vunpack.c.l.b16 %v3654
        %v3733 = vunpack.c.l.b16 %v3658
        %v3734 = vunpack.c.l.b16 %v3661
        %v3735 = vunpack.c.l.b16 %v3665
        %v3736 = vunpack.c.l.b16 %v3668
        %v3737 = vunpack.c.l.b16 %v3672
        %v3738 = vunpack.c.l.b16 %v3675
        %v3739 = vunpack.c.l.b16 %v3679
        %v3740 = vunpack.c.l.b16 %v3682
        %v3741 = vunpack.c.l.b16 %v3686
        %v3742 = vunpack.c.l.b16 %v3689
        %v3743 = vunpack.c.l.b16 %v3693
        %v3744 = vunpack.c.l.b16 %v3696
        %v3745 = vpack.c.b16 %v3730, %v3729
        %v3746 = vpack.c.b16 %v3732, %v3731
        %v3747 = vpack.c.b16 %v3734, %v3733
        %v3748 = vpack.c.b16 %v3736, %v3735
        %v3749 = vpack.c.b16 %v3738, %v3737
        %v3750 = vpack.c.b16 %v3740, %v3739
        %v3751 = vpack.c.b16 %v3742, %v3741
        %v3752 = vpack.c.b16 %v3744, %v3743
        %s3761 = scalar_lea.vmem %s1, 768
        %v3762 = vld [vmem:[%s3761] sm:$0xf]
        %v3763 = vld [vmem:[%s3761 + $0x4] sm:$0xf]
        %v3764 = vld [vmem:[%s3761 + $0x8] sm:$0xf]
        %v3765 = vld [vmem:[%s3761 + $0xc] sm:$0xf]
        %v3766 = vld [vmem:[%s3761 + $0x10] sm:$0xf]
        %v3767 = vld [vmem:[%s3761 + $0x14] sm:$0xf]
        %v3768 = vld [vmem:[%s3761 + $0x18] sm:$0xf]
        %v3769 = vld [vmem:[%s3761 + $0x1c] sm:$0xf]
        %v3770 = vld [vmem:[%s3761 + $0x20] sm:$0xf]
        %v3771 = vld [vmem:[%s3761 + $0x24] sm:$0xf]
        %v3772 = vld [vmem:[%s3761 + $0x28] sm:$0xf]
        %v3773 = vld [vmem:[%s3761 + $0x2c] sm:$0xf]
        %v3774 = vld [vmem:[%s3761 + $0x30] sm:$0xf]
        %v3775 = vld [vmem:[%s3761 + $0x34] sm:$0xf]
        %v3776 = vld [vmem:[%s3761 + $0x38] sm:$0xf]
        %v3777 = vld [vmem:[%s3761 + $0x3c] sm:$0xf]
        %v3778 = vld [vmem:[%s3761 + $0x40] sm:$0xf]
        %v3779 = vld [vmem:[%s3761 + $0x44] sm:$0xf]
        %v3780 = vld [vmem:[%s3761 + $0x48] sm:$0xf]
        %v3781 = vld [vmem:[%s3761 + $0x4c] sm:$0xf]
        %v3782 = vld [vmem:[%s3761 + $0x50] sm:$0xf]
        %v3783 = vld [vmem:[%s3761 + $0x54] sm:$0xf]
        %v3784 = vld [vmem:[%s3761 + $0x58] sm:$0xf]
        %v3785 = vld [vmem:[%s3761 + $0x5c] sm:$0xf]
        %v3786 = vld [vmem:[%s3761 + $0x60] sm:$0xf]
        %v3787 = vld [vmem:[%s3761 + $0x64] sm:$0xf]
        %v3788 = vld [vmem:[%s3761 + $0x68] sm:$0xf]
        %v3789 = vld [vmem:[%s3761 + $0x6c] sm:$0xf]
        %v3790 = vld [vmem:[%s3761 + $0x70] sm:$0xf]
        %v3791 = vld [vmem:[%s3761 + $0x74] sm:$0xf]
        %v3792 = vld [vmem:[%s3761 + $0x78] sm:$0xf]
        %v3793 = vld [vmem:[%s3761 + $0x7c] sm:$0xf]
        %v3794 = vld [vmem:[%s3761 + $0x80] sm:$0xf]
        %v3795 = vld [vmem:[%s3761 + $0x84] sm:$0xf]
        %v3796 = vld [vmem:[%s3761 + $0x88] sm:$0xf]
        %v3797 = vld [vmem:[%s3761 + $0x8c] sm:$0xf]
        %v3798 = vld [vmem:[%s3761 + $0x90] sm:$0xf]
        %v3799 = vld [vmem:[%s3761 + $0x94] sm:$0xf]
        %v3800 = vld [vmem:[%s3761 + $0x98] sm:$0xf]
        %v3801 = vld [vmem:[%s3761 + $0x9c] sm:$0xf]
        %v3802 = vld [vmem:[%s3761 + $0xa0] sm:$0xf]
        %v3803 = vld [vmem:[%s3761 + $0xa4] sm:$0xf]
        %v3804 = vld [vmem:[%s3761 + $0xa8] sm:$0xf]
        %v3805 = vld [vmem:[%s3761 + $0xac] sm:$0xf]
        %v3806 = vld [vmem:[%s3761 + $0xb0] sm:$0xf]
        %v3807 = vld [vmem:[%s3761 + $0xb4] sm:$0xf]
        %v3808 = vld [vmem:[%s3761 + $0xb8] sm:$0xf]
        %v3809 = vld [vmem:[%s3761 + $0xbc] sm:$0xf]
        %v3810 = vld [vmem:[%s3761 + $0xc0] sm:$0xf]
        %v3811 = vld [vmem:[%s3761 + $0xc4] sm:$0xf]
        %v3812 = vld [vmem:[%s3761 + $0xc8] sm:$0xf]
        %v3813 = vld [vmem:[%s3761 + $0xcc] sm:$0xf]
        %v3814 = vld [vmem:[%s3761 + $0xd0] sm:$0xf]
        %v3815 = vld [vmem:[%s3761 + $0xd4] sm:$0xf]
        %v3816 = vld [vmem:[%s3761 + $0xd8] sm:$0xf]
        %v3817 = vld [vmem:[%s3761 + $0xdc] sm:$0xf]
        %v3818 = vld [vmem:[%s3761 + $0xe0] sm:$0xf]
        %v3819 = vld [vmem:[%s3761 + $0xe4] sm:$0xf]
        %v3820 = vld [vmem:[%s3761 + $0xe8] sm:$0xf]
        %v3821 = vld [vmem:[%s3761 + $0xec] sm:$0xf]
        %v3822 = vld [vmem:[%s3761 + $0xf0] sm:$0xf]
        %v3823 = vld [vmem:[%s3761 + $0xf4] sm:$0xf]
        %v3824 = vld [vmem:[%s3761 + $0xf8] sm:$0xf]
        %v3825 = vld [vmem:[%s3761 + $0xfc] sm:$0xf]
        %v3890 = vunpack.c.l.b16 %v3762
        %v3891 = vunpack.c.l.b16 %v3763
        %v3892 = vunpack.c.l.b16 %v3764
        %v3893 = vunpack.c.l.b16 %v3765
        %v3894 = vunpack.c.l.b16 %v3766
        %v3895 = vunpack.c.l.b16 %v3767
        %v3896 = vunpack.c.l.b16 %v3768
        %v3897 = vunpack.c.l.b16 %v3769
        %v3898 = vunpack.c.l.b16 %v3770
        %v3899 = vunpack.c.l.b16 %v3771
        %v3900 = vunpack.c.l.b16 %v3772
        %v3901 = vunpack.c.l.b16 %v3773
        %v3902 = vunpack.c.l.b16 %v3774
        %v3903 = vunpack.c.l.b16 %v3775
        %v3904 = vunpack.c.l.b16 %v3776
        %v3905 = vunpack.c.l.b16 %v3777
        %v3906 = vunpack.c.l.b16 %v3778
        %v3907 = vunpack.c.l.b16 %v3779
        %v3908 = vunpack.c.l.b16 %v3780
        %v3909 = vunpack.c.l.b16 %v3781
        %v3910 = vunpack.c.l.b16 %v3782
        %v3911 = vunpack.c.l.b16 %v3783
        %v3912 = vunpack.c.l.b16 %v3784
        %v3913 = vunpack.c.l.b16 %v3785
        %v3914 = vunpack.c.l.b16 %v3786
        %v3915 = vunpack.c.l.b16 %v3787
        %v3916 = vunpack.c.l.b16 %v3788
        %v3917 = vunpack.c.l.b16 %v3789
        %v3918 = vunpack.c.l.b16 %v3790
        %v3919 = vunpack.c.l.b16 %v3791
        %v3920 = vunpack.c.l.b16 %v3792
        %v3921 = vunpack.c.l.b16 %v3793
        %v3922 = vunpack.c.l.b16 %v3794
        %v3923 = vunpack.c.l.b16 %v3795
        %v3924 = vunpack.c.l.b16 %v3796
        %v3925 = vunpack.c.l.b16 %v3797
        %v3926 = vunpack.c.l.b16 %v3798
        %v3927 = vunpack.c.l.b16 %v3799
        %v3928 = vunpack.c.l.b16 %v3800
        %v3929 = vunpack.c.l.b16 %v3801
        %v3930 = vunpack.c.l.b16 %v3802
        %v3931 = vunpack.c.l.b16 %v3803
        %v3932 = vunpack.c.l.b16 %v3804
        %v3933 = vunpack.c.l.b16 %v3805
        %v3934 = vunpack.c.l.b16 %v3806
        %v3935 = vunpack.c.l.b16 %v3807
        %v3936 = vunpack.c.l.b16 %v3808
        %v3937 = vunpack.c.l.b16 %v3809
        %v3938 = vunpack.c.l.b16 %v3810
        %v3939 = vunpack.c.l.b16 %v3811
        %v3940 = vunpack.c.l.b16 %v3812
        %v3941 = vunpack.c.l.b16 %v3813
        %v3942 = vunpack.c.l.b16 %v3814
        %v3943 = vunpack.c.l.b16 %v3815
        %v3944 = vunpack.c.l.b16 %v3816
        %v3945 = vunpack.c.l.b16 %v3817
        %v3946 = vunpack.c.l.b16 %v3818
        %v3947 = vunpack.c.l.b16 %v3819
        %v3948 = vunpack.c.l.b16 %v3820
        %v3949 = vunpack.c.l.b16 %v3821
        %v3950 = vunpack.c.l.b16 %v3822
        %v3951 = vunpack.c.l.b16 %v3823
        %v3952 = vunpack.c.l.b16 %v3824
        %v3953 = vunpack.c.l.b16 %v3825
        %v3954 = vpack.c.b16 %v3891, %v3890
        %v3955 = vpack.c.b16 %v3893, %v3892
        %v3956 = vpack.c.b16 %v3895, %v3894
        %v3957 = vpack.c.b16 %v3897, %v3896
        %v3958 = vpack.c.b16 %v3899, %v3898
        %v3959 = vpack.c.b16 %v3901, %v3900
        %v3960 = vpack.c.b16 %v3903, %v3902
        %v3961 = vpack.c.b16 %v3905, %v3904
        %v3962 = vpack.c.b16 %v3907, %v3906
        %v3963 = vpack.c.b16 %v3909, %v3908
        %v3964 = vpack.c.b16 %v3911, %v3910
        %v3965 = vpack.c.b16 %v3913, %v3912
        %v3966 = vpack.c.b16 %v3915, %v3914
        %v3967 = vpack.c.b16 %v3917, %v3916
        %v3968 = vpack.c.b16 %v3919, %v3918
        %v3969 = vpack.c.b16 %v3921, %v3920
        %v3970 = vpack.c.b16 %v3923, %v3922
        %v3971 = vpack.c.b16 %v3925, %v3924
        %v3972 = vpack.c.b16 %v3927, %v3926
        %v3973 = vpack.c.b16 %v3929, %v3928
        %v3974 = vpack.c.b16 %v3931, %v3930
        %v3975 = vpack.c.b16 %v3933, %v3932
        %v3976 = vpack.c.b16 %v3935, %v3934
        %v3977 = vpack.c.b16 %v3937, %v3936
        %v3978 = vpack.c.b16 %v3939, %v3938
        %v3979 = vpack.c.b16 %v3941, %v3940
        %v3980 = vpack.c.b16 %v3943, %v3942
        %v3981 = vpack.c.b16 %v3945, %v3944
        %v3982 = vpack.c.b16 %v3947, %v3946
        %v3983 = vpack.c.b16 %v3949, %v3948
        %v3984 = vpack.c.b16 %v3951, %v3950
        %v3985 = vpack.c.b16 %v3953, %v3952
        %4018 = vmatpush.bf16.msra.mxu0 %v3961
        %4019 = vmatpush.bf16.msra.mxu0 %v3960
        %4020 = vmatpush.bf16.msra.mxu0 %v3959
        %4021 = vmatpush.bf16.msra.mxu0 %v3958
        %4022 = vmatpush.bf16.msra.mxu0 %v3957
        %4023 = vmatpush.bf16.msra.mxu0 %v3956
        %4024 = vmatpush.bf16.msra.mxu0 %v3955
        %4025 = vmatpush.bf16.msra.mxu0 %v3954
        %4026 = vmatmul.bf16.gmra.mxu0 %v3713
        %v4027 = vpop.f32.mrf.mxu0
        %v4028 = vadd.f32 0.0, %v4027
        %v4029 = vpop.f32.mrf.mxu0
        %v4030 = vadd.f32 0.0, %v4029
        %4031 = vmatmul.bf16.gmra.mxu0 %v3714
        %v4032 = vpop.f32.mrf.mxu0
        %v4033 = vadd.f32 0.0, %v4032
        %v4034 = vpop.f32.mrf.mxu0
        %v4035 = vadd.f32 0.0, %v4034
        %4036 = vmatmul.bf16.gmra.mxu0 %v3715
        %v4037 = vpop.f32.mrf.mxu0
        %v4038 = vadd.f32 0.0, %v4037
        %v4039 = vpop.f32.mrf.mxu0
        %v4040 = vadd.f32 0.0, %v4039
        %4041 = vmatmul.bf16.gmra.mxu0 %v3716
        %v4042 = vpop.f32.mrf.mxu0
        %v4043 = vadd.f32 0.0, %v4042
        %v4044 = vpop.f32.mrf.mxu0
        %v4045 = vadd.f32 0.0, %v4044
        %4046 = vmatmul.bf16.gmra.mxu0 %v3717
        %v4047 = vpop.f32.mrf.mxu0
        %v4048 = vadd.f32 0.0, %v4047
        %v4049 = vpop.f32.mrf.mxu0
        %v4050 = vadd.f32 0.0, %v4049
        %4051 = vmatmul.bf16.gmra.mxu0 %v3718
        %v4052 = vpop.f32.mrf.mxu0
        %v4053 = vadd.f32 0.0, %v4052
        %v4054 = vpop.f32.mrf.mxu0
        %v4055 = vadd.f32 0.0, %v4054
        %4056 = vmatmul.bf16.gmra.mxu0 %v3719
        %v4057 = vpop.f32.mrf.mxu0
        %v4058 = vadd.f32 0.0, %v4057
        %v4059 = vpop.f32.mrf.mxu0
        %v4060 = vadd.f32 0.0, %v4059
        %4061 = vmatmul.bf16.gmra.mxu0 %v3720
        %v4062 = vpop.f32.mrf.mxu0
        %v4063 = vadd.f32 0.0, %v4062
        %v4064 = vpop.f32.mrf.mxu0
        %v4065 = vadd.f32 0.0, %v4064
        %4066 = vdwg.mxu0
        %4067 = vmatpush.bf16.msra.mxu0 %v3969
        %4068 = vmatpush.bf16.msra.mxu0 %v3968
        %4069 = vmatpush.bf16.msra.mxu0 %v3967
        %4070 = vmatpush.bf16.msra.mxu0 %v3966
        %4071 = vmatpush.bf16.msra.mxu0 %v3965
        %4072 = vmatpush.bf16.msra.mxu0 %v3964
        %4073 = vmatpush.bf16.msra.mxu0 %v3963
        %4074 = vmatpush.bf16.msra.mxu0 %v3962
        %4075 = vmatmul.bf16.gmra.mxu0 %v2880
        %v4076 = vpop.f32.mrf.mxu0
        %v4077 = vadd.f32 %v4028, %v4076
        %v4078 = vpop.f32.mrf.mxu0
        %v4079 = vadd.f32 %v4030, %v4078
        %4080 = vmatmul.bf16.gmra.mxu0 %v2881
        %v4081 = vpop.f32.mrf.mxu0
        %v4082 = vadd.f32 %v4033, %v4081
        %v4083 = vpop.f32.mrf.mxu0
        %v4084 = vadd.f32 %v4035, %v4083
        %4085 = vmatmul.bf16.gmra.mxu0 %v2882
        %v4086 = vpop.f32.mrf.mxu0
        %v4087 = vadd.f32 %v4038, %v4086
        %v4088 = vpop.f32.mrf.mxu0
        %v4089 = vadd.f32 %v4040, %v4088
        %4090 = vmatmul.bf16.gmra.mxu0 %v2883
        %v4091 = vpop.f32.mrf.mxu0
        %v4092 = vadd.f32 %v4043, %v4091
        %v4093 = vpop.f32.mrf.mxu0
        %v4094 = vadd.f32 %v4045, %v4093
        %4095 = vmatmul.bf16.gmra.mxu0 %v2884
        %v4096 = vpop.f32.mrf.mxu0
        %v4097 = vadd.f32 %v4048, %v4096
        %v4098 = vpop.f32.mrf.mxu0
        %v4099 = vadd.f32 %v4050, %v4098
        %4100 = vmatmul.bf16.gmra.mxu0 %v2885
        %v4101 = vpop.f32.mrf.mxu0
        %v4102 = vadd.f32 %v4053, %v4101
        %v4103 = vpop.f32.mrf.mxu0
        %v4104 = vadd.f32 %v4055, %v4103
        %4105 = vmatmul.bf16.gmra.mxu0 %v2886
        %v4106 = vpop.f32.mrf.mxu0
        %v4107 = vadd.f32 %v4058, %v4106
        %v4108 = vpop.f32.mrf.mxu0
        %v4109 = vadd.f32 %v4060, %v4108
        %4110 = vmatmul.bf16.gmra.mxu0 %v2887
        %v4111 = vpop.f32.mrf.mxu0
        %v4112 = vadd.f32 %v4063, %v4111
        %v4113 = vpop.f32.mrf.mxu0
        %v4114 = vadd.f32 %v4065, %v4113
        %4115 = vdwg.mxu0
        %4116 = vmatpush.bf16.msra.mxu0 %v3977
        %4117 = vmatpush.bf16.msra.mxu0 %v3976
        %4118 = vmatpush.bf16.msra.mxu0 %v3975
        %4119 = vmatpush.bf16.msra.mxu0 %v3974
        %4120 = vmatpush.bf16.msra.mxu0 %v3973
        %4121 = vmatpush.bf16.msra.mxu0 %v3972
        %4122 = vmatpush.bf16.msra.mxu0 %v3971
        %4123 = vmatpush.bf16.msra.mxu0 %v3970
        %4124 = vmatmul.bf16.gmra.mxu0 %v3745
        %v4125 = vpop.f32.mrf.mxu0
        %v4126 = vadd.f32 %v4077, %v4125
        %v4127 = vpop.f32.mrf.mxu0
        %v4128 = vadd.f32 %v4079, %v4127
        %4129 = vmatmul.bf16.gmra.mxu0 %v3746
        %v4130 = vpop.f32.mrf.mxu0
        %v4131 = vadd.f32 %v4082, %v4130
        %v4132 = vpop.f32.mrf.mxu0
        %v4133 = vadd.f32 %v4084, %v4132
        %4134 = vmatmul.bf16.gmra.mxu0 %v3747
        %v4135 = vpop.f32.mrf.mxu0
        %v4136 = vadd.f32 %v4087, %v4135
        %v4137 = vpop.f32.mrf.mxu0
        %v4138 = vadd.f32 %v4089, %v4137
        %4139 = vmatmul.bf16.gmra.mxu0 %v3748
        %v4140 = vpop.f32.mrf.mxu0
        %v4141 = vadd.f32 %v4092, %v4140
        %v4142 = vpop.f32.mrf.mxu0
        %v4143 = vadd.f32 %v4094, %v4142
        %4144 = vmatmul.bf16.gmra.mxu0 %v3749
        %v4145 = vpop.f32.mrf.mxu0
        %v4146 = vadd.f32 %v4097, %v4145
        %v4147 = vpop.f32.mrf.mxu0
        %v4148 = vadd.f32 %v4099, %v4147
        %4149 = vmatmul.bf16.gmra.mxu0 %v3750
        %v4150 = vpop.f32.mrf.mxu0
        %v4151 = vadd.f32 %v4102, %v4150
        %v4152 = vpop.f32.mrf.mxu0
        %v4153 = vadd.f32 %v4104, %v4152
        %4154 = vmatmul.bf16.gmra.mxu0 %v3751
        %v4155 = vpop.f32.mrf.mxu0
        %v4156 = vadd.f32 %v4107, %v4155
        %v4157 = vpop.f32.mrf.mxu0
        %v4158 = vadd.f32 %v4109, %v4157
        %4159 = vmatmul.bf16.gmra.mxu0 %v3752
        %v4160 = vpop.f32.mrf.mxu0
        %v4161 = vadd.f32 %v4112, %v4160
        %v4162 = vpop.f32.mrf.mxu0
        %v4163 = vadd.f32 %v4114, %v4162
        %4164 = vdwg.mxu0
        %4165 = vmatpush.bf16.msra.mxu0 %v3985
        %4166 = vmatpush.bf16.msra.mxu0 %v3984
        %4167 = vmatpush.bf16.msra.mxu0 %v3983
        %4168 = vmatpush.bf16.msra.mxu0 %v3982
        %4169 = vmatpush.bf16.msra.mxu0 %v3981
        %4170 = vmatpush.bf16.msra.mxu0 %v3980
        %4171 = vmatpush.bf16.msra.mxu0 %v3979
        %4172 = vmatpush.bf16.msra.mxu0 %v3978
        %4173 = vmatmul.bf16.gmra.mxu0 %v2960
        %v4174 = vpop.f32.mrf.mxu0
        %v4175 = vadd.f32 %v4126, %v4174
        %v4176 = vpop.f32.mrf.mxu0
        %v4177 = vadd.f32 %v4128, %v4176
        %4178 = vmatmul.bf16.gmra.mxu0 %v2961
        %v4179 = vpop.f32.mrf.mxu0
        %v4180 = vadd.f32 %v4131, %v4179
        %v4181 = vpop.f32.mrf.mxu0
        %v4182 = vadd.f32 %v4133, %v4181
        %4183 = vmatmul.bf16.gmra.mxu0 %v2962
        %v4184 = vpop.f32.mrf.mxu0
        %v4185 = vadd.f32 %v4136, %v4184
        %v4186 = vpop.f32.mrf.mxu0
        %v4187 = vadd.f32 %v4138, %v4186
        %4188 = vmatmul.bf16.gmra.mxu0 %v2963
        %v4189 = vpop.f32.mrf.mxu0
        %v4190 = vadd.f32 %v4141, %v4189
        %v4191 = vpop.f32.mrf.mxu0
        %v4192 = vadd.f32 %v4143, %v4191
        %4193 = vmatmul.bf16.gmra.mxu0 %v2964
        %v4194 = vpop.f32.mrf.mxu0
        %v4195 = vadd.f32 %v4146, %v4194
        %v4196 = vpop.f32.mrf.mxu0
        %v4197 = vadd.f32 %v4148, %v4196
        %4198 = vmatmul.bf16.gmra.mxu0 %v2965
        %v4199 = vpop.f32.mrf.mxu0
        %v4200 = vadd.f32 %v4151, %v4199
        %v4201 = vpop.f32.mrf.mxu0
        %v4202 = vadd.f32 %v4153, %v4201
        %4203 = vmatmul.bf16.gmra.mxu0 %v2966
        %v4204 = vpop.f32.mrf.mxu0
        %v4205 = vadd.f32 %v4156, %v4204
        %v4206 = vpop.f32.mrf.mxu0
        %v4207 = vadd.f32 %v4158, %v4206
        %4208 = vmatmul.bf16.gmra.mxu0 %v2967
        %v4209 = vpop.f32.mrf.mxu0
        %v4210 = vadd.f32 %v4161, %v4209
        %v4211 = vpop.f32.mrf.mxu0
        %v4212 = vadd.f32 %v4163, %v4211
        %4213 = vdwg.mxu0
        %v4214 = vadd.f32 %v4175, %v4177
        %v4215 = vadd.f32 %v4214, %v4180
        %v4216 = vadd.f32 %v4215, %v4182
        %v4217 = vadd.f32 %v4216, %v4185
        %v4218 = vadd.f32 %v4217, %v4187
        %v4219 = vadd.f32 %v4218, %v4190
        %v4220 = vadd.f32 %v4219, %v4192
        %v4221 = vadd.f32 %v4220, %v4195
        %v4222 = vadd.f32 %v4221, %v4197
        %v4223 = vadd.f32 %v4222, %v4200
        %v4224 = vadd.f32 %v4223, %v4202
        %v4225 = vadd.f32 %v4224, %v4205
        %v4226 = vadd.f32 %v4225, %v4207
        %v4227 = vadd.f32 %v4226, %v4210
        %v4228 = vadd.f32 %v4227, %v4212
        %v4229 = vrot.slane %v4228, 4
        %v4230 = vadd.f32 %v4228, %v4229
        %v4231 = vrot.slane %v4230, 2
        %v4232 = vadd.f32 %v4230, %v4231
        %v4233 = vrot.slane %v4232, 1
        %v4234 = vadd.f32 %v4232, %v4233
        %v4235 = vadd.f32 %v3498, %v4234
        %v4236 = vmul.f32 %v4175, %v4175
        %v4237 = vmul.f32 %v4177, %v4177
        %v4238 = vmul.f32 %v4180, %v4180
        %v4239 = vmul.f32 %v4182, %v4182
        %v4240 = vmul.f32 %v4185, %v4185
        %v4241 = vmul.f32 %v4187, %v4187
        %v4242 = vmul.f32 %v4190, %v4190
        %v4243 = vmul.f32 %v4192, %v4192
        %v4244 = vmul.f32 %v4195, %v4195
        %v4245 = vmul.f32 %v4197, %v4197
        %v4246 = vmul.f32 %v4200, %v4200
        %v4247 = vmul.f32 %v4202, %v4202
        %v4248 = vmul.f32 %v4205, %v4205
        %v4249 = vmul.f32 %v4207, %v4207
        %v4250 = vmul.f32 %v4210, %v4210
        %v4251 = vmul.f32 %v4212, %v4212
        %v4252 = vadd.f32 %v4236, %v4237
        %v4253 = vadd.f32 %v4252, %v4238
        %v4254 = vadd.f32 %v4253, %v4239
        %v4255 = vadd.f32 %v4254, %v4240
        %v4256 = vadd.f32 %v4255, %v4241
        %v4257 = vadd.f32 %v4256, %v4242
        %v4258 = vadd.f32 %v4257, %v4243
        %v4259 = vadd.f32 %v4258, %v4244
        %v4260 = vadd.f32 %v4259, %v4245
        %v4261 = vadd.f32 %v4260, %v4246
        %v4262 = vadd.f32 %v4261, %v4247
        %v4263 = vadd.f32 %v4262, %v4248
        %v4264 = vadd.f32 %v4263, %v4249
        %v4265 = vadd.f32 %v4264, %v4250
        %v4266 = vadd.f32 %v4265, %v4251
        %v4267 = vrot.slane %v4266, 4
        %v4268 = vadd.f32 %v4266, %v4267
        %v4269 = vrot.slane %v4268, 2
        %v4270 = vadd.f32 %v4268, %v4269
        %v4271 = vrot.slane %v4270, 1
        %v4272 = vadd.f32 %v4270, %v4271
        %v4273 = vadd.f32 %v3536, %v4272
        %s4274 = scalar_lea.vmem %s541, 32
        %4275 = vst [vmem:[%s4274] sm:$0xff] %v3438
        %4276 = vst [vmem:[%s4274 + $0x8] sm:$0xff] %v4175
        %4277 = vst [vmem:[%s4274 + $0x10] sm:$0xff] %v3440
        %4278 = vst [vmem:[%s4274 + $0x18] sm:$0xff] %v4177
        %4279 = vst [vmem:[%s4274 + $0x40] sm:$0xff] %v3443
        %4280 = vst [vmem:[%s4274 + $0x48] sm:$0xff] %v4180
        %4281 = vst [vmem:[%s4274 + $0x50] sm:$0xff] %v3445
        %4282 = vst [vmem:[%s4274 + $0x58] sm:$0xff] %v4182
        %4283 = vst [vmem:[%s4274 + $0x80] sm:$0xff] %v3448
        %4284 = vst [vmem:[%s4274 + $0x88] sm:$0xff] %v4185
        %4285 = vst [vmem:[%s4274 + $0x90] sm:$0xff] %v3450
        %4286 = vst [vmem:[%s4274 + $0x98] sm:$0xff] %v4187
        %4287 = vst [vmem:[%s4274 + $0xc0] sm:$0xff] %v3453
        %4288 = vst [vmem:[%s4274 + $0xc8] sm:$0xff] %v4190
        %4289 = vst [vmem:[%s4274 + $0xd0] sm:$0xff] %v3455
        %4290 = vst [vmem:[%s4274 + $0xd8] sm:$0xff] %v4192
        %4291 = vst [vmem:[%s4274 + $0x100] sm:$0xff] %v3458
        %4292 = vst [vmem:[%s4274 + $0x108] sm:$0xff] %v4195
        %4293 = vst [vmem:[%s4274 + $0x110] sm:$0xff] %v3460
        %4294 = vst [vmem:[%s4274 + $0x118] sm:$0xff] %v4197
        %4295 = vst [vmem:[%s4274 + $0x140] sm:$0xff] %v3463
        %4296 = vst [vmem:[%s4274 + $0x148] sm:$0xff] %v4200
        %4297 = vst [vmem:[%s4274 + $0x150] sm:$0xff] %v3465
        %4298 = vst [vmem:[%s4274 + $0x158] sm:$0xff] %v4202
        %4299 = vst [vmem:[%s4274 + $0x180] sm:$0xff] %v3468
        %4300 = vst [vmem:[%s4274 + $0x188] sm:$0xff] %v4205
        %4301 = vst [vmem:[%s4274 + $0x190] sm:$0xff] %v3470
        %4302 = vst [vmem:[%s4274 + $0x198] sm:$0xff] %v4207
        %4303 = vst [vmem:[%s4274 + $0x1c0] sm:$0xff] %v3473
        %4304 = vst [vmem:[%s4274 + $0x1c8] sm:$0xff] %v4210
        %4305 = vst [vmem:[%s4274 + $0x1d0] sm:$0xff] %v3475
        %4306 = vst [vmem:[%s4274 + $0x1d8] sm:$0xff] %v4212
        %vm4307 = vcmask 1040384
        %v4308 = vsel %vm4307, %v4235, %v4273
        %4309 = vst [vmem:[%s550] sm:$0x3] %v4308
        %s4310 = smul.u32 8, %s20
        %p4311 = scmp.lt.s32.totalorder %s19, 1
        %s4312 = scalar_select %p4311, %s19, 1
        %p4313 = scmp.lt.s32.totalorder %s4310, 15
        %s4314 = scalar_select %p4313, %s4310, 15
        %s4315 = smul.addr %s4314, 8
        %s4316 = smul.addr %s4312, 128
        %s4317 = sadd.s32 %s4315, %s4316
        %s4318 = smul.addr %s4317, 8
        %s4319 = scalar_lea.vmem %s2, %s4318
        %p4320 = scmp.lt.s32.totalorder %s19, 1
        %s4321 = scalar_select %p4320, %s19, 1
        %p4322 = scmp.lt.s32.totalorder %s20, 1
        %s4323 = scalar_select %p4322, %s20, 1
        %s4324 = smul.addr %s4321, 2
        %s4325 = sadd.s32 %s4323, %s4324
        %s4326 = smul.addr %s4325, 2
        %s4327 = scalar_lea.vmem %s3, %s4326
        // Predicated region
        $region70: #{decoder_block_forward.6} parent=64 // pred_check
          %p4328 = pneg %p96
        $region71: #{decoder_block_forward.6} parent=64 // pred_check_branch
          %4330 = sbr.rel (%p4328) target = $region73
        $region72: #{decoder_block_forward.6} parent=64 // pred_region
          %s4331 = smul.u32 8, %s20
        $region73: #{decoder_block_forward.6} parent=64 // pred_fallthru
          _
        // Predicated region
        $region74: #{decoder_block_forward.6} parent=64 // pred_check
          %p4332 = pneg %p124
        $region75: #{decoder_block_forward.6} parent=64 // pred_check_branch
          %4334 = sbr.rel (%p4332) target = $region77
        $region76: #{decoder_block_forward.6} parent=64 // pred_region
          _
        $region77: #{decoder_block_forward.6} parent=64 // pred_fallthru
          _
      $region65: #{decoder_block_forward.6} parent=5 // pred_fallthru
        _
      %p4335 = scmp.le.s32.totalorder 2, %s10
      // Predicated region
      $region78: #{decoder_block_forward.6} parent=5 // pred_check
        %p4336 = pneg %p4335
      $region79: #{decoder_block_forward.6} parent=5 // pred_check_branch
        %4338 = sbr.rel (%p4336) target = $region81
      $region80: #{decoder_block_forward.6} parent=5 // pred_region
        %s4339 = ssub.s32 %s10, 2
        // Predicated region
        $region82: #{decoder_block_forward.6} parent=80 // pred_check
          %p4340 = pneg %p102
        $region83: #{decoder_block_forward.6} parent=80 // pred_check_branch
          %4342 = sbr.rel (%p4340) target = $region85
        $region84: #{decoder_block_forward.6} parent=80 // pred_region
          %s4343 = smul.u32 8, %s22
          %p4344 = scmp.lt.s32.totalorder %s21, 1
          %s4345 = scalar_select %p4344, %s21, 1
          %p4346 = scmp.lt.s32.totalorder %s4343, 15
          %s4347 = scalar_select %p4346, %s4343, 15
          %s4348 = smul.addr %s4347, 8
          %s4349 = smul.addr %s4345, 128
          %s4350 = sadd.s32 %s4348, %s4349
          %s4351 = smul.addr %s4350, 8
          %s4352 = scalar_lea.vmem %s2, %s4351
        $region85: #{decoder_block_forward.6} parent=80 // pred_fallthru
          _
        // Predicated region
        $region86: #{decoder_block_forward.6} parent=80 // pred_check
          %p4353 = pneg %p130
        $region87: #{decoder_block_forward.6} parent=80 // pred_check_branch
          %4355 = sbr.rel (%p4353) target = $region89
        $region88: #{decoder_block_forward.6} parent=80 // pred_region
          %p4356 = scmp.lt.s32.totalorder %s21, 1
          %s4357 = scalar_select %p4356, %s21, 1
          %p4358 = scmp.lt.s32.totalorder %s22, 1
          %s4359 = scalar_select %p4358, %s22, 1
          %s4360 = smul.addr %s4357, 2
          %s4361 = sadd.s32 %s4359, %s4360
          %s4362 = smul.addr %s4361, 2
          %s4363 = scalar_lea.vmem %s3, %s4362
        $region89: #{decoder_block_forward.6} parent=80 // pred_fallthru
          _
      $region81: #{decoder_block_forward.6} parent=5 // pred_fallthru
        _
    $region6: #{decoder_block_forward.6} parent=1 // loop_footer
      %s14 = sadd.s32 1, %s10
    $region7: #{decoder_block_forward.6} parent=1 // loop_footer_branch
      %9 = sbr.rel target = $region3
    $region8: #{decoder_block_forward.6} parent=1 // loop_exit
      _

</llo_original>
